<compile_context>
chip_gen: v5e
topology: v5e:2x2
jax: 0.10.0
libtpu: 0.0.40
codegen_flags: <defaults>
</compile_context>

<pallas_src>
import functools

import jax
import jax.numpy as jnp
from jax.experimental import pallas as pl
from jax.experimental.pallas import tpu as pltpu


H = 256            # hidden size (img_fc out, embedding dim, GRU hidden)
F1 = 128           # fc1 out
IMG_DIM = 2048     # img_fc in
TV_MAX = 2048      # max vocab tile width (lanes) for the fc2 grid axis


def _round_up(x, m):
    return (x + m - 1) // m * m


# ---------------------------------------------------------------------------
# Kernel A: everything up to (and including) fc1.  No grid.
# ---------------------------------------------------------------------------
def prefc2_kernel(
    seq_ref,     # (T*B, 1)     i32   time-major flattened token ids
    image_ref,   # (B, 2048)    f32
    w_img_ref,   # (2048, 256)  bf16  (transposed Linear weight)
    b_img_ref,   # (1, 256)     f32
    emb_ref,     # (V_emb, 256) bf16
    w_ih_ref,    # (256, 768)   bf16  (transposed GRU weight_ih, [r|z|n])
    b_ih_ref,    # (1, 768)     f32
    w_hh_ref,    # (256, 768)   bf16
    b_hh_ref,    # (1, 768)     f32
    w1_ref,      # (256, 128)   bf16
    b1_ref,      # (1, 128)     f32
    x_ref,       # (B, 128)     bf16  output (fc1 activations)
    gx_ref,      # ((T+1)*B, 768) f32 scratch (batched GRU input projections)
):
    B = image_ref.shape[0]
    TB = seq_ref.shape[0]
    T = TB // B
    V = emb_ref.shape[0]

    # ---- img_feat = relu(image @ W_img + b_img) (bf16 x bf16 on MXU) ------
    img_feat = jnp.maximum(
        jnp.dot(image_ref[...].astype(jnp.bfloat16), w_img_ref[...],
                preferred_element_type=jnp.float32) + b_img_ref[...],
        0.0,
    )                                                        # (B, 256) f32

    # ---- vectorized embedding gather: one-hot @ emb on the MXU ------------
    # One-hot entries are exactly representable in bf16, so the gather is
    # bit-exact row selection of the bf16 embedding table.
    # TODO(synk): for production vocab sizes, DMA-gather just the T*B rows
    # from an HBM-resident table instead of a full-vocab one-hot matmul.
    ids = seq_ref[...]                                       # (T*B, 1) i32
    iota_v = jax.lax.broadcasted_iota(jnp.int32, (TB, V), 1)
    onehot = jnp.where(ids == iota_v, 1.0, 0.0).astype(jnp.bfloat16)
    emb_rows = jnp.dot(onehot, emb_ref[...],
                       preferred_element_type=jnp.float32)   # (T*B, 256) f32

    # ---- batched GRU input projections for all steps -> VMEM scratch ------
    gx_ref[pl.ds(0, B), :] = (
        jnp.dot(img_feat.astype(jnp.bfloat16), w_ih_ref[...],
                preferred_element_type=jnp.float32) + b_ih_ref[...]
    )
    gx_ref[pl.ds(B, TB), :] = (
        jnp.dot(emb_rows.astype(jnp.bfloat16), w_ih_ref[...],
                preferred_element_type=jnp.float32) + b_ih_ref[...]
    )

    # ---- recurrence: only the small gh matmul sits on the serial chain ----
    h = jnp.zeros((B, H), jnp.float32)
    for t in range(T + 1):                       # static unroll, T is small
        gx = gx_ref[pl.ds(t * B, B), :]                       # (B, 768)
        gh = jnp.dot(h.astype(jnp.bfloat16), w_hh_ref[...],
                     preferred_element_type=jnp.float32) + b_hh_ref[...]
        r = jax.nn.sigmoid(gx[:, 0 * H:1 * H] + gh[:, 0 * H:1 * H])
        z = jax.nn.sigmoid(gx[:, 1 * H:2 * H] + gh[:, 1 * H:2 * H])
        n = jnp.tanh(gx[:, 2 * H:3 * H] + r * gh[:, 2 * H:3 * H])
        h = (1.0 - z) * n + z * h

    # ---- head part 1: (gru_out[:, -1] + img_feat) -> fc1 -> relu ----------
    x = jnp.maximum(
        jnp.dot((h + img_feat).astype(jnp.bfloat16), w1_ref[...],
                preferred_element_type=jnp.float32) + b1_ref[...],
        0.0,
    )
    x_ref[...] = x.astype(jnp.bfloat16)


# ---------------------------------------------------------------------------
# Kernel B: fc2 over a (tile of the) vocab.
# ---------------------------------------------------------------------------
def fc2_kernel(x_ref, w2_ref, b2_ref, out_ref):
    out_ref[...] = (
        jnp.dot(x_ref[...], w2_ref[...], preferred_element_type=jnp.float32)
        + b2_ref[...]
    )


# ---------------------------------------------------------------------------
# Wrapper
# ---------------------------------------------------------------------------
def caption_model_pallas(image, sequence, prepared):
    p = prepared
    B, T = sequence.shape
    B_pad = max(8, _round_up(B, 8))

    V = p["vocab_size"]
    tv = p["tv"]
    V_pad = p["w2"].shape[1]
    n_vt = V_pad // tv

    image_p = jnp.zeros((B_pad, IMG_DIM), jnp.float32).at[:B].set(image)
    seq_p = jnp.zeros((B_pad, T), jnp.int32).at[:B].set(sequence)
    # Time-major flattened ids: row t*B_pad + b holds sequence[b, t].
    seq_tm = seq_p.T.reshape(T * B_pad, 1)

    vmem = functools.partial(pl.BlockSpec, memory_space=pltpu.MemorySpace.VMEM)

    # ---- kernel A: through fc1 --------------------------------------------
    x = pl.pallas_call(
        prefc2_kernel,
        out_shape=jax.ShapeDtypeStruct((B_pad, F1), jnp.bfloat16),
        in_specs=[vmem() for _ in range(11)],
        out_specs=vmem(),
        scratch_shapes=[pltpu.VMEM(((T + 1) * B_pad, 3 * H), jnp.float32)],
        compiler_params=pltpu.CompilerParams(vmem_limit_bytes=32 << 20),
    )(
        seq_tm, image_p,
        p["w_img"], p["b_img"], p["emb"],
        p["w_ih"], p["b_ih"], p["w_hh"], p["b_hh"],
        p["w1"], p["b1"],
    )

    # ---- kernel B: fc2 (vocab-tiled; gridless when one tile suffices) -----
    if n_vt == 1:
        out = pl.pallas_call(
            fc2_kernel,
            out_shape=jax.ShapeDtypeStruct((B_pad, V_pad), jnp.float32),
            in_specs=[vmem(), vmem(), vmem()],
            out_specs=vmem(),
            compiler_params=pltpu.CompilerParams(vmem_limit_bytes=32 << 20),
        )(x, p["w2"], p["b2"])
    else:
        out = pl.pallas_call(
            fc2_kernel,
            out_shape=jax.ShapeDtypeStruct((B_pad, V_pad), jnp.float32),
            grid=(n_vt,),
            in_specs=[
                pl.BlockSpec((B_pad, F1), lambda j: (0, 0)),   # grid-invariant
                pl.BlockSpec((F1, tv), lambda j: (0, j)),      # w2 vocab tile
                pl.BlockSpec((1, tv), lambda j: (0, j)),       # b2 vocab tile
            ],
            out_specs=pl.BlockSpec((B_pad, tv), lambda j: (0, j)),
            compiler_params=pltpu.CompilerParams(
                dimension_semantics=("parallel",),   # shard vocab tiles over TCs
                vmem_limit_bytes=32 << 20,
            ),
        )(x, p["w2"], p["b2"])

    return out[:B, :V]


# ---------------------------------------------------------------------------
# Reference (pure JAX, f32, mirrors the PyTorch forward; dropout = identity)
# ---------------------------------------------------------------------------
def caption_model_ref(image, sequence, params):
    p = {k: v.astype(jnp.float32) for k, v in params.items()}
    img_feat = jax.nn.relu(image @ p["w_img"] + p["b_img"])               # (B,256)
    seq_embed = p["emb"][sequence]                                        # (B,T,256)
    merged = jnp.concatenate([img_feat[:, None, :], seq_embed], axis=1)   # (B,T+1,256)

    def step(h, x_t):
        gx = x_t @ p["w_ih"] + p["b_ih"]
        gh = h @ p["w_hh"] + p["b_hh"]
        r = jax.nn.sigmoid(gx[:, :H] + gh[:, :H])
        z = jax.nn.sigmoid(gx[:, H:2 * H] + gh[:, H:2 * H])
        n = jnp.tanh(gx[:, 2 * H:] + r * gh[:, 2 * H:])
        return (1.0 - z) * n + z * h, None

    h0 = jnp.zeros((image.shape[0], H), jnp.float32)
    h_last, _ = jax.lax.scan(step, h0, jnp.swapaxes(merged, 0, 1))
    x = h_last + img_feat
    x = jax.nn.relu(x @ p["w1"] + p["b1"])
    return x @ p["w2"] + p["b2"]


# ---------------------------------------------------------------------------
# Parameters
# ---------------------------------------------------------------------------
def init_params(key, vocab_size):
    ks = jax.random.split(key, 9)
    scale = 0.05
    bf = jnp.bfloat16
    # Matmul weights stored pre-transposed (in_features, out_features), bf16;
    # biases f32.  Embedding table also bf16 (gather via one-hot is exact).
    return {
        "w_img": (scale * jax.random.normal(ks[0], (IMG_DIM, H))).astype(bf),
        "b_img": scale * jax.random.normal(ks[1], (1, H), jnp.float32),
        "emb":   (scale * jax.random.normal(ks[2], (vocab_size, H))).astype(bf),
        # GRU weights, gate order [r | z | n] (PyTorch convention).
        "w_ih":  (scale * jax.random.normal(ks[3], (H, 3 * H))).astype(bf),
        "b_ih":  scale * jax.random.normal(ks[4], (1, 3 * H), jnp.float32),
        "w_hh":  (scale * jax.random.normal(ks[5], (H, 3 * H))).astype(bf),
        "b_hh":  scale * jax.random.normal(ks[6], (1, 3 * H), jnp.float32),
        "w1":    (scale * jax.random.normal(ks[7], (H, F1))).astype(bf),
        "b1":    jnp.zeros((1, F1), jnp.float32),
        "w2":    (scale * jax.random.normal(ks[8], (F1, vocab_size))).astype(bf),
        "b2":    jnp.zeros((1, vocab_size), jnp.float32),
    }


def prepare_params(params, tv_max=TV_MAX):
    """One-time padding of kernel-side params (hoisted out of the forward)."""
    V = params["w2"].shape[1]
    tv = min(tv_max, _round_up(V, 128))
    V_pad = _round_up(V, tv)
    V_emb_pad = _round_up(params["emb"].shape[0], 8)

    p = dict(params)
    p["w2"] = jnp.zeros((F1, V_pad), params["w2"].dtype).at[:, :V].set(params["w2"])
    p["b2"] = jnp.zeros((1, V_pad), jnp.float32).at[:, :V].set(params["b2"])
    p["emb"] = (jnp.zeros((V_emb_pad, H), params["emb"].dtype)
                .at[:params["emb"].shape[0]].set(params["emb"]))
    p["tv"] = tv
    p["vocab_size"] = V
    return p


if __name__ == "__main__":
    B, T = 2, 8
    key = jax.random.PRNGKey(0)
    k_img, k_seq1, k_par1, k_seq2, k_par2 = jax.random.split(key, 5)

    image = jax.random.normal(k_img, (B, IMG_DIM), jnp.float32)

    # bf16 activations on the MXU add a small rounding drift vs the f32
    # reference, so the tolerance is 5e-2 (weights are bf16 in both paths).
    def check(seq, raw_params):
        prepared = prepare_params(raw_params)
        out = jax.block_until_ready(caption_model_pallas(image, seq, prepared))
        ref = jax.block_until_ready(caption_model_ref(image, seq, raw_params))
        assert out.shape == ref.shape, (out.shape, ref.shape)
        err = float(jnp.max(jnp.abs(out - ref)))
        assert jnp.allclose(out, ref, rtol=5e-2, atol=5e-2), f"max abs diff = {err}"

    # Case 1: small vocab -> single fc2 tile (gridless fc2 kernel).
    V1 = 512
    seq1 = jax.random.randint(k_seq1, (B, T), 0, V1, jnp.int32)
    check(seq1, init_params(k_par1, V1))

    # Case 2: larger vocab -> vocab-tiled fc2 with a parallel grid axis.
    V2 = 4096
    seq2 = jax.random.randint(k_seq2, (B, T), 0, V2, jnp.int32)
    check(seq2, init_params(k_par2, V2))

    print("KERNEL_OK")
</pallas_src>

<mosaic_0001>
module attributes {stable_mosaic.version = 11 : i64} {
  func.func @prefc2_kernel(%arg0: memref<64x1xi32, #tpu.memory_space<vmem>>, %arg1: memref<8x2048xf32, #tpu.memory_space<vmem>>, %arg2: memref<2048x256xbf16, #tpu.memory_space<vmem>>, %arg3: memref<1x256xf32, #tpu.memory_space<vmem>>, %arg4: memref<512x256xbf16, #tpu.memory_space<vmem>>, %arg5: memref<256x768xbf16, #tpu.memory_space<vmem>>, %arg6: memref<1x768xf32, #tpu.memory_space<vmem>>, %arg7: memref<256x768xbf16, #tpu.memory_space<vmem>>, %arg8: memref<1x768xf32, #tpu.memory_space<vmem>>, %arg9: memref<256x128xbf16, #tpu.memory_space<vmem>>, %arg10: memref<1x128xf32, #tpu.memory_space<vmem>>, %arg11: memref<8x128xbf16, #tpu.memory_space<vmem>>, %arg12: memref<72x768xf32, #tpu.memory_space<vmem>>) attributes {dimension_semantics = [], scalar_prefetch = 0 : i64, scratch_operands = 1 : i64, tpu.core_type = #tpu.core_type<tc>} {
    %c0 = arith.constant 0 : index
    %c0_0 = arith.constant 0 : index
    %0 = vector.load %arg1[%c0, %c0_0] : memref<8x2048xf32, #tpu.memory_space<vmem>>, vector<8x2048xf32>
    %1 = arith.truncf %0 : vector<8x2048xf32> to vector<8x2048xbf16>
    %c0_1 = arith.constant 0 : index
    %c0_2 = arith.constant 0 : index
    %2 = vector.load %arg2[%c0_1, %c0_2] : memref<2048x256xbf16, #tpu.memory_space<vmem>>, vector<2048x256xbf16>
    %cst = arith.constant dense<0.000000e+00> : vector<8x256xf32>
    %3 = tpu.matmul %1, %2, %cst {dimension_numbers = #tpu.dot_dimension_numbers<[1], [0], [0], [1], [0, 0, 1, 1], [], []>} : vector<8x2048xbf16>, vector<2048x256xbf16>, vector<8x256xf32> -> vector<8x256xf32>
    %c0_3 = arith.constant 0 : index
    %c0_4 = arith.constant 0 : index
    %4 = vector.load %arg3[%c0_3, %c0_4] : memref<1x256xf32, #tpu.memory_space<vmem>>, vector<1x256xf32>
    %5 = vector.broadcast %4 : vector<1x256xf32> to vector<8x256xf32>
    %6 = arith.addf %3, %5 : vector<8x256xf32>
    %cst_5 = arith.constant 0.000000e+00 : f32
    %7 = vector.broadcast %cst_5 : f32 to vector<8x256xf32>
    %8 = arith.maximumf %6, %7 : vector<8x256xf32>
    %c0_6 = arith.constant 0 : index
    %c0_7 = arith.constant 0 : index
    %9 = vector.load %arg0[%c0_6, %c0_7] : memref<64x1xi32, #tpu.memory_space<vmem>>, vector<64x1xi32>
    %10 = tpu.iota {dimensions = array<i32: 1>} : vector<64x512xi32>
    %11 = vector.broadcast %9 : vector<64x1xi32> to vector<64x512xi32>
    %12 = arith.cmpi eq, %11, %10 : vector<64x512xi32>
    %cst_8 = arith.constant 1.000000e+00 : f32
    %cst_9 = arith.constant 0.000000e+00 : f32
    %13 = vector.broadcast %cst_8 : f32 to vector<64x512xf32>
    %14 = vector.broadcast %cst_9 : f32 to vector<64x512xf32>
    %15 = arith.select %12, %13, %14 : vector<64x512xi1>, vector<64x512xf32>
    %16 = arith.truncf %15 : vector<64x512xf32> to vector<64x512xbf16>
    %c0_10 = arith.constant 0 : index
    %c0_11 = arith.constant 0 : index
    %17 = vector.load %arg4[%c0_10, %c0_11] : memref<512x256xbf16, #tpu.memory_space<vmem>>, vector<512x256xbf16>
    %cst_12 = arith.constant dense<0.000000e+00> : vector<64x256xf32>
    %18 = tpu.matmul %16, %17, %cst_12 {dimension_numbers = #tpu.dot_dimension_numbers<[1], [0], [0], [1], [0, 0, 1, 1], [], []>} : vector<64x512xbf16>, vector<512x256xbf16>, vector<64x256xf32> -> vector<64x256xf32>
    %19 = arith.truncf %8 : vector<8x256xf32> to vector<8x256xbf16>
    %c0_13 = arith.constant 0 : index
    %c0_14 = arith.constant 0 : index
    %20 = vector.load %arg5[%c0_13, %c0_14] : memref<256x768xbf16, #tpu.memory_space<vmem>>, vector<256x768xbf16>
    %cst_15 = arith.constant dense<0.000000e+00> : vector<8x768xf32>
    %21 = tpu.matmul %19, %20, %cst_15 {dimension_numbers = #tpu.dot_dimension_numbers<[1], [0], [0], [1], [0, 0, 1, 1], [], []>} : vector<8x256xbf16>, vector<256x768xbf16>, vector<8x768xf32> -> vector<8x768xf32>
    %c0_16 = arith.constant 0 : index
    %c0_17 = arith.constant 0 : index
    %22 = vector.load %arg6[%c0_16, %c0_17] : memref<1x768xf32, #tpu.memory_space<vmem>>, vector<1x768xf32>
    %23 = vector.broadcast %22 : vector<1x768xf32> to vector<8x768xf32>
    %24 = arith.addf %21, %23 : vector<8x768xf32>
    %c0_18 = arith.constant 0 : index
    %c0_19 = arith.constant 0 : index
    %25 = vector.load %arg12[%c0_18, %c0_19] : memref<72x768xf32, #tpu.memory_space<vmem>>, vector<8x768xf32>
    tpu.vector_store %arg12[%c0_18, %c0_19], %24 {strides = array<i32>} : memref<72x768xf32, #tpu.memory_space<vmem>>, vector<8x768xf32>,
    %26 = arith.truncf %18 : vector<64x256xf32> to vector<64x256xbf16>
    %c0_20 = arith.constant 0 : index
    %c0_21 = arith.constant 0 : index
    %27 = vector.load %arg5[%c0_20, %c0_21] : memref<256x768xbf16, #tpu.memory_space<vmem>>, vector<256x768xbf16>
    %cst_22 = arith.constant dense<0.000000e+00> : vector<64x768xf32>
    %28 = tpu.matmul %26, %27, %cst_22 {dimension_numbers = #tpu.dot_dimension_numbers<[1], [0], [0], [1], [0, 0, 1, 1], [], []>} : vector<64x256xbf16>, vector<256x768xbf16>, vector<64x768xf32> -> vector<64x768xf32>
    %c0_23 = arith.constant 0 : index
    %c0_24 = arith.constant 0 : index
    %29 = vector.load %arg6[%c0_23, %c0_24] : memref<1x768xf32, #tpu.memory_space<vmem>>, vector<1x768xf32>
    %30 = vector.broadcast %29 : vector<1x768xf32> to vector<64x768xf32>
    %31 = arith.addf %28, %30 : vector<64x768xf32>
    %c8 = arith.constant 8 : index
    %c0_25 = arith.constant 0 : index
    %32 = vector.load %arg12[%c8, %c0_25] : memref<72x768xf32, #tpu.memory_space<vmem>>, vector<64x768xf32>
    tpu.vector_store %arg12[%c8, %c0_25], %31 {strides = array<i32>} : memref<72x768xf32, #tpu.memory_space<vmem>>, vector<64x768xf32>,
    %cst_26 = arith.constant 0.000000e+00 : f32
    %33 = vector.broadcast %cst_26 : f32 to vector<8x256xf32>
    %c0_27 = arith.constant 0 : index
    %c0_28 = arith.constant 0 : index
    %34 = vector.load %arg12[%c0_27, %c0_28] : memref<72x768xf32, #tpu.memory_space<vmem>>, vector<8x768xf32>
    %35 = arith.truncf %33 : vector<8x256xf32> to vector<8x256xbf16>
    %c0_29 = arith.constant 0 : index
    %c0_30 = arith.constant 0 : index
    %36 = vector.load %arg7[%c0_29, %c0_30] : memref<256x768xbf16, #tpu.memory_space<vmem>>, vector<256x768xbf16>
    %cst_31 = arith.constant dense<0.000000e+00> : vector<8x768xf32>
    %37 = tpu.matmul %35, %36, %cst_31 {dimension_numbers = #tpu.dot_dimension_numbers<[1], [0], [0], [1], [0, 0, 1, 1], [], []>} : vector<8x256xbf16>, vector<256x768xbf16>, vector<8x768xf32> -> vector<8x768xf32>
    %c0_32 = arith.constant 0 : index
    %c0_33 = arith.constant 0 : index
    %38 = vector.load %arg8[%c0_32, %c0_33] : memref<1x768xf32, #tpu.memory_space<vmem>>, vector<1x768xf32>
    %39 = vector.broadcast %38 : vector<1x768xf32> to vector<8x768xf32>
    %40 = arith.addf %37, %39 : vector<8x768xf32>
    %41 = vector.extract_strided_slice %34 {offsets = [0, 0], sizes = [8, 256], strides = [1, 1]} : vector<8x768xf32> to vector<8x256xf32>
    %42 = vector.extract_strided_slice %40 {offsets = [0, 0], sizes = [8, 256], strides = [1, 1]} : vector<8x768xf32> to vector<8x256xf32>
    %43 = arith.addf %41, %42 : vector<8x256xf32>
    %44 = arith.negf %43 : vector<8x256xf32>
    %45 = math.exp %44 : vector<8x256xf32>
    %cst_34 = arith.constant 1.000000e+00 : f32
    %46 = vector.broadcast %cst_34 : f32 to vector<8x256xf32>
    %47 = arith.addf %46, %45 : vector<8x256xf32>
    %48 = arith.divf %46, %47 : vector<8x256xf32>
    %49 = vector.extract_strided_slice %34 {offsets = [0, 256], sizes = [8, 256], strides = [1, 1]} : vector<8x768xf32> to vector<8x256xf32>
    %50 = vector.extract_strided_slice %40 {offsets = [0, 256], sizes = [8, 256], strides = [1, 1]} : vector<8x768xf32> to vector<8x256xf32>
    %51 = arith.addf %49, %50 : vector<8x256xf32>
    %52 = arith.negf %51 : vector<8x256xf32>
    %53 = math.exp %52 : vector<8x256xf32>
    %cst_35 = arith.constant 1.000000e+00 : f32
    %54 = vector.broadcast %cst_35 : f32 to vector<8x256xf32>
    %55 = arith.addf %54, %53 : vector<8x256xf32>
    %56 = arith.divf %54, %55 : vector<8x256xf32>
    %57 = vector.extract_strided_slice %34 {offsets = [0, 512], sizes = [8, 256], strides = [1, 1]} : vector<8x768xf32> to vector<8x256xf32>
    %58 = vector.extract_strided_slice %40 {offsets = [0, 512], sizes = [8, 256], strides = [1, 1]} : vector<8x768xf32> to vector<8x256xf32>
    %59 = arith.mulf %48, %58 : vector<8x256xf32>
    %60 = arith.addf %57, %59 : vector<8x256xf32>
    %61 = math.tanh %60 : vector<8x256xf32>
    %cst_36 = arith.constant 1.000000e+00 : f32
    %62 = vector.broadcast %cst_36 : f32 to vector<8x256xf32>
    %63 = arith.subf %62, %56 : vector<8x256xf32>
    %64 = arith.mulf %63, %61 : vector<8x256xf32>
    %65 = arith.mulf %56, %33 : vector<8x256xf32>
    %66 = arith.addf %64, %65 : vector<8x256xf32>
    %c8_37 = arith.constant 8 : index
    %c0_38 = arith.constant 0 : index
    %67 = vector.load %arg12[%c8_37, %c0_38] : memref<72x768xf32, #tpu.memory_space<vmem>>, vector<8x768xf32>
    %68 = arith.truncf %66 : vector<8x256xf32> to vector<8x256xbf16>
    %c0_39 = arith.constant 0 : index
    %c0_40 = arith.constant 0 : index
    %69 = vector.load %arg7[%c0_39, %c0_40] : memref<256x768xbf16, #tpu.memory_space<vmem>>, vector<256x768xbf16>
    %cst_41 = arith.constant dense<0.000000e+00> : vector<8x768xf32>
    %70 = tpu.matmul %68, %69, %cst_41 {dimension_numbers = #tpu.dot_dimension_numbers<[1], [0], [0], [1], [0, 0, 1, 1], [], []>} : vector<8x256xbf16>, vector<256x768xbf16>, vector<8x768xf32> -> vector<8x768xf32>
    %c0_42 = arith.constant 0 : index
    %c0_43 = arith.constant 0 : index
    %71 = vector.load %arg8[%c0_42, %c0_43] : memref<1x768xf32, #tpu.memory_space<vmem>>, vector<1x768xf32>
    %72 = vector.broadcast %71 : vector<1x768xf32> to vector<8x768xf32>
    %73 = arith.addf %70, %72 : vector<8x768xf32>
    %74 = vector.extract_strided_slice %67 {offsets = [0, 0], sizes = [8, 256], strides = [1, 1]} : vector<8x768xf32> to vector<8x256xf32>
    %75 = vector.extract_strided_slice %73 {offsets = [0, 0], sizes = [8, 256], strides = [1, 1]} : vector<8x768xf32> to vector<8x256xf32>
    %76 = arith.addf %74, %75 : vector<8x256xf32>
    %77 = arith.negf %76 : vector<8x256xf32>
    %78 = math.exp %77 : vector<8x256xf32>
    %cst_44 = arith.constant 1.000000e+00 : f32
    %79 = vector.broadcast %cst_44 : f32 to vector<8x256xf32>
    %80 = arith.addf %79, %78 : vector<8x256xf32>
    %81 = arith.divf %79, %80 : vector<8x256xf32>
    %82 = vector.extract_strided_slice %67 {offsets = [0, 256], sizes = [8, 256], strides = [1, 1]} : vector<8x768xf32> to vector<8x256xf32>
    %83 = vector.extract_strided_slice %73 {offsets = [0, 256], sizes = [8, 256], strides = [1, 1]} : vector<8x768xf32> to vector<8x256xf32>
    %84 = arith.addf %82, %83 : vector<8x256xf32>
    %85 = arith.negf %84 : vector<8x256xf32>
    %86 = math.exp %85 : vector<8x256xf32>
    %cst_45 = arith.constant 1.000000e+00 : f32
    %87 = vector.broadcast %cst_45 : f32 to vector<8x256xf32>
    %88 = arith.addf %87, %86 : vector<8x256xf32>
    %89 = arith.divf %87, %88 : vector<8x256xf32>
    %90 = vector.extract_strided_slice %67 {offsets = [0, 512], sizes = [8, 256], strides = [1, 1]} : vector<8x768xf32> to vector<8x256xf32>
    %91 = vector.extract_strided_slice %73 {offsets = [0, 512], sizes = [8, 256], strides = [1, 1]} : vector<8x768xf32> to vector<8x256xf32>
    %92 = arith.mulf %81, %91 : vector<8x256xf32>
    %93 = arith.addf %90, %92 : vector<8x256xf32>
    %94 = math.tanh %93 : vector<8x256xf32>
    %cst_46 = arith.constant 1.000000e+00 : f32
    %95 = vector.broadcast %cst_46 : f32 to vector<8x256xf32>
    %96 = arith.subf %95, %89 : vector<8x256xf32>
    %97 = arith.mulf %96, %94 : vector<8x256xf32>
    %98 = arith.mulf %89, %66 : vector<8x256xf32>
    %99 = arith.addf %97, %98 : vector<8x256xf32>
    %c16 = arith.constant 16 : index
    %c0_47 = arith.constant 0 : index
    %100 = vector.load %arg12[%c16, %c0_47] : memref<72x768xf32, #tpu.memory_space<vmem>>, vector<8x768xf32>
    %101 = arith.truncf %99 : vector<8x256xf32> to vector<8x256xbf16>
    %c0_48 = arith.constant 0 : index
    %c0_49 = arith.constant 0 : index
    %102 = vector.load %arg7[%c0_48, %c0_49] : memref<256x768xbf16, #tpu.memory_space<vmem>>, vector<256x768xbf16>
    %cst_50 = arith.constant dense<0.000000e+00> : vector<8x768xf32>
    %103 = tpu.matmul %101, %102, %cst_50 {dimension_numbers = #tpu.dot_dimension_numbers<[1], [0], [0], [1], [0, 0, 1, 1], [], []>} : vector<8x256xbf16>, vector<256x768xbf16>, vector<8x768xf32> -> vector<8x768xf32>
    %c0_51 = arith.constant 0 : index
    %c0_52 = arith.constant 0 : index
    %104 = vector.load %arg8[%c0_51, %c0_52] : memref<1x768xf32, #tpu.memory_space<vmem>>, vector<1x768xf32>
    %105 = vector.broadcast %104 : vector<1x768xf32> to vector<8x768xf32>
    %106 = arith.addf %103, %105 : vector<8x768xf32>
    %107 = vector.extract_strided_slice %100 {offsets = [0, 0], sizes = [8, 256], strides = [1, 1]} : vector<8x768xf32> to vector<8x256xf32>
    %108 = vector.extract_strided_slice %106 {offsets = [0, 0], sizes = [8, 256], strides = [1, 1]} : vector<8x768xf32> to vector<8x256xf32>
    %109 = arith.addf %107, %108 : vector<8x256xf32>
    %110 = arith.negf %109 : vector<8x256xf32>
    %111 = math.exp %110 : vector<8x256xf32>
    %cst_53 = arith.constant 1.000000e+00 : f32
    %112 = vector.broadcast %cst_53 : f32 to vector<8x256xf32>
    %113 = arith.addf %112, %111 : vector<8x256xf32>
    %114 = arith.divf %112, %113 : vector<8x256xf32>
    %115 = vector.extract_strided_slice %100 {offsets = [0, 256], sizes = [8, 256], strides = [1, 1]} : vector<8x768xf32> to vector<8x256xf32>
    %116 = vector.extract_strided_slice %106 {offsets = [0, 256], sizes = [8, 256], strides = [1, 1]} : vector<8x768xf32> to vector<8x256xf32>
    %117 = arith.addf %115, %116 : vector<8x256xf32>
    %118 = arith.negf %117 : vector<8x256xf32>
    %119 = math.exp %118 : vector<8x256xf32>
    %cst_54 = arith.constant 1.000000e+00 : f32
    %120 = vector.broadcast %cst_54 : f32 to vector<8x256xf32>
    %121 = arith.addf %120, %119 : vector<8x256xf32>
    %122 = arith.divf %120, %121 : vector<8x256xf32>
    %123 = vector.extract_strided_slice %100 {offsets = [0, 512], sizes = [8, 256], strides = [1, 1]} : vector<8x768xf32> to vector<8x256xf32>
    %124 = vector.extract_strided_slice %106 {offsets = [0, 512], sizes = [8, 256], strides = [1, 1]} : vector<8x768xf32> to vector<8x256xf32>
    %125 = arith.mulf %114, %124 : vector<8x256xf32>
    %126 = arith.addf %123, %125 : vector<8x256xf32>
    %127 = math.tanh %126 : vector<8x256xf32>
    %cst_55 = arith.constant 1.000000e+00 : f32
    %128 = vector.broadcast %cst_55 : f32 to vector<8x256xf32>
    %129 = arith.subf %128, %122 : vector<8x256xf32>
    %130 = arith.mulf %129, %127 : vector<8x256xf32>
    %131 = arith.mulf %122, %99 : vector<8x256xf32>
    %132 = arith.addf %130, %131 : vector<8x256xf32>
    %c24 = arith.constant 24 : index
    %c0_56 = arith.constant 0 : index
    %133 = vector.load %arg12[%c24, %c0_56] : memref<72x768xf32, #tpu.memory_space<vmem>>, vector<8x768xf32>
    %134 = arith.truncf %132 : vector<8x256xf32> to vector<8x256xbf16>
    %c0_57 = arith.constant 0 : index
    %c0_58 = arith.constant 0 : index
    %135 = vector.load %arg7[%c0_57, %c0_58] : memref<256x768xbf16, #tpu.memory_space<vmem>>, vector<256x768xbf16>
    %cst_59 = arith.constant dense<0.000000e+00> : vector<8x768xf32>
    %136 = tpu.matmul %134, %135, %cst_59 {dimension_numbers = #tpu.dot_dimension_numbers<[1], [0], [0], [1], [0, 0, 1, 1], [], []>} : vector<8x256xbf16>, vector<256x768xbf16>, vector<8x768xf32> -> vector<8x768xf32>
    %c0_60 = arith.constant 0 : index
    %c0_61 = arith.constant 0 : index
    %137 = vector.load %arg8[%c0_60, %c0_61] : memref<1x768xf32, #tpu.memory_space<vmem>>, vector<1x768xf32>
    %138 = vector.broadcast %137 : vector<1x768xf32> to vector<8x768xf32>
    %139 = arith.addf %136, %138 : vector<8x768xf32>
    %140 = vector.extract_strided_slice %133 {offsets = [0, 0], sizes = [8, 256], strides = [1, 1]} : vector<8x768xf32> to vector<8x256xf32>
    %141 = vector.extract_strided_slice %139 {offsets = [0, 0], sizes = [8, 256], strides = [1, 1]} : vector<8x768xf32> to vector<8x256xf32>
    %142 = arith.addf %140, %141 : vector<8x256xf32>
    %143 = arith.negf %142 : vector<8x256xf32>
    %144 = math.exp %143 : vector<8x256xf32>
    %cst_62 = arith.constant 1.000000e+00 : f32
    %145 = vector.broadcast %cst_62 : f32 to vector<8x256xf32>
    %146 = arith.addf %145, %144 : vector<8x256xf32>
    %147 = arith.divf %145, %146 : vector<8x256xf32>
    %148 = vector.extract_strided_slice %133 {offsets = [0, 256], sizes = [8, 256], strides = [1, 1]} : vector<8x768xf32> to vector<8x256xf32>
    %149 = vector.extract_strided_slice %139 {offsets = [0, 256], sizes = [8, 256], strides = [1, 1]} : vector<8x768xf32> to vector<8x256xf32>
    %150 = arith.addf %148, %149 : vector<8x256xf32>
    %151 = arith.negf %150 : vector<8x256xf32>
    %152 = math.exp %151 : vector<8x256xf32>
    %cst_63 = arith.constant 1.000000e+00 : f32
    %153 = vector.broadcast %cst_63 : f32 to vector<8x256xf32>
    %154 = arith.addf %153, %152 : vector<8x256xf32>
    %155 = arith.divf %153, %154 : vector<8x256xf32>
    %156 = vector.extract_strided_slice %133 {offsets = [0, 512], sizes = [8, 256], strides = [1, 1]} : vector<8x768xf32> to vector<8x256xf32>
    %157 = vector.extract_strided_slice %139 {offsets = [0, 512], sizes = [8, 256], strides = [1, 1]} : vector<8x768xf32> to vector<8x256xf32>
    %158 = arith.mulf %147, %157 : vector<8x256xf32>
    %159 = arith.addf %156, %158 : vector<8x256xf32>
    %160 = math.tanh %159 : vector<8x256xf32>
    %cst_64 = arith.constant 1.000000e+00 : f32
    %161 = vector.broadcast %cst_64 : f32 to vector<8x256xf32>
    %162 = arith.subf %161, %155 : vector<8x256xf32>
    %163 = arith.mulf %162, %160 : vector<8x256xf32>
    %164 = arith.mulf %155, %132 : vector<8x256xf32>
    %165 = arith.addf %163, %164 : vector<8x256xf32>
    %c32 = arith.constant 32 : index
    %c0_65 = arith.constant 0 : index
    %166 = vector.load %arg12[%c32, %c0_65] : memref<72x768xf32, #tpu.memory_space<vmem>>, vector<8x768xf32>
    %167 = arith.truncf %165 : vector<8x256xf32> to vector<8x256xbf16>
    %c0_66 = arith.constant 0 : index
    %c0_67 = arith.constant 0 : index
    %168 = vector.load %arg7[%c0_66, %c0_67] : memref<256x768xbf16, #tpu.memory_space<vmem>>, vector<256x768xbf16>
    %cst_68 = arith.constant dense<0.000000e+00> : vector<8x768xf32>
    %169 = tpu.matmul %167, %168, %cst_68 {dimension_numbers = #tpu.dot_dimension_numbers<[1], [0], [0], [1], [0, 0, 1, 1], [], []>} : vector<8x256xbf16>, vector<256x768xbf16>, vector<8x768xf32> -> vector<8x768xf32>
    %c0_69 = arith.constant 0 : index
    %c0_70 = arith.constant 0 : index
    %170 = vector.load %arg8[%c0_69, %c0_70] : memref<1x768xf32, #tpu.memory_space<vmem>>, vector<1x768xf32>
    %171 = vector.broadcast %170 : vector<1x768xf32> to vector<8x768xf32>
    %172 = arith.addf %169, %171 : vector<8x768xf32>
    %173 = vector.extract_strided_slice %166 {offsets = [0, 0], sizes = [8, 256], strides = [1, 1]} : vector<8x768xf32> to vector<8x256xf32>
    %174 = vector.extract_strided_slice %172 {offsets = [0, 0], sizes = [8, 256], strides = [1, 1]} : vector<8x768xf32> to vector<8x256xf32>
    %175 = arith.addf %173, %174 : vector<8x256xf32>
    %176 = arith.negf %175 : vector<8x256xf32>
    %177 = math.exp %176 : vector<8x256xf32>
    %cst_71 = arith.constant 1.000000e+00 : f32
    %178 = vector.broadcast %cst_71 : f32 to vector<8x256xf32>
    %179 = arith.addf %178, %177 : vector<8x256xf32>
    %180 = arith.divf %178, %179 : vector<8x256xf32>
    %181 = vector.extract_strided_slice %166 {offsets = [0, 256], sizes = [8, 256], strides = [1, 1]} : vector<8x768xf32> to vector<8x256xf32>
    %182 = vector.extract_strided_slice %172 {offsets = [0, 256], sizes = [8, 256], strides = [1, 1]} : vector<8x768xf32> to vector<8x256xf32>
    %183 = arith.addf %181, %182 : vector<8x256xf32>
    %184 = arith.negf %183 : vector<8x256xf32>
    %185 = math.exp %184 : vector<8x256xf32>
    %cst_72 = arith.constant 1.000000e+00 : f32
    %186 = vector.broadcast %cst_72 : f32 to vector<8x256xf32>
    %187 = arith.addf %186, %185 : vector<8x256xf32>
    %188 = arith.divf %186, %187 : vector<8x256xf32>
    %189 = vector.extract_strided_slice %166 {offsets = [0, 512], sizes = [8, 256], strides = [1, 1]} : vector<8x768xf32> to vector<8x256xf32>
    %190 = vector.extract_strided_slice %172 {offsets = [0, 512], sizes = [8, 256], strides = [1, 1]} : vector<8x768xf32> to vector<8x256xf32>
    %191 = arith.mulf %180, %190 : vector<8x256xf32>
    %192 = arith.addf %189, %191 : vector<8x256xf32>
    %193 = math.tanh %192 : vector<8x256xf32>
    %cst_73 = arith.constant 1.000000e+00 : f32
    %194 = vector.broadcast %cst_73 : f32 to vector<8x256xf32>
    %195 = arith.subf %194, %188 : vector<8x256xf32>
    %196 = arith.mulf %195, %193 : vector<8x256xf32>
    %197 = arith.mulf %188, %165 : vector<8x256xf32>
    %198 = arith.addf %196, %197 : vector<8x256xf32>
    %c40 = arith.constant 40 : index
    %c0_74 = arith.constant 0 : index
    %199 = vector.load %arg12[%c40, %c0_74] : memref<72x768xf32, #tpu.memory_space<vmem>>, vector<8x768xf32>
    %200 = arith.truncf %198 : vector<8x256xf32> to vector<8x256xbf16>
    %c0_75 = arith.constant 0 : index
    %c0_76 = arith.constant 0 : index
    %201 = vector.load %arg7[%c0_75, %c0_76] : memref<256x768xbf16, #tpu.memory_space<vmem>>, vector<256x768xbf16>
    %cst_77 = arith.constant dense<0.000000e+00> : vector<8x768xf32>
    %202 = tpu.matmul %200, %201, %cst_77 {dimension_numbers = #tpu.dot_dimension_numbers<[1], [0], [0], [1], [0, 0, 1, 1], [], []>} : vector<8x256xbf16>, vector<256x768xbf16>, vector<8x768xf32> -> vector<8x768xf32>
    %c0_78 = arith.constant 0 : index
    %c0_79 = arith.constant 0 : index
    %203 = vector.load %arg8[%c0_78, %c0_79] : memref<1x768xf32, #tpu.memory_space<vmem>>, vector<1x768xf32>
    %204 = vector.broadcast %203 : vector<1x768xf32> to vector<8x768xf32>
    %205 = arith.addf %202, %204 : vector<8x768xf32>
    %206 = vector.extract_strided_slice %199 {offsets = [0, 0], sizes = [8, 256], strides = [1, 1]} : vector<8x768xf32> to vector<8x256xf32>
    %207 = vector.extract_strided_slice %205 {offsets = [0, 0], sizes = [8, 256], strides = [1, 1]} : vector<8x768xf32> to vector<8x256xf32>
    %208 = arith.addf %206, %207 : vector<8x256xf32>
    %209 = arith.negf %208 : vector<8x256xf32>
    %210 = math.exp %209 : vector<8x256xf32>
    %cst_80 = arith.constant 1.000000e+00 : f32
    %211 = vector.broadcast %cst_80 : f32 to vector<8x256xf32>
    %212 = arith.addf %211, %210 : vector<8x256xf32>
    %213 = arith.divf %211, %212 : vector<8x256xf32>
    %214 = vector.extract_strided_slice %199 {offsets = [0, 256], sizes = [8, 256], strides = [1, 1]} : vector<8x768xf32> to vector<8x256xf32>
    %215 = vector.extract_strided_slice %205 {offsets = [0, 256], sizes = [8, 256], strides = [1, 1]} : vector<8x768xf32> to vector<8x256xf32>
    %216 = arith.addf %214, %215 : vector<8x256xf32>
    %217 = arith.negf %216 : vector<8x256xf32>
    %218 = math.exp %217 : vector<8x256xf32>
    %cst_81 = arith.constant 1.000000e+00 : f32
    %219 = vector.broadcast %cst_81 : f32 to vector<8x256xf32>
    %220 = arith.addf %219, %218 : vector<8x256xf32>
    %221 = arith.divf %219, %220 : vector<8x256xf32>
    %222 = vector.extract_strided_slice %199 {offsets = [0, 512], sizes = [8, 256], strides = [1, 1]} : vector<8x768xf32> to vector<8x256xf32>
    %223 = vector.extract_strided_slice %205 {offsets = [0, 512], sizes = [8, 256], strides = [1, 1]} : vector<8x768xf32> to vector<8x256xf32>
    %224 = arith.mulf %213, %223 : vector<8x256xf32>
    %225 = arith.addf %222, %224 : vector<8x256xf32>
    %226 = math.tanh %225 : vector<8x256xf32>
    %cst_82 = arith.constant 1.000000e+00 : f32
    %227 = vector.broadcast %cst_82 : f32 to vector<8x256xf32>
    %228 = arith.subf %227, %221 : vector<8x256xf32>
    %229 = arith.mulf %228, %226 : vector<8x256xf32>
    %230 = arith.mulf %221, %198 : vector<8x256xf32>
    %231 = arith.addf %229, %230 : vector<8x256xf32>
    %c48 = arith.constant 48 : index
    %c0_83 = arith.constant 0 : index
    %232 = vector.load %arg12[%c48, %c0_83] : memref<72x768xf32, #tpu.memory_space<vmem>>, vector<8x768xf32>
    %233 = arith.truncf %231 : vector<8x256xf32> to vector<8x256xbf16>
    %c0_84 = arith.constant 0 : index
    %c0_85 = arith.constant 0 : index
    %234 = vector.load %arg7[%c0_84, %c0_85] : memref<256x768xbf16, #tpu.memory_space<vmem>>, vector<256x768xbf16>
    %cst_86 = arith.constant dense<0.000000e+00> : vector<8x768xf32>
    %235 = tpu.matmul %233, %234, %cst_86 {dimension_numbers = #tpu.dot_dimension_numbers<[1], [0], [0], [1], [0, 0, 1, 1], [], []>} : vector<8x256xbf16>, vector<256x768xbf16>, vector<8x768xf32> -> vector<8x768xf32>
    %c0_87 = arith.constant 0 : index
    %c0_88 = arith.constant 0 : index
    %236 = vector.load %arg8[%c0_87, %c0_88] : memref<1x768xf32, #tpu.memory_space<vmem>>, vector<1x768xf32>
    %237 = vector.broadcast %236 : vector<1x768xf32> to vector<8x768xf32>
    %238 = arith.addf %235, %237 : vector<8x768xf32>
    %239 = vector.extract_strided_slice %232 {offsets = [0, 0], sizes = [8, 256], strides = [1, 1]} : vector<8x768xf32> to vector<8x256xf32>
    %240 = vector.extract_strided_slice %238 {offsets = [0, 0], sizes = [8, 256], strides = [1, 1]} : vector<8x768xf32> to vector<8x256xf32>
    %241 = arith.addf %239, %240 : vector<8x256xf32>
    %242 = arith.negf %241 : vector<8x256xf32>
    %243 = math.exp %242 : vector<8x256xf32>
    %cst_89 = arith.constant 1.000000e+00 : f32
    %244 = vector.broadcast %cst_89 : f32 to vector<8x256xf32>
    %245 = arith.addf %244, %243 : vector<8x256xf32>
    %246 = arith.divf %244, %245 : vector<8x256xf32>
    %247 = vector.extract_strided_slice %232 {offsets = [0, 256], sizes = [8, 256], strides = [1, 1]} : vector<8x768xf32> to vector<8x256xf32>
    %248 = vector.extract_strided_slice %238 {offsets = [0, 256], sizes = [8, 256], strides = [1, 1]} : vector<8x768xf32> to vector<8x256xf32>
    %249 = arith.addf %247, %248 : vector<8x256xf32>
    %250 = arith.negf %249 : vector<8x256xf32>
    %251 = math.exp %250 : vector<8x256xf32>
    %cst_90 = arith.constant 1.000000e+00 : f32
    %252 = vector.broadcast %cst_90 : f32 to vector<8x256xf32>
    %253 = arith.addf %252, %251 : vector<8x256xf32>
    %254 = arith.divf %252, %253 : vector<8x256xf32>
    %255 = vector.extract_strided_slice %232 {offsets = [0, 512], sizes = [8, 256], strides = [1, 1]} : vector<8x768xf32> to vector<8x256xf32>
    %256 = vector.extract_strided_slice %238 {offsets = [0, 512], sizes = [8, 256], strides = [1, 1]} : vector<8x768xf32> to vector<8x256xf32>
    %257 = arith.mulf %246, %256 : vector<8x256xf32>
    %258 = arith.addf %255, %257 : vector<8x256xf32>
    %259 = math.tanh %258 : vector<8x256xf32>
    %cst_91 = arith.constant 1.000000e+00 : f32
    %260 = vector.broadcast %cst_91 : f32 to vector<8x256xf32>
    %261 = arith.subf %260, %254 : vector<8x256xf32>
    %262 = arith.mulf %261, %259 : vector<8x256xf32>
    %263 = arith.mulf %254, %231 : vector<8x256xf32>
    %264 = arith.addf %262, %263 : vector<8x256xf32>
    %c56 = arith.constant 56 : index
    %c0_92 = arith.constant 0 : index
    %265 = vector.load %arg12[%c56, %c0_92] : memref<72x768xf32, #tpu.memory_space<vmem>>, vector<8x768xf32>
    %266 = arith.truncf %264 : vector<8x256xf32> to vector<8x256xbf16>
    %c0_93 = arith.constant 0 : index
    %c0_94 = arith.constant 0 : index
    %267 = vector.load %arg7[%c0_93, %c0_94] : memref<256x768xbf16, #tpu.memory_space<vmem>>, vector<256x768xbf16>
    %cst_95 = arith.constant dense<0.000000e+00> : vector<8x768xf32>
    %268 = tpu.matmul %266, %267, %cst_95 {dimension_numbers = #tpu.dot_dimension_numbers<[1], [0], [0], [1], [0, 0, 1, 1], [], []>} : vector<8x256xbf16>, vector<256x768xbf16>, vector<8x768xf32> -> vector<8x768xf32>
    %c0_96 = arith.constant 0 : index
    %c0_97 = arith.constant 0 : index
    %269 = vector.load %arg8[%c0_96, %c0_97] : memref<1x768xf32, #tpu.memory_space<vmem>>, vector<1x768xf32>
    %270 = vector.broadcast %269 : vector<1x768xf32> to vector<8x768xf32>
    %271 = arith.addf %268, %270 : vector<8x768xf32>
    %272 = vector.extract_strided_slice %265 {offsets = [0, 0], sizes = [8, 256], strides = [1, 1]} : vector<8x768xf32> to vector<8x256xf32>
    %273 = vector.extract_strided_slice %271 {offsets = [0, 0], sizes = [8, 256], strides = [1, 1]} : vector<8x768xf32> to vector<8x256xf32>
    %274 = arith.addf %272, %273 : vector<8x256xf32>
    %275 = arith.negf %274 : vector<8x256xf32>
    %276 = math.exp %275 : vector<8x256xf32>
    %cst_98 = arith.constant 1.000000e+00 : f32
    %277 = vector.broadcast %cst_98 : f32 to vector<8x256xf32>
    %278 = arith.addf %277, %276 : vector<8x256xf32>
    %279 = arith.divf %277, %278 : vector<8x256xf32>
    %280 = vector.extract_strided_slice %265 {offsets = [0, 256], sizes = [8, 256], strides = [1, 1]} : vector<8x768xf32> to vector<8x256xf32>
    %281 = vector.extract_strided_slice %271 {offsets = [0, 256], sizes = [8, 256], strides = [1, 1]} : vector<8x768xf32> to vector<8x256xf32>
    %282 = arith.addf %280, %281 : vector<8x256xf32>
    %283 = arith.negf %282 : vector<8x256xf32>
    %284 = math.exp %283 : vector<8x256xf32>
    %cst_99 = arith.constant 1.000000e+00 : f32
    %285 = vector.broadcast %cst_99 : f32 to vector<8x256xf32>
    %286 = arith.addf %285, %284 : vector<8x256xf32>
    %287 = arith.divf %285, %286 : vector<8x256xf32>
    %288 = vector.extract_strided_slice %265 {offsets = [0, 512], sizes = [8, 256], strides = [1, 1]} : vector<8x768xf32> to vector<8x256xf32>
    %289 = vector.extract_strided_slice %271 {offsets = [0, 512], sizes = [8, 256], strides = [1, 1]} : vector<8x768xf32> to vector<8x256xf32>
    %290 = arith.mulf %279, %289 : vector<8x256xf32>
    %291 = arith.addf %288, %290 : vector<8x256xf32>
    %292 = math.tanh %291 : vector<8x256xf32>
    %cst_100 = arith.constant 1.000000e+00 : f32
    %293 = vector.broadcast %cst_100 : f32 to vector<8x256xf32>
    %294 = arith.subf %293, %287 : vector<8x256xf32>
    %295 = arith.mulf %294, %292 : vector<8x256xf32>
    %296 = arith.mulf %287, %264 : vector<8x256xf32>
    %297 = arith.addf %295, %296 : vector<8x256xf32>
    %c64 = arith.constant 64 : index
    %c0_101 = arith.constant 0 : index
    %298 = vector.load %arg12[%c64, %c0_101] : memref<72x768xf32, #tpu.memory_space<vmem>>, vector<8x768xf32>
    %299 = arith.truncf %297 : vector<8x256xf32> to vector<8x256xbf16>
    %c0_102 = arith.constant 0 : index
    %c0_103 = arith.constant 0 : index
    %300 = vector.load %arg7[%c0_102, %c0_103] : memref<256x768xbf16, #tpu.memory_space<vmem>>, vector<256x768xbf16>
    %cst_104 = arith.constant dense<0.000000e+00> : vector<8x768xf32>
    %301 = tpu.matmul %299, %300, %cst_104 {dimension_numbers = #tpu.dot_dimension_numbers<[1], [0], [0], [1], [0, 0, 1, 1], [], []>} : vector<8x256xbf16>, vector<256x768xbf16>, vector<8x768xf32> -> vector<8x768xf32>
    %c0_105 = arith.constant 0 : index
    %c0_106 = arith.constant 0 : index
    %302 = vector.load %arg8[%c0_105, %c0_106] : memref<1x768xf32, #tpu.memory_space<vmem>>, vector<1x768xf32>
    %303 = vector.broadcast %302 : vector<1x768xf32> to vector<8x768xf32>
    %304 = arith.addf %301, %303 : vector<8x768xf32>
    %305 = vector.extract_strided_slice %298 {offsets = [0, 0], sizes = [8, 256], strides = [1, 1]} : vector<8x768xf32> to vector<8x256xf32>
    %306 = vector.extract_strided_slice %304 {offsets = [0, 0], sizes = [8, 256], strides = [1, 1]} : vector<8x768xf32> to vector<8x256xf32>
    %307 = arith.addf %305, %306 : vector<8x256xf32>
    %308 = arith.negf %307 : vector<8x256xf32>
    %309 = math.exp %308 : vector<8x256xf32>
    %cst_107 = arith.constant 1.000000e+00 : f32
    %310 = vector.broadcast %cst_107 : f32 to vector<8x256xf32>
    %311 = arith.addf %310, %309 : vector<8x256xf32>
    %312 = arith.divf %310, %311 : vector<8x256xf32>
    %313 = vector.extract_strided_slice %298 {offsets = [0, 256], sizes = [8, 256], strides = [1, 1]} : vector<8x768xf32> to vector<8x256xf32>
    %314 = vector.extract_strided_slice %304 {offsets = [0, 256], sizes = [8, 256], strides = [1, 1]} : vector<8x768xf32> to vector<8x256xf32>
    %315 = arith.addf %313, %314 : vector<8x256xf32>
    %316 = arith.negf %315 : vector<8x256xf32>
    %317 = math.exp %316 : vector<8x256xf32>
    %cst_108 = arith.constant 1.000000e+00 : f32
    %318 = vector.broadcast %cst_108 : f32 to vector<8x256xf32>
    %319 = arith.addf %318, %317 : vector<8x256xf32>
    %320 = arith.divf %318, %319 : vector<8x256xf32>
    %321 = vector.extract_strided_slice %298 {offsets = [0, 512], sizes = [8, 256], strides = [1, 1]} : vector<8x768xf32> to vector<8x256xf32>
    %322 = vector.extract_strided_slice %304 {offsets = [0, 512], sizes = [8, 256], strides = [1, 1]} : vector<8x768xf32> to vector<8x256xf32>
    %323 = arith.mulf %312, %322 : vector<8x256xf32>
    %324 = arith.addf %321, %323 : vector<8x256xf32>
    %325 = math.tanh %324 : vector<8x256xf32>
    %cst_109 = arith.constant 1.000000e+00 : f32
    %326 = vector.broadcast %cst_109 : f32 to vector<8x256xf32>
    %327 = arith.subf %326, %320 : vector<8x256xf32>
    %328 = arith.mulf %327, %325 : vector<8x256xf32>
    %329 = arith.mulf %320, %297 : vector<8x256xf32>
    %330 = arith.addf %328, %329 : vector<8x256xf32>
    %331 = arith.addf %330, %8 : vector<8x256xf32>
    %332 = arith.truncf %331 : vector<8x256xf32> to vector<8x256xbf16>
    %c0_110 = arith.constant 0 : index
    %c0_111 = arith.constant 0 : index
    %333 = vector.load %arg9[%c0_110, %c0_111] : memref<256x128xbf16, #tpu.memory_space<vmem>>, vector<256x128xbf16>
    %cst_112 = arith.constant dense<0.000000e+00> : vector<8x128xf32>
    %334 = tpu.matmul %332, %333, %cst_112 {dimension_numbers = #tpu.dot_dimension_numbers<[1], [0], [0], [1], [0, 0, 1, 1], [], []>} : vector<8x256xbf16>, vector<256x128xbf16>, vector<8x128xf32> -> vector<8x128xf32>
    %c0_113 = arith.constant 0 : index
    %c0_114 = arith.constant 0 : index
    %335 = vector.load %arg10[%c0_113, %c0_114] : memref<1x128xf32, #tpu.memory_space<vmem>>, vector<1x128xf32>
    %336 = vector.broadcast %335 : vector<1x128xf32> to vector<8x128xf32>
    %337 = arith.addf %334, %336 : vector<8x128xf32>
    %cst_115 = arith.constant 0.000000e+00 : f32
    %338 = vector.broadcast %cst_115 : f32 to vector<8x128xf32>
    %339 = arith.maximumf %337, %338 : vector<8x128xf32>
    %340 = arith.truncf %339 : vector<8x128xf32> to vector<8x128xbf16>
    %c0_116 = arith.constant 0 : index
    %c0_117 = arith.constant 0 : index
    %341 = vector.load %arg11[%c0_116, %c0_117] : memref<8x128xbf16, #tpu.memory_space<vmem>>, vector<8x128xbf16>
    tpu.vector_store %arg11[%c0_116, %c0_117], %340 {strides = array<i32>} : memref<8x128xbf16, #tpu.memory_space<vmem>>, vector<8x128xbf16>,
    return
  }
}

</mosaic_0001>

<llo_original>
// kernel: tpu_custom_call.1
$region0: #{tpu_custom_call.1}
  #allocation0 [shape = 'u32[]', space=smem, size = 0x4, offset = 0x4, fixed_abs, tag = 'smem constant byte address 0x4 - core index']
  #allocation1 [shape = 'u32[72,128]{1,0:T(1,128)}', space=vmem, size = 0x9000, scoped, tag = 'internal scratch']
  #allocation2 [shape = 'f32[72,768]{1,0:T(8,128)}', space=vmem, size = 0x36000, scoped, tag = 'scratch operand']
  %s0 = inlined_call_operand.vmem [shape: s32[64,1], index: 0, kind: input, shape index: {}]
  %s1 = inlined_call_operand.hbm [shape: f32[8,2048], index: 1, kind: input, shape index: {}]
  %s2 = inlined_call_operand.hbm [shape: bf16[2048,256], index: 2, kind: input, shape index: {}]
  %s3 = inlined_call_operand.vmem [shape: f32[1,256], index: 3, kind: input, shape index: {}]
  %s4 = inlined_call_operand.hbm [shape: bf16[512,256], index: 4, kind: input, shape index: {}]
  %s5 = inlined_call_operand.hbm [shape: bf16[256,768], index: 5, kind: input, shape index: {}]
  %s6 = inlined_call_operand.vmem [shape: f32[1,768], index: 6, kind: input, shape index: {}]
  %s7 = inlined_call_operand.hbm [shape: bf16[256,768], index: 7, kind: input, shape index: {}]
  %s8 = inlined_call_operand.vmem [shape: f32[1,768], index: 8, kind: input, shape index: {}]
  %s9 = inlined_call_operand.hbm [shape: bf16[256,128], index: 9, kind: input, shape index: {}]
  %s10 = inlined_call_operand.vmem [shape: f32[1,128], index: 10, kind: input, shape index: {}]
  %s11 = inlined_call_operand.hbm [shape: bf16[8,128], index: 11, kind: output, shape index: {}]
  %s12 = sld [smem:[#allocation0]]
  $region78: #{tpu_custom_call.1} parent=0
    _
  %s14 = ssub.s32 1, %s12
  %s15 = scalar_select 0, %s14, %s12
  $region1: #{tpu_custom_call.1} parent=0
    #allocation3 [shape = 'u8[65536]{0}', space=vmem, size = 0x10000, scoped, tag = 'input window, operand 1, single buffered']
    #allocation4 [shape = 's32[1]{0}', space=sflag, size = 0x4, scoped, tag = 'scoped memory for tpu_custom_call.1']
    #allocation5 [shape = 's32[1]{0}', space=sflag, size = 0x4, scoped, tag = 'scoped memory for tpu_custom_call.1']
    #allocation6 [shape = 'u8[1048576]{0}', space=vmem, size = 0x100000, scoped, tag = 'input window, operand 2, single buffered']
    #allocation7 [shape = 's32[1]{0}', space=sflag, size = 0x4, scoped, tag = 'scoped memory for tpu_custom_call.1']
    #allocation8 [shape = 'u8[262144]{0}', space=vmem, size = 0x40000, scoped, tag = 'input window, operand 4, single buffered']
    #allocation9 [shape = 'u8[393216]{0}', space=vmem, size = 0x60000, scoped, tag = 'input window, operand 5, single buffered']
    #allocation10 [shape = 's32[1]{0}', space=sflag, size = 0x4, scoped, tag = 'scoped memory for tpu_custom_call.1']
    #allocation11 [shape = 'u8[393216]{0}', space=vmem, size = 0x60000, scoped, tag = 'input window, operand 7, single buffered']
    #allocation12 [shape = 'u8[65536]{0}', space=vmem, size = 0x10000, scoped, tag = 'input window, operand 9, single buffered']
    #allocation13 [shape = 's32[1]{0}', space=sflag, size = 0x4, scoped, tag = 'scoped memory for tpu_custom_call.1']
    #allocation14 [shape = 'u8[2048]{0}', space=vmem, size = 0x800, scoped, tag = 'output window, operand 0, single buffered']
    %16 = vsyncpa [#allocation4], 0
    %17 = vsyncpa [#allocation7], 0
    %18 = vsyncpa [#allocation10], 0
    %19 = vsyncpa [#allocation13], 0
    %20 = vsyncpa [#allocation5], 0
    // Predicated region
    $region2: #{tpu_custom_call.1} parent=1 // pred_check
      _
    $region3: #{tpu_custom_call.1} parent=1 // pred_check_branch
      %22 = sbr.rel (0) target = $region5
    $region4: #{tpu_custom_call.1} parent=1 // pred_region
      _
    $region5: #{tpu_custom_call.1} parent=1 // pred_fallthru
      _
    // Predicated region
    $region6: #{tpu_custom_call.1} parent=1 // pred_check
      _
    $region7: #{tpu_custom_call.1} parent=1 // pred_check_branch
      %24 = sbr.rel (0) target = $region9
    $region8: #{tpu_custom_call.1} parent=1 // pred_region
      %26 = vsyncadd [#allocation4], 0
      %s28 = sshll.u32 %s1, 4
      %s29 = int_to_ptr.hbm [resolvable:$true] %s28
      %s30 = sshll.u32 [#allocation3], 4
      %s31 = int_to_ptr.vmem [resolvable:$true] %s30
      %33 = dma.hbm_to_vmem [thread:$0]  %s29, 2048, %s31, [#allocation4]
    $region9: #{tpu_custom_call.1} parent=1 // pred_fallthru
      _
    // Predicated region
    $region10: #{tpu_custom_call.1} parent=1 // pred_check
      _
    $region11: #{tpu_custom_call.1} parent=1 // pred_check_branch
      %35 = sbr.rel (0) target = $region13
    $region12: #{tpu_custom_call.1} parent=1 // pred_region
      %37 = vsyncadd [#allocation7], 0
      %s38 = sshll.u32 %s2, 4
      %s39 = int_to_ptr.hbm [resolvable:$true] %s38
      %s40 = sshll.u32 [#allocation6], 4
      %s41 = int_to_ptr.vmem [resolvable:$true] %s40
      %46 = dma.hbm_to_vmem [thread:$0]  %s39, 32768, %s41, [#allocation7], 128, 128, 8
    $region13: #{tpu_custom_call.1} parent=1 // pred_fallthru
      _
    // Predicated region
    $region14: #{tpu_custom_call.1} parent=1 // pred_check
      _
    $region15: #{tpu_custom_call.1} parent=1 // pred_check_branch
      %48 = sbr.rel (0) target = $region17
    $region16: #{tpu_custom_call.1} parent=1 // pred_region
      _
    $region17: #{tpu_custom_call.1} parent=1 // pred_fallthru
      _
    // Predicated region
    $region18: #{tpu_custom_call.1} parent=1 // pred_check
      _
    $region19: #{tpu_custom_call.1} parent=1 // pred_check_branch
      %50 = sbr.rel (0) target = $region21
    $region20: #{tpu_custom_call.1} parent=1 // pred_region
      %52 = vsyncadd [#allocation7], 0
      %s53 = sshll.u32 %s4, 4
      %s54 = int_to_ptr.hbm [resolvable:$true] %s53
      %s55 = sshll.u32 [#allocation8], 4
      %s56 = int_to_ptr.vmem [resolvable:$true] %s55
      %61 = dma.hbm_to_vmem [thread:$0]  %s54, 8192, %s56, [#allocation7], 128, 128, 8
    $region21: #{tpu_custom_call.1} parent=1 // pred_fallthru
      _
    // Predicated region
    $region22: #{tpu_custom_call.1} parent=1 // pred_check
      _
    $region23: #{tpu_custom_call.1} parent=1 // pred_check_branch
      %63 = sbr.rel (0) target = $region25
    $region24: #{tpu_custom_call.1} parent=1 // pred_region
      %65 = vsyncadd [#allocation10], 0
      %s66 = sshll.u32 %s5, 4
      %s67 = int_to_ptr.hbm [resolvable:$true] %s66
      %s68 = sshll.u32 [#allocation9], 4
      %s69 = int_to_ptr.vmem [resolvable:$true] %s68
      %74 = dma.hbm_to_vmem [thread:$0]  %s67, 12288, %s69, [#allocation10], 384, 384, 24
    $region25: #{tpu_custom_call.1} parent=1 // pred_fallthru
      _
    // Predicated region
    $region26: #{tpu_custom_call.1} parent=1 // pred_check
      _
    $region27: #{tpu_custom_call.1} parent=1 // pred_check_branch
      %76 = sbr.rel (0) target = $region29
    $region28: #{tpu_custom_call.1} parent=1 // pred_region
      _
    $region29: #{tpu_custom_call.1} parent=1 // pred_fallthru
      _
    // Predicated region
    $region30: #{tpu_custom_call.1} parent=1 // pred_check
      _
    $region31: #{tpu_custom_call.1} parent=1 // pred_check_branch
      %78 = sbr.rel (0) target = $region33
    $region32: #{tpu_custom_call.1} parent=1 // pred_region
      %80 = vsyncadd [#allocation10], 0
      %s81 = sshll.u32 %s7, 4
      %s82 = int_to_ptr.hbm [resolvable:$true] %s81
      %s83 = sshll.u32 [#allocation11], 4
      %s84 = int_to_ptr.vmem [resolvable:$true] %s83
      %89 = dma.hbm_to_vmem [thread:$0]  %s82, 12288, %s84, [#allocation10], 384, 384, 24
    $region33: #{tpu_custom_call.1} parent=1 // pred_fallthru
      _
    // Predicated region
    $region34: #{tpu_custom_call.1} parent=1 // pred_check
      _
    $region35: #{tpu_custom_call.1} parent=1 // pred_check_branch
      %91 = sbr.rel (0) target = $region37
    $region36: #{tpu_custom_call.1} parent=1 // pred_region
      _
    $region37: #{tpu_custom_call.1} parent=1 // pred_fallthru
      _
    // Predicated region
    $region38: #{tpu_custom_call.1} parent=1 // pred_check
      _
    $region39: #{tpu_custom_call.1} parent=1 // pred_check_branch
      %93 = sbr.rel (0) target = $region41
    $region40: #{tpu_custom_call.1} parent=1 // pred_region
      %95 = vsyncadd [#allocation13], 0
      %s96 = sshll.u32 %s9, 4
      %s97 = int_to_ptr.hbm [resolvable:$true] %s96
      %s98 = sshll.u32 [#allocation12], 4
      %s99 = int_to_ptr.vmem [resolvable:$true] %s98
      %104 = dma.hbm_to_vmem [thread:$0]  %s97, 2048, %s99, [#allocation13], 64, 64, 4
    $region41: #{tpu_custom_call.1} parent=1 // pred_fallthru
      _
    // Predicated region
    $region42: #{tpu_custom_call.1} parent=1 // pred_check
      _
    $region43: #{tpu_custom_call.1} parent=1 // pred_check_branch
      %106 = sbr.rel (0) target = $region45
    $region44: #{tpu_custom_call.1} parent=1 // pred_region
      _
    $region45: #{tpu_custom_call.1} parent=1 // pred_fallthru
      _
    // Predicated region
    $region46: #{tpu_custom_call.1} parent=1 // pred_check
      _
    $region47: #{tpu_custom_call.1} parent=1 // pred_check_branch
      %108 = sbr.rel (0) target = $region49
    $region48: #{tpu_custom_call.1} parent=1 // pred_region
      %110 = dma.done [#allocation4], 2048
    $region49: #{tpu_custom_call.1} parent=1 // pred_fallthru
      _
    // Predicated region
    $region50: #{tpu_custom_call.1} parent=1 // pred_check
      _
    $region51: #{tpu_custom_call.1} parent=1 // pred_check_branch
      %112 = sbr.rel (0) target = $region53
    $region52: #{tpu_custom_call.1} parent=1 // pred_region
      %114 = dma.done [#allocation7], 32768
    $region53: #{tpu_custom_call.1} parent=1 // pred_fallthru
      _
    // Predicated region
    $region54: #{tpu_custom_call.1} parent=1 // pred_check
      _
    $region55: #{tpu_custom_call.1} parent=1 // pred_check_branch
      %116 = sbr.rel (0) target = $region57
    $region56: #{tpu_custom_call.1} parent=1 // pred_region
      %118 = dma.done [#allocation7], 8192
    $region57: #{tpu_custom_call.1} parent=1 // pred_fallthru
      _
    // Predicated region
    $region58: #{tpu_custom_call.1} parent=1 // pred_check
      _
    $region59: #{tpu_custom_call.1} parent=1 // pred_check_branch
      %120 = sbr.rel (0) target = $region61
    $region60: #{tpu_custom_call.1} parent=1 // pred_region
      %122 = dma.done [#allocation10], 12288
    $region61: #{tpu_custom_call.1} parent=1 // pred_fallthru
      _
    // Predicated region
    $region62: #{tpu_custom_call.1} parent=1 // pred_check
      _
    $region63: #{tpu_custom_call.1} parent=1 // pred_check_branch
      %124 = sbr.rel (0) target = $region65
    $region64: #{tpu_custom_call.1} parent=1 // pred_region
      %126 = dma.done [#allocation10], 12288
    $region65: #{tpu_custom_call.1} parent=1 // pred_fallthru
      _
    // Predicated region
    $region66: #{tpu_custom_call.1} parent=1 // pred_check
      _
    $region67: #{tpu_custom_call.1} parent=1 // pred_check_branch
      %128 = sbr.rel (0) target = $region69
    $region68: #{tpu_custom_call.1} parent=1 // pred_region
      %130 = dma.done [#allocation13], 2048
    $region69: #{tpu_custom_call.1} parent=1 // pred_fallthru
      _
    %v132 = vld [vmem:[#allocation3] sm:$0xff]
    %v133 = vld [vmem:[#allocation3 + $0x8] sm:$0xff]
    %v134 = vld [vmem:[#allocation3 + $0x10] sm:$0xff]
    %v135 = vld [vmem:[#allocation3 + $0x18] sm:$0xff]
    %v136 = vld [vmem:[#allocation3 + $0x20] sm:$0xff]
    %v137 = vld [vmem:[#allocation3 + $0x28] sm:$0xff]
    %v138 = vld [vmem:[#allocation3 + $0x30] sm:$0xff]
    %v139 = vld [vmem:[#allocation3 + $0x38] sm:$0xff]
    %v140 = vld [vmem:[#allocation3 + $0x40] sm:$0xff]
    %v141 = vld [vmem:[#allocation3 + $0x48] sm:$0xff]
    %v142 = vld [vmem:[#allocation3 + $0x50] sm:$0xff]
    %v143 = vld [vmem:[#allocation3 + $0x58] sm:$0xff]
    %v144 = vld [vmem:[#allocation3 + $0x60] sm:$0xff]
    %v145 = vld [vmem:[#allocation3 + $0x68] sm:$0xff]
    %v146 = vld [vmem:[#allocation3 + $0x70] sm:$0xff]
    %v147 = vld [vmem:[#allocation3 + $0x78] sm:$0xff]
    %v148 = vpack.c.bf16 %v132, %v132
    %v149 = vpack.c.bf16 %v133, %v133
    %v150 = vpack.c.bf16 %v134, %v134
    %v151 = vpack.c.bf16 %v135, %v135
    %v152 = vpack.c.bf16 %v136, %v136
    %v153 = vpack.c.bf16 %v137, %v137
    %v154 = vpack.c.bf16 %v138, %v138
    %v155 = vpack.c.bf16 %v139, %v139
    %v156 = vpack.c.bf16 %v140, %v140
    %v157 = vpack.c.bf16 %v141, %v141
    %v158 = vpack.c.bf16 %v142, %v142
    %v159 = vpack.c.bf16 %v143, %v143
    %v160 = vpack.c.bf16 %v144, %v144
    %v161 = vpack.c.bf16 %v145, %v145
    %v162 = vpack.c.bf16 %v146, %v146
    %v163 = vpack.c.bf16 %v147, %v147
    %v164 = vld [vmem:[#allocation6] sm:$0xff]
    %v165 = vld [vmem:[#allocation6 + $0x8] sm:$0xff]
    %v166 = vld [vmem:[#allocation6 + $0x10] sm:$0xff]
    %v167 = vld [vmem:[#allocation6 + $0x18] sm:$0xff]
    %v168 = vld [vmem:[#allocation6 + $0x20] sm:$0xff]
    %v169 = vld [vmem:[#allocation6 + $0x28] sm:$0xff]
    %v170 = vld [vmem:[#allocation6 + $0x30] sm:$0xff]
    %v171 = vld [vmem:[#allocation6 + $0x38] sm:$0xff]
    %v172 = vld [vmem:[#allocation6 + $0x40] sm:$0xff]
    %v173 = vld [vmem:[#allocation6 + $0x48] sm:$0xff]
    %v174 = vld [vmem:[#allocation6 + $0x50] sm:$0xff]
    %v175 = vld [vmem:[#allocation6 + $0x58] sm:$0xff]
    %v176 = vld [vmem:[#allocation6 + $0x60] sm:$0xff]
    %v177 = vld [vmem:[#allocation6 + $0x68] sm:$0xff]
    %v178 = vld [vmem:[#allocation6 + $0x70] sm:$0xff]
    %v179 = vld [vmem:[#allocation6 + $0x78] sm:$0xff]
    %v180 = vld [vmem:[#allocation6 + $0x80] sm:$0xff]
    %v181 = vld [vmem:[#allocation6 + $0x88] sm:$0xff]
    %v182 = vld [vmem:[#allocation6 + $0x90] sm:$0xff]
    %v183 = vld [vmem:[#allocation6 + $0x98] sm:$0xff]
    %v184 = vld [vmem:[#allocation6 + $0xa0] sm:$0xff]
    %v185 = vld [vmem:[#allocation6 + $0xa8] sm:$0xff]
    %v186 = vld [vmem:[#allocation6 + $0xb0] sm:$0xff]
    %v187 = vld [vmem:[#allocation6 + $0xb8] sm:$0xff]
    %v188 = vld [vmem:[#allocation6 + $0xc0] sm:$0xff]
    %v189 = vld [vmem:[#allocation6 + $0xc8] sm:$0xff]
    %v190 = vld [vmem:[#allocation6 + $0xd0] sm:$0xff]
    %v191 = vld [vmem:[#allocation6 + $0xd8] sm:$0xff]
    %v192 = vld [vmem:[#allocation6 + $0xe0] sm:$0xff]
    %v193 = vld [vmem:[#allocation6 + $0xe8] sm:$0xff]
    %v194 = vld [vmem:[#allocation6 + $0xf0] sm:$0xff]
    %v195 = vld [vmem:[#allocation6 + $0xf8] sm:$0xff]
    %v196 = vld [vmem:[#allocation6 + $0x100] sm:$0xff]
    %v197 = vld [vmem:[#allocation6 + $0x108] sm:$0xff]
    %v198 = vld [vmem:[#allocation6 + $0x110] sm:$0xff]
    %v199 = vld [vmem:[#allocation6 + $0x118] sm:$0xff]
    %v200 = vld [vmem:[#allocation6 + $0x120] sm:$0xff]
    %v201 = vld [vmem:[#allocation6 + $0x128] sm:$0xff]
    %v202 = vld [vmem:[#allocation6 + $0x130] sm:$0xff]
    %v203 = vld [vmem:[#allocation6 + $0x138] sm:$0xff]
    %v204 = vld [vmem:[#allocation6 + $0x140] sm:$0xff]
    %v205 = vld [vmem:[#allocation6 + $0x148] sm:$0xff]
    %v206 = vld [vmem:[#allocation6 + $0x150] sm:$0xff]
    %v207 = vld [vmem:[#allocation6 + $0x158] sm:$0xff]
    %v208 = vld [vmem:[#allocation6 + $0x160] sm:$0xff]
    %v209 = vld [vmem:[#allocation6 + $0x168] sm:$0xff]
    %v210 = vld [vmem:[#allocation6 + $0x170] sm:$0xff]
    %v211 = vld [vmem:[#allocation6 + $0x178] sm:$0xff]
    %v212 = vld [vmem:[#allocation6 + $0x180] sm:$0xff]
    %v213 = vld [vmem:[#allocation6 + $0x188] sm:$0xff]
    %v214 = vld [vmem:[#allocation6 + $0x190] sm:$0xff]
    %v215 = vld [vmem:[#allocation6 + $0x198] sm:$0xff]
    %v216 = vld [vmem:[#allocation6 + $0x1a0] sm:$0xff]
    %v217 = vld [vmem:[#allocation6 + $0x1a8] sm:$0xff]
    %v218 = vld [vmem:[#allocation6 + $0x1b0] sm:$0xff]
    %v219 = vld [vmem:[#allocation6 + $0x1b8] sm:$0xff]
    %v220 = vld [vmem:[#allocation6 + $0x1c0] sm:$0xff]
    %v221 = vld [vmem:[#allocation6 + $0x1c8] sm:$0xff]
    %v222 = vld [vmem:[#allocation6 + $0x1d0] sm:$0xff]
    %v223 = vld [vmem:[#allocation6 + $0x1d8] sm:$0xff]
    %v224 = vld [vmem:[#allocation6 + $0x1e0] sm:$0xff]
    %v225 = vld [vmem:[#allocation6 + $0x1e8] sm:$0xff]
    %v226 = vld [vmem:[#allocation6 + $0x1f0] sm:$0xff]
    %v227 = vld [vmem:[#allocation6 + $0x1f8] sm:$0xff]
    %v228 = vld [vmem:[#allocation6 + $0x200] sm:$0xff]
    %v229 = vld [vmem:[#allocation6 + $0x208] sm:$0xff]
    %v230 = vld [vmem:[#allocation6 + $0x210] sm:$0xff]
    %v231 = vld [vmem:[#allocation6 + $0x218] sm:$0xff]
    %v232 = vld [vmem:[#allocation6 + $0x220] sm:$0xff]
    %v233 = vld [vmem:[#allocation6 + $0x228] sm:$0xff]
    %v234 = vld [vmem:[#allocation6 + $0x230] sm:$0xff]
    %v235 = vld [vmem:[#allocation6 + $0x238] sm:$0xff]
    %v236 = vld [vmem:[#allocation6 + $0x240] sm:$0xff]
    %v237 = vld [vmem:[#allocation6 + $0x248] sm:$0xff]
    %v238 = vld [vmem:[#allocation6 + $0x250] sm:$0xff]
    %v239 = vld [vmem:[#allocation6 + $0x258] sm:$0xff]
    %v240 = vld [vmem:[#allocation6 + $0x260] sm:$0xff]
    %v241 = vld [vmem:[#allocation6 + $0x268] sm:$0xff]
    %v242 = vld [vmem:[#allocation6 + $0x270] sm:$0xff]
    %v243 = vld [vmem:[#allocation6 + $0x278] sm:$0xff]
    %v244 = vld [vmem:[#allocation6 + $0x280] sm:$0xff]
    %v245 = vld [vmem:[#allocation6 + $0x288] sm:$0xff]
    %v246 = vld [vmem:[#allocation6 + $0x290] sm:$0xff]
    %v247 = vld [vmem:[#allocation6 + $0x298] sm:$0xff]
    %v248 = vld [vmem:[#allocation6 + $0x2a0] sm:$0xff]
    %v249 = vld [vmem:[#allocation6 + $0x2a8] sm:$0xff]
    %v250 = vld [vmem:[#allocation6 + $0x2b0] sm:$0xff]
    %v251 = vld [vmem:[#allocation6 + $0x2b8] sm:$0xff]
    %v252 = vld [vmem:[#allocation6 + $0x2c0] sm:$0xff]
    %v253 = vld [vmem:[#allocation6 + $0x2c8] sm:$0xff]
    %v254 = vld [vmem:[#allocation6 + $0x2d0] sm:$0xff]
    %v255 = vld [vmem:[#allocation6 + $0x2d8] sm:$0xff]
    %v256 = vld [vmem:[#allocation6 + $0x2e0] sm:$0xff]
    %v257 = vld [vmem:[#allocation6 + $0x2e8] sm:$0xff]
    %v258 = vld [vmem:[#allocation6 + $0x2f0] sm:$0xff]
    %v259 = vld [vmem:[#allocation6 + $0x2f8] sm:$0xff]
    %v260 = vld [vmem:[#allocation6 + $0x300] sm:$0xff]
    %v261 = vld [vmem:[#allocation6 + $0x308] sm:$0xff]
    %v262 = vld [vmem:[#allocation6 + $0x310] sm:$0xff]
    %v263 = vld [vmem:[#allocation6 + $0x318] sm:$0xff]
    %v264 = vld [vmem:[#allocation6 + $0x320] sm:$0xff]
    %v265 = vld [vmem:[#allocation6 + $0x328] sm:$0xff]
    %v266 = vld [vmem:[#allocation6 + $0x330] sm:$0xff]
    %v267 = vld [vmem:[#allocation6 + $0x338] sm:$0xff]
    %v268 = vld [vmem:[#allocation6 + $0x340] sm:$0xff]
    %v269 = vld [vmem:[#allocation6 + $0x348] sm:$0xff]
    %v270 = vld [vmem:[#allocation6 + $0x350] sm:$0xff]
    %v271 = vld [vmem:[#allocation6 + $0x358] sm:$0xff]
    %v272 = vld [vmem:[#allocation6 + $0x360] sm:$0xff]
    %v273 = vld [vmem:[#allocation6 + $0x368] sm:$0xff]
    %v274 = vld [vmem:[#allocation6 + $0x370] sm:$0xff]
    %v275 = vld [vmem:[#allocation6 + $0x378] sm:$0xff]
    %v276 = vld [vmem:[#allocation6 + $0x380] sm:$0xff]
    %v277 = vld [vmem:[#allocation6 + $0x388] sm:$0xff]
    %v278 = vld [vmem:[#allocation6 + $0x390] sm:$0xff]
    %v279 = vld [vmem:[#allocation6 + $0x398] sm:$0xff]
    %v280 = vld [vmem:[#allocation6 + $0x3a0] sm:$0xff]
    %v281 = vld [vmem:[#allocation6 + $0x3a8] sm:$0xff]
    %v282 = vld [vmem:[#allocation6 + $0x3b0] sm:$0xff]
    %v283 = vld [vmem:[#allocation6 + $0x3b8] sm:$0xff]
    %v284 = vld [vmem:[#allocation6 + $0x3c0] sm:$0xff]
    %v285 = vld [vmem:[#allocation6 + $0x3c8] sm:$0xff]
    %v286 = vld [vmem:[#allocation6 + $0x3d0] sm:$0xff]
    %v287 = vld [vmem:[#allocation6 + $0x3d8] sm:$0xff]
    %v288 = vld [vmem:[#allocation6 + $0x3e0] sm:$0xff]
    %v289 = vld [vmem:[#allocation6 + $0x3e8] sm:$0xff]
    %v290 = vld [vmem:[#allocation6 + $0x3f0] sm:$0xff]
    %v291 = vld [vmem:[#allocation6 + $0x3f8] sm:$0xff]
    %v292 = vld [vmem:[#allocation6 + $0x400] sm:$0xff]
    %v293 = vld [vmem:[#allocation6 + $0x408] sm:$0xff]
    %v294 = vld [vmem:[#allocation6 + $0x410] sm:$0xff]
    %v295 = vld [vmem:[#allocation6 + $0x418] sm:$0xff]
    %v296 = vld [vmem:[#allocation6 + $0x420] sm:$0xff]
    %v297 = vld [vmem:[#allocation6 + $0x428] sm:$0xff]
    %v298 = vld [vmem:[#allocation6 + $0x430] sm:$0xff]
    %v299 = vld [vmem:[#allocation6 + $0x438] sm:$0xff]
    %v300 = vld [vmem:[#allocation6 + $0x440] sm:$0xff]
    %v301 = vld [vmem:[#allocation6 + $0x448] sm:$0xff]
    %v302 = vld [vmem:[#allocation6 + $0x450] sm:$0xff]
    %v303 = vld [vmem:[#allocation6 + $0x458] sm:$0xff]
    %v304 = vld [vmem:[#allocation6 + $0x460] sm:$0xff]
    %v305 = vld [vmem:[#allocation6 + $0x468] sm:$0xff]
    %v306 = vld [vmem:[#allocation6 + $0x470] sm:$0xff]
    %v307 = vld [vmem:[#allocation6 + $0x478] sm:$0xff]
    %v308 = vld [vmem:[#allocation6 + $0x480] sm:$0xff]
    %v309 = vld [vmem:[#allocation6 + $0x488] sm:$0xff]
    %v310 = vld [vmem:[#allocation6 + $0x490] sm:$0xff]
    %v311 = vld [vmem:[#allocation6 + $0x498] sm:$0xff]
    %v312 = vld [vmem:[#allocation6 + $0x4a0] sm:$0xff]
    %v313 = vld [vmem:[#allocation6 + $0x4a8] sm:$0xff]
    %v314 = vld [vmem:[#allocation6 + $0x4b0] sm:$0xff]
    %v315 = vld [vmem:[#allocation6 + $0x4b8] sm:$0xff]
    %v316 = vld [vmem:[#allocation6 + $0x4c0] sm:$0xff]
    %v317 = vld [vmem:[#allocation6 + $0x4c8] sm:$0xff]
    %v318 = vld [vmem:[#allocation6 + $0x4d0] sm:$0xff]
    %v319 = vld [vmem:[#allocation6 + $0x4d8] sm:$0xff]
    %v320 = vld [vmem:[#allocation6 + $0x4e0] sm:$0xff]
    %v321 = vld [vmem:[#allocation6 + $0x4e8] sm:$0xff]
    %v322 = vld [vmem:[#allocation6 + $0x4f0] sm:$0xff]
    %v323 = vld [vmem:[#allocation6 + $0x4f8] sm:$0xff]
    %v324 = vld [vmem:[#allocation6 + $0x500] sm:$0xff]
    %v325 = vld [vmem:[#allocation6 + $0x508] sm:$0xff]
    %v326 = vld [vmem:[#allocation6 + $0x510] sm:$0xff]
    %v327 = vld [vmem:[#allocation6 + $0x518] sm:$0xff]
    %v328 = vld [vmem:[#allocation6 + $0x520] sm:$0xff]
    %v329 = vld [vmem:[#allocation6 + $0x528] sm:$0xff]
    %v330 = vld [vmem:[#allocation6 + $0x530] sm:$0xff]
    %v331 = vld [vmem:[#allocation6 + $0x538] sm:$0xff]
    %v332 = vld [vmem:[#allocation6 + $0x540] sm:$0xff]
    %v333 = vld [vmem:[#allocation6 + $0x548] sm:$0xff]
    %v334 = vld [vmem:[#allocation6 + $0x550] sm:$0xff]
    %v335 = vld [vmem:[#allocation6 + $0x558] sm:$0xff]
    %v336 = vld [vmem:[#allocation6 + $0x560] sm:$0xff]
    %v337 = vld [vmem:[#allocation6 + $0x568] sm:$0xff]
    %v338 = vld [vmem:[#allocation6 + $0x570] sm:$0xff]
    %v339 = vld [vmem:[#allocation6 + $0x578] sm:$0xff]
    %v340 = vld [vmem:[#allocation6 + $0x580] sm:$0xff]
    %v341 = vld [vmem:[#allocation6 + $0x588] sm:$0xff]
    %v342 = vld [vmem:[#allocation6 + $0x590] sm:$0xff]
    %v343 = vld [vmem:[#allocation6 + $0x598] sm:$0xff]
    %v344 = vld [vmem:[#allocation6 + $0x5a0] sm:$0xff]
    %v345 = vld [vmem:[#allocation6 + $0x5a8] sm:$0xff]
    %v346 = vld [vmem:[#allocation6 + $0x5b0] sm:$0xff]
    %v347 = vld [vmem:[#allocation6 + $0x5b8] sm:$0xff]
    %v348 = vld [vmem:[#allocation6 + $0x5c0] sm:$0xff]
    %v349 = vld [vmem:[#allocation6 + $0x5c8] sm:$0xff]
    %v350 = vld [vmem:[#allocation6 + $0x5d0] sm:$0xff]
    %v351 = vld [vmem:[#allocation6 + $0x5d8] sm:$0xff]
    %v352 = vld [vmem:[#allocation6 + $0x5e0] sm:$0xff]
    %v353 = vld [vmem:[#allocation6 + $0x5e8] sm:$0xff]
    %v354 = vld [vmem:[#allocation6 + $0x5f0] sm:$0xff]
    %v355 = vld [vmem:[#allocation6 + $0x5f8] sm:$0xff]
    %v356 = vld [vmem:[#allocation6 + $0x600] sm:$0xff]
    %v357 = vld [vmem:[#allocation6 + $0x608] sm:$0xff]
    %v358 = vld [vmem:[#allocation6 + $0x610] sm:$0xff]
    %v359 = vld [vmem:[#allocation6 + $0x618] sm:$0xff]
    %v360 = vld [vmem:[#allocation6 + $0x620] sm:$0xff]
    %v361 = vld [vmem:[#allocation6 + $0x628] sm:$0xff]
    %v362 = vld [vmem:[#allocation6 + $0x630] sm:$0xff]
    %v363 = vld [vmem:[#allocation6 + $0x638] sm:$0xff]
    %v364 = vld [vmem:[#allocation6 + $0x640] sm:$0xff]
    %v365 = vld [vmem:[#allocation6 + $0x648] sm:$0xff]
    %v366 = vld [vmem:[#allocation6 + $0x650] sm:$0xff]
    %v367 = vld [vmem:[#allocation6 + $0x658] sm:$0xff]
    %v368 = vld [vmem:[#allocation6 + $0x660] sm:$0xff]
    %v369 = vld [vmem:[#allocation6 + $0x668] sm:$0xff]
    %v370 = vld [vmem:[#allocation6 + $0x670] sm:$0xff]
    %v371 = vld [vmem:[#allocation6 + $0x678] sm:$0xff]
    %v372 = vld [vmem:[#allocation6 + $0x680] sm:$0xff]
    %v373 = vld [vmem:[#allocation6 + $0x688] sm:$0xff]
    %v374 = vld [vmem:[#allocation6 + $0x690] sm:$0xff]
    %v375 = vld [vmem:[#allocation6 + $0x698] sm:$0xff]
    %v376 = vld [vmem:[#allocation6 + $0x6a0] sm:$0xff]
    %v377 = vld [vmem:[#allocation6 + $0x6a8] sm:$0xff]
    %v378 = vld [vmem:[#allocation6 + $0x6b0] sm:$0xff]
    %v379 = vld [vmem:[#allocation6 + $0x6b8] sm:$0xff]
    %v380 = vld [vmem:[#allocation6 + $0x6c0] sm:$0xff]
    %v381 = vld [vmem:[#allocation6 + $0x6c8] sm:$0xff]
    %v382 = vld [vmem:[#allocation6 + $0x6d0] sm:$0xff]
    %v383 = vld [vmem:[#allocation6 + $0x6d8] sm:$0xff]
    %v384 = vld [vmem:[#allocation6 + $0x6e0] sm:$0xff]
    %v385 = vld [vmem:[#allocation6 + $0x6e8] sm:$0xff]
    %v386 = vld [vmem:[#allocation6 + $0x6f0] sm:$0xff]
    %v387 = vld [vmem:[#allocation6 + $0x6f8] sm:$0xff]
    %v388 = vld [vmem:[#allocation6 + $0x700] sm:$0xff]
    %v389 = vld [vmem:[#allocation6 + $0x708] sm:$0xff]
    %v390 = vld [vmem:[#allocation6 + $0x710] sm:$0xff]
    %v391 = vld [vmem:[#allocation6 + $0x718] sm:$0xff]
    %v392 = vld [vmem:[#allocation6 + $0x720] sm:$0xff]
    %v393 = vld [vmem:[#allocation6 + $0x728] sm:$0xff]
    %v394 = vld [vmem:[#allocation6 + $0x730] sm:$0xff]
    %v395 = vld [vmem:[#allocation6 + $0x738] sm:$0xff]
    %v396 = vld [vmem:[#allocation6 + $0x740] sm:$0xff]
    %v397 = vld [vmem:[#allocation6 + $0x748] sm:$0xff]
    %v398 = vld [vmem:[#allocation6 + $0x750] sm:$0xff]
    %v399 = vld [vmem:[#allocation6 + $0x758] sm:$0xff]
    %v400 = vld [vmem:[#allocation6 + $0x760] sm:$0xff]
    %v401 = vld [vmem:[#allocation6 + $0x768] sm:$0xff]
    %v402 = vld [vmem:[#allocation6 + $0x770] sm:$0xff]
    %v403 = vld [vmem:[#allocation6 + $0x778] sm:$0xff]
    %v404 = vld [vmem:[#allocation6 + $0x780] sm:$0xff]
    %v405 = vld [vmem:[#allocation6 + $0x788] sm:$0xff]
    %v406 = vld [vmem:[#allocation6 + $0x790] sm:$0xff]
    %v407 = vld [vmem:[#allocation6 + $0x798] sm:$0xff]
    %v408 = vld [vmem:[#allocation6 + $0x7a0] sm:$0xff]
    %v409 = vld [vmem:[#allocation6 + $0x7a8] sm:$0xff]
    %v410 = vld [vmem:[#allocation6 + $0x7b0] sm:$0xff]
    %v411 = vld [vmem:[#allocation6 + $0x7b8] sm:$0xff]
    %v412 = vld [vmem:[#allocation6 + $0x7c0] sm:$0xff]
    %v413 = vld [vmem:[#allocation6 + $0x7c8] sm:$0xff]
    %v414 = vld [vmem:[#allocation6 + $0x7d0] sm:$0xff]
    %v415 = vld [vmem:[#allocation6 + $0x7d8] sm:$0xff]
    %v416 = vld [vmem:[#allocation6 + $0x7e0] sm:$0xff]
    %v417 = vld [vmem:[#allocation6 + $0x7e8] sm:$0xff]
    %v418 = vld [vmem:[#allocation6 + $0x7f0] sm:$0xff]
    %v419 = vld [vmem:[#allocation6 + $0x7f8] sm:$0xff]
    %v420 = vld [vmem:[%s3] sm:$0x3]
    %v422 = vperm.slane %v420, 0
    %v423 = vperm.slane %v420, 1
    %v682 = vunpack.c.l.b16 %v164
    %v683 = vunpack.c.h.b16 %v164
    %v684 = vunpack.c.l.b16 %v165
    %v685 = vunpack.c.h.b16 %v165
    %v686 = vunpack.c.l.b16 %v166
    %v687 = vunpack.c.h.b16 %v166
    %v688 = vunpack.c.l.b16 %v167
    %v689 = vunpack.c.h.b16 %v167
    %v690 = vunpack.c.l.b16 %v168
    %v691 = vunpack.c.h.b16 %v168
    %v692 = vunpack.c.l.b16 %v169
    %v693 = vunpack.c.h.b16 %v169
    %v694 = vunpack.c.l.b16 %v170
    %v695 = vunpack.c.h.b16 %v170
    %v696 = vunpack.c.l.b16 %v171
    %v697 = vunpack.c.h.b16 %v171
    %v698 = vunpack.c.l.b16 %v172
    %v699 = vunpack.c.h.b16 %v172
    %v700 = vunpack.c.l.b16 %v173
    %v701 = vunpack.c.h.b16 %v173
    %v702 = vunpack.c.l.b16 %v174
    %v703 = vunpack.c.h.b16 %v174
    %v704 = vunpack.c.l.b16 %v175
    %v705 = vunpack.c.h.b16 %v175
    %v706 = vunpack.c.l.b16 %v176
    %v707 = vunpack.c.h.b16 %v176
    %v708 = vunpack.c.l.b16 %v177
    %v709 = vunpack.c.h.b16 %v177
    %v710 = vunpack.c.l.b16 %v178
    %v711 = vunpack.c.h.b16 %v178
    %v712 = vunpack.c.l.b16 %v179
    %v713 = vunpack.c.h.b16 %v179
    %v714 = vunpack.c.l.b16 %v180
    %v715 = vunpack.c.h.b16 %v180
    %v716 = vunpack.c.l.b16 %v181
    %v717 = vunpack.c.h.b16 %v181
    %v718 = vunpack.c.l.b16 %v182
    %v719 = vunpack.c.h.b16 %v182
    %v720 = vunpack.c.l.b16 %v183
    %v721 = vunpack.c.h.b16 %v183
    %v722 = vunpack.c.l.b16 %v184
    %v723 = vunpack.c.h.b16 %v184
    %v724 = vunpack.c.l.b16 %v185
    %v725 = vunpack.c.h.b16 %v185
    %v726 = vunpack.c.l.b16 %v186
    %v727 = vunpack.c.h.b16 %v186
    %v728 = vunpack.c.l.b16 %v187
    %v729 = vunpack.c.h.b16 %v187
    %v730 = vunpack.c.l.b16 %v188
    %v731 = vunpack.c.h.b16 %v188
    %v732 = vunpack.c.l.b16 %v189
    %v733 = vunpack.c.h.b16 %v189
    %v734 = vunpack.c.l.b16 %v190
    %v735 = vunpack.c.h.b16 %v190
    %v736 = vunpack.c.l.b16 %v191
    %v737 = vunpack.c.h.b16 %v191
    %v738 = vunpack.c.l.b16 %v192
    %v739 = vunpack.c.h.b16 %v192
    %v740 = vunpack.c.l.b16 %v193
    %v741 = vunpack.c.h.b16 %v193
    %v742 = vunpack.c.l.b16 %v194
    %v743 = vunpack.c.h.b16 %v194
    %v744 = vunpack.c.l.b16 %v195
    %v745 = vunpack.c.h.b16 %v195
    %v746 = vunpack.c.l.b16 %v196
    %v747 = vunpack.c.h.b16 %v196
    %v748 = vunpack.c.l.b16 %v197
    %v749 = vunpack.c.h.b16 %v197
    %v750 = vunpack.c.l.b16 %v198
    %v751 = vunpack.c.h.b16 %v198
    %v752 = vunpack.c.l.b16 %v199
    %v753 = vunpack.c.h.b16 %v199
    %v754 = vunpack.c.l.b16 %v200
    %v755 = vunpack.c.h.b16 %v200
    %v756 = vunpack.c.l.b16 %v201
    %v757 = vunpack.c.h.b16 %v201
    %v758 = vunpack.c.l.b16 %v202
    %v759 = vunpack.c.h.b16 %v202
    %v760 = vunpack.c.l.b16 %v203
    %v761 = vunpack.c.h.b16 %v203
    %v762 = vunpack.c.l.b16 %v204
    %v763 = vunpack.c.h.b16 %v204
    %v764 = vunpack.c.l.b16 %v205
    %v765 = vunpack.c.h.b16 %v205
    %v766 = vunpack.c.l.b16 %v206
    %v767 = vunpack.c.h.b16 %v206
    %v768 = vunpack.c.l.b16 %v207
    %v769 = vunpack.c.h.b16 %v207
    %v770 = vunpack.c.l.b16 %v208
    %v771 = vunpack.c.h.b16 %v208
    %v772 = vunpack.c.l.b16 %v209
    %v773 = vunpack.c.h.b16 %v209
    %v774 = vunpack.c.l.b16 %v210
    %v775 = vunpack.c.h.b16 %v210
    %v776 = vunpack.c.l.b16 %v211
    %v777 = vunpack.c.h.b16 %v211
    %v778 = vunpack.c.l.b16 %v212
    %v779 = vunpack.c.h.b16 %v212
    %v780 = vunpack.c.l.b16 %v213
    %v781 = vunpack.c.h.b16 %v213
    %v782 = vunpack.c.l.b16 %v214
    %v783 = vunpack.c.h.b16 %v214
    %v784 = vunpack.c.l.b16 %v215
    %v785 = vunpack.c.h.b16 %v215
    %v786 = vunpack.c.l.b16 %v216
    %v787 = vunpack.c.h.b16 %v216
    %v788 = vunpack.c.l.b16 %v217
    %v789 = vunpack.c.h.b16 %v217
    %v790 = vunpack.c.l.b16 %v218
    %v791 = vunpack.c.h.b16 %v218
    %v792 = vunpack.c.l.b16 %v219
    %v793 = vunpack.c.h.b16 %v219
    %v794 = vunpack.c.l.b16 %v220
    %v795 = vunpack.c.h.b16 %v220
    %v796 = vunpack.c.l.b16 %v221
    %v797 = vunpack.c.h.b16 %v221
    %v798 = vunpack.c.l.b16 %v222
    %v799 = vunpack.c.h.b16 %v222
    %v800 = vunpack.c.l.b16 %v223
    %v801 = vunpack.c.h.b16 %v223
    %v802 = vunpack.c.l.b16 %v224
    %v803 = vunpack.c.h.b16 %v224
    %v804 = vunpack.c.l.b16 %v225
    %v805 = vunpack.c.h.b16 %v225
    %v806 = vunpack.c.l.b16 %v226
    %v807 = vunpack.c.h.b16 %v226
    %v808 = vunpack.c.l.b16 %v227
    %v809 = vunpack.c.h.b16 %v227
    %v810 = vunpack.c.l.b16 %v228
    %v811 = vunpack.c.h.b16 %v228
    %v812 = vunpack.c.l.b16 %v229
    %v813 = vunpack.c.h.b16 %v229
    %v814 = vunpack.c.l.b16 %v230
    %v815 = vunpack.c.h.b16 %v230
    %v816 = vunpack.c.l.b16 %v231
    %v817 = vunpack.c.h.b16 %v231
    %v818 = vunpack.c.l.b16 %v232
    %v819 = vunpack.c.h.b16 %v232
    %v820 = vunpack.c.l.b16 %v233
    %v821 = vunpack.c.h.b16 %v233
    %v822 = vunpack.c.l.b16 %v234
    %v823 = vunpack.c.h.b16 %v234
    %v824 = vunpack.c.l.b16 %v235
    %v825 = vunpack.c.h.b16 %v235
    %v826 = vunpack.c.l.b16 %v236
    %v827 = vunpack.c.h.b16 %v236
    %v828 = vunpack.c.l.b16 %v237
    %v829 = vunpack.c.h.b16 %v237
    %v830 = vunpack.c.l.b16 %v238
    %v831 = vunpack.c.h.b16 %v238
    %v832 = vunpack.c.l.b16 %v239
    %v833 = vunpack.c.h.b16 %v239
    %v834 = vunpack.c.l.b16 %v240
    %v835 = vunpack.c.h.b16 %v240
    %v836 = vunpack.c.l.b16 %v241
    %v837 = vunpack.c.h.b16 %v241
    %v838 = vunpack.c.l.b16 %v242
    %v839 = vunpack.c.h.b16 %v242
    %v840 = vunpack.c.l.b16 %v243
    %v841 = vunpack.c.h.b16 %v243
    %v842 = vunpack.c.l.b16 %v244
    %v843 = vunpack.c.h.b16 %v244
    %v844 = vunpack.c.l.b16 %v245
    %v845 = vunpack.c.h.b16 %v245
    %v846 = vunpack.c.l.b16 %v246
    %v847 = vunpack.c.h.b16 %v246
    %v848 = vunpack.c.l.b16 %v247
    %v849 = vunpack.c.h.b16 %v247
    %v850 = vunpack.c.l.b16 %v248
    %v851 = vunpack.c.h.b16 %v248
    %v852 = vunpack.c.l.b16 %v249
    %v853 = vunpack.c.h.b16 %v249
    %v854 = vunpack.c.l.b16 %v250
    %v855 = vunpack.c.h.b16 %v250
    %v856 = vunpack.c.l.b16 %v251
    %v857 = vunpack.c.h.b16 %v251
    %v858 = vunpack.c.l.b16 %v252
    %v859 = vunpack.c.h.b16 %v252
    %v860 = vunpack.c.l.b16 %v253
    %v861 = vunpack.c.h.b16 %v253
    %v862 = vunpack.c.l.b16 %v254
    %v863 = vunpack.c.h.b16 %v254
    %v864 = vunpack.c.l.b16 %v255
    %v865 = vunpack.c.h.b16 %v255
    %v866 = vunpack.c.l.b16 %v256
    %v867 = vunpack.c.h.b16 %v256
    %v868 = vunpack.c.l.b16 %v257
    %v869 = vunpack.c.h.b16 %v257
    %v870 = vunpack.c.l.b16 %v258
    %v871 = vunpack.c.h.b16 %v258
    %v872 = vunpack.c.l.b16 %v259
    %v873 = vunpack.c.h.b16 %v259
    %v874 = vunpack.c.l.b16 %v260
    %v875 = vunpack.c.h.b16 %v260
    %v876 = vunpack.c.l.b16 %v261
    %v877 = vunpack.c.h.b16 %v261
    %v878 = vunpack.c.l.b16 %v262
    %v879 = vunpack.c.h.b16 %v262
    %v880 = vunpack.c.l.b16 %v263
    %v881 = vunpack.c.h.b16 %v263
    %v882 = vunpack.c.l.b16 %v264
    %v883 = vunpack.c.h.b16 %v264
    %v884 = vunpack.c.l.b16 %v265
    %v885 = vunpack.c.h.b16 %v265
    %v886 = vunpack.c.l.b16 %v266
    %v887 = vunpack.c.h.b16 %v266
    %v888 = vunpack.c.l.b16 %v267
    %v889 = vunpack.c.h.b16 %v267
    %v890 = vunpack.c.l.b16 %v268
    %v891 = vunpack.c.h.b16 %v268
    %v892 = vunpack.c.l.b16 %v269
    %v893 = vunpack.c.h.b16 %v269
    %v894 = vunpack.c.l.b16 %v270
    %v895 = vunpack.c.h.b16 %v270
    %v896 = vunpack.c.l.b16 %v271
    %v897 = vunpack.c.h.b16 %v271
    %v898 = vunpack.c.l.b16 %v272
    %v899 = vunpack.c.h.b16 %v272
    %v900 = vunpack.c.l.b16 %v273
    %v901 = vunpack.c.h.b16 %v273
    %v902 = vunpack.c.l.b16 %v274
    %v903 = vunpack.c.h.b16 %v274
    %v904 = vunpack.c.l.b16 %v275
    %v905 = vunpack.c.h.b16 %v275
    %v906 = vunpack.c.l.b16 %v276
    %v907 = vunpack.c.h.b16 %v276
    %v908 = vunpack.c.l.b16 %v277
    %v909 = vunpack.c.h.b16 %v277
    %v910 = vunpack.c.l.b16 %v278
    %v911 = vunpack.c.h.b16 %v278
    %v912 = vunpack.c.l.b16 %v279
    %v913 = vunpack.c.h.b16 %v279
    %v914 = vunpack.c.l.b16 %v280
    %v915 = vunpack.c.h.b16 %v280
    %v916 = vunpack.c.l.b16 %v281
    %v917 = vunpack.c.h.b16 %v281
    %v918 = vunpack.c.l.b16 %v282
    %v919 = vunpack.c.h.b16 %v282
    %v920 = vunpack.c.l.b16 %v283
    %v921 = vunpack.c.h.b16 %v283
    %v922 = vunpack.c.l.b16 %v284
    %v923 = vunpack.c.h.b16 %v284
    %v924 = vunpack.c.l.b16 %v285
    %v925 = vunpack.c.h.b16 %v285
    %v926 = vunpack.c.l.b16 %v286
    %v927 = vunpack.c.h.b16 %v286
    %v928 = vunpack.c.l.b16 %v287
    %v929 = vunpack.c.h.b16 %v287
    %v930 = vunpack.c.l.b16 %v288
    %v931 = vunpack.c.h.b16 %v288
    %v932 = vunpack.c.l.b16 %v289
    %v933 = vunpack.c.h.b16 %v289
    %v934 = vunpack.c.l.b16 %v290
    %v935 = vunpack.c.h.b16 %v290
    %v936 = vunpack.c.l.b16 %v291
    %v937 = vunpack.c.h.b16 %v291
    %v938 = vunpack.c.l.b16 %v292
    %v939 = vunpack.c.h.b16 %v292
    %v940 = vunpack.c.l.b16 %v293
    %v941 = vunpack.c.h.b16 %v293
    %v942 = vunpack.c.l.b16 %v294
    %v943 = vunpack.c.h.b16 %v294
    %v944 = vunpack.c.l.b16 %v295
    %v945 = vunpack.c.h.b16 %v295
    %v946 = vunpack.c.l.b16 %v296
    %v947 = vunpack.c.h.b16 %v296
    %v948 = vunpack.c.l.b16 %v297
    %v949 = vunpack.c.h.b16 %v297
    %v950 = vunpack.c.l.b16 %v298
    %v951 = vunpack.c.h.b16 %v298
    %v952 = vunpack.c.l.b16 %v299
    %v953 = vunpack.c.h.b16 %v299
    %v954 = vunpack.c.l.b16 %v300
    %v955 = vunpack.c.h.b16 %v300
    %v956 = vunpack.c.l.b16 %v301
    %v957 = vunpack.c.h.b16 %v301
    %v958 = vunpack.c.l.b16 %v302
    %v959 = vunpack.c.h.b16 %v302
    %v960 = vunpack.c.l.b16 %v303
    %v961 = vunpack.c.h.b16 %v303
    %v962 = vunpack.c.l.b16 %v304
    %v963 = vunpack.c.h.b16 %v304
    %v964 = vunpack.c.l.b16 %v305
    %v965 = vunpack.c.h.b16 %v305
    %v966 = vunpack.c.l.b16 %v306
    %v967 = vunpack.c.h.b16 %v306
    %v968 = vunpack.c.l.b16 %v307
    %v969 = vunpack.c.h.b16 %v307
    %v970 = vunpack.c.l.b16 %v308
    %v971 = vunpack.c.h.b16 %v308
    %v972 = vunpack.c.l.b16 %v309
    %v973 = vunpack.c.h.b16 %v309
    %v974 = vunpack.c.l.b16 %v310
    %v975 = vunpack.c.h.b16 %v310
    %v976 = vunpack.c.l.b16 %v311
    %v977 = vunpack.c.h.b16 %v311
    %v978 = vunpack.c.l.b16 %v312
    %v979 = vunpack.c.h.b16 %v312
    %v980 = vunpack.c.l.b16 %v313
    %v981 = vunpack.c.h.b16 %v313
    %v982 = vunpack.c.l.b16 %v314
    %v983 = vunpack.c.h.b16 %v314
    %v984 = vunpack.c.l.b16 %v315
    %v985 = vunpack.c.h.b16 %v315
    %v986 = vunpack.c.l.b16 %v316
    %v987 = vunpack.c.h.b16 %v316
    %v988 = vunpack.c.l.b16 %v317
    %v989 = vunpack.c.h.b16 %v317
    %v990 = vunpack.c.l.b16 %v318
    %v991 = vunpack.c.h.b16 %v318
    %v992 = vunpack.c.l.b16 %v319
    %v993 = vunpack.c.h.b16 %v319
    %v994 = vunpack.c.l.b16 %v320
    %v995 = vunpack.c.h.b16 %v320
    %v996 = vunpack.c.l.b16 %v321
    %v997 = vunpack.c.h.b16 %v321
    %v998 = vunpack.c.l.b16 %v322
    %v999 = vunpack.c.h.b16 %v322
    %v1000 = vunpack.c.l.b16 %v323
    %v1001 = vunpack.c.h.b16 %v323
    %v1002 = vunpack.c.l.b16 %v324
    %v1003 = vunpack.c.h.b16 %v324
    %v1004 = vunpack.c.l.b16 %v325
    %v1005 = vunpack.c.h.b16 %v325
    %v1006 = vunpack.c.l.b16 %v326
    %v1007 = vunpack.c.h.b16 %v326
    %v1008 = vunpack.c.l.b16 %v327
    %v1009 = vunpack.c.h.b16 %v327
    %v1010 = vunpack.c.l.b16 %v328
    %v1011 = vunpack.c.h.b16 %v328
    %v1012 = vunpack.c.l.b16 %v329
    %v1013 = vunpack.c.h.b16 %v329
    %v1014 = vunpack.c.l.b16 %v330
    %v1015 = vunpack.c.h.b16 %v330
    %v1016 = vunpack.c.l.b16 %v331
    %v1017 = vunpack.c.h.b16 %v331
    %v1018 = vunpack.c.l.b16 %v332
    %v1019 = vunpack.c.h.b16 %v332
    %v1020 = vunpack.c.l.b16 %v333
    %v1021 = vunpack.c.h.b16 %v333
    %v1022 = vunpack.c.l.b16 %v334
    %v1023 = vunpack.c.h.b16 %v334
    %v1024 = vunpack.c.l.b16 %v335
    %v1025 = vunpack.c.h.b16 %v335
    %v1026 = vunpack.c.l.b16 %v336
    %v1027 = vunpack.c.h.b16 %v336
    %v1028 = vunpack.c.l.b16 %v337
    %v1029 = vunpack.c.h.b16 %v337
    %v1030 = vunpack.c.l.b16 %v338
    %v1031 = vunpack.c.h.b16 %v338
    %v1032 = vunpack.c.l.b16 %v339
    %v1033 = vunpack.c.h.b16 %v339
    %v1034 = vunpack.c.l.b16 %v340
    %v1035 = vunpack.c.h.b16 %v340
    %v1036 = vunpack.c.l.b16 %v341
    %v1037 = vunpack.c.h.b16 %v341
    %v1038 = vunpack.c.l.b16 %v342
    %v1039 = vunpack.c.h.b16 %v342
    %v1040 = vunpack.c.l.b16 %v343
    %v1041 = vunpack.c.h.b16 %v343
    %v1042 = vunpack.c.l.b16 %v344
    %v1043 = vunpack.c.h.b16 %v344
    %v1044 = vunpack.c.l.b16 %v345
    %v1045 = vunpack.c.h.b16 %v345
    %v1046 = vunpack.c.l.b16 %v346
    %v1047 = vunpack.c.h.b16 %v346
    %v1048 = vunpack.c.l.b16 %v347
    %v1049 = vunpack.c.h.b16 %v347
    %v1050 = vunpack.c.l.b16 %v348
    %v1051 = vunpack.c.h.b16 %v348
    %v1052 = vunpack.c.l.b16 %v349
    %v1053 = vunpack.c.h.b16 %v349
    %v1054 = vunpack.c.l.b16 %v350
    %v1055 = vunpack.c.h.b16 %v350
    %v1056 = vunpack.c.l.b16 %v351
    %v1057 = vunpack.c.h.b16 %v351
    %v1058 = vunpack.c.l.b16 %v352
    %v1059 = vunpack.c.h.b16 %v352
    %v1060 = vunpack.c.l.b16 %v353
    %v1061 = vunpack.c.h.b16 %v353
    %v1062 = vunpack.c.l.b16 %v354
    %v1063 = vunpack.c.h.b16 %v354
    %v1064 = vunpack.c.l.b16 %v355
    %v1065 = vunpack.c.h.b16 %v355
    %v1066 = vunpack.c.l.b16 %v356
    %v1067 = vunpack.c.h.b16 %v356
    %v1068 = vunpack.c.l.b16 %v357
    %v1069 = vunpack.c.h.b16 %v357
    %v1070 = vunpack.c.l.b16 %v358
    %v1071 = vunpack.c.h.b16 %v358
    %v1072 = vunpack.c.l.b16 %v359
    %v1073 = vunpack.c.h.b16 %v359
    %v1074 = vunpack.c.l.b16 %v360
    %v1075 = vunpack.c.h.b16 %v360
    %v1076 = vunpack.c.l.b16 %v361
    %v1077 = vunpack.c.h.b16 %v361
    %v1078 = vunpack.c.l.b16 %v362
    %v1079 = vunpack.c.h.b16 %v362
    %v1080 = vunpack.c.l.b16 %v363
    %v1081 = vunpack.c.h.b16 %v363
    %v1082 = vunpack.c.l.b16 %v364
    %v1083 = vunpack.c.h.b16 %v364
    %v1084 = vunpack.c.l.b16 %v365
    %v1085 = vunpack.c.h.b16 %v365
    %v1086 = vunpack.c.l.b16 %v366
    %v1087 = vunpack.c.h.b16 %v366
    %v1088 = vunpack.c.l.b16 %v367
    %v1089 = vunpack.c.h.b16 %v367
    %v1090 = vunpack.c.l.b16 %v368
    %v1091 = vunpack.c.h.b16 %v368
    %v1092 = vunpack.c.l.b16 %v369
    %v1093 = vunpack.c.h.b16 %v369
    %v1094 = vunpack.c.l.b16 %v370
    %v1095 = vunpack.c.h.b16 %v370
    %v1096 = vunpack.c.l.b16 %v371
    %v1097 = vunpack.c.h.b16 %v371
    %v1098 = vunpack.c.l.b16 %v372
    %v1099 = vunpack.c.h.b16 %v372
    %v1100 = vunpack.c.l.b16 %v373
    %v1101 = vunpack.c.h.b16 %v373
    %v1102 = vunpack.c.l.b16 %v374
    %v1103 = vunpack.c.h.b16 %v374
    %v1104 = vunpack.c.l.b16 %v375
    %v1105 = vunpack.c.h.b16 %v375
    %v1106 = vunpack.c.l.b16 %v376
    %v1107 = vunpack.c.h.b16 %v376
    %v1108 = vunpack.c.l.b16 %v377
    %v1109 = vunpack.c.h.b16 %v377
    %v1110 = vunpack.c.l.b16 %v378
    %v1111 = vunpack.c.h.b16 %v378
    %v1112 = vunpack.c.l.b16 %v379
    %v1113 = vunpack.c.h.b16 %v379
    %v1114 = vunpack.c.l.b16 %v380
    %v1115 = vunpack.c.h.b16 %v380
    %v1116 = vunpack.c.l.b16 %v381
    %v1117 = vunpack.c.h.b16 %v381
    %v1118 = vunpack.c.l.b16 %v382
    %v1119 = vunpack.c.h.b16 %v382
    %v1120 = vunpack.c.l.b16 %v383
    %v1121 = vunpack.c.h.b16 %v383
    %v1122 = vunpack.c.l.b16 %v384
    %v1123 = vunpack.c.h.b16 %v384
    %v1124 = vunpack.c.l.b16 %v385
    %v1125 = vunpack.c.h.b16 %v385
    %v1126 = vunpack.c.l.b16 %v386
    %v1127 = vunpack.c.h.b16 %v386
    %v1128 = vunpack.c.l.b16 %v387
    %v1129 = vunpack.c.h.b16 %v387
    %v1130 = vunpack.c.l.b16 %v388
    %v1131 = vunpack.c.h.b16 %v388
    %v1132 = vunpack.c.l.b16 %v389
    %v1133 = vunpack.c.h.b16 %v389
    %v1134 = vunpack.c.l.b16 %v390
    %v1135 = vunpack.c.h.b16 %v390
    %v1136 = vunpack.c.l.b16 %v391
    %v1137 = vunpack.c.h.b16 %v391
    %v1138 = vunpack.c.l.b16 %v392
    %v1139 = vunpack.c.h.b16 %v392
    %v1140 = vunpack.c.l.b16 %v393
    %v1141 = vunpack.c.h.b16 %v393
    %v1142 = vunpack.c.l.b16 %v394
    %v1143 = vunpack.c.h.b16 %v394
    %v1144 = vunpack.c.l.b16 %v395
    %v1145 = vunpack.c.h.b16 %v395
    %v1146 = vunpack.c.l.b16 %v396
    %v1147 = vunpack.c.h.b16 %v396
    %v1148 = vunpack.c.l.b16 %v397
    %v1149 = vunpack.c.h.b16 %v397
    %v1150 = vunpack.c.l.b16 %v398
    %v1151 = vunpack.c.h.b16 %v398
    %v1152 = vunpack.c.l.b16 %v399
    %v1153 = vunpack.c.h.b16 %v399
    %v1154 = vunpack.c.l.b16 %v400
    %v1155 = vunpack.c.h.b16 %v400
    %v1156 = vunpack.c.l.b16 %v401
    %v1157 = vunpack.c.h.b16 %v401
    %v1158 = vunpack.c.l.b16 %v402
    %v1159 = vunpack.c.h.b16 %v402
    %v1160 = vunpack.c.l.b16 %v403
    %v1161 = vunpack.c.h.b16 %v403
    %v1162 = vunpack.c.l.b16 %v404
    %v1163 = vunpack.c.h.b16 %v404
    %v1164 = vunpack.c.l.b16 %v405
    %v1165 = vunpack.c.h.b16 %v405
    %v1166 = vunpack.c.l.b16 %v406
    %v1167 = vunpack.c.h.b16 %v406
    %v1168 = vunpack.c.l.b16 %v407
    %v1169 = vunpack.c.h.b16 %v407
    %v1170 = vunpack.c.l.b16 %v408
    %v1171 = vunpack.c.h.b16 %v408
    %v1172 = vunpack.c.l.b16 %v409
    %v1173 = vunpack.c.h.b16 %v409
    %v1174 = vunpack.c.l.b16 %v410
    %v1175 = vunpack.c.h.b16 %v410
    %v1176 = vunpack.c.l.b16 %v411
    %v1177 = vunpack.c.h.b16 %v411
    %v1178 = vunpack.c.l.b16 %v412
    %v1179 = vunpack.c.h.b16 %v412
    %v1180 = vunpack.c.l.b16 %v413
    %v1181 = vunpack.c.h.b16 %v413
    %v1182 = vunpack.c.l.b16 %v414
    %v1183 = vunpack.c.h.b16 %v414
    %v1184 = vunpack.c.l.b16 %v415
    %v1185 = vunpack.c.h.b16 %v415
    %v1186 = vunpack.c.l.b16 %v416
    %v1187 = vunpack.c.h.b16 %v416
    %v1188 = vunpack.c.l.b16 %v417
    %v1189 = vunpack.c.h.b16 %v417
    %v1190 = vunpack.c.l.b16 %v418
    %v1191 = vunpack.c.h.b16 %v418
    %v1192 = vunpack.c.l.b16 %v419
    %v1193 = vunpack.c.h.b16 %v419
    %v1194 = vpack.c.b16 %v684, %v682
    %v1195 = vpack.c.b16 %v685, %v683
    %v1196 = vpack.c.b16 %v688, %v686
    %v1197 = vpack.c.b16 %v689, %v687
    %v1198 = vpack.c.b16 %v692, %v690
    %v1199 = vpack.c.b16 %v693, %v691
    %v1200 = vpack.c.b16 %v696, %v694
    %v1201 = vpack.c.b16 %v697, %v695
    %v1202 = vpack.c.b16 %v700, %v698
    %v1203 = vpack.c.b16 %v701, %v699
    %v1204 = vpack.c.b16 %v704, %v702
    %v1205 = vpack.c.b16 %v705, %v703
    %v1206 = vpack.c.b16 %v708, %v706
    %v1207 = vpack.c.b16 %v709, %v707
    %v1208 = vpack.c.b16 %v712, %v710
    %v1209 = vpack.c.b16 %v713, %v711
    %v1210 = vpack.c.b16 %v716, %v714
    %v1211 = vpack.c.b16 %v717, %v715
    %v1212 = vpack.c.b16 %v720, %v718
    %v1213 = vpack.c.b16 %v721, %v719
    %v1214 = vpack.c.b16 %v724, %v722
    %v1215 = vpack.c.b16 %v725, %v723
    %v1216 = vpack.c.b16 %v728, %v726
    %v1217 = vpack.c.b16 %v729, %v727
    %v1218 = vpack.c.b16 %v732, %v730
    %v1219 = vpack.c.b16 %v733, %v731
    %v1220 = vpack.c.b16 %v736, %v734
    %v1221 = vpack.c.b16 %v737, %v735
    %v1222 = vpack.c.b16 %v740, %v738
    %v1223 = vpack.c.b16 %v741, %v739
    %v1224 = vpack.c.b16 %v744, %v742
    %v1225 = vpack.c.b16 %v745, %v743
    %v1226 = vpack.c.b16 %v748, %v746
    %v1227 = vpack.c.b16 %v749, %v747
    %v1228 = vpack.c.b16 %v752, %v750
    %v1229 = vpack.c.b16 %v753, %v751
    %v1230 = vpack.c.b16 %v756, %v754
    %v1231 = vpack.c.b16 %v757, %v755
    %v1232 = vpack.c.b16 %v760, %v758
    %v1233 = vpack.c.b16 %v761, %v759
    %v1234 = vpack.c.b16 %v764, %v762
    %v1235 = vpack.c.b16 %v765, %v763
    %v1236 = vpack.c.b16 %v768, %v766
    %v1237 = vpack.c.b16 %v769, %v767
    %v1238 = vpack.c.b16 %v772, %v770
    %v1239 = vpack.c.b16 %v773, %v771
    %v1240 = vpack.c.b16 %v776, %v774
    %v1241 = vpack.c.b16 %v777, %v775
    %v1242 = vpack.c.b16 %v780, %v778
    %v1243 = vpack.c.b16 %v781, %v779
    %v1244 = vpack.c.b16 %v784, %v782
    %v1245 = vpack.c.b16 %v785, %v783
    %v1246 = vpack.c.b16 %v788, %v786
    %v1247 = vpack.c.b16 %v789, %v787
    %v1248 = vpack.c.b16 %v792, %v790
    %v1249 = vpack.c.b16 %v793, %v791
    %v1250 = vpack.c.b16 %v796, %v794
    %v1251 = vpack.c.b16 %v797, %v795
    %v1252 = vpack.c.b16 %v800, %v798
    %v1253 = vpack.c.b16 %v801, %v799
    %v1254 = vpack.c.b16 %v804, %v802
    %v1255 = vpack.c.b16 %v805, %v803
    %v1256 = vpack.c.b16 %v808, %v806
    %v1257 = vpack.c.b16 %v809, %v807
    %v1258 = vpack.c.b16 %v812, %v810
    %v1259 = vpack.c.b16 %v813, %v811
    %v1260 = vpack.c.b16 %v816, %v814
    %v1261 = vpack.c.b16 %v817, %v815
    %v1262 = vpack.c.b16 %v820, %v818
    %v1263 = vpack.c.b16 %v821, %v819
    %v1264 = vpack.c.b16 %v824, %v822
    %v1265 = vpack.c.b16 %v825, %v823
    %v1266 = vpack.c.b16 %v828, %v826
    %v1267 = vpack.c.b16 %v829, %v827
    %v1268 = vpack.c.b16 %v832, %v830
    %v1269 = vpack.c.b16 %v833, %v831
    %v1270 = vpack.c.b16 %v836, %v834
    %v1271 = vpack.c.b16 %v837, %v835
    %v1272 = vpack.c.b16 %v840, %v838
    %v1273 = vpack.c.b16 %v841, %v839
    %v1274 = vpack.c.b16 %v844, %v842
    %v1275 = vpack.c.b16 %v845, %v843
    %v1276 = vpack.c.b16 %v848, %v846
    %v1277 = vpack.c.b16 %v849, %v847
    %v1278 = vpack.c.b16 %v852, %v850
    %v1279 = vpack.c.b16 %v853, %v851
    %v1280 = vpack.c.b16 %v856, %v854
    %v1281 = vpack.c.b16 %v857, %v855
    %v1282 = vpack.c.b16 %v860, %v858
    %v1283 = vpack.c.b16 %v861, %v859
    %v1284 = vpack.c.b16 %v864, %v862
    %v1285 = vpack.c.b16 %v865, %v863
    %v1286 = vpack.c.b16 %v868, %v866
    %v1287 = vpack.c.b16 %v869, %v867
    %v1288 = vpack.c.b16 %v872, %v870
    %v1289 = vpack.c.b16 %v873, %v871
    %v1290 = vpack.c.b16 %v876, %v874
    %v1291 = vpack.c.b16 %v877, %v875
    %v1292 = vpack.c.b16 %v880, %v878
    %v1293 = vpack.c.b16 %v881, %v879
    %v1294 = vpack.c.b16 %v884, %v882
    %v1295 = vpack.c.b16 %v885, %v883
    %v1296 = vpack.c.b16 %v888, %v886
    %v1297 = vpack.c.b16 %v889, %v887
    %v1298 = vpack.c.b16 %v892, %v890
    %v1299 = vpack.c.b16 %v893, %v891
    %v1300 = vpack.c.b16 %v896, %v894
    %v1301 = vpack.c.b16 %v897, %v895
    %v1302 = vpack.c.b16 %v900, %v898
    %v1303 = vpack.c.b16 %v901, %v899
    %v1304 = vpack.c.b16 %v904, %v902
    %v1305 = vpack.c.b16 %v905, %v903
    %v1306 = vpack.c.b16 %v908, %v906
    %v1307 = vpack.c.b16 %v909, %v907
    %v1308 = vpack.c.b16 %v912, %v910
    %v1309 = vpack.c.b16 %v913, %v911
    %v1310 = vpack.c.b16 %v916, %v914
    %v1311 = vpack.c.b16 %v917, %v915
    %v1312 = vpack.c.b16 %v920, %v918
    %v1313 = vpack.c.b16 %v921, %v919
    %v1314 = vpack.c.b16 %v924, %v922
    %v1315 = vpack.c.b16 %v925, %v923
    %v1316 = vpack.c.b16 %v928, %v926
    %v1317 = vpack.c.b16 %v929, %v927
    %v1318 = vpack.c.b16 %v932, %v930
    %v1319 = vpack.c.b16 %v933, %v931
    %v1320 = vpack.c.b16 %v936, %v934
    %v1321 = vpack.c.b16 %v937, %v935
    %v1322 = vpack.c.b16 %v940, %v938
    %v1323 = vpack.c.b16 %v941, %v939
    %v1324 = vpack.c.b16 %v944, %v942
    %v1325 = vpack.c.b16 %v945, %v943
    %v1326 = vpack.c.b16 %v948, %v946
    %v1327 = vpack.c.b16 %v949, %v947
    %v1328 = vpack.c.b16 %v952, %v950
    %v1329 = vpack.c.b16 %v953, %v951
    %v1330 = vpack.c.b16 %v956, %v954
    %v1331 = vpack.c.b16 %v957, %v955
    %v1332 = vpack.c.b16 %v960, %v958
    %v1333 = vpack.c.b16 %v961, %v959
    %v1334 = vpack.c.b16 %v964, %v962
    %v1335 = vpack.c.b16 %v965, %v963
    %v1336 = vpack.c.b16 %v968, %v966
    %v1337 = vpack.c.b16 %v969, %v967
    %v1338 = vpack.c.b16 %v972, %v970
    %v1339 = vpack.c.b16 %v973, %v971
    %v1340 = vpack.c.b16 %v976, %v974
    %v1341 = vpack.c.b16 %v977, %v975
    %v1342 = vpack.c.b16 %v980, %v978
    %v1343 = vpack.c.b16 %v981, %v979
    %v1344 = vpack.c.b16 %v984, %v982
    %v1345 = vpack.c.b16 %v985, %v983
    %v1346 = vpack.c.b16 %v988, %v986
    %v1347 = vpack.c.b16 %v989, %v987
    %v1348 = vpack.c.b16 %v992, %v990
    %v1349 = vpack.c.b16 %v993, %v991
    %v1350 = vpack.c.b16 %v996, %v994
    %v1351 = vpack.c.b16 %v997, %v995
    %v1352 = vpack.c.b16 %v1000, %v998
    %v1353 = vpack.c.b16 %v1001, %v999
    %v1354 = vpack.c.b16 %v1004, %v1002
    %v1355 = vpack.c.b16 %v1005, %v1003
    %v1356 = vpack.c.b16 %v1008, %v1006
    %v1357 = vpack.c.b16 %v1009, %v1007
    %v1358 = vpack.c.b16 %v1012, %v1010
    %v1359 = vpack.c.b16 %v1013, %v1011
    %v1360 = vpack.c.b16 %v1016, %v1014
    %v1361 = vpack.c.b16 %v1017, %v1015
    %v1362 = vpack.c.b16 %v1020, %v1018
    %v1363 = vpack.c.b16 %v1021, %v1019
    %v1364 = vpack.c.b16 %v1024, %v1022
    %v1365 = vpack.c.b16 %v1025, %v1023
    %v1366 = vpack.c.b16 %v1028, %v1026
    %v1367 = vpack.c.b16 %v1029, %v1027
    %v1368 = vpack.c.b16 %v1032, %v1030
    %v1369 = vpack.c.b16 %v1033, %v1031
    %v1370 = vpack.c.b16 %v1036, %v1034
    %v1371 = vpack.c.b16 %v1037, %v1035
    %v1372 = vpack.c.b16 %v1040, %v1038
    %v1373 = vpack.c.b16 %v1041, %v1039
    %v1374 = vpack.c.b16 %v1044, %v1042
    %v1375 = vpack.c.b16 %v1045, %v1043
    %v1376 = vpack.c.b16 %v1048, %v1046
    %v1377 = vpack.c.b16 %v1049, %v1047
    %v1378 = vpack.c.b16 %v1052, %v1050
    %v1379 = vpack.c.b16 %v1053, %v1051
    %v1380 = vpack.c.b16 %v1056, %v1054
    %v1381 = vpack.c.b16 %v1057, %v1055
    %v1382 = vpack.c.b16 %v1060, %v1058
    %v1383 = vpack.c.b16 %v1061, %v1059
    %v1384 = vpack.c.b16 %v1064, %v1062
    %v1385 = vpack.c.b16 %v1065, %v1063
    %v1386 = vpack.c.b16 %v1068, %v1066
    %v1387 = vpack.c.b16 %v1069, %v1067
    %v1388 = vpack.c.b16 %v1072, %v1070
    %v1389 = vpack.c.b16 %v1073, %v1071
    %v1390 = vpack.c.b16 %v1076, %v1074
    %v1391 = vpack.c.b16 %v1077, %v1075
    %v1392 = vpack.c.b16 %v1080, %v1078
    %v1393 = vpack.c.b16 %v1081, %v1079
    %v1394 = vpack.c.b16 %v1084, %v1082
    %v1395 = vpack.c.b16 %v1085, %v1083
    %v1396 = vpack.c.b16 %v1088, %v1086
    %v1397 = vpack.c.b16 %v1089, %v1087
    %v1398 = vpack.c.b16 %v1092, %v1090
    %v1399 = vpack.c.b16 %v1093, %v1091
    %v1400 = vpack.c.b16 %v1096, %v1094
    %v1401 = vpack.c.b16 %v1097, %v1095
    %v1402 = vpack.c.b16 %v1100, %v1098
    %v1403 = vpack.c.b16 %v1101, %v1099
    %v1404 = vpack.c.b16 %v1104, %v1102
    %v1405 = vpack.c.b16 %v1105, %v1103
    %v1406 = vpack.c.b16 %v1108, %v1106
    %v1407 = vpack.c.b16 %v1109, %v1107
    %v1408 = vpack.c.b16 %v1112, %v1110
    %v1409 = vpack.c.b16 %v1113, %v1111
    %v1410 = vpack.c.b16 %v1116, %v1114
    %v1411 = vpack.c.b16 %v1117, %v1115
    %v1412 = vpack.c.b16 %v1120, %v1118
    %v1413 = vpack.c.b16 %v1121, %v1119
    %v1414 = vpack.c.b16 %v1124, %v1122
    %v1415 = vpack.c.b16 %v1125, %v1123
    %v1416 = vpack.c.b16 %v1128, %v1126
    %v1417 = vpack.c.b16 %v1129, %v1127
    %v1418 = vpack.c.b16 %v1132, %v1130
    %v1419 = vpack.c.b16 %v1133, %v1131
    %v1420 = vpack.c.b16 %v1136, %v1134
    %v1421 = vpack.c.b16 %v1137, %v1135
    %v1422 = vpack.c.b16 %v1140, %v1138
    %v1423 = vpack.c.b16 %v1141, %v1139
    %v1424 = vpack.c.b16 %v1144, %v1142
    %v1425 = vpack.c.b16 %v1145, %v1143
    %v1426 = vpack.c.b16 %v1148, %v1146
    %v1427 = vpack.c.b16 %v1149, %v1147
    %v1428 = vpack.c.b16 %v1152, %v1150
    %v1429 = vpack.c.b16 %v1153, %v1151
    %v1430 = vpack.c.b16 %v1156, %v1154
    %v1431 = vpack.c.b16 %v1157, %v1155
    %v1432 = vpack.c.b16 %v1160, %v1158
    %v1433 = vpack.c.b16 %v1161, %v1159
    %v1434 = vpack.c.b16 %v1164, %v1162
    %v1435 = vpack.c.b16 %v1165, %v1163
    %v1436 = vpack.c.b16 %v1168, %v1166
    %v1437 = vpack.c.b16 %v1169, %v1167
    %v1438 = vpack.c.b16 %v1172, %v1170
    %v1439 = vpack.c.b16 %v1173, %v1171
    %v1440 = vpack.c.b16 %v1176, %v1174
    %v1441 = vpack.c.b16 %v1177, %v1175
    %v1442 = vpack.c.b16 %v1180, %v1178
    %v1443 = vpack.c.b16 %v1181, %v1179
    %v1444 = vpack.c.b16 %v1184, %v1182
    %v1445 = vpack.c.b16 %v1185, %v1183
    %v1446 = vpack.c.b16 %v1188, %v1186
    %v1447 = vpack.c.b16 %v1189, %v1187
    %v1448 = vpack.c.b16 %v1192, %v1190
    %v1449 = vpack.c.b16 %v1193, %v1191
    %1706 = vmatpush.bf16.msra.mxu0 %v1208
    %1707 = vmatpush.bf16.msra.mxu0 %v1206
    %1708 = vmatpush.bf16.msra.mxu0 %v1204
    %1709 = vmatpush.bf16.msra.mxu0 %v1202
    %1710 = vmatpush.bf16.msra.mxu0 %v1200
    %1711 = vmatpush.bf16.msra.mxu0 %v1198
    %1712 = vmatpush.bf16.msra.mxu0 %v1196
    %1713 = vmatpush.bf16.msra.mxu0 %v1194
    %1714 = vmatmul.bf16.gmra.mxu0 %v148
    %v1715 = vpop.f32.mrf.mxu0
    %v1716 = vadd.f32 %v422, %v1715
    %v1717 = vpop.f32.mrf.mxu0
    %1718 = vdwg.mxu0
    %1719 = vmatpush.bf16.msra.mxu0 %v1224
    %1720 = vmatpush.bf16.msra.mxu0 %v1222
    %1721 = vmatpush.bf16.msra.mxu0 %v1220
    %1722 = vmatpush.bf16.msra.mxu0 %v1218
    %1723 = vmatpush.bf16.msra.mxu0 %v1216
    %1724 = vmatpush.bf16.msra.mxu0 %v1214
    %1725 = vmatpush.bf16.msra.mxu0 %v1212
    %1726 = vmatpush.bf16.msra.mxu0 %v1210
    %1727 = vmatmul.bf16.gmra.mxu0 %v149
    %v1728 = vpop.f32.mrf.mxu0
    %v1729 = vadd.f32 %v1716, %v1728
    %v1730 = vpop.f32.mrf.mxu0
    %1731 = vdwg.mxu0
    %1732 = vmatpush.bf16.msra.mxu0 %v1240
    %1733 = vmatpush.bf16.msra.mxu0 %v1238
    %1734 = vmatpush.bf16.msra.mxu0 %v1236
    %1735 = vmatpush.bf16.msra.mxu0 %v1234
    %1736 = vmatpush.bf16.msra.mxu0 %v1232
    %1737 = vmatpush.bf16.msra.mxu0 %v1230
    %1738 = vmatpush.bf16.msra.mxu0 %v1228
    %1739 = vmatpush.bf16.msra.mxu0 %v1226
    %1740 = vmatmul.bf16.gmra.mxu0 %v150
    %v1741 = vpop.f32.mrf.mxu0
    %v1742 = vadd.f32 %v1729, %v1741
    %v1743 = vpop.f32.mrf.mxu0
    %1744 = vdwg.mxu0
    %1745 = vmatpush.bf16.msra.mxu0 %v1256
    %1746 = vmatpush.bf16.msra.mxu0 %v1254
    %1747 = vmatpush.bf16.msra.mxu0 %v1252
    %1748 = vmatpush.bf16.msra.mxu0 %v1250
    %1749 = vmatpush.bf16.msra.mxu0 %v1248
    %1750 = vmatpush.bf16.msra.mxu0 %v1246
    %1751 = vmatpush.bf16.msra.mxu0 %v1244
    %1752 = vmatpush.bf16.msra.mxu0 %v1242
    %1753 = vmatmul.bf16.gmra.mxu0 %v151
    %v1754 = vpop.f32.mrf.mxu0
    %v1755 = vadd.f32 %v1742, %v1754
    %v1756 = vpop.f32.mrf.mxu0
    %1757 = vdwg.mxu0
    %1758 = vmatpush.bf16.msra.mxu0 %v1272
    %1759 = vmatpush.bf16.msra.mxu0 %v1270
    %1760 = vmatpush.bf16.msra.mxu0 %v1268
    %1761 = vmatpush.bf16.msra.mxu0 %v1266
    %1762 = vmatpush.bf16.msra.mxu0 %v1264
    %1763 = vmatpush.bf16.msra.mxu0 %v1262
    %1764 = vmatpush.bf16.msra.mxu0 %v1260
    %1765 = vmatpush.bf16.msra.mxu0 %v1258
    %1766 = vmatmul.bf16.gmra.mxu0 %v152
    %v1767 = vpop.f32.mrf.mxu0
    %v1768 = vadd.f32 %v1755, %v1767
    %v1769 = vpop.f32.mrf.mxu0
    %1770 = vdwg.mxu0
    %1771 = vmatpush.bf16.msra.mxu0 %v1288
    %1772 = vmatpush.bf16.msra.mxu0 %v1286
    %1773 = vmatpush.bf16.msra.mxu0 %v1284
    %1774 = vmatpush.bf16.msra.mxu0 %v1282
    %1775 = vmatpush.bf16.msra.mxu0 %v1280
    %1776 = vmatpush.bf16.msra.mxu0 %v1278
    %1777 = vmatpush.bf16.msra.mxu0 %v1276
    %1778 = vmatpush.bf16.msra.mxu0 %v1274
    %1779 = vmatmul.bf16.gmra.mxu0 %v153
    %v1780 = vpop.f32.mrf.mxu0
    %v1781 = vadd.f32 %v1768, %v1780
    %v1782 = vpop.f32.mrf.mxu0
    %1783 = vdwg.mxu0
    %1784 = vmatpush.bf16.msra.mxu0 %v1304
    %1785 = vmatpush.bf16.msra.mxu0 %v1302
    %1786 = vmatpush.bf16.msra.mxu0 %v1300
    %1787 = vmatpush.bf16.msra.mxu0 %v1298
    %1788 = vmatpush.bf16.msra.mxu0 %v1296
    %1789 = vmatpush.bf16.msra.mxu0 %v1294
    %1790 = vmatpush.bf16.msra.mxu0 %v1292
    %1791 = vmatpush.bf16.msra.mxu0 %v1290
    %1792 = vmatmul.bf16.gmra.mxu0 %v154
    %v1793 = vpop.f32.mrf.mxu0
    %v1794 = vadd.f32 %v1781, %v1793
    %v1795 = vpop.f32.mrf.mxu0
    %1796 = vdwg.mxu0
    %1797 = vmatpush.bf16.msra.mxu0 %v1320
    %1798 = vmatpush.bf16.msra.mxu0 %v1318
    %1799 = vmatpush.bf16.msra.mxu0 %v1316
    %1800 = vmatpush.bf16.msra.mxu0 %v1314
    %1801 = vmatpush.bf16.msra.mxu0 %v1312
    %1802 = vmatpush.bf16.msra.mxu0 %v1310
    %1803 = vmatpush.bf16.msra.mxu0 %v1308
    %1804 = vmatpush.bf16.msra.mxu0 %v1306
    %1805 = vmatmul.bf16.gmra.mxu0 %v155
    %v1806 = vpop.f32.mrf.mxu0
    %v1807 = vadd.f32 %v1794, %v1806
    %v1808 = vpop.f32.mrf.mxu0
    %1809 = vdwg.mxu0
    %1810 = vmatpush.bf16.msra.mxu0 %v1336
    %1811 = vmatpush.bf16.msra.mxu0 %v1334
    %1812 = vmatpush.bf16.msra.mxu0 %v1332
    %1813 = vmatpush.bf16.msra.mxu0 %v1330
    %1814 = vmatpush.bf16.msra.mxu0 %v1328
    %1815 = vmatpush.bf16.msra.mxu0 %v1326
    %1816 = vmatpush.bf16.msra.mxu0 %v1324
    %1817 = vmatpush.bf16.msra.mxu0 %v1322
    %1818 = vmatmul.bf16.gmra.mxu0 %v156
    %v1819 = vpop.f32.mrf.mxu0
    %v1820 = vadd.f32 %v1807, %v1819
    %v1821 = vpop.f32.mrf.mxu0
    %1822 = vdwg.mxu0
    %1823 = vmatpush.bf16.msra.mxu0 %v1352
    %1824 = vmatpush.bf16.msra.mxu0 %v1350
    %1825 = vmatpush.bf16.msra.mxu0 %v1348
    %1826 = vmatpush.bf16.msra.mxu0 %v1346
    %1827 = vmatpush.bf16.msra.mxu0 %v1344
    %1828 = vmatpush.bf16.msra.mxu0 %v1342
    %1829 = vmatpush.bf16.msra.mxu0 %v1340
    %1830 = vmatpush.bf16.msra.mxu0 %v1338
    %1831 = vmatmul.bf16.gmra.mxu0 %v157
    %v1832 = vpop.f32.mrf.mxu0
    %v1833 = vadd.f32 %v1820, %v1832
    %v1834 = vpop.f32.mrf.mxu0
    %1835 = vdwg.mxu0
    %1836 = vmatpush.bf16.msra.mxu0 %v1368
    %1837 = vmatpush.bf16.msra.mxu0 %v1366
    %1838 = vmatpush.bf16.msra.mxu0 %v1364
    %1839 = vmatpush.bf16.msra.mxu0 %v1362
    %1840 = vmatpush.bf16.msra.mxu0 %v1360
    %1841 = vmatpush.bf16.msra.mxu0 %v1358
    %1842 = vmatpush.bf16.msra.mxu0 %v1356
    %1843 = vmatpush.bf16.msra.mxu0 %v1354
    %1844 = vmatmul.bf16.gmra.mxu0 %v158
    %v1845 = vpop.f32.mrf.mxu0
    %v1846 = vadd.f32 %v1833, %v1845
    %v1847 = vpop.f32.mrf.mxu0
    %1848 = vdwg.mxu0
    %1849 = vmatpush.bf16.msra.mxu0 %v1384
    %1850 = vmatpush.bf16.msra.mxu0 %v1382
    %1851 = vmatpush.bf16.msra.mxu0 %v1380
    %1852 = vmatpush.bf16.msra.mxu0 %v1378
    %1853 = vmatpush.bf16.msra.mxu0 %v1376
    %1854 = vmatpush.bf16.msra.mxu0 %v1374
    %1855 = vmatpush.bf16.msra.mxu0 %v1372
    %1856 = vmatpush.bf16.msra.mxu0 %v1370
    %1857 = vmatmul.bf16.gmra.mxu0 %v159
    %v1858 = vpop.f32.mrf.mxu0
    %v1859 = vadd.f32 %v1846, %v1858
    %v1860 = vpop.f32.mrf.mxu0
    %1861 = vdwg.mxu0
    %1862 = vmatpush.bf16.msra.mxu0 %v1400
    %1863 = vmatpush.bf16.msra.mxu0 %v1398
    %1864 = vmatpush.bf16.msra.mxu0 %v1396
    %1865 = vmatpush.bf16.msra.mxu0 %v1394
    %1866 = vmatpush.bf16.msra.mxu0 %v1392
    %1867 = vmatpush.bf16.msra.mxu0 %v1390
    %1868 = vmatpush.bf16.msra.mxu0 %v1388
    %1869 = vmatpush.bf16.msra.mxu0 %v1386
    %1870 = vmatmul.bf16.gmra.mxu0 %v160
    %v1871 = vpop.f32.mrf.mxu0
    %v1872 = vadd.f32 %v1859, %v1871
    %v1873 = vpop.f32.mrf.mxu0
    %1874 = vdwg.mxu0
    %1875 = vmatpush.bf16.msra.mxu0 %v1416
    %1876 = vmatpush.bf16.msra.mxu0 %v1414
    %1877 = vmatpush.bf16.msra.mxu0 %v1412
    %1878 = vmatpush.bf16.msra.mxu0 %v1410
    %1879 = vmatpush.bf16.msra.mxu0 %v1408
    %1880 = vmatpush.bf16.msra.mxu0 %v1406
    %1881 = vmatpush.bf16.msra.mxu0 %v1404
    %1882 = vmatpush.bf16.msra.mxu0 %v1402
    %1883 = vmatmul.bf16.gmra.mxu0 %v161
    %v1884 = vpop.f32.mrf.mxu0
    %v1885 = vadd.f32 %v1872, %v1884
    %v1886 = vpop.f32.mrf.mxu0
    %1887 = vdwg.mxu0
    %1888 = vmatpush.bf16.msra.mxu0 %v1432
    %1889 = vmatpush.bf16.msra.mxu0 %v1430
    %1890 = vmatpush.bf16.msra.mxu0 %v1428
    %1891 = vmatpush.bf16.msra.mxu0 %v1426
    %1892 = vmatpush.bf16.msra.mxu0 %v1424
    %1893 = vmatpush.bf16.msra.mxu0 %v1422
    %1894 = vmatpush.bf16.msra.mxu0 %v1420
    %1895 = vmatpush.bf16.msra.mxu0 %v1418
    %1896 = vmatmul.bf16.gmra.mxu0 %v162
    %v1897 = vpop.f32.mrf.mxu0
    %v1898 = vadd.f32 %v1885, %v1897
    %v1899 = vpop.f32.mrf.mxu0
    %1900 = vdwg.mxu0
    %1901 = vmatpush.bf16.msra.mxu0 %v1448
    %1902 = vmatpush.bf16.msra.mxu0 %v1446
    %1903 = vmatpush.bf16.msra.mxu0 %v1444
    %1904 = vmatpush.bf16.msra.mxu0 %v1442
    %1905 = vmatpush.bf16.msra.mxu0 %v1440
    %1906 = vmatpush.bf16.msra.mxu0 %v1438
    %1907 = vmatpush.bf16.msra.mxu0 %v1436
    %1908 = vmatpush.bf16.msra.mxu0 %v1434
    %1909 = vmatmul.bf16.gmra.mxu0 %v163
    %v1910 = vpop.f32.mrf.mxu0
    %v1911 = vadd.f32 %v1898, %v1910
    %v1912 = vpop.f32.mrf.mxu0
    %1913 = vdwg.mxu0
    %1914 = vmatpush.bf16.msra.mxu0 %v1209
    %1915 = vmatpush.bf16.msra.mxu0 %v1207
    %1916 = vmatpush.bf16.msra.mxu0 %v1205
    %1917 = vmatpush.bf16.msra.mxu0 %v1203
    %1918 = vmatpush.bf16.msra.mxu0 %v1201
    %1919 = vmatpush.bf16.msra.mxu0 %v1199
    %1920 = vmatpush.bf16.msra.mxu0 %v1197
    %1921 = vmatpush.bf16.msra.mxu0 %v1195
    %1922 = vmatmul.bf16.gmra.mxu0 %v148
    %v1923 = vpop.f32.mrf.mxu0
    %v1924 = vadd.f32 %v423, %v1923
    %v1925 = vpop.f32.mrf.mxu0
    %1926 = vdwg.mxu0
    %1927 = vmatpush.bf16.msra.mxu0 %v1225
    %1928 = vmatpush.bf16.msra.mxu0 %v1223
    %1929 = vmatpush.bf16.msra.mxu0 %v1221
    %1930 = vmatpush.bf16.msra.mxu0 %v1219
    %1931 = vmatpush.bf16.msra.mxu0 %v1217
    %1932 = vmatpush.bf16.msra.mxu0 %v1215
    %1933 = vmatpush.bf16.msra.mxu0 %v1213
    %1934 = vmatpush.bf16.msra.mxu0 %v1211
    %1935 = vmatmul.bf16.gmra.mxu0 %v149
    %v1936 = vpop.f32.mrf.mxu0
    %v1937 = vadd.f32 %v1924, %v1936
    %v1938 = vpop.f32.mrf.mxu0
    %1939 = vdwg.mxu0
    %1940 = vmatpush.bf16.msra.mxu0 %v1241
    %1941 = vmatpush.bf16.msra.mxu0 %v1239
    %1942 = vmatpush.bf16.msra.mxu0 %v1237
    %1943 = vmatpush.bf16.msra.mxu0 %v1235
    %1944 = vmatpush.bf16.msra.mxu0 %v1233
    %1945 = vmatpush.bf16.msra.mxu0 %v1231
    %1946 = vmatpush.bf16.msra.mxu0 %v1229
    %1947 = vmatpush.bf16.msra.mxu0 %v1227
    %1948 = vmatmul.bf16.gmra.mxu0 %v150
    %v1949 = vpop.f32.mrf.mxu0
    %v1950 = vadd.f32 %v1937, %v1949
    %v1951 = vpop.f32.mrf.mxu0
    %1952 = vdwg.mxu0
    %1953 = vmatpush.bf16.msra.mxu0 %v1257
    %1954 = vmatpush.bf16.msra.mxu0 %v1255
    %1955 = vmatpush.bf16.msra.mxu0 %v1253
    %1956 = vmatpush.bf16.msra.mxu0 %v1251
    %1957 = vmatpush.bf16.msra.mxu0 %v1249
    %1958 = vmatpush.bf16.msra.mxu0 %v1247
    %1959 = vmatpush.bf16.msra.mxu0 %v1245
    %1960 = vmatpush.bf16.msra.mxu0 %v1243
    %1961 = vmatmul.bf16.gmra.mxu0 %v151
    %v1962 = vpop.f32.mrf.mxu0
    %v1963 = vadd.f32 %v1950, %v1962
    %v1964 = vpop.f32.mrf.mxu0
    %1965 = vdwg.mxu0
    %1966 = vmatpush.bf16.msra.mxu0 %v1273
    %1967 = vmatpush.bf16.msra.mxu0 %v1271
    %1968 = vmatpush.bf16.msra.mxu0 %v1269
    %1969 = vmatpush.bf16.msra.mxu0 %v1267
    %1970 = vmatpush.bf16.msra.mxu0 %v1265
    %1971 = vmatpush.bf16.msra.mxu0 %v1263
    %1972 = vmatpush.bf16.msra.mxu0 %v1261
    %1973 = vmatpush.bf16.msra.mxu0 %v1259
    %1974 = vmatmul.bf16.gmra.mxu0 %v152
    %v1975 = vpop.f32.mrf.mxu0
    %v1976 = vadd.f32 %v1963, %v1975
    %v1977 = vpop.f32.mrf.mxu0
    %1978 = vdwg.mxu0
    %1979 = vmatpush.bf16.msra.mxu0 %v1289
    %1980 = vmatpush.bf16.msra.mxu0 %v1287
    %1981 = vmatpush.bf16.msra.mxu0 %v1285
    %1982 = vmatpush.bf16.msra.mxu0 %v1283
    %1983 = vmatpush.bf16.msra.mxu0 %v1281
    %1984 = vmatpush.bf16.msra.mxu0 %v1279
    %1985 = vmatpush.bf16.msra.mxu0 %v1277
    %1986 = vmatpush.bf16.msra.mxu0 %v1275
    %1987 = vmatmul.bf16.gmra.mxu0 %v153
    %v1988 = vpop.f32.mrf.mxu0
    %v1989 = vadd.f32 %v1976, %v1988
    %v1990 = vpop.f32.mrf.mxu0
    %1991 = vdwg.mxu0
    %1992 = vmatpush.bf16.msra.mxu0 %v1305
    %1993 = vmatpush.bf16.msra.mxu0 %v1303
    %1994 = vmatpush.bf16.msra.mxu0 %v1301
    %1995 = vmatpush.bf16.msra.mxu0 %v1299
    %1996 = vmatpush.bf16.msra.mxu0 %v1297
    %1997 = vmatpush.bf16.msra.mxu0 %v1295
    %1998 = vmatpush.bf16.msra.mxu0 %v1293
    %1999 = vmatpush.bf16.msra.mxu0 %v1291
    %2000 = vmatmul.bf16.gmra.mxu0 %v154
    %v2001 = vpop.f32.mrf.mxu0
    %v2002 = vadd.f32 %v1989, %v2001
    %v2003 = vpop.f32.mrf.mxu0
    %2004 = vdwg.mxu0
    %2005 = vmatpush.bf16.msra.mxu0 %v1321
    %2006 = vmatpush.bf16.msra.mxu0 %v1319
    %2007 = vmatpush.bf16.msra.mxu0 %v1317
    %2008 = vmatpush.bf16.msra.mxu0 %v1315
    %2009 = vmatpush.bf16.msra.mxu0 %v1313
    %2010 = vmatpush.bf16.msra.mxu0 %v1311
    %2011 = vmatpush.bf16.msra.mxu0 %v1309
    %2012 = vmatpush.bf16.msra.mxu0 %v1307
    %2013 = vmatmul.bf16.gmra.mxu0 %v155
    %v2014 = vpop.f32.mrf.mxu0
    %v2015 = vadd.f32 %v2002, %v2014
    %v2016 = vpop.f32.mrf.mxu0
    %2017 = vdwg.mxu0
    %2018 = vmatpush.bf16.msra.mxu0 %v1337
    %2019 = vmatpush.bf16.msra.mxu0 %v1335
    %2020 = vmatpush.bf16.msra.mxu0 %v1333
    %2021 = vmatpush.bf16.msra.mxu0 %v1331
    %2022 = vmatpush.bf16.msra.mxu0 %v1329
    %2023 = vmatpush.bf16.msra.mxu0 %v1327
    %2024 = vmatpush.bf16.msra.mxu0 %v1325
    %2025 = vmatpush.bf16.msra.mxu0 %v1323
    %2026 = vmatmul.bf16.gmra.mxu0 %v156
    %v2027 = vpop.f32.mrf.mxu0
    %v2028 = vadd.f32 %v2015, %v2027
    %v2029 = vpop.f32.mrf.mxu0
    %2030 = vdwg.mxu0
    %2031 = vmatpush.bf16.msra.mxu0 %v1353
    %2032 = vmatpush.bf16.msra.mxu0 %v1351
    %2033 = vmatpush.bf16.msra.mxu0 %v1349
    %2034 = vmatpush.bf16.msra.mxu0 %v1347
    %2035 = vmatpush.bf16.msra.mxu0 %v1345
    %2036 = vmatpush.bf16.msra.mxu0 %v1343
    %2037 = vmatpush.bf16.msra.mxu0 %v1341
    %2038 = vmatpush.bf16.msra.mxu0 %v1339
    %2039 = vmatmul.bf16.gmra.mxu0 %v157
    %v2040 = vpop.f32.mrf.mxu0
    %v2041 = vadd.f32 %v2028, %v2040
    %v2042 = vpop.f32.mrf.mxu0
    %2043 = vdwg.mxu0
    %2044 = vmatpush.bf16.msra.mxu0 %v1369
    %2045 = vmatpush.bf16.msra.mxu0 %v1367
    %2046 = vmatpush.bf16.msra.mxu0 %v1365
    %2047 = vmatpush.bf16.msra.mxu0 %v1363
    %2048 = vmatpush.bf16.msra.mxu0 %v1361
    %2049 = vmatpush.bf16.msra.mxu0 %v1359
    %2050 = vmatpush.bf16.msra.mxu0 %v1357
    %2051 = vmatpush.bf16.msra.mxu0 %v1355
    %2052 = vmatmul.bf16.gmra.mxu0 %v158
    %v2053 = vpop.f32.mrf.mxu0
    %v2054 = vadd.f32 %v2041, %v2053
    %v2055 = vpop.f32.mrf.mxu0
    %2056 = vdwg.mxu0
    %2057 = vmatpush.bf16.msra.mxu0 %v1385
    %2058 = vmatpush.bf16.msra.mxu0 %v1383
    %2059 = vmatpush.bf16.msra.mxu0 %v1381
    %2060 = vmatpush.bf16.msra.mxu0 %v1379
    %2061 = vmatpush.bf16.msra.mxu0 %v1377
    %2062 = vmatpush.bf16.msra.mxu0 %v1375
    %2063 = vmatpush.bf16.msra.mxu0 %v1373
    %2064 = vmatpush.bf16.msra.mxu0 %v1371
    %2065 = vmatmul.bf16.gmra.mxu0 %v159
    %v2066 = vpop.f32.mrf.mxu0
    %v2067 = vadd.f32 %v2054, %v2066
    %v2068 = vpop.f32.mrf.mxu0
    %2069 = vdwg.mxu0
    %2070 = vmatpush.bf16.msra.mxu0 %v1401
    %2071 = vmatpush.bf16.msra.mxu0 %v1399
    %2072 = vmatpush.bf16.msra.mxu0 %v1397
    %2073 = vmatpush.bf16.msra.mxu0 %v1395
    %2074 = vmatpush.bf16.msra.mxu0 %v1393
    %2075 = vmatpush.bf16.msra.mxu0 %v1391
    %2076 = vmatpush.bf16.msra.mxu0 %v1389
    %2077 = vmatpush.bf16.msra.mxu0 %v1387
    %2078 = vmatmul.bf16.gmra.mxu0 %v160
    %v2079 = vpop.f32.mrf.mxu0
    %v2080 = vadd.f32 %v2067, %v2079
    %v2081 = vpop.f32.mrf.mxu0
    %2082 = vdwg.mxu0
    %2083 = vmatpush.bf16.msra.mxu0 %v1417
    %2084 = vmatpush.bf16.msra.mxu0 %v1415
    %2085 = vmatpush.bf16.msra.mxu0 %v1413
    %2086 = vmatpush.bf16.msra.mxu0 %v1411
    %2087 = vmatpush.bf16.msra.mxu0 %v1409
    %2088 = vmatpush.bf16.msra.mxu0 %v1407
    %2089 = vmatpush.bf16.msra.mxu0 %v1405
    %2090 = vmatpush.bf16.msra.mxu0 %v1403
    %2091 = vmatmul.bf16.gmra.mxu0 %v161
    %v2092 = vpop.f32.mrf.mxu0
    %v2093 = vadd.f32 %v2080, %v2092
    %v2094 = vpop.f32.mrf.mxu0
    %2095 = vdwg.mxu0
    %2096 = vmatpush.bf16.msra.mxu0 %v1433
    %2097 = vmatpush.bf16.msra.mxu0 %v1431
    %2098 = vmatpush.bf16.msra.mxu0 %v1429
    %2099 = vmatpush.bf16.msra.mxu0 %v1427
    %2100 = vmatpush.bf16.msra.mxu0 %v1425
    %2101 = vmatpush.bf16.msra.mxu0 %v1423
    %2102 = vmatpush.bf16.msra.mxu0 %v1421
    %2103 = vmatpush.bf16.msra.mxu0 %v1419
    %2104 = vmatmul.bf16.gmra.mxu0 %v162
    %v2105 = vpop.f32.mrf.mxu0
    %v2106 = vadd.f32 %v2093, %v2105
    %v2107 = vpop.f32.mrf.mxu0
    %2108 = vdwg.mxu0
    %2109 = vmatpush.bf16.msra.mxu0 %v1449
    %2110 = vmatpush.bf16.msra.mxu0 %v1447
    %2111 = vmatpush.bf16.msra.mxu0 %v1445
    %2112 = vmatpush.bf16.msra.mxu0 %v1443
    %2113 = vmatpush.bf16.msra.mxu0 %v1441
    %2114 = vmatpush.bf16.msra.mxu0 %v1439
    %2115 = vmatpush.bf16.msra.mxu0 %v1437
    %2116 = vmatpush.bf16.msra.mxu0 %v1435
    %2117 = vmatmul.bf16.gmra.mxu0 %v163
    %v2118 = vpop.f32.mrf.mxu0
    %v2119 = vadd.f32 %v2106, %v2118
    %v2120 = vpop.f32.mrf.mxu0
    %2121 = vdwg.mxu0
    %v2122 = vmax.f32 %v1911, 0.0
    %v2123 = vmax.f32 %v2119, 0.0
    %v2124 = vld [vmem:[%s0] sm:$0xff]
    %v2125 = vld [vmem:[%s0 + $0x8] sm:$0xff]
    %v2126 = vld [vmem:[%s0 + $0x10] sm:$0xff]
    %v2127 = vld [vmem:[%s0 + $0x18] sm:$0xff]
    %v2128 = vld [vmem:[%s0 + $0x20] sm:$0xff]
    %v2129 = vld [vmem:[%s0 + $0x28] sm:$0xff]
    %v2130 = vld [vmem:[%s0 + $0x30] sm:$0xff]
    %v2131 = vld [vmem:[%s0 + $0x38] sm:$0xff]
    %v2132 = vlaneseq
    %v2133 = vand.u32 %v2132, 127
    %v2134 = vadd.s32 %v2133, 128
    %v2135 = vadd.s32 %v2133, 256
    %v2136 = vadd.s32 %v2133, 384
    %2137 = vset.pattern.permute.xlu0 0
    %2138 = vperm.xlu0 %2137, %v2124
    %v2139 = vpop.permute.xlu0 %2138
    %2140 = vset.pattern.permute.xlu0 0
    %2141 = vperm.xlu0 %2140, %v2125
    %v2142 = vpop.permute.xlu0 %2141
    %2143 = vset.pattern.permute.xlu0 0
    %2144 = vperm.xlu0 %2143, %v2126
    %v2145 = vpop.permute.xlu0 %2144
    %2146 = vset.pattern.permute.xlu0 0
    %2147 = vperm.xlu0 %2146, %v2127
    %v2148 = vpop.permute.xlu0 %2147
    %2149 = vset.pattern.permute.xlu0 0
    %2150 = vperm.xlu0 %2149, %v2128
    %v2151 = vpop.permute.xlu0 %2150
    %2152 = vset.pattern.permute.xlu0 0
    %2153 = vperm.xlu0 %2152, %v2129
    %v2154 = vpop.permute.xlu0 %2153
    %2155 = vset.pattern.permute.xlu0 0
    %2156 = vperm.xlu0 %2155, %v2130
    %v2157 = vpop.permute.xlu0 %2156
    %2158 = vset.pattern.permute.xlu0 0
    %2159 = vperm.xlu0 %2158, %v2131
    %v2160 = vpop.permute.xlu0 %2159
    %vm2161 = vcmp.eq.s32.totalorder %v2139, %v2133
    %vm2162 = vcmp.eq.s32.totalorder %v2139, %v2134
    %vm2163 = vcmp.eq.s32.totalorder %v2139, %v2135
    %vm2164 = vcmp.eq.s32.totalorder %v2139, %v2136
    %vm2165 = vcmp.eq.s32.totalorder %v2142, %v2133
    %vm2166 = vcmp.eq.s32.totalorder %v2142, %v2134
    %vm2167 = vcmp.eq.s32.totalorder %v2142, %v2135
    %vm2168 = vcmp.eq.s32.totalorder %v2142, %v2136
    %vm2169 = vcmp.eq.s32.totalorder %v2145, %v2133
    %vm2170 = vcmp.eq.s32.totalorder %v2145, %v2134
    %vm2171 = vcmp.eq.s32.totalorder %v2145, %v2135
    %vm2172 = vcmp.eq.s32.totalorder %v2145, %v2136
    %vm2173 = vcmp.eq.s32.totalorder %v2148, %v2133
    %vm2174 = vcmp.eq.s32.totalorder %v2148, %v2134
    %vm2175 = vcmp.eq.s32.totalorder %v2148, %v2135
    %vm2176 = vcmp.eq.s32.totalorder %v2148, %v2136
    %vm2177 = vcmp.eq.s32.totalorder %v2151, %v2133
    %vm2178 = vcmp.eq.s32.totalorder %v2151, %v2134
    %vm2179 = vcmp.eq.s32.totalorder %v2151, %v2135
    %vm2180 = vcmp.eq.s32.totalorder %v2151, %v2136
    %vm2181 = vcmp.eq.s32.totalorder %v2154, %v2133
    %vm2182 = vcmp.eq.s32.totalorder %v2154, %v2134
    %vm2183 = vcmp.eq.s32.totalorder %v2154, %v2135
    %vm2184 = vcmp.eq.s32.totalorder %v2154, %v2136
    %vm2185 = vcmp.eq.s32.totalorder %v2157, %v2133
    %vm2186 = vcmp.eq.s32.totalorder %v2157, %v2134
    %vm2187 = vcmp.eq.s32.totalorder %v2157, %v2135
    %vm2188 = vcmp.eq.s32.totalorder %v2157, %v2136
    %vm2189 = vcmp.eq.s32.totalorder %v2160, %v2133
    %vm2190 = vcmp.eq.s32.totalorder %v2160, %v2134
    %vm2191 = vcmp.eq.s32.totalorder %v2160, %v2135
    %vm2192 = vcmp.eq.s32.totalorder %v2160, %v2136
    %v2193 = vsel %vm2161, 1.0, 0.0
    %v2194 = vsel %vm2162, 1.0, 0.0
    %v2195 = vsel %vm2163, 1.0, 0.0
    %v2196 = vsel %vm2164, 1.0, 0.0
    %v2197 = vsel %vm2165, 1.0, 0.0
    %v2198 = vsel %vm2166, 1.0, 0.0
    %v2199 = vsel %vm2167, 1.0, 0.0
    %v2200 = vsel %vm2168, 1.0, 0.0
    %v2201 = vsel %vm2169, 1.0, 0.0
    %v2202 = vsel %vm2170, 1.0, 0.0
    %v2203 = vsel %vm2171, 1.0, 0.0
    %v2204 = vsel %vm2172, 1.0, 0.0
    %v2205 = vsel %vm2173, 1.0, 0.0
    %v2206 = vsel %vm2174, 1.0, 0.0
    %v2207 = vsel %vm2175, 1.0, 0.0
    %v2208 = vsel %vm2176, 1.0, 0.0
    %v2209 = vsel %vm2177, 1.0, 0.0
    %v2210 = vsel %vm2178, 1.0, 0.0
    %v2211 = vsel %vm2179, 1.0, 0.0
    %v2212 = vsel %vm2180, 1.0, 0.0
    %v2213 = vsel %vm2181, 1.0, 0.0
    %v2214 = vsel %vm2182, 1.0, 0.0
    %v2215 = vsel %vm2183, 1.0, 0.0
    %v2216 = vsel %vm2184, 1.0, 0.0
    %v2217 = vsel %vm2185, 1.0, 0.0
    %v2218 = vsel %vm2186, 1.0, 0.0
    %v2219 = vsel %vm2187, 1.0, 0.0
    %v2220 = vsel %vm2188, 1.0, 0.0
    %v2221 = vsel %vm2189, 1.0, 0.0
    %v2222 = vsel %vm2190, 1.0, 0.0
    %v2223 = vsel %vm2191, 1.0, 0.0
    %v2224 = vsel %vm2192, 1.0, 0.0
    %v2225 = vpack.c.bf16 %v2197, %v2193
    %v2226 = vpack.c.bf16 %v2198, %v2194
    %v2227 = vpack.c.bf16 %v2199, %v2195
    %v2228 = vpack.c.bf16 %v2200, %v2196
    %v2229 = vpack.c.bf16 %v2205, %v2201
    %v2230 = vpack.c.bf16 %v2206, %v2202
    %v2231 = vpack.c.bf16 %v2207, %v2203
    %v2232 = vpack.c.bf16 %v2208, %v2204
    %v2233 = vpack.c.bf16 %v2213, %v2209
    %v2234 = vpack.c.bf16 %v2214, %v2210
    %v2235 = vpack.c.bf16 %v2215, %v2211
    %v2236 = vpack.c.bf16 %v2216, %v2212
    %v2237 = vpack.c.bf16 %v2221, %v2217
    %v2238 = vpack.c.bf16 %v2222, %v2218
    %v2239 = vpack.c.bf16 %v2223, %v2219
    %v2240 = vpack.c.bf16 %v2224, %v2220
    %v2241 = vld [vmem:[#allocation8] sm:$0xff]
    %v2242 = vld [vmem:[#allocation8 + $0x8] sm:$0xff]
    %v2243 = vld [vmem:[#allocation8 + $0x10] sm:$0xff]
    %v2244 = vld [vmem:[#allocation8 + $0x18] sm:$0xff]
    %v2245 = vld [vmem:[#allocation8 + $0x20] sm:$0xff]
    %v2246 = vld [vmem:[#allocation8 + $0x28] sm:$0xff]
    %v2247 = vld [vmem:[#allocation8 + $0x30] sm:$0xff]
    %v2248 = vld [vmem:[#allocation8 + $0x38] sm:$0xff]
    %v2249 = vld [vmem:[#allocation8 + $0x40] sm:$0xff]
    %v2250 = vld [vmem:[#allocation8 + $0x48] sm:$0xff]
    %v2251 = vld [vmem:[#allocation8 + $0x50] sm:$0xff]
    %v2252 = vld [vmem:[#allocation8 + $0x58] sm:$0xff]
    %v2253 = vld [vmem:[#allocation8 + $0x60] sm:$0xff]
    %v2254 = vld [vmem:[#allocation8 + $0x68] sm:$0xff]
    %v2255 = vld [vmem:[#allocation8 + $0x70] sm:$0xff]
    %v2256 = vld [vmem:[#allocation8 + $0x78] sm:$0xff]
    %v2257 = vld [vmem:[#allocation8 + $0x80] sm:$0xff]
    %v2258 = vld [vmem:[#allocation8 + $0x88] sm:$0xff]
    %v2259 = vld [vmem:[#allocation8 + $0x90] sm:$0xff]
    %v2260 = vld [vmem:[#allocation8 + $0x98] sm:$0xff]
    %v2261 = vld [vmem:[#allocation8 + $0xa0] sm:$0xff]
    %v2262 = vld [vmem:[#allocation8 + $0xa8] sm:$0xff]
    %v2263 = vld [vmem:[#allocation8 + $0xb0] sm:$0xff]
    %v2264 = vld [vmem:[#allocation8 + $0xb8] sm:$0xff]
    %v2265 = vld [vmem:[#allocation8 + $0xc0] sm:$0xff]
    %v2266 = vld [vmem:[#allocation8 + $0xc8] sm:$0xff]
    %v2267 = vld [vmem:[#allocation8 + $0xd0] sm:$0xff]
    %v2268 = vld [vmem:[#allocation8 + $0xd8] sm:$0xff]
    %v2269 = vld [vmem:[#allocation8 + $0xe0] sm:$0xff]
    %v2270 = vld [vmem:[#allocation8 + $0xe8] sm:$0xff]
    %v2271 = vld [vmem:[#allocation8 + $0xf0] sm:$0xff]
    %v2272 = vld [vmem:[#allocation8 + $0xf8] sm:$0xff]
    %v2273 = vld [vmem:[#allocation8 + $0x100] sm:$0xff]
    %v2274 = vld [vmem:[#allocation8 + $0x108] sm:$0xff]
    %v2275 = vld [vmem:[#allocation8 + $0x110] sm:$0xff]
    %v2276 = vld [vmem:[#allocation8 + $0x118] sm:$0xff]
    %v2277 = vld [vmem:[#allocation8 + $0x120] sm:$0xff]
    %v2278 = vld [vmem:[#allocation8 + $0x128] sm:$0xff]
    %v2279 = vld [vmem:[#allocation8 + $0x130] sm:$0xff]
    %v2280 = vld [vmem:[#allocation8 + $0x138] sm:$0xff]
    %v2281 = vld [vmem:[#allocation8 + $0x140] sm:$0xff]
    %v2282 = vld [vmem:[#allocation8 + $0x148] sm:$0xff]
    %v2283 = vld [vmem:[#allocation8 + $0x150] sm:$0xff]
    %v2284 = vld [vmem:[#allocation8 + $0x158] sm:$0xff]
    %v2285 = vld [vmem:[#allocation8 + $0x160] sm:$0xff]
    %v2286 = vld [vmem:[#allocation8 + $0x168] sm:$0xff]
    %v2287 = vld [vmem:[#allocation8 + $0x170] sm:$0xff]
    %v2288 = vld [vmem:[#allocation8 + $0x178] sm:$0xff]
    %v2289 = vld [vmem:[#allocation8 + $0x180] sm:$0xff]
    %v2290 = vld [vmem:[#allocation8 + $0x188] sm:$0xff]
    %v2291 = vld [vmem:[#allocation8 + $0x190] sm:$0xff]
    %v2292 = vld [vmem:[#allocation8 + $0x198] sm:$0xff]
    %v2293 = vld [vmem:[#allocation8 + $0x1a0] sm:$0xff]
    %v2294 = vld [vmem:[#allocation8 + $0x1a8] sm:$0xff]
    %v2295 = vld [vmem:[#allocation8 + $0x1b0] sm:$0xff]
    %v2296 = vld [vmem:[#allocation8 + $0x1b8] sm:$0xff]
    %v2297 = vld [vmem:[#allocation8 + $0x1c0] sm:$0xff]
    %v2298 = vld [vmem:[#allocation8 + $0x1c8] sm:$0xff]
    %v2299 = vld [vmem:[#allocation8 + $0x1d0] sm:$0xff]
    %v2300 = vld [vmem:[#allocation8 + $0x1d8] sm:$0xff]
    %v2301 = vld [vmem:[#allocation8 + $0x1e0] sm:$0xff]
    %v2302 = vld [vmem:[#allocation8 + $0x1e8] sm:$0xff]
    %v2303 = vld [vmem:[#allocation8 + $0x1f0] sm:$0xff]
    %v2304 = vld [vmem:[#allocation8 + $0x1f8] sm:$0xff]
    %v2369 = vunpack.c.l.b16 %v2241
    %v2370 = vunpack.c.h.b16 %v2241
    %v2371 = vunpack.c.l.b16 %v2242
    %v2372 = vunpack.c.h.b16 %v2242
    %v2373 = vunpack.c.l.b16 %v2243
    %v2374 = vunpack.c.h.b16 %v2243
    %v2375 = vunpack.c.l.b16 %v2244
    %v2376 = vunpack.c.h.b16 %v2244
    %v2377 = vunpack.c.l.b16 %v2245
    %v2378 = vunpack.c.h.b16 %v2245
    %v2379 = vunpack.c.l.b16 %v2246
    %v2380 = vunpack.c.h.b16 %v2246
    %v2381 = vunpack.c.l.b16 %v2247
    %v2382 = vunpack.c.h.b16 %v2247
    %v2383 = vunpack.c.l.b16 %v2248
    %v2384 = vunpack.c.h.b16 %v2248
    %v2385 = vunpack.c.l.b16 %v2249
    %v2386 = vunpack.c.h.b16 %v2249
    %v2387 = vunpack.c.l.b16 %v2250
    %v2388 = vunpack.c.h.b16 %v2250
    %v2389 = vunpack.c.l.b16 %v2251
    %v2390 = vunpack.c.h.b16 %v2251
    %v2391 = vunpack.c.l.b16 %v2252
    %v2392 = vunpack.c.h.b16 %v2252
    %v2393 = vunpack.c.l.b16 %v2253
    %v2394 = vunpack.c.h.b16 %v2253
    %v2395 = vunpack.c.l.b16 %v2254
    %v2396 = vunpack.c.h.b16 %v2254
    %v2397 = vunpack.c.l.b16 %v2255
    %v2398 = vunpack.c.h.b16 %v2255
    %v2399 = vunpack.c.l.b16 %v2256
    %v2400 = vunpack.c.h.b16 %v2256
    %v2401 = vunpack.c.l.b16 %v2257
    %v2402 = vunpack.c.h.b16 %v2257
    %v2403 = vunpack.c.l.b16 %v2258
    %v2404 = vunpack.c.h.b16 %v2258
    %v2405 = vunpack.c.l.b16 %v2259
    %v2406 = vunpack.c.h.b16 %v2259
    %v2407 = vunpack.c.l.b16 %v2260
    %v2408 = vunpack.c.h.b16 %v2260
    %v2409 = vunpack.c.l.b16 %v2261
    %v2410 = vunpack.c.h.b16 %v2261
    %v2411 = vunpack.c.l.b16 %v2262
    %v2412 = vunpack.c.h.b16 %v2262
    %v2413 = vunpack.c.l.b16 %v2263
    %v2414 = vunpack.c.h.b16 %v2263
    %v2415 = vunpack.c.l.b16 %v2264
    %v2416 = vunpack.c.h.b16 %v2264
    %v2417 = vunpack.c.l.b16 %v2265
    %v2418 = vunpack.c.h.b16 %v2265
    %v2419 = vunpack.c.l.b16 %v2266
    %v2420 = vunpack.c.h.b16 %v2266
    %v2421 = vunpack.c.l.b16 %v2267
    %v2422 = vunpack.c.h.b16 %v2267
    %v2423 = vunpack.c.l.b16 %v2268
    %v2424 = vunpack.c.h.b16 %v2268
    %v2425 = vunpack.c.l.b16 %v2269
    %v2426 = vunpack.c.h.b16 %v2269
    %v2427 = vunpack.c.l.b16 %v2270
    %v2428 = vunpack.c.h.b16 %v2270
    %v2429 = vunpack.c.l.b16 %v2271
    %v2430 = vunpack.c.h.b16 %v2271
    %v2431 = vunpack.c.l.b16 %v2272
    %v2432 = vunpack.c.h.b16 %v2272
    %v2433 = vunpack.c.l.b16 %v2273
    %v2434 = vunpack.c.h.b16 %v2273
    %v2435 = vunpack.c.l.b16 %v2274
    %v2436 = vunpack.c.h.b16 %v2274
    %v2437 = vunpack.c.l.b16 %v2275
    %v2438 = vunpack.c.h.b16 %v2275
    %v2439 = vunpack.c.l.b16 %v2276
    %v2440 = vunpack.c.h.b16 %v2276
    %v2441 = vunpack.c.l.b16 %v2277
    %v2442 = vunpack.c.h.b16 %v2277
    %v2443 = vunpack.c.l.b16 %v2278
    %v2444 = vunpack.c.h.b16 %v2278
    %v2445 = vunpack.c.l.b16 %v2279
    %v2446 = vunpack.c.h.b16 %v2279
    %v2447 = vunpack.c.l.b16 %v2280
    %v2448 = vunpack.c.h.b16 %v2280
    %v2449 = vunpack.c.l.b16 %v2281
    %v2450 = vunpack.c.h.b16 %v2281
    %v2451 = vunpack.c.l.b16 %v2282
    %v2452 = vunpack.c.h.b16 %v2282
    %v2453 = vunpack.c.l.b16 %v2283
    %v2454 = vunpack.c.h.b16 %v2283
    %v2455 = vunpack.c.l.b16 %v2284
    %v2456 = vunpack.c.h.b16 %v2284
    %v2457 = vunpack.c.l.b16 %v2285
    %v2458 = vunpack.c.h.b16 %v2285
    %v2459 = vunpack.c.l.b16 %v2286
    %v2460 = vunpack.c.h.b16 %v2286
    %v2461 = vunpack.c.l.b16 %v2287
    %v2462 = vunpack.c.h.b16 %v2287
    %v2463 = vunpack.c.l.b16 %v2288
    %v2464 = vunpack.c.h.b16 %v2288
    %v2465 = vunpack.c.l.b16 %v2289
    %v2466 = vunpack.c.h.b16 %v2289
    %v2467 = vunpack.c.l.b16 %v2290
    %v2468 = vunpack.c.h.b16 %v2290
    %v2469 = vunpack.c.l.b16 %v2291
    %v2470 = vunpack.c.h.b16 %v2291
    %v2471 = vunpack.c.l.b16 %v2292
    %v2472 = vunpack.c.h.b16 %v2292
    %v2473 = vunpack.c.l.b16 %v2293
    %v2474 = vunpack.c.h.b16 %v2293
    %v2475 = vunpack.c.l.b16 %v2294
    %v2476 = vunpack.c.h.b16 %v2294
    %v2477 = vunpack.c.l.b16 %v2295
    %v2478 = vunpack.c.h.b16 %v2295
    %v2479 = vunpack.c.l.b16 %v2296
    %v2480 = vunpack.c.h.b16 %v2296
    %v2481 = vunpack.c.l.b16 %v2297
    %v2482 = vunpack.c.h.b16 %v2297
    %v2483 = vunpack.c.l.b16 %v2298
    %v2484 = vunpack.c.h.b16 %v2298
    %v2485 = vunpack.c.l.b16 %v2299
    %v2486 = vunpack.c.h.b16 %v2299
    %v2487 = vunpack.c.l.b16 %v2300
    %v2488 = vunpack.c.h.b16 %v2300
    %v2489 = vunpack.c.l.b16 %v2301
    %v2490 = vunpack.c.h.b16 %v2301
    %v2491 = vunpack.c.l.b16 %v2302
    %v2492 = vunpack.c.h.b16 %v2302
    %v2493 = vunpack.c.l.b16 %v2303
    %v2494 = vunpack.c.h.b16 %v2303
    %v2495 = vunpack.c.l.b16 %v2304
    %v2496 = vunpack.c.h.b16 %v2304
    %v2497 = vpack.c.b16 %v2371, %v2369
    %v2498 = vpack.c.b16 %v2372, %v2370
    %v2499 = vpack.c.b16 %v2375, %v2373
    %v2500 = vpack.c.b16 %v2376, %v2374
    %v2501 = vpack.c.b16 %v2379, %v2377
    %v2502 = vpack.c.b16 %v2380, %v2378
    %v2503 = vpack.c.b16 %v2383, %v2381
    %v2504 = vpack.c.b16 %v2384, %v2382
    %v2505 = vpack.c.b16 %v2387, %v2385
    %v2506 = vpack.c.b16 %v2388, %v2386
    %v2507 = vpack.c.b16 %v2391, %v2389
    %v2508 = vpack.c.b16 %v2392, %v2390
    %v2509 = vpack.c.b16 %v2395, %v2393
    %v2510 = vpack.c.b16 %v2396, %v2394
    %v2511 = vpack.c.b16 %v2399, %v2397
    %v2512 = vpack.c.b16 %v2400, %v2398
    %v2513 = vpack.c.b16 %v2403, %v2401
    %v2514 = vpack.c.b16 %v2404, %v2402
    %v2515 = vpack.c.b16 %v2407, %v2405
    %v2516 = vpack.c.b16 %v2408, %v2406
    %v2517 = vpack.c.b16 %v2411, %v2409
    %v2518 = vpack.c.b16 %v2412, %v2410
    %v2519 = vpack.c.b16 %v2415, %v2413
    %v2520 = vpack.c.b16 %v2416, %v2414
    %v2521 = vpack.c.b16 %v2419, %v2417
    %v2522 = vpack.c.b16 %v2420, %v2418
    %v2523 = vpack.c.b16 %v2423, %v2421
    %v2524 = vpack.c.b16 %v2424, %v2422
    %v2525 = vpack.c.b16 %v2427, %v2425
    %v2526 = vpack.c.b16 %v2428, %v2426
    %v2527 = vpack.c.b16 %v2431, %v2429
    %v2528 = vpack.c.b16 %v2432, %v2430
    %v2529 = vpack.c.b16 %v2435, %v2433
    %v2530 = vpack.c.b16 %v2436, %v2434
    %v2531 = vpack.c.b16 %v2439, %v2437
    %v2532 = vpack.c.b16 %v2440, %v2438
    %v2533 = vpack.c.b16 %v2443, %v2441
    %v2534 = vpack.c.b16 %v2444, %v2442
    %v2535 = vpack.c.b16 %v2447, %v2445
    %v2536 = vpack.c.b16 %v2448, %v2446
    %v2537 = vpack.c.b16 %v2451, %v2449
    %v2538 = vpack.c.b16 %v2452, %v2450
    %v2539 = vpack.c.b16 %v2455, %v2453
    %v2540 = vpack.c.b16 %v2456, %v2454
    %v2541 = vpack.c.b16 %v2459, %v2457
    %v2542 = vpack.c.b16 %v2460, %v2458
    %v2543 = vpack.c.b16 %v2463, %v2461
    %v2544 = vpack.c.b16 %v2464, %v2462
    %v2545 = vpack.c.b16 %v2467, %v2465
    %v2546 = vpack.c.b16 %v2468, %v2466
    %v2547 = vpack.c.b16 %v2471, %v2469
    %v2548 = vpack.c.b16 %v2472, %v2470
    %v2549 = vpack.c.b16 %v2475, %v2473
    %v2550 = vpack.c.b16 %v2476, %v2474
    %v2551 = vpack.c.b16 %v2479, %v2477
    %v2552 = vpack.c.b16 %v2480, %v2478
    %v2553 = vpack.c.b16 %v2483, %v2481
    %v2554 = vpack.c.b16 %v2484, %v2482
    %v2555 = vpack.c.b16 %v2487, %v2485
    %v2556 = vpack.c.b16 %v2488, %v2486
    %v2557 = vpack.c.b16 %v2491, %v2489
    %v2558 = vpack.c.b16 %v2492, %v2490
    %v2559 = vpack.c.b16 %v2495, %v2493
    %v2560 = vpack.c.b16 %v2496, %v2494
    %2625 = vmatpush.bf16.msra.mxu0 %v2511
    %2626 = vmatpush.bf16.msra.mxu0 %v2509
    %2627 = vmatpush.bf16.msra.mxu0 %v2507
    %2628 = vmatpush.bf16.msra.mxu0 %v2505
    %2629 = vmatpush.bf16.msra.mxu0 %v2503
    %2630 = vmatpush.bf16.msra.mxu0 %v2501
    %2631 = vmatpush.bf16.msra.mxu0 %v2499
    %2632 = vmatpush.bf16.msra.mxu0 %v2497
    %2633 = vmatmul.bf16.gmra.mxu0 %v2225
    %v2634 = vpop.f32.mrf.mxu0
    %v2635 = vadd.f32 0.0, %v2634
    %v2636 = vpop.f32.mrf.mxu0
    %v2637 = vadd.f32 0.0, %v2636
    %2638 = vmatmul.bf16.gmra.mxu0 %v2229
    %v2639 = vpop.f32.mrf.mxu0
    %v2640 = vadd.f32 0.0, %v2639
    %v2641 = vpop.f32.mrf.mxu0
    %v2642 = vadd.f32 0.0, %v2641
    %2643 = vmatmul.bf16.gmra.mxu0 %v2233
    %v2644 = vpop.f32.mrf.mxu0
    %v2645 = vadd.f32 0.0, %v2644
    %v2646 = vpop.f32.mrf.mxu0
    %v2647 = vadd.f32 0.0, %v2646
    %2648 = vmatmul.bf16.gmra.mxu0 %v2237
    %v2649 = vpop.f32.mrf.mxu0
    %v2650 = vadd.f32 0.0, %v2649
    %v2651 = vpop.f32.mrf.mxu0
    %v2652 = vadd.f32 0.0, %v2651
    %2653 = vdwg.mxu0
    %2654 = vmatpush.bf16.msra.mxu0 %v2527
    %2655 = vmatpush.bf16.msra.mxu0 %v2525
    %2656 = vmatpush.bf16.msra.mxu0 %v2523
    %2657 = vmatpush.bf16.msra.mxu0 %v2521
    %2658 = vmatpush.bf16.msra.mxu0 %v2519
    %2659 = vmatpush.bf16.msra.mxu0 %v2517
    %2660 = vmatpush.bf16.msra.mxu0 %v2515
    %2661 = vmatpush.bf16.msra.mxu0 %v2513
    %2662 = vmatmul.bf16.gmra.mxu0 %v2226
    %v2663 = vpop.f32.mrf.mxu0
    %v2664 = vadd.f32 %v2635, %v2663
    %v2665 = vpop.f32.mrf.mxu0
    %v2666 = vadd.f32 %v2637, %v2665
    %2667 = vmatmul.bf16.gmra.mxu0 %v2230
    %v2668 = vpop.f32.mrf.mxu0
    %v2669 = vadd.f32 %v2640, %v2668
    %v2670 = vpop.f32.mrf.mxu0
    %v2671 = vadd.f32 %v2642, %v2670
    %2672 = vmatmul.bf16.gmra.mxu0 %v2234
    %v2673 = vpop.f32.mrf.mxu0
    %v2674 = vadd.f32 %v2645, %v2673
    %v2675 = vpop.f32.mrf.mxu0
    %v2676 = vadd.f32 %v2647, %v2675
    %2677 = vmatmul.bf16.gmra.mxu0 %v2238
    %v2678 = vpop.f32.mrf.mxu0
    %v2679 = vadd.f32 %v2650, %v2678
    %v2680 = vpop.f32.mrf.mxu0
    %v2681 = vadd.f32 %v2652, %v2680
    %2682 = vdwg.mxu0
    %2683 = vmatpush.bf16.msra.mxu0 %v2543
    %2684 = vmatpush.bf16.msra.mxu0 %v2541
    %2685 = vmatpush.bf16.msra.mxu0 %v2539
    %2686 = vmatpush.bf16.msra.mxu0 %v2537
    %2687 = vmatpush.bf16.msra.mxu0 %v2535
    %2688 = vmatpush.bf16.msra.mxu0 %v2533
    %2689 = vmatpush.bf16.msra.mxu0 %v2531
    %2690 = vmatpush.bf16.msra.mxu0 %v2529
    %2691 = vmatmul.bf16.gmra.mxu0 %v2227
    %v2692 = vpop.f32.mrf.mxu0
    %v2693 = vadd.f32 %v2664, %v2692
    %v2694 = vpop.f32.mrf.mxu0
    %v2695 = vadd.f32 %v2666, %v2694
    %2696 = vmatmul.bf16.gmra.mxu0 %v2231
    %v2697 = vpop.f32.mrf.mxu0
    %v2698 = vadd.f32 %v2669, %v2697
    %v2699 = vpop.f32.mrf.mxu0
    %v2700 = vadd.f32 %v2671, %v2699
    %2701 = vmatmul.bf16.gmra.mxu0 %v2235
    %v2702 = vpop.f32.mrf.mxu0
    %v2703 = vadd.f32 %v2674, %v2702
    %v2704 = vpop.f32.mrf.mxu0
    %v2705 = vadd.f32 %v2676, %v2704
    %2706 = vmatmul.bf16.gmra.mxu0 %v2239
    %v2707 = vpop.f32.mrf.mxu0
    %v2708 = vadd.f32 %v2679, %v2707
    %v2709 = vpop.f32.mrf.mxu0
    %v2710 = vadd.f32 %v2681, %v2709
    %2711 = vdwg.mxu0
    %2712 = vmatpush.bf16.msra.mxu0 %v2559
    %2713 = vmatpush.bf16.msra.mxu0 %v2557
    %2714 = vmatpush.bf16.msra.mxu0 %v2555
    %2715 = vmatpush.bf16.msra.mxu0 %v2553
    %2716 = vmatpush.bf16.msra.mxu0 %v2551
    %2717 = vmatpush.bf16.msra.mxu0 %v2549
    %2718 = vmatpush.bf16.msra.mxu0 %v2547
    %2719 = vmatpush.bf16.msra.mxu0 %v2545
    %2720 = vmatmul.bf16.gmra.mxu0 %v2228
    %v2721 = vpop.f32.mrf.mxu0
    %v2722 = vadd.f32 %v2693, %v2721
    %v2723 = vpop.f32.mrf.mxu0
    %v2724 = vadd.f32 %v2695, %v2723
    %2725 = vmatmul.bf16.gmra.mxu0 %v2232
    %v2726 = vpop.f32.mrf.mxu0
    %v2727 = vadd.f32 %v2698, %v2726
    %v2728 = vpop.f32.mrf.mxu0
    %v2729 = vadd.f32 %v2700, %v2728
    %2730 = vmatmul.bf16.gmra.mxu0 %v2236
    %v2731 = vpop.f32.mrf.mxu0
    %v2732 = vadd.f32 %v2703, %v2731
    %v2733 = vpop.f32.mrf.mxu0
    %v2734 = vadd.f32 %v2705, %v2733
    %2735 = vmatmul.bf16.gmra.mxu0 %v2240
    %v2736 = vpop.f32.mrf.mxu0
    %v2737 = vadd.f32 %v2708, %v2736
    %v2738 = vpop.f32.mrf.mxu0
    %v2739 = vadd.f32 %v2710, %v2738
    %2740 = vdwg.mxu0
    %2741 = vmatpush.bf16.msra.mxu0 %v2512
    %2742 = vmatpush.bf16.msra.mxu0 %v2510
    %2743 = vmatpush.bf16.msra.mxu0 %v2508
    %2744 = vmatpush.bf16.msra.mxu0 %v2506
    %2745 = vmatpush.bf16.msra.mxu0 %v2504
    %2746 = vmatpush.bf16.msra.mxu0 %v2502
    %2747 = vmatpush.bf16.msra.mxu0 %v2500
    %2748 = vmatpush.bf16.msra.mxu0 %v2498
    %2749 = vmatmul.bf16.gmra.mxu0 %v2225
    %v2750 = vpop.f32.mrf.mxu0
    %v2751 = vadd.f32 0.0, %v2750
    %v2752 = vpop.f32.mrf.mxu0
    %v2753 = vadd.f32 0.0, %v2752
    %2754 = vmatmul.bf16.gmra.mxu0 %v2229
    %v2755 = vpop.f32.mrf.mxu0
    %v2756 = vadd.f32 0.0, %v2755
    %v2757 = vpop.f32.mrf.mxu0
    %v2758 = vadd.f32 0.0, %v2757
    %2759 = vmatmul.bf16.gmra.mxu0 %v2233
    %v2760 = vpop.f32.mrf.mxu0
    %v2761 = vadd.f32 0.0, %v2760
    %v2762 = vpop.f32.mrf.mxu0
    %v2763 = vadd.f32 0.0, %v2762
    %2764 = vmatmul.bf16.gmra.mxu0 %v2237
    %v2765 = vpop.f32.mrf.mxu0
    %v2766 = vadd.f32 0.0, %v2765
    %v2767 = vpop.f32.mrf.mxu0
    %v2768 = vadd.f32 0.0, %v2767
    %2769 = vdwg.mxu0
    %2770 = vmatpush.bf16.msra.mxu0 %v2528
    %2771 = vmatpush.bf16.msra.mxu0 %v2526
    %2772 = vmatpush.bf16.msra.mxu0 %v2524
    %2773 = vmatpush.bf16.msra.mxu0 %v2522
    %2774 = vmatpush.bf16.msra.mxu0 %v2520
    %2775 = vmatpush.bf16.msra.mxu0 %v2518
    %2776 = vmatpush.bf16.msra.mxu0 %v2516
    %2777 = vmatpush.bf16.msra.mxu0 %v2514
    %2778 = vmatmul.bf16.gmra.mxu0 %v2226
    %v2779 = vpop.f32.mrf.mxu0
    %v2780 = vadd.f32 %v2751, %v2779
    %v2781 = vpop.f32.mrf.mxu0
    %v2782 = vadd.f32 %v2753, %v2781
    %2783 = vmatmul.bf16.gmra.mxu0 %v2230
    %v2784 = vpop.f32.mrf.mxu0
    %v2785 = vadd.f32 %v2756, %v2784
    %v2786 = vpop.f32.mrf.mxu0
    %v2787 = vadd.f32 %v2758, %v2786
    %2788 = vmatmul.bf16.gmra.mxu0 %v2234
    %v2789 = vpop.f32.mrf.mxu0
    %v2790 = vadd.f32 %v2761, %v2789
    %v2791 = vpop.f32.mrf.mxu0
    %v2792 = vadd.f32 %v2763, %v2791
    %2793 = vmatmul.bf16.gmra.mxu0 %v2238
    %v2794 = vpop.f32.mrf.mxu0
    %v2795 = vadd.f32 %v2766, %v2794
    %v2796 = vpop.f32.mrf.mxu0
    %v2797 = vadd.f32 %v2768, %v2796
    %2798 = vdwg.mxu0
    %2799 = vmatpush.bf16.msra.mxu0 %v2544
    %2800 = vmatpush.bf16.msra.mxu0 %v2542
    %2801 = vmatpush.bf16.msra.mxu0 %v2540
    %2802 = vmatpush.bf16.msra.mxu0 %v2538
    %2803 = vmatpush.bf16.msra.mxu0 %v2536
    %2804 = vmatpush.bf16.msra.mxu0 %v2534
    %2805 = vmatpush.bf16.msra.mxu0 %v2532
    %2806 = vmatpush.bf16.msra.mxu0 %v2530
    %2807 = vmatmul.bf16.gmra.mxu0 %v2227
    %v2808 = vpop.f32.mrf.mxu0
    %v2809 = vadd.f32 %v2780, %v2808
    %v2810 = vpop.f32.mrf.mxu0
    %v2811 = vadd.f32 %v2782, %v2810
    %2812 = vmatmul.bf16.gmra.mxu0 %v2231
    %v2813 = vpop.f32.mrf.mxu0
    %v2814 = vadd.f32 %v2785, %v2813
    %v2815 = vpop.f32.mrf.mxu0
    %v2816 = vadd.f32 %v2787, %v2815
    %2817 = vmatmul.bf16.gmra.mxu0 %v2235
    %v2818 = vpop.f32.mrf.mxu0
    %v2819 = vadd.f32 %v2790, %v2818
    %v2820 = vpop.f32.mrf.mxu0
    %v2821 = vadd.f32 %v2792, %v2820
    %2822 = vmatmul.bf16.gmra.mxu0 %v2239
    %v2823 = vpop.f32.mrf.mxu0
    %v2824 = vadd.f32 %v2795, %v2823
    %v2825 = vpop.f32.mrf.mxu0
    %v2826 = vadd.f32 %v2797, %v2825
    %2827 = vdwg.mxu0
    %2828 = vmatpush.bf16.msra.mxu0 %v2560
    %2829 = vmatpush.bf16.msra.mxu0 %v2558
    %2830 = vmatpush.bf16.msra.mxu0 %v2556
    %2831 = vmatpush.bf16.msra.mxu0 %v2554
    %2832 = vmatpush.bf16.msra.mxu0 %v2552
    %2833 = vmatpush.bf16.msra.mxu0 %v2550
    %2834 = vmatpush.bf16.msra.mxu0 %v2548
    %2835 = vmatpush.bf16.msra.mxu0 %v2546
    %2836 = vmatmul.bf16.gmra.mxu0 %v2228
    %v2837 = vpop.f32.mrf.mxu0
    %v2838 = vadd.f32 %v2809, %v2837
    %v2839 = vpop.f32.mrf.mxu0
    %v2840 = vadd.f32 %v2811, %v2839
    %2841 = vmatmul.bf16.gmra.mxu0 %v2232
    %v2842 = vpop.f32.mrf.mxu0
    %v2843 = vadd.f32 %v2814, %v2842
    %v2844 = vpop.f32.mrf.mxu0
    %v2845 = vadd.f32 %v2816, %v2844
    %2846 = vmatmul.bf16.gmra.mxu0 %v2236
    %v2847 = vpop.f32.mrf.mxu0
    %v2848 = vadd.f32 %v2819, %v2847
    %v2849 = vpop.f32.mrf.mxu0
    %v2850 = vadd.f32 %v2821, %v2849
    %2851 = vmatmul.bf16.gmra.mxu0 %v2240
    %v2852 = vpop.f32.mrf.mxu0
    %v2853 = vadd.f32 %v2824, %v2852
    %v2854 = vpop.f32.mrf.mxu0
    %v2855 = vadd.f32 %v2826, %v2854
    %2856 = vdwg.mxu0
    %v2857 = vpack.c.bf16 %v2122, %v2122
    %v2858 = vpack.c.bf16 %v2123, %v2123
    %v2859 = vld [vmem:[#allocation9] sm:$0xff]
    %v2860 = vld [vmem:[#allocation9 + $0x8] sm:$0xff]
    %v2861 = vld [vmem:[#allocation9 + $0x10] sm:$0xff]
    %v2862 = vld [vmem:[#allocation9 + $0x18] sm:$0xff]
    %v2863 = vld [vmem:[#allocation9 + $0x20] sm:$0xff]
    %v2864 = vld [vmem:[#allocation9 + $0x28] sm:$0xff]
    %v2865 = vld [vmem:[#allocation9 + $0x30] sm:$0xff]
    %v2866 = vld [vmem:[#allocation9 + $0x38] sm:$0xff]
    %v2867 = vld [vmem:[#allocation9 + $0x40] sm:$0xff]
    %v2868 = vld [vmem:[#allocation9 + $0x48] sm:$0xff]
    %v2869 = vld [vmem:[#allocation9 + $0x50] sm:$0xff]
    %v2870 = vld [vmem:[#allocation9 + $0x58] sm:$0xff]
    %v2871 = vld [vmem:[#allocation9 + $0x60] sm:$0xff]
    %v2872 = vld [vmem:[#allocation9 + $0x68] sm:$0xff]
    %v2873 = vld [vmem:[#allocation9 + $0x70] sm:$0xff]
    %v2874 = vld [vmem:[#allocation9 + $0x78] sm:$0xff]
    %v2875 = vld [vmem:[#allocation9 + $0x80] sm:$0xff]
    %v2876 = vld [vmem:[#allocation9 + $0x88] sm:$0xff]
    %v2877 = vld [vmem:[#allocation9 + $0x90] sm:$0xff]
    %v2878 = vld [vmem:[#allocation9 + $0x98] sm:$0xff]
    %v2879 = vld [vmem:[#allocation9 + $0xa0] sm:$0xff]
    %v2880 = vld [vmem:[#allocation9 + $0xa8] sm:$0xff]
    %v2881 = vld [vmem:[#allocation9 + $0xb0] sm:$0xff]
    %v2882 = vld [vmem:[#allocation9 + $0xb8] sm:$0xff]
    %v2883 = vld [vmem:[#allocation9 + $0xc0] sm:$0xff]
    %v2884 = vld [vmem:[#allocation9 + $0xc8] sm:$0xff]
    %v2885 = vld [vmem:[#allocation9 + $0xd0] sm:$0xff]
    %v2886 = vld [vmem:[#allocation9 + $0xd8] sm:$0xff]
    %v2887 = vld [vmem:[#allocation9 + $0xe0] sm:$0xff]
    %v2888 = vld [vmem:[#allocation9 + $0xe8] sm:$0xff]
    %v2889 = vld [vmem:[#allocation9 + $0xf0] sm:$0xff]
    %v2890 = vld [vmem:[#allocation9 + $0xf8] sm:$0xff]
    %v2891 = vld [vmem:[#allocation9 + $0x100] sm:$0xff]
    %v2892 = vld [vmem:[#allocation9 + $0x108] sm:$0xff]
    %v2893 = vld [vmem:[#allocation9 + $0x110] sm:$0xff]
    %v2894 = vld [vmem:[#allocation9 + $0x118] sm:$0xff]
    %v2895 = vld [vmem:[#allocation9 + $0x120] sm:$0xff]
    %v2896 = vld [vmem:[#allocation9 + $0x128] sm:$0xff]
    %v2897 = vld [vmem:[#allocation9 + $0x130] sm:$0xff]
    %v2898 = vld [vmem:[#allocation9 + $0x138] sm:$0xff]
    %v2899 = vld [vmem:[#allocation9 + $0x140] sm:$0xff]
    %v2900 = vld [vmem:[#allocation9 + $0x148] sm:$0xff]
    %v2901 = vld [vmem:[#allocation9 + $0x150] sm:$0xff]
    %v2902 = vld [vmem:[#allocation9 + $0x158] sm:$0xff]
    %v2903 = vld [vmem:[#allocation9 + $0x160] sm:$0xff]
    %v2904 = vld [vmem:[#allocation9 + $0x168] sm:$0xff]
    %v2905 = vld [vmem:[#allocation9 + $0x170] sm:$0xff]
    %v2906 = vld [vmem:[#allocation9 + $0x178] sm:$0xff]
    %v2907 = vld [vmem:[#allocation9 + $0x180] sm:$0xff]
    %v2908 = vld [vmem:[#allocation9 + $0x188] sm:$0xff]
    %v2909 = vld [vmem:[#allocation9 + $0x190] sm:$0xff]
    %v2910 = vld [vmem:[#allocation9 + $0x198] sm:$0xff]
    %v2911 = vld [vmem:[#allocation9 + $0x1a0] sm:$0xff]
    %v2912 = vld [vmem:[#allocation9 + $0x1a8] sm:$0xff]
    %v2913 = vld [vmem:[#allocation9 + $0x1b0] sm:$0xff]
    %v2914 = vld [vmem:[#allocation9 + $0x1b8] sm:$0xff]
    %v2915 = vld [vmem:[#allocation9 + $0x1c0] sm:$0xff]
    %v2916 = vld [vmem:[#allocation9 + $0x1c8] sm:$0xff]
    %v2917 = vld [vmem:[#allocation9 + $0x1d0] sm:$0xff]
    %v2918 = vld [vmem:[#allocation9 + $0x1d8] sm:$0xff]
    %v2919 = vld [vmem:[#allocation9 + $0x1e0] sm:$0xff]
    %v2920 = vld [vmem:[#allocation9 + $0x1e8] sm:$0xff]
    %v2921 = vld [vmem:[#allocation9 + $0x1f0] sm:$0xff]
    %v2922 = vld [vmem:[#allocation9 + $0x1f8] sm:$0xff]
    %v2923 = vld [vmem:[#allocation9 + $0x200] sm:$0xff]
    %v2924 = vld [vmem:[#allocation9 + $0x208] sm:$0xff]
    %v2925 = vld [vmem:[#allocation9 + $0x210] sm:$0xff]
    %v2926 = vld [vmem:[#allocation9 + $0x218] sm:$0xff]
    %v2927 = vld [vmem:[#allocation9 + $0x220] sm:$0xff]
    %v2928 = vld [vmem:[#allocation9 + $0x228] sm:$0xff]
    %v2929 = vld [vmem:[#allocation9 + $0x230] sm:$0xff]
    %v2930 = vld [vmem:[#allocation9 + $0x238] sm:$0xff]
    %v2931 = vld [vmem:[#allocation9 + $0x240] sm:$0xff]
    %v2932 = vld [vmem:[#allocation9 + $0x248] sm:$0xff]
    %v2933 = vld [vmem:[#allocation9 + $0x250] sm:$0xff]
    %v2934 = vld [vmem:[#allocation9 + $0x258] sm:$0xff]
    %v2935 = vld [vmem:[#allocation9 + $0x260] sm:$0xff]
    %v2936 = vld [vmem:[#allocation9 + $0x268] sm:$0xff]
    %v2937 = vld [vmem:[#allocation9 + $0x270] sm:$0xff]
    %v2938 = vld [vmem:[#allocation9 + $0x278] sm:$0xff]
    %v2939 = vld [vmem:[#allocation9 + $0x280] sm:$0xff]
    %v2940 = vld [vmem:[#allocation9 + $0x288] sm:$0xff]
    %v2941 = vld [vmem:[#allocation9 + $0x290] sm:$0xff]
    %v2942 = vld [vmem:[#allocation9 + $0x298] sm:$0xff]
    %v2943 = vld [vmem:[#allocation9 + $0x2a0] sm:$0xff]
    %v2944 = vld [vmem:[#allocation9 + $0x2a8] sm:$0xff]
    %v2945 = vld [vmem:[#allocation9 + $0x2b0] sm:$0xff]
    %v2946 = vld [vmem:[#allocation9 + $0x2b8] sm:$0xff]
    %v2947 = vld [vmem:[#allocation9 + $0x2c0] sm:$0xff]
    %v2948 = vld [vmem:[#allocation9 + $0x2c8] sm:$0xff]
    %v2949 = vld [vmem:[#allocation9 + $0x2d0] sm:$0xff]
    %v2950 = vld [vmem:[#allocation9 + $0x2d8] sm:$0xff]
    %v2951 = vld [vmem:[#allocation9 + $0x2e0] sm:$0xff]
    %v2952 = vld [vmem:[#allocation9 + $0x2e8] sm:$0xff]
    %v2953 = vld [vmem:[#allocation9 + $0x2f0] sm:$0xff]
    %v2954 = vld [vmem:[#allocation9 + $0x2f8] sm:$0xff]
    %v2955 = vld [vmem:[%s6] sm:$0x3f]
    %v2957 = vperm.slane %v2955, 0
    %v2958 = vperm.slane %v2955, 1
    %v2959 = vperm.slane %v2955, 2
    %v2960 = vperm.slane %v2955, 3
    %v2961 = vperm.slane %v2955, 4
    %v2962 = vperm.slane %v2955, 5
    %v3065 = vunpack.c.l.b16 %v2859
    %v3066 = vunpack.c.h.b16 %v2859
    %v3067 = vunpack.c.l.b16 %v2860
    %v3068 = vunpack.c.h.b16 %v2860
    %v3069 = vunpack.c.l.b16 %v2861
    %v3070 = vunpack.c.h.b16 %v2861
    %v3071 = vunpack.c.l.b16 %v2862
    %v3072 = vunpack.c.h.b16 %v2862
    %v3073 = vunpack.c.l.b16 %v2863
    %v3074 = vunpack.c.h.b16 %v2863
    %v3075 = vunpack.c.l.b16 %v2864
    %v3076 = vunpack.c.h.b16 %v2864
    %v3077 = vunpack.c.l.b16 %v2865
    %v3078 = vunpack.c.h.b16 %v2865
    %v3079 = vunpack.c.l.b16 %v2866
    %v3080 = vunpack.c.h.b16 %v2866
    %v3081 = vunpack.c.l.b16 %v2867
    %v3082 = vunpack.c.h.b16 %v2867
    %v3083 = vunpack.c.l.b16 %v2868
    %v3084 = vunpack.c.h.b16 %v2868
    %v3085 = vunpack.c.l.b16 %v2869
    %v3086 = vunpack.c.h.b16 %v2869
    %v3087 = vunpack.c.l.b16 %v2870
    %v3088 = vunpack.c.h.b16 %v2870
    %v3089 = vunpack.c.l.b16 %v2871
    %v3090 = vunpack.c.h.b16 %v2871
    %v3091 = vunpack.c.l.b16 %v2872
    %v3092 = vunpack.c.h.b16 %v2872
    %v3093 = vunpack.c.l.b16 %v2873
    %v3094 = vunpack.c.h.b16 %v2873
    %v3095 = vunpack.c.l.b16 %v2874
    %v3096 = vunpack.c.h.b16 %v2874
    %v3097 = vunpack.c.l.b16 %v2875
    %v3098 = vunpack.c.h.b16 %v2875
    %v3099 = vunpack.c.l.b16 %v2876
    %v3100 = vunpack.c.h.b16 %v2876
    %v3101 = vunpack.c.l.b16 %v2877
    %v3102 = vunpack.c.h.b16 %v2877
    %v3103 = vunpack.c.l.b16 %v2878
    %v3104 = vunpack.c.h.b16 %v2878
    %v3105 = vunpack.c.l.b16 %v2879
    %v3106 = vunpack.c.h.b16 %v2879
    %v3107 = vunpack.c.l.b16 %v2880
    %v3108 = vunpack.c.h.b16 %v2880
    %v3109 = vunpack.c.l.b16 %v2881
    %v3110 = vunpack.c.h.b16 %v2881
    %v3111 = vunpack.c.l.b16 %v2882
    %v3112 = vunpack.c.h.b16 %v2882
    %v3113 = vunpack.c.l.b16 %v2883
    %v3114 = vunpack.c.h.b16 %v2883
    %v3115 = vunpack.c.l.b16 %v2884
    %v3116 = vunpack.c.h.b16 %v2884
    %v3117 = vunpack.c.l.b16 %v2885
    %v3118 = vunpack.c.h.b16 %v2885
    %v3119 = vunpack.c.l.b16 %v2886
    %v3120 = vunpack.c.h.b16 %v2886
    %v3121 = vunpack.c.l.b16 %v2887
    %v3122 = vunpack.c.h.b16 %v2887
    %v3123 = vunpack.c.l.b16 %v2888
    %v3124 = vunpack.c.h.b16 %v2888
    %v3125 = vunpack.c.l.b16 %v2889
    %v3126 = vunpack.c.h.b16 %v2889
    %v3127 = vunpack.c.l.b16 %v2890
    %v3128 = vunpack.c.h.b16 %v2890
    %v3129 = vunpack.c.l.b16 %v2891
    %v3130 = vunpack.c.h.b16 %v2891
    %v3131 = vunpack.c.l.b16 %v2892
    %v3132 = vunpack.c.h.b16 %v2892
    %v3133 = vunpack.c.l.b16 %v2893
    %v3134 = vunpack.c.h.b16 %v2893
    %v3135 = vunpack.c.l.b16 %v2894
    %v3136 = vunpack.c.h.b16 %v2894
    %v3137 = vunpack.c.l.b16 %v2895
    %v3138 = vunpack.c.h.b16 %v2895
    %v3139 = vunpack.c.l.b16 %v2896
    %v3140 = vunpack.c.h.b16 %v2896
    %v3141 = vunpack.c.l.b16 %v2897
    %v3142 = vunpack.c.h.b16 %v2897
    %v3143 = vunpack.c.l.b16 %v2898
    %v3144 = vunpack.c.h.b16 %v2898
    %v3145 = vunpack.c.l.b16 %v2899
    %v3146 = vunpack.c.h.b16 %v2899
    %v3147 = vunpack.c.l.b16 %v2900
    %v3148 = vunpack.c.h.b16 %v2900
    %v3149 = vunpack.c.l.b16 %v2901
    %v3150 = vunpack.c.h.b16 %v2901
    %v3151 = vunpack.c.l.b16 %v2902
    %v3152 = vunpack.c.h.b16 %v2902
    %v3153 = vunpack.c.l.b16 %v2903
    %v3154 = vunpack.c.h.b16 %v2903
    %v3155 = vunpack.c.l.b16 %v2904
    %v3156 = vunpack.c.h.b16 %v2904
    %v3157 = vunpack.c.l.b16 %v2905
    %v3158 = vunpack.c.h.b16 %v2905
    %v3159 = vunpack.c.l.b16 %v2906
    %v3160 = vunpack.c.h.b16 %v2906
    %v3161 = vunpack.c.l.b16 %v2907
    %v3162 = vunpack.c.h.b16 %v2907
    %v3163 = vunpack.c.l.b16 %v2908
    %v3164 = vunpack.c.h.b16 %v2908
    %v3165 = vunpack.c.l.b16 %v2909
    %v3166 = vunpack.c.h.b16 %v2909
    %v3167 = vunpack.c.l.b16 %v2910
    %v3168 = vunpack.c.h.b16 %v2910
    %v3169 = vunpack.c.l.b16 %v2911
    %v3170 = vunpack.c.h.b16 %v2911
    %v3171 = vunpack.c.l.b16 %v2912
    %v3172 = vunpack.c.h.b16 %v2912
    %v3173 = vunpack.c.l.b16 %v2913
    %v3174 = vunpack.c.h.b16 %v2913
    %v3175 = vunpack.c.l.b16 %v2914
    %v3176 = vunpack.c.h.b16 %v2914
    %v3177 = vunpack.c.l.b16 %v2915
    %v3178 = vunpack.c.h.b16 %v2915
    %v3179 = vunpack.c.l.b16 %v2916
    %v3180 = vunpack.c.h.b16 %v2916
    %v3181 = vunpack.c.l.b16 %v2917
    %v3182 = vunpack.c.h.b16 %v2917
    %v3183 = vunpack.c.l.b16 %v2918
    %v3184 = vunpack.c.h.b16 %v2918
    %v3185 = vunpack.c.l.b16 %v2919
    %v3186 = vunpack.c.h.b16 %v2919
    %v3187 = vunpack.c.l.b16 %v2920
    %v3188 = vunpack.c.h.b16 %v2920
    %v3189 = vunpack.c.l.b16 %v2921
    %v3190 = vunpack.c.h.b16 %v2921
    %v3191 = vunpack.c.l.b16 %v2922
    %v3192 = vunpack.c.h.b16 %v2922
    %v3193 = vunpack.c.l.b16 %v2923
    %v3194 = vunpack.c.h.b16 %v2923
    %v3195 = vunpack.c.l.b16 %v2924
    %v3196 = vunpack.c.h.b16 %v2924
    %v3197 = vunpack.c.l.b16 %v2925
    %v3198 = vunpack.c.h.b16 %v2925
    %v3199 = vunpack.c.l.b16 %v2926
    %v3200 = vunpack.c.h.b16 %v2926
    %v3201 = vunpack.c.l.b16 %v2927
    %v3202 = vunpack.c.h.b16 %v2927
    %v3203 = vunpack.c.l.b16 %v2928
    %v3204 = vunpack.c.h.b16 %v2928
    %v3205 = vunpack.c.l.b16 %v2929
    %v3206 = vunpack.c.h.b16 %v2929
    %v3207 = vunpack.c.l.b16 %v2930
    %v3208 = vunpack.c.h.b16 %v2930
    %v3209 = vunpack.c.l.b16 %v2931
    %v3210 = vunpack.c.h.b16 %v2931
    %v3211 = vunpack.c.l.b16 %v2932
    %v3212 = vunpack.c.h.b16 %v2932
    %v3213 = vunpack.c.l.b16 %v2933
    %v3214 = vunpack.c.h.b16 %v2933
    %v3215 = vunpack.c.l.b16 %v2934
    %v3216 = vunpack.c.h.b16 %v2934
    %v3217 = vunpack.c.l.b16 %v2935
    %v3218 = vunpack.c.h.b16 %v2935
    %v3219 = vunpack.c.l.b16 %v2936
    %v3220 = vunpack.c.h.b16 %v2936
    %v3221 = vunpack.c.l.b16 %v2937
    %v3222 = vunpack.c.h.b16 %v2937
    %v3223 = vunpack.c.l.b16 %v2938
    %v3224 = vunpack.c.h.b16 %v2938
    %v3225 = vunpack.c.l.b16 %v2939
    %v3226 = vunpack.c.h.b16 %v2939
    %v3227 = vunpack.c.l.b16 %v2940
    %v3228 = vunpack.c.h.b16 %v2940
    %v3229 = vunpack.c.l.b16 %v2941
    %v3230 = vunpack.c.h.b16 %v2941
    %v3231 = vunpack.c.l.b16 %v2942
    %v3232 = vunpack.c.h.b16 %v2942
    %v3233 = vunpack.c.l.b16 %v2943
    %v3234 = vunpack.c.h.b16 %v2943
    %v3235 = vunpack.c.l.b16 %v2944
    %v3236 = vunpack.c.h.b16 %v2944
    %v3237 = vunpack.c.l.b16 %v2945
    %v3238 = vunpack.c.h.b16 %v2945
    %v3239 = vunpack.c.l.b16 %v2946
    %v3240 = vunpack.c.h.b16 %v2946
    %v3241 = vunpack.c.l.b16 %v2947
    %v3242 = vunpack.c.h.b16 %v2947
    %v3243 = vunpack.c.l.b16 %v2948
    %v3244 = vunpack.c.h.b16 %v2948
    %v3245 = vunpack.c.l.b16 %v2949
    %v3246 = vunpack.c.h.b16 %v2949
    %v3247 = vunpack.c.l.b16 %v2950
    %v3248 = vunpack.c.h.b16 %v2950
    %v3249 = vunpack.c.l.b16 %v2951
    %v3250 = vunpack.c.h.b16 %v2951
    %v3251 = vunpack.c.l.b16 %v2952
    %v3252 = vunpack.c.h.b16 %v2952
    %v3253 = vunpack.c.l.b16 %v2953
    %v3254 = vunpack.c.h.b16 %v2953
    %v3255 = vunpack.c.l.b16 %v2954
    %v3256 = vunpack.c.h.b16 %v2954
    %v3257 = vpack.c.b16 %v3071, %v3065
    %v3258 = vpack.c.b16 %v3072, %v3066
    %v3259 = vpack.c.b16 %v3073, %v3067
    %v3260 = vpack.c.b16 %v3074, %v3068
    %v3261 = vpack.c.b16 %v3075, %v3069
    %v3262 = vpack.c.b16 %v3076, %v3070
    %v3263 = vpack.c.b16 %v3083, %v3077
    %v3264 = vpack.c.b16 %v3084, %v3078
    %v3265 = vpack.c.b16 %v3085, %v3079
    %v3266 = vpack.c.b16 %v3086, %v3080
    %v3267 = vpack.c.b16 %v3087, %v3081
    %v3268 = vpack.c.b16 %v3088, %v3082
    %v3269 = vpack.c.b16 %v3095, %v3089
    %v3270 = vpack.c.b16 %v3096, %v3090
    %v3271 = vpack.c.b16 %v3097, %v3091
    %v3272 = vpack.c.b16 %v3098, %v3092
    %v3273 = vpack.c.b16 %v3099, %v3093
    %v3274 = vpack.c.b16 %v3100, %v3094
    %v3275 = vpack.c.b16 %v3107, %v3101
    %v3276 = vpack.c.b16 %v3108, %v3102
    %v3277 = vpack.c.b16 %v3109, %v3103
    %v3278 = vpack.c.b16 %v3110, %v3104
    %v3279 = vpack.c.b16 %v3111, %v3105
    %v3280 = vpack.c.b16 %v3112, %v3106
    %v3281 = vpack.c.b16 %v3119, %v3113
    %v3282 = vpack.c.b16 %v3120, %v3114
    %v3283 = vpack.c.b16 %v3121, %v3115
    %v3284 = vpack.c.b16 %v3122, %v3116
    %v3285 = vpack.c.b16 %v3123, %v3117
    %v3286 = vpack.c.b16 %v3124, %v3118
    %v3287 = vpack.c.b16 %v3131, %v3125
    %v3288 = vpack.c.b16 %v3132, %v3126
    %v3289 = vpack.c.b16 %v3133, %v3127
    %v3290 = vpack.c.b16 %v3134, %v3128
    %v3291 = vpack.c.b16 %v3135, %v3129
    %v3292 = vpack.c.b16 %v3136, %v3130
    %v3293 = vpack.c.b16 %v3143, %v3137
    %v3294 = vpack.c.b16 %v3144, %v3138
    %v3295 = vpack.c.b16 %v3145, %v3139
    %v3296 = vpack.c.b16 %v3146, %v3140
    %v3297 = vpack.c.b16 %v3147, %v3141
    %v3298 = vpack.c.b16 %v3148, %v3142
    %v3299 = vpack.c.b16 %v3155, %v3149
    %v3300 = vpack.c.b16 %v3156, %v3150
    %v3301 = vpack.c.b16 %v3157, %v3151
    %v3302 = vpack.c.b16 %v3158, %v3152
    %v3303 = vpack.c.b16 %v3159, %v3153
    %v3304 = vpack.c.b16 %v3160, %v3154
    %v3305 = vpack.c.b16 %v3167, %v3161
    %v3306 = vpack.c.b16 %v3168, %v3162
    %v3307 = vpack.c.b16 %v3169, %v3163
    %v3308 = vpack.c.b16 %v3170, %v3164
    %v3309 = vpack.c.b16 %v3171, %v3165
    %v3310 = vpack.c.b16 %v3172, %v3166
    %v3311 = vpack.c.b16 %v3179, %v3173
    %v3312 = vpack.c.b16 %v3180, %v3174
    %v3313 = vpack.c.b16 %v3181, %v3175
    %v3314 = vpack.c.b16 %v3182, %v3176
    %v3315 = vpack.c.b16 %v3183, %v3177
    %v3316 = vpack.c.b16 %v3184, %v3178
    %v3317 = vpack.c.b16 %v3191, %v3185
    %v3318 = vpack.c.b16 %v3192, %v3186
    %v3319 = vpack.c.b16 %v3193, %v3187
    %v3320 = vpack.c.b16 %v3194, %v3188
    %v3321 = vpack.c.b16 %v3195, %v3189
    %v3322 = vpack.c.b16 %v3196, %v3190
    %v3323 = vpack.c.b16 %v3203, %v3197
    %v3324 = vpack.c.b16 %v3204, %v3198
    %v3325 = vpack.c.b16 %v3205, %v3199
    %v3326 = vpack.c.b16 %v3206, %v3200
    %v3327 = vpack.c.b16 %v3207, %v3201
    %v3328 = vpack.c.b16 %v3208, %v3202
    %v3329 = vpack.c.b16 %v3215, %v3209
    %v3330 = vpack.c.b16 %v3216, %v3210
    %v3331 = vpack.c.b16 %v3217, %v3211
    %v3332 = vpack.c.b16 %v3218, %v3212
    %v3333 = vpack.c.b16 %v3219, %v3213
    %v3334 = vpack.c.b16 %v3220, %v3214
    %v3335 = vpack.c.b16 %v3227, %v3221
    %v3336 = vpack.c.b16 %v3228, %v3222
    %v3337 = vpack.c.b16 %v3229, %v3223
    %v3338 = vpack.c.b16 %v3230, %v3224
    %v3339 = vpack.c.b16 %v3231, %v3225
    %v3340 = vpack.c.b16 %v3232, %v3226
    %v3341 = vpack.c.b16 %v3239, %v3233
    %v3342 = vpack.c.b16 %v3240, %v3234
    %v3343 = vpack.c.b16 %v3241, %v3235
    %v3344 = vpack.c.b16 %v3242, %v3236
    %v3345 = vpack.c.b16 %v3243, %v3237
    %v3346 = vpack.c.b16 %v3244, %v3238
    %v3347 = vpack.c.b16 %v3251, %v3245
    %v3348 = vpack.c.b16 %v3252, %v3246
    %v3349 = vpack.c.b16 %v3253, %v3247
    %v3350 = vpack.c.b16 %v3254, %v3248
    %v3351 = vpack.c.b16 %v3255, %v3249
    %v3352 = vpack.c.b16 %v3256, %v3250
    %3449 = vmatpush.bf16.msra.mxu0 %v3299
    %3450 = vmatpush.bf16.msra.mxu0 %v3293
    %3451 = vmatpush.bf16.msra.mxu0 %v3287
    %3452 = vmatpush.bf16.msra.mxu0 %v3281
    %3453 = vmatpush.bf16.msra.mxu0 %v3275
    %3454 = vmatpush.bf16.msra.mxu0 %v3269
    %3455 = vmatpush.bf16.msra.mxu0 %v3263
    %3456 = vmatpush.bf16.msra.mxu0 %v3257
    %3457 = vmatmul.bf16.gmra.mxu0 %v2857
    %v3458 = vpop.f32.mrf.mxu0
    %v3459 = vadd.f32 %v2957, %v3458
    %v3460 = vpop.f32.mrf.mxu0
    %3461 = vdwg.mxu0
    %3462 = vmatpush.bf16.msra.mxu0 %v3347
    %3463 = vmatpush.bf16.msra.mxu0 %v3341
    %3464 = vmatpush.bf16.msra.mxu0 %v3335
    %3465 = vmatpush.bf16.msra.mxu0 %v3329
    %3466 = vmatpush.bf16.msra.mxu0 %v3323
    %3467 = vmatpush.bf16.msra.mxu0 %v3317
    %3468 = vmatpush.bf16.msra.mxu0 %v3311
    %3469 = vmatpush.bf16.msra.mxu0 %v3305
    %3470 = vmatmul.bf16.gmra.mxu0 %v2858
    %v3471 = vpop.f32.mrf.mxu0
    %v3472 = vadd.f32 %v3459, %v3471
    %v3473 = vpop.f32.mrf.mxu0
    %3474 = vdwg.mxu0
    %3475 = vmatpush.bf16.msra.mxu0 %v3300
    %3476 = vmatpush.bf16.msra.mxu0 %v3294
    %3477 = vmatpush.bf16.msra.mxu0 %v3288
    %3478 = vmatpush.bf16.msra.mxu0 %v3282
    %3479 = vmatpush.bf16.msra.mxu0 %v3276
    %3480 = vmatpush.bf16.msra.mxu0 %v3270
    %3481 = vmatpush.bf16.msra.mxu0 %v3264
    %3482 = vmatpush.bf16.msra.mxu0 %v3258
    %3483 = vmatmul.bf16.gmra.mxu0 %v2857
    %v3484 = vpop.f32.mrf.mxu0
    %v3485 = vadd.f32 %v2958, %v3484
    %v3486 = vpop.f32.mrf.mxu0
    %3487 = vdwg.mxu0
    %3488 = vmatpush.bf16.msra.mxu0 %v3348
    %3489 = vmatpush.bf16.msra.mxu0 %v3342
    %3490 = vmatpush.bf16.msra.mxu0 %v3336
    %3491 = vmatpush.bf16.msra.mxu0 %v3330
    %3492 = vmatpush.bf16.msra.mxu0 %v3324
    %3493 = vmatpush.bf16.msra.mxu0 %v3318
    %3494 = vmatpush.bf16.msra.mxu0 %v3312
    %3495 = vmatpush.bf16.msra.mxu0 %v3306
    %3496 = vmatmul.bf16.gmra.mxu0 %v2858
    %v3497 = vpop.f32.mrf.mxu0
    %v3498 = vadd.f32 %v3485, %v3497
    %v3499 = vpop.f32.mrf.mxu0
    %3500 = vdwg.mxu0
    %3501 = vmatpush.bf16.msra.mxu0 %v3301
    %3502 = vmatpush.bf16.msra.mxu0 %v3295
    %3503 = vmatpush.bf16.msra.mxu0 %v3289
    %3504 = vmatpush.bf16.msra.mxu0 %v3283
    %3505 = vmatpush.bf16.msra.mxu0 %v3277
    %3506 = vmatpush.bf16.msra.mxu0 %v3271
    %3507 = vmatpush.bf16.msra.mxu0 %v3265
    %3508 = vmatpush.bf16.msra.mxu0 %v3259
    %3509 = vmatmul.bf16.gmra.mxu0 %v2857
    %v3510 = vpop.f32.mrf.mxu0
    %v3511 = vadd.f32 %v2959, %v3510
    %v3512 = vpop.f32.mrf.mxu0
    %3513 = vdwg.mxu0
    %3514 = vmatpush.bf16.msra.mxu0 %v3349
    %3515 = vmatpush.bf16.msra.mxu0 %v3343
    %3516 = vmatpush.bf16.msra.mxu0 %v3337
    %3517 = vmatpush.bf16.msra.mxu0 %v3331
    %3518 = vmatpush.bf16.msra.mxu0 %v3325
    %3519 = vmatpush.bf16.msra.mxu0 %v3319
    %3520 = vmatpush.bf16.msra.mxu0 %v3313
    %3521 = vmatpush.bf16.msra.mxu0 %v3307
    %3522 = vmatmul.bf16.gmra.mxu0 %v2858
    %v3523 = vpop.f32.mrf.mxu0
    %v3524 = vadd.f32 %v3511, %v3523
    %v3525 = vpop.f32.mrf.mxu0
    %3526 = vdwg.mxu0
    %3527 = vmatpush.bf16.msra.mxu0 %v3302
    %3528 = vmatpush.bf16.msra.mxu0 %v3296
    %3529 = vmatpush.bf16.msra.mxu0 %v3290
    %3530 = vmatpush.bf16.msra.mxu0 %v3284
    %3531 = vmatpush.bf16.msra.mxu0 %v3278
    %3532 = vmatpush.bf16.msra.mxu0 %v3272
    %3533 = vmatpush.bf16.msra.mxu0 %v3266
    %3534 = vmatpush.bf16.msra.mxu0 %v3260
    %3535 = vmatmul.bf16.gmra.mxu0 %v2857
    %v3536 = vpop.f32.mrf.mxu0
    %v3537 = vadd.f32 %v2960, %v3536
    %v3538 = vpop.f32.mrf.mxu0
    %3539 = vdwg.mxu0
    %3540 = vmatpush.bf16.msra.mxu0 %v3350
    %3541 = vmatpush.bf16.msra.mxu0 %v3344
    %3542 = vmatpush.bf16.msra.mxu0 %v3338
    %3543 = vmatpush.bf16.msra.mxu0 %v3332
    %3544 = vmatpush.bf16.msra.mxu0 %v3326
    %3545 = vmatpush.bf16.msra.mxu0 %v3320
    %3546 = vmatpush.bf16.msra.mxu0 %v3314
    %3547 = vmatpush.bf16.msra.mxu0 %v3308
    %3548 = vmatmul.bf16.gmra.mxu0 %v2858
    %v3549 = vpop.f32.mrf.mxu0
    %v3550 = vadd.f32 %v3537, %v3549
    %v3551 = vpop.f32.mrf.mxu0
    %3552 = vdwg.mxu0
    %3553 = vmatpush.bf16.msra.mxu0 %v3303
    %3554 = vmatpush.bf16.msra.mxu0 %v3297
    %3555 = vmatpush.bf16.msra.mxu0 %v3291
    %3556 = vmatpush.bf16.msra.mxu0 %v3285
    %3557 = vmatpush.bf16.msra.mxu0 %v3279
    %3558 = vmatpush.bf16.msra.mxu0 %v3273
    %3559 = vmatpush.bf16.msra.mxu0 %v3267
    %3560 = vmatpush.bf16.msra.mxu0 %v3261
    %3561 = vmatmul.bf16.gmra.mxu0 %v2857
    %v3562 = vpop.f32.mrf.mxu0
    %v3563 = vadd.f32 %v2961, %v3562
    %v3564 = vpop.f32.mrf.mxu0
    %3565 = vdwg.mxu0
    %3566 = vmatpush.bf16.msra.mxu0 %v3351
    %3567 = vmatpush.bf16.msra.mxu0 %v3345
    %3568 = vmatpush.bf16.msra.mxu0 %v3339
    %3569 = vmatpush.bf16.msra.mxu0 %v3333
    %3570 = vmatpush.bf16.msra.mxu0 %v3327
    %3571 = vmatpush.bf16.msra.mxu0 %v3321
    %3572 = vmatpush.bf16.msra.mxu0 %v3315
    %3573 = vmatpush.bf16.msra.mxu0 %v3309
    %3574 = vmatmul.bf16.gmra.mxu0 %v2858
    %v3575 = vpop.f32.mrf.mxu0
    %v3576 = vadd.f32 %v3563, %v3575
    %v3577 = vpop.f32.mrf.mxu0
    %3578 = vdwg.mxu0
    %3579 = vmatpush.bf16.msra.mxu0 %v3304
    %3580 = vmatpush.bf16.msra.mxu0 %v3298
    %3581 = vmatpush.bf16.msra.mxu0 %v3292
    %3582 = vmatpush.bf16.msra.mxu0 %v3286
    %3583 = vmatpush.bf16.msra.mxu0 %v3280
    %3584 = vmatpush.bf16.msra.mxu0 %v3274
    %3585 = vmatpush.bf16.msra.mxu0 %v3268
    %3586 = vmatpush.bf16.msra.mxu0 %v3262
    %3587 = vmatmul.bf16.gmra.mxu0 %v2857
    %v3588 = vpop.f32.mrf.mxu0
    %v3589 = vadd.f32 %v2962, %v3588
    %v3590 = vpop.f32.mrf.mxu0
    %3591 = vdwg.mxu0
    %3592 = vmatpush.bf16.msra.mxu0 %v3352
    %3593 = vmatpush.bf16.msra.mxu0 %v3346
    %3594 = vmatpush.bf16.msra.mxu0 %v3340
    %3595 = vmatpush.bf16.msra.mxu0 %v3334
    %3596 = vmatpush.bf16.msra.mxu0 %v3328
    %3597 = vmatpush.bf16.msra.mxu0 %v3322
    %3598 = vmatpush.bf16.msra.mxu0 %v3316
    %3599 = vmatpush.bf16.msra.mxu0 %v3310
    %3600 = vmatmul.bf16.gmra.mxu0 %v2858
    %v3601 = vpop.f32.mrf.mxu0
    %v3602 = vadd.f32 %v3589, %v3601
    %v3603 = vpop.f32.mrf.mxu0
    %3604 = vdwg.mxu0
    %3605 = vst [vmem:[#allocation2] sm:$0xff] %v3472
    %3606 = vst [vmem:[#allocation2 + $0x8] sm:$0xff] %v3498
    %3607 = vst [vmem:[#allocation2 + $0x10] sm:$0xff] %v3524
    %3608 = vst [vmem:[#allocation2 + $0x18] sm:$0xff] %v3550
    %3609 = vst [vmem:[#allocation2 + $0x20] sm:$0xff] %v3576
    %3610 = vst [vmem:[#allocation2 + $0x28] sm:$0xff] %v3602
    %v3611 = vpack.c.bf16 %v2724, %v2722
    %v3612 = vpack.c.bf16 %v2840, %v2838
    %v3613 = vpack.c.bf16 %v2729, %v2727
    %v3614 = vpack.c.bf16 %v2845, %v2843
    %v3615 = vpack.c.bf16 %v2734, %v2732
    %v3616 = vpack.c.bf16 %v2850, %v2848
    %v3617 = vpack.c.bf16 %v2739, %v2737
    %v3618 = vpack.c.bf16 %v2855, %v2853
    %v3619 = vld [vmem:[#allocation9] sm:$0xff]
    %v3620 = vld [vmem:[#allocation9 + $0x8] sm:$0xff]
    %v3621 = vld [vmem:[#allocation9 + $0x10] sm:$0xff]
    %v3622 = vld [vmem:[#allocation9 + $0x18] sm:$0xff]
    %v3623 = vld [vmem:[#allocation9 + $0x20] sm:$0xff]
    %v3624 = vld [vmem:[#allocation9 + $0x28] sm:$0xff]
    %v3625 = vld [vmem:[#allocation9 + $0x30] sm:$0xff]
    %v3626 = vld [vmem:[#allocation9 + $0x38] sm:$0xff]
    %v3627 = vld [vmem:[#allocation9 + $0x40] sm:$0xff]
    %v3628 = vld [vmem:[#allocation9 + $0x48] sm:$0xff]
    %v3629 = vld [vmem:[#allocation9 + $0x50] sm:$0xff]
    %v3630 = vld [vmem:[#allocation9 + $0x58] sm:$0xff]
    %v3631 = vld [vmem:[#allocation9 + $0x60] sm:$0xff]
    %v3632 = vld [vmem:[#allocation9 + $0x68] sm:$0xff]
    %v3633 = vld [vmem:[#allocation9 + $0x70] sm:$0xff]
    %v3634 = vld [vmem:[#allocation9 + $0x78] sm:$0xff]
    %v3635 = vld [vmem:[#allocation9 + $0x80] sm:$0xff]
    %v3636 = vld [vmem:[#allocation9 + $0x88] sm:$0xff]
    %v3637 = vld [vmem:[#allocation9 + $0x90] sm:$0xff]
    %v3638 = vld [vmem:[#allocation9 + $0x98] sm:$0xff]
    %v3639 = vld [vmem:[#allocation9 + $0xa0] sm:$0xff]
    %v3640 = vld [vmem:[#allocation9 + $0xa8] sm:$0xff]
    %v3641 = vld [vmem:[#allocation9 + $0xb0] sm:$0xff]
    %v3642 = vld [vmem:[#allocation9 + $0xb8] sm:$0xff]
    %v3643 = vld [vmem:[#allocation9 + $0xc0] sm:$0xff]
    %v3644 = vld [vmem:[#allocation9 + $0xc8] sm:$0xff]
    %v3645 = vld [vmem:[#allocation9 + $0xd0] sm:$0xff]
    %v3646 = vld [vmem:[#allocation9 + $0xd8] sm:$0xff]
    %v3647 = vld [vmem:[#allocation9 + $0xe0] sm:$0xff]
    %v3648 = vld [vmem:[#allocation9 + $0xe8] sm:$0xff]
    %v3649 = vld [vmem:[#allocation9 + $0xf0] sm:$0xff]
    %v3650 = vld [vmem:[#allocation9 + $0xf8] sm:$0xff]
    %v3651 = vld [vmem:[#allocation9 + $0x100] sm:$0xff]
    %v3652 = vld [vmem:[#allocation9 + $0x108] sm:$0xff]
    %v3653 = vld [vmem:[#allocation9 + $0x110] sm:$0xff]
    %v3654 = vld [vmem:[#allocation9 + $0x118] sm:$0xff]
    %v3655 = vld [vmem:[#allocation9 + $0x120] sm:$0xff]
    %v3656 = vld [vmem:[#allocation9 + $0x128] sm:$0xff]
    %v3657 = vld [vmem:[#allocation9 + $0x130] sm:$0xff]
    %v3658 = vld [vmem:[#allocation9 + $0x138] sm:$0xff]
    %v3659 = vld [vmem:[#allocation9 + $0x140] sm:$0xff]
    %v3660 = vld [vmem:[#allocation9 + $0x148] sm:$0xff]
    %v3661 = vld [vmem:[#allocation9 + $0x150] sm:$0xff]
    %v3662 = vld [vmem:[#allocation9 + $0x158] sm:$0xff]
    %v3663 = vld [vmem:[#allocation9 + $0x160] sm:$0xff]
    %v3664 = vld [vmem:[#allocation9 + $0x168] sm:$0xff]
    %v3665 = vld [vmem:[#allocation9 + $0x170] sm:$0xff]
    %v3666 = vld [vmem:[#allocation9 + $0x178] sm:$0xff]
    %v3667 = vld [vmem:[#allocation9 + $0x180] sm:$0xff]
    %v3668 = vld [vmem:[#allocation9 + $0x188] sm:$0xff]
    %v3669 = vld [vmem:[#allocation9 + $0x190] sm:$0xff]
    %v3670 = vld [vmem:[#allocation9 + $0x198] sm:$0xff]
    %v3671 = vld [vmem:[#allocation9 + $0x1a0] sm:$0xff]
    %v3672 = vld [vmem:[#allocation9 + $0x1a8] sm:$0xff]
    %v3673 = vld [vmem:[#allocation9 + $0x1b0] sm:$0xff]
    %v3674 = vld [vmem:[#allocation9 + $0x1b8] sm:$0xff]
    %v3675 = vld [vmem:[#allocation9 + $0x1c0] sm:$0xff]
    %v3676 = vld [vmem:[#allocation9 + $0x1c8] sm:$0xff]
    %v3677 = vld [vmem:[#allocation9 + $0x1d0] sm:$0xff]
    %v3678 = vld [vmem:[#allocation9 + $0x1d8] sm:$0xff]
    %v3679 = vld [vmem:[#allocation9 + $0x1e0] sm:$0xff]
    %v3680 = vld [vmem:[#allocation9 + $0x1e8] sm:$0xff]
    %v3681 = vld [vmem:[#allocation9 + $0x1f0] sm:$0xff]
    %v3682 = vld [vmem:[#allocation9 + $0x1f8] sm:$0xff]
    %v3683 = vld [vmem:[#allocation9 + $0x200] sm:$0xff]
    %v3684 = vld [vmem:[#allocation9 + $0x208] sm:$0xff]
    %v3685 = vld [vmem:[#allocation9 + $0x210] sm:$0xff]
    %v3686 = vld [vmem:[#allocation9 + $0x218] sm:$0xff]
    %v3687 = vld [vmem:[#allocation9 + $0x220] sm:$0xff]
    %v3688 = vld [vmem:[#allocation9 + $0x228] sm:$0xff]
    %v3689 = vld [vmem:[#allocation9 + $0x230] sm:$0xff]
    %v3690 = vld [vmem:[#allocation9 + $0x238] sm:$0xff]
    %v3691 = vld [vmem:[#allocation9 + $0x240] sm:$0xff]
    %v3692 = vld [vmem:[#allocation9 + $0x248] sm:$0xff]
    %v3693 = vld [vmem:[#allocation9 + $0x250] sm:$0xff]
    %v3694 = vld [vmem:[#allocation9 + $0x258] sm:$0xff]
    %v3695 = vld [vmem:[#allocation9 + $0x260] sm:$0xff]
    %v3696 = vld [vmem:[#allocation9 + $0x268] sm:$0xff]
    %v3697 = vld [vmem:[#allocation9 + $0x270] sm:$0xff]
    %v3698 = vld [vmem:[#allocation9 + $0x278] sm:$0xff]
    %v3699 = vld [vmem:[#allocation9 + $0x280] sm:$0xff]
    %v3700 = vld [vmem:[#allocation9 + $0x288] sm:$0xff]
    %v3701 = vld [vmem:[#allocation9 + $0x290] sm:$0xff]
    %v3702 = vld [vmem:[#allocation9 + $0x298] sm:$0xff]
    %v3703 = vld [vmem:[#allocation9 + $0x2a0] sm:$0xff]
    %v3704 = vld [vmem:[#allocation9 + $0x2a8] sm:$0xff]
    %v3705 = vld [vmem:[#allocation9 + $0x2b0] sm:$0xff]
    %v3706 = vld [vmem:[#allocation9 + $0x2b8] sm:$0xff]
    %v3707 = vld [vmem:[#allocation9 + $0x2c0] sm:$0xff]
    %v3708 = vld [vmem:[#allocation9 + $0x2c8] sm:$0xff]
    %v3709 = vld [vmem:[#allocation9 + $0x2d0] sm:$0xff]
    %v3710 = vld [vmem:[#allocation9 + $0x2d8] sm:$0xff]
    %v3711 = vld [vmem:[#allocation9 + $0x2e0] sm:$0xff]
    %v3712 = vld [vmem:[#allocation9 + $0x2e8] sm:$0xff]
    %v3713 = vld [vmem:[#allocation9 + $0x2f0] sm:$0xff]
    %v3714 = vld [vmem:[#allocation9 + $0x2f8] sm:$0xff]
    %v3715 = vld [vmem:[%s6] sm:$0x3f]
    %v3717 = vperm.slane %v3715, 0
    %v3718 = vperm.slane %v3715, 1
    %v3719 = vperm.slane %v3715, 2
    %v3720 = vperm.slane %v3715, 3
    %v3721 = vperm.slane %v3715, 4
    %v3722 = vperm.slane %v3715, 5
    %v3825 = vunpack.c.l.b16 %v3619
    %v3826 = vunpack.c.h.b16 %v3619
    %v3827 = vunpack.c.l.b16 %v3620
    %v3828 = vunpack.c.h.b16 %v3620
    %v3829 = vunpack.c.l.b16 %v3621
    %v3830 = vunpack.c.h.b16 %v3621
    %v3831 = vunpack.c.l.b16 %v3622
    %v3832 = vunpack.c.h.b16 %v3622
    %v3833 = vunpack.c.l.b16 %v3623
    %v3834 = vunpack.c.h.b16 %v3623
    %v3835 = vunpack.c.l.b16 %v3624
    %v3836 = vunpack.c.h.b16 %v3624
    %v3837 = vunpack.c.l.b16 %v3625
    %v3838 = vunpack.c.h.b16 %v3625
    %v3839 = vunpack.c.l.b16 %v3626
    %v3840 = vunpack.c.h.b16 %v3626
    %v3841 = vunpack.c.l.b16 %v3627
    %v3842 = vunpack.c.h.b16 %v3627
    %v3843 = vunpack.c.l.b16 %v3628
    %v3844 = vunpack.c.h.b16 %v3628
    %v3845 = vunpack.c.l.b16 %v3629
    %v3846 = vunpack.c.h.b16 %v3629
    %v3847 = vunpack.c.l.b16 %v3630
    %v3848 = vunpack.c.h.b16 %v3630
    %v3849 = vunpack.c.l.b16 %v3631
    %v3850 = vunpack.c.h.b16 %v3631
    %v3851 = vunpack.c.l.b16 %v3632
    %v3852 = vunpack.c.h.b16 %v3632
    %v3853 = vunpack.c.l.b16 %v3633
    %v3854 = vunpack.c.h.b16 %v3633
    %v3855 = vunpack.c.l.b16 %v3634
    %v3856 = vunpack.c.h.b16 %v3634
    %v3857 = vunpack.c.l.b16 %v3635
    %v3858 = vunpack.c.h.b16 %v3635
    %v3859 = vunpack.c.l.b16 %v3636
    %v3860 = vunpack.c.h.b16 %v3636
    %v3861 = vunpack.c.l.b16 %v3637
    %v3862 = vunpack.c.h.b16 %v3637
    %v3863 = vunpack.c.l.b16 %v3638
    %v3864 = vunpack.c.h.b16 %v3638
    %v3865 = vunpack.c.l.b16 %v3639
    %v3866 = vunpack.c.h.b16 %v3639
    %v3867 = vunpack.c.l.b16 %v3640
    %v3868 = vunpack.c.h.b16 %v3640
    %v3869 = vunpack.c.l.b16 %v3641
    %v3870 = vunpack.c.h.b16 %v3641
    %v3871 = vunpack.c.l.b16 %v3642
    %v3872 = vunpack.c.h.b16 %v3642
    %v3873 = vunpack.c.l.b16 %v3643
    %v3874 = vunpack.c.h.b16 %v3643
    %v3875 = vunpack.c.l.b16 %v3644
    %v3876 = vunpack.c.h.b16 %v3644
    %v3877 = vunpack.c.l.b16 %v3645
    %v3878 = vunpack.c.h.b16 %v3645
    %v3879 = vunpack.c.l.b16 %v3646
    %v3880 = vunpack.c.h.b16 %v3646
    %v3881 = vunpack.c.l.b16 %v3647
    %v3882 = vunpack.c.h.b16 %v3647
    %v3883 = vunpack.c.l.b16 %v3648
    %v3884 = vunpack.c.h.b16 %v3648
    %v3885 = vunpack.c.l.b16 %v3649
    %v3886 = vunpack.c.h.b16 %v3649
    %v3887 = vunpack.c.l.b16 %v3650
    %v3888 = vunpack.c.h.b16 %v3650
    %v3889 = vunpack.c.l.b16 %v3651
    %v3890 = vunpack.c.h.b16 %v3651
    %v3891 = vunpack.c.l.b16 %v3652
    %v3892 = vunpack.c.h.b16 %v3652
    %v3893 = vunpack.c.l.b16 %v3653
    %v3894 = vunpack.c.h.b16 %v3653
    %v3895 = vunpack.c.l.b16 %v3654
    %v3896 = vunpack.c.h.b16 %v3654
    %v3897 = vunpack.c.l.b16 %v3655
    %v3898 = vunpack.c.h.b16 %v3655
    %v3899 = vunpack.c.l.b16 %v3656
    %v3900 = vunpack.c.h.b16 %v3656
    %v3901 = vunpack.c.l.b16 %v3657
    %v3902 = vunpack.c.h.b16 %v3657
    %v3903 = vunpack.c.l.b16 %v3658
    %v3904 = vunpack.c.h.b16 %v3658
    %v3905 = vunpack.c.l.b16 %v3659
    %v3906 = vunpack.c.h.b16 %v3659
    %v3907 = vunpack.c.l.b16 %v3660
    %v3908 = vunpack.c.h.b16 %v3660
    %v3909 = vunpack.c.l.b16 %v3661
    %v3910 = vunpack.c.h.b16 %v3661
    %v3911 = vunpack.c.l.b16 %v3662
    %v3912 = vunpack.c.h.b16 %v3662
    %v3913 = vunpack.c.l.b16 %v3663
    %v3914 = vunpack.c.h.b16 %v3663
    %v3915 = vunpack.c.l.b16 %v3664
    %v3916 = vunpack.c.h.b16 %v3664
    %v3917 = vunpack.c.l.b16 %v3665
    %v3918 = vunpack.c.h.b16 %v3665
    %v3919 = vunpack.c.l.b16 %v3666
    %v3920 = vunpack.c.h.b16 %v3666
    %v3921 = vunpack.c.l.b16 %v3667
    %v3922 = vunpack.c.h.b16 %v3667
    %v3923 = vunpack.c.l.b16 %v3668
    %v3924 = vunpack.c.h.b16 %v3668
    %v3925 = vunpack.c.l.b16 %v3669
    %v3926 = vunpack.c.h.b16 %v3669
    %v3927 = vunpack.c.l.b16 %v3670
    %v3928 = vunpack.c.h.b16 %v3670
    %v3929 = vunpack.c.l.b16 %v3671
    %v3930 = vunpack.c.h.b16 %v3671
    %v3931 = vunpack.c.l.b16 %v3672
    %v3932 = vunpack.c.h.b16 %v3672
    %v3933 = vunpack.c.l.b16 %v3673
    %v3934 = vunpack.c.h.b16 %v3673
    %v3935 = vunpack.c.l.b16 %v3674
    %v3936 = vunpack.c.h.b16 %v3674
    %v3937 = vunpack.c.l.b16 %v3675
    %v3938 = vunpack.c.h.b16 %v3675
    %v3939 = vunpack.c.l.b16 %v3676
    %v3940 = vunpack.c.h.b16 %v3676
    %v3941 = vunpack.c.l.b16 %v3677
    %v3942 = vunpack.c.h.b16 %v3677
    %v3943 = vunpack.c.l.b16 %v3678
    %v3944 = vunpack.c.h.b16 %v3678
    %v3945 = vunpack.c.l.b16 %v3679
    %v3946 = vunpack.c.h.b16 %v3679
    %v3947 = vunpack.c.l.b16 %v3680
    %v3948 = vunpack.c.h.b16 %v3680
    %v3949 = vunpack.c.l.b16 %v3681
    %v3950 = vunpack.c.h.b16 %v3681
    %v3951 = vunpack.c.l.b16 %v3682
    %v3952 = vunpack.c.h.b16 %v3682
    %v3953 = vunpack.c.l.b16 %v3683
    %v3954 = vunpack.c.h.b16 %v3683
    %v3955 = vunpack.c.l.b16 %v3684
    %v3956 = vunpack.c.h.b16 %v3684
    %v3957 = vunpack.c.l.b16 %v3685
    %v3958 = vunpack.c.h.b16 %v3685
    %v3959 = vunpack.c.l.b16 %v3686
    %v3960 = vunpack.c.h.b16 %v3686
    %v3961 = vunpack.c.l.b16 %v3687
    %v3962 = vunpack.c.h.b16 %v3687
    %v3963 = vunpack.c.l.b16 %v3688
    %v3964 = vunpack.c.h.b16 %v3688
    %v3965 = vunpack.c.l.b16 %v3689
    %v3966 = vunpack.c.h.b16 %v3689
    %v3967 = vunpack.c.l.b16 %v3690
    %v3968 = vunpack.c.h.b16 %v3690
    %v3969 = vunpack.c.l.b16 %v3691
    %v3970 = vunpack.c.h.b16 %v3691
    %v3971 = vunpack.c.l.b16 %v3692
    %v3972 = vunpack.c.h.b16 %v3692
    %v3973 = vunpack.c.l.b16 %v3693
    %v3974 = vunpack.c.h.b16 %v3693
    %v3975 = vunpack.c.l.b16 %v3694
    %v3976 = vunpack.c.h.b16 %v3694
    %v3977 = vunpack.c.l.b16 %v3695
    %v3978 = vunpack.c.h.b16 %v3695
    %v3979 = vunpack.c.l.b16 %v3696
    %v3980 = vunpack.c.h.b16 %v3696
    %v3981 = vunpack.c.l.b16 %v3697
    %v3982 = vunpack.c.h.b16 %v3697
    %v3983 = vunpack.c.l.b16 %v3698
    %v3984 = vunpack.c.h.b16 %v3698
    %v3985 = vunpack.c.l.b16 %v3699
    %v3986 = vunpack.c.h.b16 %v3699
    %v3987 = vunpack.c.l.b16 %v3700
    %v3988 = vunpack.c.h.b16 %v3700
    %v3989 = vunpack.c.l.b16 %v3701
    %v3990 = vunpack.c.h.b16 %v3701
    %v3991 = vunpack.c.l.b16 %v3702
    %v3992 = vunpack.c.h.b16 %v3702
    %v3993 = vunpack.c.l.b16 %v3703
    %v3994 = vunpack.c.h.b16 %v3703
    %v3995 = vunpack.c.l.b16 %v3704
    %v3996 = vunpack.c.h.b16 %v3704
    %v3997 = vunpack.c.l.b16 %v3705
    %v3998 = vunpack.c.h.b16 %v3705
    %v3999 = vunpack.c.l.b16 %v3706
    %v4000 = vunpack.c.h.b16 %v3706
    %v4001 = vunpack.c.l.b16 %v3707
    %v4002 = vunpack.c.h.b16 %v3707
    %v4003 = vunpack.c.l.b16 %v3708
    %v4004 = vunpack.c.h.b16 %v3708
    %v4005 = vunpack.c.l.b16 %v3709
    %v4006 = vunpack.c.h.b16 %v3709
    %v4007 = vunpack.c.l.b16 %v3710
    %v4008 = vunpack.c.h.b16 %v3710
    %v4009 = vunpack.c.l.b16 %v3711
    %v4010 = vunpack.c.h.b16 %v3711
    %v4011 = vunpack.c.l.b16 %v3712
    %v4012 = vunpack.c.h.b16 %v3712
    %v4013 = vunpack.c.l.b16 %v3713
    %v4014 = vunpack.c.h.b16 %v3713
    %v4015 = vunpack.c.l.b16 %v3714
    %v4016 = vunpack.c.h.b16 %v3714
    %v4017 = vpack.c.b16 %v3831, %v3825
    %v4018 = vpack.c.b16 %v3832, %v3826
    %v4019 = vpack.c.b16 %v3833, %v3827
    %v4020 = vpack.c.b16 %v3834, %v3828
    %v4021 = vpack.c.b16 %v3835, %v3829
    %v4022 = vpack.c.b16 %v3836, %v3830
    %v4023 = vpack.c.b16 %v3843, %v3837
    %v4024 = vpack.c.b16 %v3844, %v3838
    %v4025 = vpack.c.b16 %v3845, %v3839
    %v4026 = vpack.c.b16 %v3846, %v3840
    %v4027 = vpack.c.b16 %v3847, %v3841
    %v4028 = vpack.c.b16 %v3848, %v3842
    %v4029 = vpack.c.b16 %v3855, %v3849
    %v4030 = vpack.c.b16 %v3856, %v3850
    %v4031 = vpack.c.b16 %v3857, %v3851
    %v4032 = vpack.c.b16 %v3858, %v3852
    %v4033 = vpack.c.b16 %v3859, %v3853
    %v4034 = vpack.c.b16 %v3860, %v3854
    %v4035 = vpack.c.b16 %v3867, %v3861
    %v4036 = vpack.c.b16 %v3868, %v3862
    %v4037 = vpack.c.b16 %v3869, %v3863
    %v4038 = vpack.c.b16 %v3870, %v3864
    %v4039 = vpack.c.b16 %v3871, %v3865
    %v4040 = vpack.c.b16 %v3872, %v3866
    %v4041 = vpack.c.b16 %v3879, %v3873
    %v4042 = vpack.c.b16 %v3880, %v3874
    %v4043 = vpack.c.b16 %v3881, %v3875
    %v4044 = vpack.c.b16 %v3882, %v3876
    %v4045 = vpack.c.b16 %v3883, %v3877
    %v4046 = vpack.c.b16 %v3884, %v3878
    %v4047 = vpack.c.b16 %v3891, %v3885
    %v4048 = vpack.c.b16 %v3892, %v3886
    %v4049 = vpack.c.b16 %v3893, %v3887
    %v4050 = vpack.c.b16 %v3894, %v3888
    %v4051 = vpack.c.b16 %v3895, %v3889
    %v4052 = vpack.c.b16 %v3896, %v3890
    %v4053 = vpack.c.b16 %v3903, %v3897
    %v4054 = vpack.c.b16 %v3904, %v3898
    %v4055 = vpack.c.b16 %v3905, %v3899
    %v4056 = vpack.c.b16 %v3906, %v3900
    %v4057 = vpack.c.b16 %v3907, %v3901
    %v4058 = vpack.c.b16 %v3908, %v3902
    %v4059 = vpack.c.b16 %v3915, %v3909
    %v4060 = vpack.c.b16 %v3916, %v3910
    %v4061 = vpack.c.b16 %v3917, %v3911
    %v4062 = vpack.c.b16 %v3918, %v3912
    %v4063 = vpack.c.b16 %v3919, %v3913
    %v4064 = vpack.c.b16 %v3920, %v3914
    %v4065 = vpack.c.b16 %v3927, %v3921
    %v4066 = vpack.c.b16 %v3928, %v3922
    %v4067 = vpack.c.b16 %v3929, %v3923
    %v4068 = vpack.c.b16 %v3930, %v3924
    %v4069 = vpack.c.b16 %v3931, %v3925
    %v4070 = vpack.c.b16 %v3932, %v3926
    %v4071 = vpack.c.b16 %v3939, %v3933
    %v4072 = vpack.c.b16 %v3940, %v3934
    %v4073 = vpack.c.b16 %v3941, %v3935
    %v4074 = vpack.c.b16 %v3942, %v3936
    %v4075 = vpack.c.b16 %v3943, %v3937
    %v4076 = vpack.c.b16 %v3944, %v3938
    %v4077 = vpack.c.b16 %v3951, %v3945
    %v4078 = vpack.c.b16 %v3952, %v3946
    %v4079 = vpack.c.b16 %v3953, %v3947
    %v4080 = vpack.c.b16 %v3954, %v3948
    %v4081 = vpack.c.b16 %v3955, %v3949
    %v4082 = vpack.c.b16 %v3956, %v3950
    %v4083 = vpack.c.b16 %v3963, %v3957
    %v4084 = vpack.c.b16 %v3964, %v3958
    %v4085 = vpack.c.b16 %v3965, %v3959
    %v4086 = vpack.c.b16 %v3966, %v3960
    %v4087 = vpack.c.b16 %v3967, %v3961
    %v4088 = vpack.c.b16 %v3968, %v3962
    %v4089 = vpack.c.b16 %v3975, %v3969
    %v4090 = vpack.c.b16 %v3976, %v3970
    %v4091 = vpack.c.b16 %v3977, %v3971
    %v4092 = vpack.c.b16 %v3978, %v3972
    %v4093 = vpack.c.b16 %v3979, %v3973
    %v4094 = vpack.c.b16 %v3980, %v3974
    %v4095 = vpack.c.b16 %v3987, %v3981
    %v4096 = vpack.c.b16 %v3988, %v3982
    %v4097 = vpack.c.b16 %v3989, %v3983
    %v4098 = vpack.c.b16 %v3990, %v3984
    %v4099 = vpack.c.b16 %v3991, %v3985
    %v4100 = vpack.c.b16 %v3992, %v3986
    %v4101 = vpack.c.b16 %v3999, %v3993
    %v4102 = vpack.c.b16 %v4000, %v3994
    %v4103 = vpack.c.b16 %v4001, %v3995
    %v4104 = vpack.c.b16 %v4002, %v3996
    %v4105 = vpack.c.b16 %v4003, %v3997
    %v4106 = vpack.c.b16 %v4004, %v3998
    %v4107 = vpack.c.b16 %v4011, %v4005
    %v4108 = vpack.c.b16 %v4012, %v4006
    %v4109 = vpack.c.b16 %v4013, %v4007
    %v4110 = vpack.c.b16 %v4014, %v4008
    %v4111 = vpack.c.b16 %v4015, %v4009
    %v4112 = vpack.c.b16 %v4016, %v4010
    %4209 = vmatpush.bf16.msra.mxu0 %v4059
    %4210 = vmatpush.bf16.msra.mxu0 %v4053
    %4211 = vmatpush.bf16.msra.mxu0 %v4047
    %4212 = vmatpush.bf16.msra.mxu0 %v4041
    %4213 = vmatpush.bf16.msra.mxu0 %v4035
    %4214 = vmatpush.bf16.msra.mxu0 %v4029
    %4215 = vmatpush.bf16.msra.mxu0 %v4023
    %4216 = vmatpush.bf16.msra.mxu0 %v4017
    %4217 = vmatmul.bf16.gmra.mxu0 %v3611
    %v4218 = vpop.f32.mrf.mxu0
    %v4219 = vadd.f32 %v3717, %v4218
    %v4220 = vpop.f32.mrf.mxu0
    %v4221 = vadd.f32 %v3717, %v4220
    %4222 = vmatmul.bf16.gmra.mxu0 %v3613
    %v4223 = vpop.f32.mrf.mxu0
    %v4224 = vadd.f32 %v3717, %v4223
    %v4225 = vpop.f32.mrf.mxu0
    %v4226 = vadd.f32 %v3717, %v4225
    %4227 = vmatmul.bf16.gmra.mxu0 %v3615
    %v4228 = vpop.f32.mrf.mxu0
    %v4229 = vadd.f32 %v3717, %v4228
    %v4230 = vpop.f32.mrf.mxu0
    %v4231 = vadd.f32 %v3717, %v4230
    %4232 = vmatmul.bf16.gmra.mxu0 %v3617
    %v4233 = vpop.f32.mrf.mxu0
    %v4234 = vadd.f32 %v3717, %v4233
    %v4235 = vpop.f32.mrf.mxu0
    %v4236 = vadd.f32 %v3717, %v4235
    %4237 = vdwg.mxu0
    %4238 = vmatpush.bf16.msra.mxu0 %v4107
    %4239 = vmatpush.bf16.msra.mxu0 %v4101
    %4240 = vmatpush.bf16.msra.mxu0 %v4095
    %4241 = vmatpush.bf16.msra.mxu0 %v4089
    %4242 = vmatpush.bf16.msra.mxu0 %v4083
    %4243 = vmatpush.bf16.msra.mxu0 %v4077
    %4244 = vmatpush.bf16.msra.mxu0 %v4071
    %4245 = vmatpush.bf16.msra.mxu0 %v4065
    %4246 = vmatmul.bf16.gmra.mxu0 %v3612
    %v4247 = vpop.f32.mrf.mxu0
    %v4248 = vadd.f32 %v4219, %v4247
    %v4249 = vpop.f32.mrf.mxu0
    %v4250 = vadd.f32 %v4221, %v4249
    %4251 = vmatmul.bf16.gmra.mxu0 %v3614
    %v4252 = vpop.f32.mrf.mxu0
    %v4253 = vadd.f32 %v4224, %v4252
    %v4254 = vpop.f32.mrf.mxu0
    %v4255 = vadd.f32 %v4226, %v4254
    %4256 = vmatmul.bf16.gmra.mxu0 %v3616
    %v4257 = vpop.f32.mrf.mxu0
    %v4258 = vadd.f32 %v4229, %v4257
    %v4259 = vpop.f32.mrf.mxu0
    %v4260 = vadd.f32 %v4231, %v4259
    %4261 = vmatmul.bf16.gmra.mxu0 %v3618
    %v4262 = vpop.f32.mrf.mxu0
    %v4263 = vadd.f32 %v4234, %v4262
    %v4264 = vpop.f32.mrf.mxu0
    %v4265 = vadd.f32 %v4236, %v4264
    %4266 = vdwg.mxu0
    %4267 = vmatpush.bf16.msra.mxu0 %v4060
    %4268 = vmatpush.bf16.msra.mxu0 %v4054
    %4269 = vmatpush.bf16.msra.mxu0 %v4048
    %4270 = vmatpush.bf16.msra.mxu0 %v4042
    %4271 = vmatpush.bf16.msra.mxu0 %v4036
    %4272 = vmatpush.bf16.msra.mxu0 %v4030
    %4273 = vmatpush.bf16.msra.mxu0 %v4024
    %4274 = vmatpush.bf16.msra.mxu0 %v4018
    %4275 = vmatmul.bf16.gmra.mxu0 %v3611
    %v4276 = vpop.f32.mrf.mxu0
    %v4277 = vadd.f32 %v3718, %v4276
    %v4278 = vpop.f32.mrf.mxu0
    %v4279 = vadd.f32 %v3718, %v4278
    %4280 = vmatmul.bf16.gmra.mxu0 %v3613
    %v4281 = vpop.f32.mrf.mxu0
    %v4282 = vadd.f32 %v3718, %v4281
    %v4283 = vpop.f32.mrf.mxu0
    %v4284 = vadd.f32 %v3718, %v4283
    %4285 = vmatmul.bf16.gmra.mxu0 %v3615
    %v4286 = vpop.f32.mrf.mxu0
    %v4287 = vadd.f32 %v3718, %v4286
    %v4288 = vpop.f32.mrf.mxu0
    %v4289 = vadd.f32 %v3718, %v4288
    %4290 = vmatmul.bf16.gmra.mxu0 %v3617
    %v4291 = vpop.f32.mrf.mxu0
    %v4292 = vadd.f32 %v3718, %v4291
    %v4293 = vpop.f32.mrf.mxu0
    %v4294 = vadd.f32 %v3718, %v4293
    %4295 = vdwg.mxu0
    %4296 = vmatpush.bf16.msra.mxu0 %v4108
    %4297 = vmatpush.bf16.msra.mxu0 %v4102
    %4298 = vmatpush.bf16.msra.mxu0 %v4096
    %4299 = vmatpush.bf16.msra.mxu0 %v4090
    %4300 = vmatpush.bf16.msra.mxu0 %v4084
    %4301 = vmatpush.bf16.msra.mxu0 %v4078
    %4302 = vmatpush.bf16.msra.mxu0 %v4072
    %4303 = vmatpush.bf16.msra.mxu0 %v4066
    %4304 = vmatmul.bf16.gmra.mxu0 %v3612
    %v4305 = vpop.f32.mrf.mxu0
    %v4306 = vadd.f32 %v4277, %v4305
    %v4307 = vpop.f32.mrf.mxu0
    %v4308 = vadd.f32 %v4279, %v4307
    %4309 = vmatmul.bf16.gmra.mxu0 %v3614
    %v4310 = vpop.f32.mrf.mxu0
    %v4311 = vadd.f32 %v4282, %v4310
    %v4312 = vpop.f32.mrf.mxu0
    %v4313 = vadd.f32 %v4284, %v4312
    %4314 = vmatmul.bf16.gmra.mxu0 %v3616
    %v4315 = vpop.f32.mrf.mxu0
    %v4316 = vadd.f32 %v4287, %v4315
    %v4317 = vpop.f32.mrf.mxu0
    %v4318 = vadd.f32 %v4289, %v4317
    %4319 = vmatmul.bf16.gmra.mxu0 %v3618
    %v4320 = vpop.f32.mrf.mxu0
    %v4321 = vadd.f32 %v4292, %v4320
    %v4322 = vpop.f32.mrf.mxu0
    %v4323 = vadd.f32 %v4294, %v4322
    %4324 = vdwg.mxu0
    %4325 = vmatpush.bf16.msra.mxu0 %v4061
    %4326 = vmatpush.bf16.msra.mxu0 %v4055
    %4327 = vmatpush.bf16.msra.mxu0 %v4049
    %4328 = vmatpush.bf16.msra.mxu0 %v4043
    %4329 = vmatpush.bf16.msra.mxu0 %v4037
    %4330 = vmatpush.bf16.msra.mxu0 %v4031
    %4331 = vmatpush.bf16.msra.mxu0 %v4025
    %4332 = vmatpush.bf16.msra.mxu0 %v4019
    %4333 = vmatmul.bf16.gmra.mxu0 %v3611
    %v4334 = vpop.f32.mrf.mxu0
    %v4335 = vadd.f32 %v3719, %v4334
    %v4336 = vpop.f32.mrf.mxu0
    %v4337 = vadd.f32 %v3719, %v4336
    %4338 = vmatmul.bf16.gmra.mxu0 %v3613
    %v4339 = vpop.f32.mrf.mxu0
    %v4340 = vadd.f32 %v3719, %v4339
    %v4341 = vpop.f32.mrf.mxu0
    %v4342 = vadd.f32 %v3719, %v4341
    %4343 = vmatmul.bf16.gmra.mxu0 %v3615
    %v4344 = vpop.f32.mrf.mxu0
    %v4345 = vadd.f32 %v3719, %v4344
    %v4346 = vpop.f32.mrf.mxu0
    %v4347 = vadd.f32 %v3719, %v4346
    %4348 = vmatmul.bf16.gmra.mxu0 %v3617
    %v4349 = vpop.f32.mrf.mxu0
    %v4350 = vadd.f32 %v3719, %v4349
    %v4351 = vpop.f32.mrf.mxu0
    %v4352 = vadd.f32 %v3719, %v4351
    %4353 = vdwg.mxu0
    %4354 = vmatpush.bf16.msra.mxu0 %v4109
    %4355 = vmatpush.bf16.msra.mxu0 %v4103
    %4356 = vmatpush.bf16.msra.mxu0 %v4097
    %4357 = vmatpush.bf16.msra.mxu0 %v4091
    %4358 = vmatpush.bf16.msra.mxu0 %v4085
    %4359 = vmatpush.bf16.msra.mxu0 %v4079
    %4360 = vmatpush.bf16.msra.mxu0 %v4073
    %4361 = vmatpush.bf16.msra.mxu0 %v4067
    %4362 = vmatmul.bf16.gmra.mxu0 %v3612
    %v4363 = vpop.f32.mrf.mxu0
    %v4364 = vadd.f32 %v4335, %v4363
    %v4365 = vpop.f32.mrf.mxu0
    %v4366 = vadd.f32 %v4337, %v4365
    %4367 = vmatmul.bf16.gmra.mxu0 %v3614
    %v4368 = vpop.f32.mrf.mxu0
    %v4369 = vadd.f32 %v4340, %v4368
    %v4370 = vpop.f32.mrf.mxu0
    %v4371 = vadd.f32 %v4342, %v4370
    %4372 = vmatmul.bf16.gmra.mxu0 %v3616
    %v4373 = vpop.f32.mrf.mxu0
    %v4374 = vadd.f32 %v4345, %v4373
    %v4375 = vpop.f32.mrf.mxu0
    %v4376 = vadd.f32 %v4347, %v4375
    %4377 = vmatmul.bf16.gmra.mxu0 %v3618
    %v4378 = vpop.f32.mrf.mxu0
    %v4379 = vadd.f32 %v4350, %v4378
    %v4380 = vpop.f32.mrf.mxu0
    %v4381 = vadd.f32 %v4352, %v4380
    %4382 = vdwg.mxu0
    %4383 = vmatpush.bf16.msra.mxu0 %v4062
    %4384 = vmatpush.bf16.msra.mxu0 %v4056
    %4385 = vmatpush.bf16.msra.mxu0 %v4050
    %4386 = vmatpush.bf16.msra.mxu0 %v4044
    %4387 = vmatpush.bf16.msra.mxu0 %v4038
    %4388 = vmatpush.bf16.msra.mxu0 %v4032
    %4389 = vmatpush.bf16.msra.mxu0 %v4026
    %4390 = vmatpush.bf16.msra.mxu0 %v4020
    %4391 = vmatmul.bf16.gmra.mxu0 %v3611
    %v4392 = vpop.f32.mrf.mxu0
    %v4393 = vadd.f32 %v3720, %v4392
    %v4394 = vpop.f32.mrf.mxu0
    %v4395 = vadd.f32 %v3720, %v4394
    %4396 = vmatmul.bf16.gmra.mxu0 %v3613
    %v4397 = vpop.f32.mrf.mxu0
    %v4398 = vadd.f32 %v3720, %v4397
    %v4399 = vpop.f32.mrf.mxu0
    %v4400 = vadd.f32 %v3720, %v4399
    %4401 = vmatmul.bf16.gmra.mxu0 %v3615
    %v4402 = vpop.f32.mrf.mxu0
    %v4403 = vadd.f32 %v3720, %v4402
    %v4404 = vpop.f32.mrf.mxu0
    %v4405 = vadd.f32 %v3720, %v4404
    %4406 = vmatmul.bf16.gmra.mxu0 %v3617
    %v4407 = vpop.f32.mrf.mxu0
    %v4408 = vadd.f32 %v3720, %v4407
    %v4409 = vpop.f32.mrf.mxu0
    %v4410 = vadd.f32 %v3720, %v4409
    %4411 = vdwg.mxu0
    %4412 = vmatpush.bf16.msra.mxu0 %v4110
    %4413 = vmatpush.bf16.msra.mxu0 %v4104
    %4414 = vmatpush.bf16.msra.mxu0 %v4098
    %4415 = vmatpush.bf16.msra.mxu0 %v4092
    %4416 = vmatpush.bf16.msra.mxu0 %v4086
    %4417 = vmatpush.bf16.msra.mxu0 %v4080
    %4418 = vmatpush.bf16.msra.mxu0 %v4074
    %4419 = vmatpush.bf16.msra.mxu0 %v4068
    %4420 = vmatmul.bf16.gmra.mxu0 %v3612
    %v4421 = vpop.f32.mrf.mxu0
    %v4422 = vadd.f32 %v4393, %v4421
    %v4423 = vpop.f32.mrf.mxu0
    %v4424 = vadd.f32 %v4395, %v4423
    %4425 = vmatmul.bf16.gmra.mxu0 %v3614
    %v4426 = vpop.f32.mrf.mxu0
    %v4427 = vadd.f32 %v4398, %v4426
    %v4428 = vpop.f32.mrf.mxu0
    %v4429 = vadd.f32 %v4400, %v4428
    %4430 = vmatmul.bf16.gmra.mxu0 %v3616
    %v4431 = vpop.f32.mrf.mxu0
    %v4432 = vadd.f32 %v4403, %v4431
    %v4433 = vpop.f32.mrf.mxu0
    %v4434 = vadd.f32 %v4405, %v4433
    %4435 = vmatmul.bf16.gmra.mxu0 %v3618
    %v4436 = vpop.f32.mrf.mxu0
    %v4437 = vadd.f32 %v4408, %v4436
    %v4438 = vpop.f32.mrf.mxu0
    %v4439 = vadd.f32 %v4410, %v4438
    %4440 = vdwg.mxu0
    %4441 = vmatpush.bf16.msra.mxu0 %v4063
    %4442 = vmatpush.bf16.msra.mxu0 %v4057
    %4443 = vmatpush.bf16.msra.mxu0 %v4051
    %4444 = vmatpush.bf16.msra.mxu0 %v4045
    %4445 = vmatpush.bf16.msra.mxu0 %v4039
    %4446 = vmatpush.bf16.msra.mxu0 %v4033
    %4447 = vmatpush.bf16.msra.mxu0 %v4027
    %4448 = vmatpush.bf16.msra.mxu0 %v4021
    %4449 = vmatmul.bf16.gmra.mxu0 %v3611
    %v4450 = vpop.f32.mrf.mxu0
    %v4451 = vadd.f32 %v3721, %v4450
    %v4452 = vpop.f32.mrf.mxu0
    %v4453 = vadd.f32 %v3721, %v4452
    %4454 = vmatmul.bf16.gmra.mxu0 %v3613
    %v4455 = vpop.f32.mrf.mxu0
    %v4456 = vadd.f32 %v3721, %v4455
    %v4457 = vpop.f32.mrf.mxu0
    %v4458 = vadd.f32 %v3721, %v4457
    %4459 = vmatmul.bf16.gmra.mxu0 %v3615
    %v4460 = vpop.f32.mrf.mxu0
    %v4461 = vadd.f32 %v3721, %v4460
    %v4462 = vpop.f32.mrf.mxu0
    %v4463 = vadd.f32 %v3721, %v4462
    %4464 = vmatmul.bf16.gmra.mxu0 %v3617
    %v4465 = vpop.f32.mrf.mxu0
    %v4466 = vadd.f32 %v3721, %v4465
    %v4467 = vpop.f32.mrf.mxu0
    %v4468 = vadd.f32 %v3721, %v4467
    %4469 = vdwg.mxu0
    %4470 = vmatpush.bf16.msra.mxu0 %v4111
    %4471 = vmatpush.bf16.msra.mxu0 %v4105
    %4472 = vmatpush.bf16.msra.mxu0 %v4099
    %4473 = vmatpush.bf16.msra.mxu0 %v4093
    %4474 = vmatpush.bf16.msra.mxu0 %v4087
    %4475 = vmatpush.bf16.msra.mxu0 %v4081
    %4476 = vmatpush.bf16.msra.mxu0 %v4075
    %4477 = vmatpush.bf16.msra.mxu0 %v4069
    %4478 = vmatmul.bf16.gmra.mxu0 %v3612
    %v4479 = vpop.f32.mrf.mxu0
    %v4480 = vadd.f32 %v4451, %v4479
    %v4481 = vpop.f32.mrf.mxu0
    %v4482 = vadd.f32 %v4453, %v4481
    %4483 = vmatmul.bf16.gmra.mxu0 %v3614
    %v4484 = vpop.f32.mrf.mxu0
    %v4485 = vadd.f32 %v4456, %v4484
    %v4486 = vpop.f32.mrf.mxu0
    %v4487 = vadd.f32 %v4458, %v4486
    %4488 = vmatmul.bf16.gmra.mxu0 %v3616
    %v4489 = vpop.f32.mrf.mxu0
    %v4490 = vadd.f32 %v4461, %v4489
    %v4491 = vpop.f32.mrf.mxu0
    %v4492 = vadd.f32 %v4463, %v4491
    %4493 = vmatmul.bf16.gmra.mxu0 %v3618
    %v4494 = vpop.f32.mrf.mxu0
    %v4495 = vadd.f32 %v4466, %v4494
    %v4496 = vpop.f32.mrf.mxu0
    %v4497 = vadd.f32 %v4468, %v4496
    %4498 = vdwg.mxu0
    %4499 = vmatpush.bf16.msra.mxu0 %v4064
    %4500 = vmatpush.bf16.msra.mxu0 %v4058
    %4501 = vmatpush.bf16.msra.mxu0 %v4052
    %4502 = vmatpush.bf16.msra.mxu0 %v4046
    %4503 = vmatpush.bf16.msra.mxu0 %v4040
    %4504 = vmatpush.bf16.msra.mxu0 %v4034
    %4505 = vmatpush.bf16.msra.mxu0 %v4028
    %4506 = vmatpush.bf16.msra.mxu0 %v4022
    %4507 = vmatmul.bf16.gmra.mxu0 %v3611
    %v4508 = vpop.f32.mrf.mxu0
    %v4509 = vadd.f32 %v3722, %v4508
    %v4510 = vpop.f32.mrf.mxu0
    %v4511 = vadd.f32 %v3722, %v4510
    %4512 = vmatmul.bf16.gmra.mxu0 %v3613
    %v4513 = vpop.f32.mrf.mxu0
    %v4514 = vadd.f32 %v3722, %v4513
    %v4515 = vpop.f32.mrf.mxu0
    %v4516 = vadd.f32 %v3722, %v4515
    %4517 = vmatmul.bf16.gmra.mxu0 %v3615
    %v4518 = vpop.f32.mrf.mxu0
    %v4519 = vadd.f32 %v3722, %v4518
    %v4520 = vpop.f32.mrf.mxu0
    %v4521 = vadd.f32 %v3722, %v4520
    %4522 = vmatmul.bf16.gmra.mxu0 %v3617
    %v4523 = vpop.f32.mrf.mxu0
    %v4524 = vadd.f32 %v3722, %v4523
    %v4525 = vpop.f32.mrf.mxu0
    %v4526 = vadd.f32 %v3722, %v4525
    %4527 = vdwg.mxu0
    %4528 = vmatpush.bf16.msra.mxu0 %v4112
    %4529 = vmatpush.bf16.msra.mxu0 %v4106
    %4530 = vmatpush.bf16.msra.mxu0 %v4100
    %4531 = vmatpush.bf16.msra.mxu0 %v4094
    %4532 = vmatpush.bf16.msra.mxu0 %v4088
    %4533 = vmatpush.bf16.msra.mxu0 %v4082
    %4534 = vmatpush.bf16.msra.mxu0 %v4076
    %4535 = vmatpush.bf16.msra.mxu0 %v4070
    %4536 = vmatmul.bf16.gmra.mxu0 %v3612
    %v4537 = vpop.f32.mrf.mxu0
    %v4538 = vadd.f32 %v4509, %v4537
    %v4539 = vpop.f32.mrf.mxu0
    %v4540 = vadd.f32 %v4511, %v4539
    %4541 = vmatmul.bf16.gmra.mxu0 %v3614
    %v4542 = vpop.f32.mrf.mxu0
    %v4543 = vadd.f32 %v4514, %v4542
    %v4544 = vpop.f32.mrf.mxu0
    %v4545 = vadd.f32 %v4516, %v4544
    %4546 = vmatmul.bf16.gmra.mxu0 %v3616
    %v4547 = vpop.f32.mrf.mxu0
    %v4548 = vadd.f32 %v4519, %v4547
    %v4549 = vpop.f32.mrf.mxu0
    %v4550 = vadd.f32 %v4521, %v4549
    %4551 = vmatmul.bf16.gmra.mxu0 %v3618
    %v4552 = vpop.f32.mrf.mxu0
    %v4553 = vadd.f32 %v4524, %v4552
    %v4554 = vpop.f32.mrf.mxu0
    %v4555 = vadd.f32 %v4526, %v4554
    %4556 = vdwg.mxu0
    %4557 = vst [vmem:[#allocation2 + $0x30] sm:$0xff] %v4248
    %4558 = vst [vmem:[#allocation2 + $0x38] sm:$0xff] %v4306
    %4559 = vst [vmem:[#allocation2 + $0x40] sm:$0xff] %v4364
    %4560 = vst [vmem:[#allocation2 + $0x48] sm:$0xff] %v4422
    %4561 = vst [vmem:[#allocation2 + $0x50] sm:$0xff] %v4480
    %4562 = vst [vmem:[#allocation2 + $0x58] sm:$0xff] %v4538
    %4563 = vst [vmem:[#allocation2 + $0x60] sm:$0xff] %v4250
    %4564 = vst [vmem:[#allocation2 + $0x68] sm:$0xff] %v4308
    %4565 = vst [vmem:[#allocation2 + $0x70] sm:$0xff] %v4366
    %4566 = vst [vmem:[#allocation2 + $0x78] sm:$0xff] %v4424
    %4567 = vst [vmem:[#allocation2 + $0x80] sm:$0xff] %v4482
    %4568 = vst [vmem:[#allocation2 + $0x88] sm:$0xff] %v4540
    %4569 = vst [vmem:[#allocation2 + $0x90] sm:$0xff] %v4253
    %4570 = vst [vmem:[#allocation2 + $0x98] sm:$0xff] %v4311
    %4571 = vst [vmem:[#allocation2 + $0xa0] sm:$0xff] %v4369
    %4572 = vst [vmem:[#allocation2 + $0xa8] sm:$0xff] %v4427
    %4573 = vst [vmem:[#allocation2 + $0xb0] sm:$0xff] %v4485
    %4574 = vst [vmem:[#allocation2 + $0xb8] sm:$0xff] %v4543
    %4575 = vst [vmem:[#allocation2 + $0xc0] sm:$0xff] %v4255
    %4576 = vst [vmem:[#allocation2 + $0xc8] sm:$0xff] %v4313
    %4577 = vst [vmem:[#allocation2 + $0xd0] sm:$0xff] %v4371
    %4578 = vst [vmem:[#allocation2 + $0xd8] sm:$0xff] %v4429
    %4579 = vst [vmem:[#allocation2 + $0xe0] sm:$0xff] %v4487
    %4580 = vst [vmem:[#allocation2 + $0xe8] sm:$0xff] %v4545
    %4581 = vst [vmem:[#allocation2 + $0xf0] sm:$0xff] %v4258
    %4582 = vst [vmem:[#allocation2 + $0xf8] sm:$0xff] %v4316
    %4583 = vst [vmem:[#allocation2 + $0x100] sm:$0xff] %v4374
    %4584 = vst [vmem:[#allocation2 + $0x108] sm:$0xff] %v4432
    %4585 = vst [vmem:[#allocation2 + $0x110] sm:$0xff] %v4490
    %4586 = vst [vmem:[#allocation2 + $0x118] sm:$0xff] %v4548
    %4587 = vst [vmem:[#allocation2 + $0x120] sm:$0xff] %v4260
    %4588 = vst [vmem:[#allocation2 + $0x128] sm:$0xff] %v4318
    %4589 = vst [vmem:[#allocation2 + $0x130] sm:$0xff] %v4376
    %4590 = vst [vmem:[#allocation2 + $0x138] sm:$0xff] %v4434
    %4591 = vst [vmem:[#allocation2 + $0x140] sm:$0xff] %v4492
    %4592 = vst [vmem:[#allocation2 + $0x148] sm:$0xff] %v4550
    %4593 = vst [vmem:[#allocation2 + $0x150] sm:$0xff] %v4263
    %4594 = vst [vmem:[#allocation2 + $0x158] sm:$0xff] %v4321
    %4595 = vst [vmem:[#allocation2 + $0x160] sm:$0xff] %v4379
    %4596 = vst [vmem:[#allocation2 + $0x168] sm:$0xff] %v4437
    %4597 = vst [vmem:[#allocation2 + $0x170] sm:$0xff] %v4495
    %4598 = vst [vmem:[#allocation2 + $0x178] sm:$0xff] %v4553
    %4599 = vst [vmem:[#allocation2 + $0x180] sm:$0xff] %v4265
    %4600 = vst [vmem:[#allocation2 + $0x188] sm:$0xff] %v4323
    %4601 = vst [vmem:[#allocation2 + $0x190] sm:$0xff] %v4381
    %4602 = vst [vmem:[#allocation2 + $0x198] sm:$0xff] %v4439
    %4603 = vst [vmem:[#allocation2 + $0x1a0] sm:$0xff] %v4497
    %4604 = vst [vmem:[#allocation2 + $0x1a8] sm:$0xff] %v4555
    %v4605 = vld [vmem:[#allocation2] sm:$0xff]
    %v4606 = vld [vmem:[#allocation2 + $0x8] sm:$0xff]
    %v4607 = vld [vmem:[#allocation2 + $0x10] sm:$0xff]
    %v4608 = vld [vmem:[#allocation2 + $0x18] sm:$0xff]
    %v4609 = vld [vmem:[#allocation2 + $0x20] sm:$0xff]
    %v4610 = vld [vmem:[#allocation2 + $0x28] sm:$0xff]
    %v4611 = vld [vmem:[#allocation11] sm:$0xff]
    %v4612 = vld [vmem:[#allocation11 + $0x8] sm:$0xff]
    %v4613 = vld [vmem:[#allocation11 + $0x10] sm:$0xff]
    %v4614 = vld [vmem:[#allocation11 + $0x18] sm:$0xff]
    %v4615 = vld [vmem:[#allocation11 + $0x20] sm:$0xff]
    %v4616 = vld [vmem:[#allocation11 + $0x28] sm:$0xff]
    %v4617 = vld [vmem:[#allocation11 + $0x30] sm:$0xff]
    %v4618 = vld [vmem:[#allocation11 + $0x38] sm:$0xff]
    %v4619 = vld [vmem:[#allocation11 + $0x40] sm:$0xff]
    %v4620 = vld [vmem:[#allocation11 + $0x48] sm:$0xff]
    %v4621 = vld [vmem:[#allocation11 + $0x50] sm:$0xff]
    %v4622 = vld [vmem:[#allocation11 + $0x58] sm:$0xff]
    %v4623 = vld [vmem:[#allocation11 + $0x60] sm:$0xff]
    %v4624 = vld [vmem:[#allocation11 + $0x68] sm:$0xff]
    %v4625 = vld [vmem:[#allocation11 + $0x70] sm:$0xff]
    %v4626 = vld [vmem:[#allocation11 + $0x78] sm:$0xff]
    %v4627 = vld [vmem:[#allocation11 + $0x80] sm:$0xff]
    %v4628 = vld [vmem:[#allocation11 + $0x88] sm:$0xff]
    %v4629 = vld [vmem:[#allocation11 + $0x90] sm:$0xff]
    %v4630 = vld [vmem:[#allocation11 + $0x98] sm:$0xff]
    %v4631 = vld [vmem:[#allocation11 + $0xa0] sm:$0xff]
    %v4632 = vld [vmem:[#allocation11 + $0xa8] sm:$0xff]
    %v4633 = vld [vmem:[#allocation11 + $0xb0] sm:$0xff]
    %v4634 = vld [vmem:[#allocation11 + $0xb8] sm:$0xff]
    %v4635 = vld [vmem:[#allocation11 + $0xc0] sm:$0xff]
    %v4636 = vld [vmem:[#allocation11 + $0xc8] sm:$0xff]
    %v4637 = vld [vmem:[#allocation11 + $0xd0] sm:$0xff]
    %v4638 = vld [vmem:[#allocation11 + $0xd8] sm:$0xff]
    %v4639 = vld [vmem:[#allocation11 + $0xe0] sm:$0xff]
    %v4640 = vld [vmem:[#allocation11 + $0xe8] sm:$0xff]
    %v4641 = vld [vmem:[#allocation11 + $0xf0] sm:$0xff]
    %v4642 = vld [vmem:[#allocation11 + $0xf8] sm:$0xff]
    %v4643 = vld [vmem:[#allocation11 + $0x100] sm:$0xff]
    %v4644 = vld [vmem:[#allocation11 + $0x108] sm:$0xff]
    %v4645 = vld [vmem:[#allocation11 + $0x110] sm:$0xff]
    %v4646 = vld [vmem:[#allocation11 + $0x118] sm:$0xff]
    %v4647 = vld [vmem:[#allocation11 + $0x120] sm:$0xff]
    %v4648 = vld [vmem:[#allocation11 + $0x128] sm:$0xff]
    %v4649 = vld [vmem:[#allocation11 + $0x130] sm:$0xff]
    %v4650 = vld [vmem:[#allocation11 + $0x138] sm:$0xff]
    %v4651 = vld [vmem:[#allocation11 + $0x140] sm:$0xff]
    %v4652 = vld [vmem:[#allocation11 + $0x148] sm:$0xff]
    %v4653 = vld [vmem:[#allocation11 + $0x150] sm:$0xff]
    %v4654 = vld [vmem:[#allocation11 + $0x158] sm:$0xff]
    %v4655 = vld [vmem:[#allocation11 + $0x160] sm:$0xff]
    %v4656 = vld [vmem:[#allocation11 + $0x168] sm:$0xff]
    %v4657 = vld [vmem:[#allocation11 + $0x170] sm:$0xff]
    %v4658 = vld [vmem:[#allocation11 + $0x178] sm:$0xff]
    %v4659 = vld [vmem:[#allocation11 + $0x180] sm:$0xff]
    %v4660 = vld [vmem:[#allocation11 + $0x188] sm:$0xff]
    %v4661 = vld [vmem:[#allocation11 + $0x190] sm:$0xff]
    %v4662 = vld [vmem:[#allocation11 + $0x198] sm:$0xff]
    %v4663 = vld [vmem:[#allocation11 + $0x1a0] sm:$0xff]
    %v4664 = vld [vmem:[#allocation11 + $0x1a8] sm:$0xff]
    %v4665 = vld [vmem:[#allocation11 + $0x1b0] sm:$0xff]
    %v4666 = vld [vmem:[#allocation11 + $0x1b8] sm:$0xff]
    %v4667 = vld [vmem:[#allocation11 + $0x1c0] sm:$0xff]
    %v4668 = vld [vmem:[#allocation11 + $0x1c8] sm:$0xff]
    %v4669 = vld [vmem:[#allocation11 + $0x1d0] sm:$0xff]
    %v4670 = vld [vmem:[#allocation11 + $0x1d8] sm:$0xff]
    %v4671 = vld [vmem:[#allocation11 + $0x1e0] sm:$0xff]
    %v4672 = vld [vmem:[#allocation11 + $0x1e8] sm:$0xff]
    %v4673 = vld [vmem:[#allocation11 + $0x1f0] sm:$0xff]
    %v4674 = vld [vmem:[#allocation11 + $0x1f8] sm:$0xff]
    %v4675 = vld [vmem:[#allocation11 + $0x200] sm:$0xff]
    %v4676 = vld [vmem:[#allocation11 + $0x208] sm:$0xff]
    %v4677 = vld [vmem:[#allocation11 + $0x210] sm:$0xff]
    %v4678 = vld [vmem:[#allocation11 + $0x218] sm:$0xff]
    %v4679 = vld [vmem:[#allocation11 + $0x220] sm:$0xff]
    %v4680 = vld [vmem:[#allocation11 + $0x228] sm:$0xff]
    %v4681 = vld [vmem:[#allocation11 + $0x230] sm:$0xff]
    %v4682 = vld [vmem:[#allocation11 + $0x238] sm:$0xff]
    %v4683 = vld [vmem:[#allocation11 + $0x240] sm:$0xff]
    %v4684 = vld [vmem:[#allocation11 + $0x248] sm:$0xff]
    %v4685 = vld [vmem:[#allocation11 + $0x250] sm:$0xff]
    %v4686 = vld [vmem:[#allocation11 + $0x258] sm:$0xff]
    %v4687 = vld [vmem:[#allocation11 + $0x260] sm:$0xff]
    %v4688 = vld [vmem:[#allocation11 + $0x268] sm:$0xff]
    %v4689 = vld [vmem:[#allocation11 + $0x270] sm:$0xff]
    %v4690 = vld [vmem:[#allocation11 + $0x278] sm:$0xff]
    %v4691 = vld [vmem:[#allocation11 + $0x280] sm:$0xff]
    %v4692 = vld [vmem:[#allocation11 + $0x288] sm:$0xff]
    %v4693 = vld [vmem:[#allocation11 + $0x290] sm:$0xff]
    %v4694 = vld [vmem:[#allocation11 + $0x298] sm:$0xff]
    %v4695 = vld [vmem:[#allocation11 + $0x2a0] sm:$0xff]
    %v4696 = vld [vmem:[#allocation11 + $0x2a8] sm:$0xff]
    %v4697 = vld [vmem:[#allocation11 + $0x2b0] sm:$0xff]
    %v4698 = vld [vmem:[#allocation11 + $0x2b8] sm:$0xff]
    %v4699 = vld [vmem:[#allocation11 + $0x2c0] sm:$0xff]
    %v4700 = vld [vmem:[#allocation11 + $0x2c8] sm:$0xff]
    %v4701 = vld [vmem:[#allocation11 + $0x2d0] sm:$0xff]
    %v4702 = vld [vmem:[#allocation11 + $0x2d8] sm:$0xff]
    %v4703 = vld [vmem:[#allocation11 + $0x2e0] sm:$0xff]
    %v4704 = vld [vmem:[#allocation11 + $0x2e8] sm:$0xff]
    %v4705 = vld [vmem:[#allocation11 + $0x2f0] sm:$0xff]
    %v4706 = vld [vmem:[#allocation11 + $0x2f8] sm:$0xff]
    %v4707 = vld [vmem:[%s8] sm:$0x3f]
    %v4709 = vperm.slane %v4707, 0
    %v4710 = vperm.slane %v4707, 1
    %v4711 = vperm.slane %v4707, 2
    %v4712 = vperm.slane %v4707, 3
    %v4713 = vperm.slane %v4707, 4
    %v4714 = vperm.slane %v4707, 5
    %v4817 = vunpack.c.l.b16 %v4611
    %v4818 = vunpack.c.h.b16 %v4611
    %v4819 = vunpack.c.l.b16 %v4612
    %v4820 = vunpack.c.h.b16 %v4612
    %v4821 = vunpack.c.l.b16 %v4613
    %v4822 = vunpack.c.h.b16 %v4613
    %v4823 = vunpack.c.l.b16 %v4614
    %v4824 = vunpack.c.h.b16 %v4614
    %v4825 = vunpack.c.l.b16 %v4615
    %v4826 = vunpack.c.h.b16 %v4615
    %v4827 = vunpack.c.l.b16 %v4616
    %v4828 = vunpack.c.h.b16 %v4616
    %v4829 = vunpack.c.l.b16 %v4617
    %v4830 = vunpack.c.h.b16 %v4617
    %v4831 = vunpack.c.l.b16 %v4618
    %v4832 = vunpack.c.h.b16 %v4618
    %v4833 = vunpack.c.l.b16 %v4619
    %v4834 = vunpack.c.h.b16 %v4619
    %v4835 = vunpack.c.l.b16 %v4620
    %v4836 = vunpack.c.h.b16 %v4620
    %v4837 = vunpack.c.l.b16 %v4621
    %v4838 = vunpack.c.h.b16 %v4621
    %v4839 = vunpack.c.l.b16 %v4622
    %v4840 = vunpack.c.h.b16 %v4622
    %v4841 = vunpack.c.l.b16 %v4623
    %v4842 = vunpack.c.h.b16 %v4623
    %v4843 = vunpack.c.l.b16 %v4624
    %v4844 = vunpack.c.h.b16 %v4624
    %v4845 = vunpack.c.l.b16 %v4625
    %v4846 = vunpack.c.h.b16 %v4625
    %v4847 = vunpack.c.l.b16 %v4626
    %v4848 = vunpack.c.h.b16 %v4626
    %v4849 = vunpack.c.l.b16 %v4627
    %v4850 = vunpack.c.h.b16 %v4627
    %v4851 = vunpack.c.l.b16 %v4628
    %v4852 = vunpack.c.h.b16 %v4628
    %v4853 = vunpack.c.l.b16 %v4629
    %v4854 = vunpack.c.h.b16 %v4629
    %v4855 = vunpack.c.l.b16 %v4630
    %v4856 = vunpack.c.h.b16 %v4630
    %v4857 = vunpack.c.l.b16 %v4631
    %v4858 = vunpack.c.h.b16 %v4631
    %v4859 = vunpack.c.l.b16 %v4632
    %v4860 = vunpack.c.h.b16 %v4632
    %v4861 = vunpack.c.l.b16 %v4633
    %v4862 = vunpack.c.h.b16 %v4633
    %v4863 = vunpack.c.l.b16 %v4634
    %v4864 = vunpack.c.h.b16 %v4634
    %v4865 = vunpack.c.l.b16 %v4635
    %v4866 = vunpack.c.h.b16 %v4635
    %v4867 = vunpack.c.l.b16 %v4636
    %v4868 = vunpack.c.h.b16 %v4636
    %v4869 = vunpack.c.l.b16 %v4637
    %v4870 = vunpack.c.h.b16 %v4637
    %v4871 = vunpack.c.l.b16 %v4638
    %v4872 = vunpack.c.h.b16 %v4638
    %v4873 = vunpack.c.l.b16 %v4639
    %v4874 = vunpack.c.h.b16 %v4639
    %v4875 = vunpack.c.l.b16 %v4640
    %v4876 = vunpack.c.h.b16 %v4640
    %v4877 = vunpack.c.l.b16 %v4641
    %v4878 = vunpack.c.h.b16 %v4641
    %v4879 = vunpack.c.l.b16 %v4642
    %v4880 = vunpack.c.h.b16 %v4642
    %v4881 = vunpack.c.l.b16 %v4643
    %v4882 = vunpack.c.h.b16 %v4643
    %v4883 = vunpack.c.l.b16 %v4644
    %v4884 = vunpack.c.h.b16 %v4644
    %v4885 = vunpack.c.l.b16 %v4645
    %v4886 = vunpack.c.h.b16 %v4645
    %v4887 = vunpack.c.l.b16 %v4646
    %v4888 = vunpack.c.h.b16 %v4646
    %v4889 = vunpack.c.l.b16 %v4647
    %v4890 = vunpack.c.h.b16 %v4647
    %v4891 = vunpack.c.l.b16 %v4648
    %v4892 = vunpack.c.h.b16 %v4648
    %v4893 = vunpack.c.l.b16 %v4649
    %v4894 = vunpack.c.h.b16 %v4649
    %v4895 = vunpack.c.l.b16 %v4650
    %v4896 = vunpack.c.h.b16 %v4650
    %v4897 = vunpack.c.l.b16 %v4651
    %v4898 = vunpack.c.h.b16 %v4651
    %v4899 = vunpack.c.l.b16 %v4652
    %v4900 = vunpack.c.h.b16 %v4652
    %v4901 = vunpack.c.l.b16 %v4653
    %v4902 = vunpack.c.h.b16 %v4653
    %v4903 = vunpack.c.l.b16 %v4654
    %v4904 = vunpack.c.h.b16 %v4654
    %v4905 = vunpack.c.l.b16 %v4655
    %v4906 = vunpack.c.h.b16 %v4655
    %v4907 = vunpack.c.l.b16 %v4656
    %v4908 = vunpack.c.h.b16 %v4656
    %v4909 = vunpack.c.l.b16 %v4657
    %v4910 = vunpack.c.h.b16 %v4657
    %v4911 = vunpack.c.l.b16 %v4658
    %v4912 = vunpack.c.h.b16 %v4658
    %v4913 = vunpack.c.l.b16 %v4659
    %v4914 = vunpack.c.h.b16 %v4659
    %v4915 = vunpack.c.l.b16 %v4660
    %v4916 = vunpack.c.h.b16 %v4660
    %v4917 = vunpack.c.l.b16 %v4661
    %v4918 = vunpack.c.h.b16 %v4661
    %v4919 = vunpack.c.l.b16 %v4662
    %v4920 = vunpack.c.h.b16 %v4662
    %v4921 = vunpack.c.l.b16 %v4663
    %v4922 = vunpack.c.h.b16 %v4663
    %v4923 = vunpack.c.l.b16 %v4664
    %v4924 = vunpack.c.h.b16 %v4664
    %v4925 = vunpack.c.l.b16 %v4665
    %v4926 = vunpack.c.h.b16 %v4665
    %v4927 = vunpack.c.l.b16 %v4666
    %v4928 = vunpack.c.h.b16 %v4666
    %v4929 = vunpack.c.l.b16 %v4667
    %v4930 = vunpack.c.h.b16 %v4667
    %v4931 = vunpack.c.l.b16 %v4668
    %v4932 = vunpack.c.h.b16 %v4668
    %v4933 = vunpack.c.l.b16 %v4669
    %v4934 = vunpack.c.h.b16 %v4669
    %v4935 = vunpack.c.l.b16 %v4670
    %v4936 = vunpack.c.h.b16 %v4670
    %v4937 = vunpack.c.l.b16 %v4671
    %v4938 = vunpack.c.h.b16 %v4671
    %v4939 = vunpack.c.l.b16 %v4672
    %v4940 = vunpack.c.h.b16 %v4672
    %v4941 = vunpack.c.l.b16 %v4673
    %v4942 = vunpack.c.h.b16 %v4673
    %v4943 = vunpack.c.l.b16 %v4674
    %v4944 = vunpack.c.h.b16 %v4674
    %v4945 = vunpack.c.l.b16 %v4675
    %v4946 = vunpack.c.h.b16 %v4675
    %v4947 = vunpack.c.l.b16 %v4676
    %v4948 = vunpack.c.h.b16 %v4676
    %v4949 = vunpack.c.l.b16 %v4677
    %v4950 = vunpack.c.h.b16 %v4677
    %v4951 = vunpack.c.l.b16 %v4678
    %v4952 = vunpack.c.h.b16 %v4678
    %v4953 = vunpack.c.l.b16 %v4679
    %v4954 = vunpack.c.h.b16 %v4679
    %v4955 = vunpack.c.l.b16 %v4680
    %v4956 = vunpack.c.h.b16 %v4680
    %v4957 = vunpack.c.l.b16 %v4681
    %v4958 = vunpack.c.h.b16 %v4681
    %v4959 = vunpack.c.l.b16 %v4682
    %v4960 = vunpack.c.h.b16 %v4682
    %v4961 = vunpack.c.l.b16 %v4683
    %v4962 = vunpack.c.h.b16 %v4683
    %v4963 = vunpack.c.l.b16 %v4684
    %v4964 = vunpack.c.h.b16 %v4684
    %v4965 = vunpack.c.l.b16 %v4685
    %v4966 = vunpack.c.h.b16 %v4685
    %v4967 = vunpack.c.l.b16 %v4686
    %v4968 = vunpack.c.h.b16 %v4686
    %v4969 = vunpack.c.l.b16 %v4687
    %v4970 = vunpack.c.h.b16 %v4687
    %v4971 = vunpack.c.l.b16 %v4688
    %v4972 = vunpack.c.h.b16 %v4688
    %v4973 = vunpack.c.l.b16 %v4689
    %v4974 = vunpack.c.h.b16 %v4689
    %v4975 = vunpack.c.l.b16 %v4690
    %v4976 = vunpack.c.h.b16 %v4690
    %v4977 = vunpack.c.l.b16 %v4691
    %v4978 = vunpack.c.h.b16 %v4691
    %v4979 = vunpack.c.l.b16 %v4692
    %v4980 = vunpack.c.h.b16 %v4692
    %v4981 = vunpack.c.l.b16 %v4693
    %v4982 = vunpack.c.h.b16 %v4693
    %v4983 = vunpack.c.l.b16 %v4694
    %v4984 = vunpack.c.h.b16 %v4694
    %v4985 = vunpack.c.l.b16 %v4695
    %v4986 = vunpack.c.h.b16 %v4695
    %v4987 = vunpack.c.l.b16 %v4696
    %v4988 = vunpack.c.h.b16 %v4696
    %v4989 = vunpack.c.l.b16 %v4697
    %v4990 = vunpack.c.h.b16 %v4697
    %v4991 = vunpack.c.l.b16 %v4698
    %v4992 = vunpack.c.h.b16 %v4698
    %v4993 = vunpack.c.l.b16 %v4699
    %v4994 = vunpack.c.h.b16 %v4699
    %v4995 = vunpack.c.l.b16 %v4700
    %v4996 = vunpack.c.h.b16 %v4700
    %v4997 = vunpack.c.l.b16 %v4701
    %v4998 = vunpack.c.h.b16 %v4701
    %v4999 = vunpack.c.l.b16 %v4702
    %v5000 = vunpack.c.h.b16 %v4702
    %v5001 = vunpack.c.l.b16 %v4703
    %v5002 = vunpack.c.h.b16 %v4703
    %v5003 = vunpack.c.l.b16 %v4704
    %v5004 = vunpack.c.h.b16 %v4704
    %v5005 = vunpack.c.l.b16 %v4705
    %v5006 = vunpack.c.h.b16 %v4705
    %v5007 = vunpack.c.l.b16 %v4706
    %v5008 = vunpack.c.h.b16 %v4706
    %v5009 = vpack.c.b16 %v4823, %v4817
    %v5010 = vpack.c.b16 %v4824, %v4818
    %v5011 = vpack.c.b16 %v4825, %v4819
    %v5012 = vpack.c.b16 %v4826, %v4820
    %v5013 = vpack.c.b16 %v4827, %v4821
    %v5014 = vpack.c.b16 %v4828, %v4822
    %v5015 = vpack.c.b16 %v4835, %v4829
    %v5016 = vpack.c.b16 %v4836, %v4830
    %v5017 = vpack.c.b16 %v4837, %v4831
    %v5018 = vpack.c.b16 %v4838, %v4832
    %v5019 = vpack.c.b16 %v4839, %v4833
    %v5020 = vpack.c.b16 %v4840, %v4834
    %v5021 = vpack.c.b16 %v4847, %v4841
    %v5022 = vpack.c.b16 %v4848, %v4842
    %v5023 = vpack.c.b16 %v4849, %v4843
    %v5024 = vpack.c.b16 %v4850, %v4844
    %v5025 = vpack.c.b16 %v4851, %v4845
    %v5026 = vpack.c.b16 %v4852, %v4846
    %v5027 = vpack.c.b16 %v4859, %v4853
    %v5028 = vpack.c.b16 %v4860, %v4854
    %v5029 = vpack.c.b16 %v4861, %v4855
    %v5030 = vpack.c.b16 %v4862, %v4856
    %v5031 = vpack.c.b16 %v4863, %v4857
    %v5032 = vpack.c.b16 %v4864, %v4858
    %v5033 = vpack.c.b16 %v4871, %v4865
    %v5034 = vpack.c.b16 %v4872, %v4866
    %v5035 = vpack.c.b16 %v4873, %v4867
    %v5036 = vpack.c.b16 %v4874, %v4868
    %v5037 = vpack.c.b16 %v4875, %v4869
    %v5038 = vpack.c.b16 %v4876, %v4870
    %v5039 = vpack.c.b16 %v4883, %v4877
    %v5040 = vpack.c.b16 %v4884, %v4878
    %v5041 = vpack.c.b16 %v4885, %v4879
    %v5042 = vpack.c.b16 %v4886, %v4880
    %v5043 = vpack.c.b16 %v4887, %v4881
    %v5044 = vpack.c.b16 %v4888, %v4882
    %v5045 = vpack.c.b16 %v4895, %v4889
    %v5046 = vpack.c.b16 %v4896, %v4890
    %v5047 = vpack.c.b16 %v4897, %v4891
    %v5048 = vpack.c.b16 %v4898, %v4892
    %v5049 = vpack.c.b16 %v4899, %v4893
    %v5050 = vpack.c.b16 %v4900, %v4894
    %v5051 = vpack.c.b16 %v4907, %v4901
    %v5052 = vpack.c.b16 %v4908, %v4902
    %v5053 = vpack.c.b16 %v4909, %v4903
    %v5054 = vpack.c.b16 %v4910, %v4904
    %v5055 = vpack.c.b16 %v4911, %v4905
    %v5056 = vpack.c.b16 %v4912, %v4906
    %v5057 = vpack.c.b16 %v4919, %v4913
    %v5058 = vpack.c.b16 %v4920, %v4914
    %v5059 = vpack.c.b16 %v4921, %v4915
    %v5060 = vpack.c.b16 %v4922, %v4916
    %v5061 = vpack.c.b16 %v4923, %v4917
    %v5062 = vpack.c.b16 %v4924, %v4918
    %v5063 = vpack.c.b16 %v4931, %v4925
    %v5064 = vpack.c.b16 %v4932, %v4926
    %v5065 = vpack.c.b16 %v4933, %v4927
    %v5066 = vpack.c.b16 %v4934, %v4928
    %v5067 = vpack.c.b16 %v4935, %v4929
    %v5068 = vpack.c.b16 %v4936, %v4930
    %v5069 = vpack.c.b16 %v4943, %v4937
    %v5070 = vpack.c.b16 %v4944, %v4938
    %v5071 = vpack.c.b16 %v4945, %v4939
    %v5072 = vpack.c.b16 %v4946, %v4940
    %v5073 = vpack.c.b16 %v4947, %v4941
    %v5074 = vpack.c.b16 %v4948, %v4942
    %v5075 = vpack.c.b16 %v4955, %v4949
    %v5076 = vpack.c.b16 %v4956, %v4950
    %v5077 = vpack.c.b16 %v4957, %v4951
    %v5078 = vpack.c.b16 %v4958, %v4952
    %v5079 = vpack.c.b16 %v4959, %v4953
    %v5080 = vpack.c.b16 %v4960, %v4954
    %v5081 = vpack.c.b16 %v4967, %v4961
    %v5082 = vpack.c.b16 %v4968, %v4962
    %v5083 = vpack.c.b16 %v4969, %v4963
    %v5084 = vpack.c.b16 %v4970, %v4964
    %v5085 = vpack.c.b16 %v4971, %v4965
    %v5086 = vpack.c.b16 %v4972, %v4966
    %v5087 = vpack.c.b16 %v4979, %v4973
    %v5088 = vpack.c.b16 %v4980, %v4974
    %v5089 = vpack.c.b16 %v4981, %v4975
    %v5090 = vpack.c.b16 %v4982, %v4976
    %v5091 = vpack.c.b16 %v4983, %v4977
    %v5092 = vpack.c.b16 %v4984, %v4978
    %v5093 = vpack.c.b16 %v4991, %v4985
    %v5094 = vpack.c.b16 %v4992, %v4986
    %v5095 = vpack.c.b16 %v4993, %v4987
    %v5096 = vpack.c.b16 %v4994, %v4988
    %v5097 = vpack.c.b16 %v4995, %v4989
    %v5098 = vpack.c.b16 %v4996, %v4990
    %v5099 = vpack.c.b16 %v5003, %v4997
    %v5100 = vpack.c.b16 %v5004, %v4998
    %v5101 = vpack.c.b16 %v5005, %v4999
    %v5102 = vpack.c.b16 %v5006, %v5000
    %v5103 = vpack.c.b16 %v5007, %v5001
    %v5104 = vpack.c.b16 %v5008, %v5002
    %5201 = vmatpush.bf16.msra.mxu0 %v5051
    %5202 = vmatpush.bf16.msra.mxu0 %v5045
    %5203 = vmatpush.bf16.msra.mxu0 %v5039
    %5204 = vmatpush.bf16.msra.mxu0 %v5033
    %5205 = vmatpush.bf16.msra.mxu0 %v5027
    %5206 = vmatpush.bf16.msra.mxu0 %v5021
    %5207 = vmatpush.bf16.msra.mxu0 %v5015
    %5208 = vmatpush.bf16.msra.mxu0 %v5009
    %5209 = vmatmul.bf16.gmra.mxu0 0
    %v5210 = vpop.f32.mrf.mxu0
    %v5211 = vadd.f32 %v4709, %v5210
    %v5212 = vpop.f32.mrf.mxu0
    %5213 = vdwg.mxu0
    %5214 = vmatpush.bf16.msra.mxu0 %v5099
    %5215 = vmatpush.bf16.msra.mxu0 %v5093
    %5216 = vmatpush.bf16.msra.mxu0 %v5087
    %5217 = vmatpush.bf16.msra.mxu0 %v5081
    %5218 = vmatpush.bf16.msra.mxu0 %v5075
    %5219 = vmatpush.bf16.msra.mxu0 %v5069
    %5220 = vmatpush.bf16.msra.mxu0 %v5063
    %5221 = vmatpush.bf16.msra.mxu0 %v5057
    %5222 = vmatmul.bf16.gmra.mxu0 0
    %v5223 = vpop.f32.mrf.mxu0
    %v5224 = vadd.f32 %v5211, %v5223
    %v5225 = vpop.f32.mrf.mxu0
    %5226 = vdwg.mxu0
    %5227 = vmatpush.bf16.msra.mxu0 %v5052
    %5228 = vmatpush.bf16.msra.mxu0 %v5046
    %5229 = vmatpush.bf16.msra.mxu0 %v5040
    %5230 = vmatpush.bf16.msra.mxu0 %v5034
    %5231 = vmatpush.bf16.msra.mxu0 %v5028
    %5232 = vmatpush.bf16.msra.mxu0 %v5022
    %5233 = vmatpush.bf16.msra.mxu0 %v5016
    %5234 = vmatpush.bf16.msra.mxu0 %v5010
    %5235 = vmatmul.bf16.gmra.mxu0 0
    %v5236 = vpop.f32.mrf.mxu0
    %v5237 = vadd.f32 %v4710, %v5236
    %v5238 = vpop.f32.mrf.mxu0
    %5239 = vdwg.mxu0
    %5240 = vmatpush.bf16.msra.mxu0 %v5100
    %5241 = vmatpush.bf16.msra.mxu0 %v5094
    %5242 = vmatpush.bf16.msra.mxu0 %v5088
    %5243 = vmatpush.bf16.msra.mxu0 %v5082
    %5244 = vmatpush.bf16.msra.mxu0 %v5076
    %5245 = vmatpush.bf16.msra.mxu0 %v5070
    %5246 = vmatpush.bf16.msra.mxu0 %v5064
    %5247 = vmatpush.bf16.msra.mxu0 %v5058
    %5248 = vmatmul.bf16.gmra.mxu0 0
    %v5249 = vpop.f32.mrf.mxu0
    %v5250 = vadd.f32 %v5237, %v5249
    %v5251 = vpop.f32.mrf.mxu0
    %5252 = vdwg.mxu0
    %5253 = vmatpush.bf16.msra.mxu0 %v5053
    %5254 = vmatpush.bf16.msra.mxu0 %v5047
    %5255 = vmatpush.bf16.msra.mxu0 %v5041
    %5256 = vmatpush.bf16.msra.mxu0 %v5035
    %5257 = vmatpush.bf16.msra.mxu0 %v5029
    %5258 = vmatpush.bf16.msra.mxu0 %v5023
    %5259 = vmatpush.bf16.msra.mxu0 %v5017
    %5260 = vmatpush.bf16.msra.mxu0 %v5011
    %5261 = vmatmul.bf16.gmra.mxu0 0
    %v5262 = vpop.f32.mrf.mxu0
    %v5263 = vadd.f32 %v4711, %v5262
    %v5264 = vpop.f32.mrf.mxu0
    %5265 = vdwg.mxu0
    %5266 = vmatpush.bf16.msra.mxu0 %v5101
    %5267 = vmatpush.bf16.msra.mxu0 %v5095
    %5268 = vmatpush.bf16.msra.mxu0 %v5089
    %5269 = vmatpush.bf16.msra.mxu0 %v5083
    %5270 = vmatpush.bf16.msra.mxu0 %v5077
    %5271 = vmatpush.bf16.msra.mxu0 %v5071
    %5272 = vmatpush.bf16.msra.mxu0 %v5065
    %5273 = vmatpush.bf16.msra.mxu0 %v5059
    %5274 = vmatmul.bf16.gmra.mxu0 0
    %v5275 = vpop.f32.mrf.mxu0
    %v5276 = vadd.f32 %v5263, %v5275
    %v5277 = vpop.f32.mrf.mxu0
    %5278 = vdwg.mxu0
    %5279 = vmatpush.bf16.msra.mxu0 %v5054
    %5280 = vmatpush.bf16.msra.mxu0 %v5048
    %5281 = vmatpush.bf16.msra.mxu0 %v5042
    %5282 = vmatpush.bf16.msra.mxu0 %v5036
    %5283 = vmatpush.bf16.msra.mxu0 %v5030
    %5284 = vmatpush.bf16.msra.mxu0 %v5024
    %5285 = vmatpush.bf16.msra.mxu0 %v5018
    %5286 = vmatpush.bf16.msra.mxu0 %v5012
    %5287 = vmatmul.bf16.gmra.mxu0 0
    %v5288 = vpop.f32.mrf.mxu0
    %v5289 = vadd.f32 %v4712, %v5288
    %v5290 = vpop.f32.mrf.mxu0
    %5291 = vdwg.mxu0
    %5292 = vmatpush.bf16.msra.mxu0 %v5102
    %5293 = vmatpush.bf16.msra.mxu0 %v5096
    %5294 = vmatpush.bf16.msra.mxu0 %v5090
    %5295 = vmatpush.bf16.msra.mxu0 %v5084
    %5296 = vmatpush.bf16.msra.mxu0 %v5078
    %5297 = vmatpush.bf16.msra.mxu0 %v5072
    %5298 = vmatpush.bf16.msra.mxu0 %v5066
    %5299 = vmatpush.bf16.msra.mxu0 %v5060
    %5300 = vmatmul.bf16.gmra.mxu0 0
    %v5301 = vpop.f32.mrf.mxu0
    %v5302 = vadd.f32 %v5289, %v5301
    %v5303 = vpop.f32.mrf.mxu0
    %5304 = vdwg.mxu0
    %5305 = vmatpush.bf16.msra.mxu0 %v5055
    %5306 = vmatpush.bf16.msra.mxu0 %v5049
    %5307 = vmatpush.bf16.msra.mxu0 %v5043
    %5308 = vmatpush.bf16.msra.mxu0 %v5037
    %5309 = vmatpush.bf16.msra.mxu0 %v5031
    %5310 = vmatpush.bf16.msra.mxu0 %v5025
    %5311 = vmatpush.bf16.msra.mxu0 %v5019
    %5312 = vmatpush.bf16.msra.mxu0 %v5013
    %5313 = vmatmul.bf16.gmra.mxu0 0
    %v5314 = vpop.f32.mrf.mxu0
    %v5315 = vadd.f32 %v4713, %v5314
    %v5316 = vpop.f32.mrf.mxu0
    %5317 = vdwg.mxu0
    %5318 = vmatpush.bf16.msra.mxu0 %v5103
    %5319 = vmatpush.bf16.msra.mxu0 %v5097
    %5320 = vmatpush.bf16.msra.mxu0 %v5091
    %5321 = vmatpush.bf16.msra.mxu0 %v5085
    %5322 = vmatpush.bf16.msra.mxu0 %v5079
    %5323 = vmatpush.bf16.msra.mxu0 %v5073
    %5324 = vmatpush.bf16.msra.mxu0 %v5067
    %5325 = vmatpush.bf16.msra.mxu0 %v5061
    %5326 = vmatmul.bf16.gmra.mxu0 0
    %v5327 = vpop.f32.mrf.mxu0
    %v5328 = vadd.f32 %v5315, %v5327
    %v5329 = vpop.f32.mrf.mxu0
    %5330 = vdwg.mxu0
    %5331 = vmatpush.bf16.msra.mxu0 %v5056
    %5332 = vmatpush.bf16.msra.mxu0 %v5050
    %5333 = vmatpush.bf16.msra.mxu0 %v5044
    %5334 = vmatpush.bf16.msra.mxu0 %v5038
    %5335 = vmatpush.bf16.msra.mxu0 %v5032
    %5336 = vmatpush.bf16.msra.mxu0 %v5026
    %5337 = vmatpush.bf16.msra.mxu0 %v5020
    %5338 = vmatpush.bf16.msra.mxu0 %v5014
    %5339 = vmatmul.bf16.gmra.mxu0 0
    %v5340 = vpop.f32.mrf.mxu0
    %v5341 = vadd.f32 %v4714, %v5340
    %v5342 = vpop.f32.mrf.mxu0
    %5343 = vdwg.mxu0
    %5344 = vmatpush.bf16.msra.mxu0 %v5104
    %5345 = vmatpush.bf16.msra.mxu0 %v5098
    %5346 = vmatpush.bf16.msra.mxu0 %v5092
    %5347 = vmatpush.bf16.msra.mxu0 %v5086
    %5348 = vmatpush.bf16.msra.mxu0 %v5080
    %5349 = vmatpush.bf16.msra.mxu0 %v5074
    %5350 = vmatpush.bf16.msra.mxu0 %v5068
    %5351 = vmatpush.bf16.msra.mxu0 %v5062
    %5352 = vmatmul.bf16.gmra.mxu0 0
    %v5353 = vpop.f32.mrf.mxu0
    %v5354 = vadd.f32 %v5341, %v5353
    %v5355 = vpop.f32.mrf.mxu0
    %5356 = vdwg.mxu0
    %v5357 = vadd.f32 %v4605, %v5224
    %v5358 = vadd.f32 %v4606, %v5250
    %v5359 = vxor.u32 %v5357, 2147483648
    %v5360 = vxor.u32 %v5358, 2147483648
    %v5361 = vmul.f32 %v5359, 1.442695
    %v5362 = vpow.pop %v5361
    %v5363 = vmul.f32 %v5360, 1.442695
    %v5364 = vpow.pop %v5363
    %v5365 = vadd.f32 %v5362, 1.0
    %v5366 = vadd.f32 %v5364, 1.0
    %v5367 = vrcp.pop %v5365
    %v5368 = vmul.f32 %v5365, %v5367
    %v5369 = vsub.f32 1.0, %v5368
    %v5370 = vmul.f32 %v5367, %v5369
    %v5371 = vadd.f32 %v5367, %v5370
    %vm5372 = vweird.f32 %v5365
    %vm5373 = vweird.f32 %v5367
    %vm5374 = vmor %vm5372, %vm5373
    %v5375 = vsel %vm5374, %v5367, %v5371
    %v5376 = vand.u32 2147483647, %v5365
    %vm5377 = vcmp.eq.f32.partialorder %v5376, 8.507059e+37
    %v5378 = vand.u32 %v5365, 2147483648
    %v5379 = vor.u32 1.1754944e-38, %v5378
    %v5380 = vsel %vm5377, %v5379, %v5375
    %v5381 = vmul.f32 1.0, %v5380
    %v5382 = vrcp.pop %v5366
    %v5383 = vmul.f32 %v5366, %v5382
    %v5384 = vsub.f32 1.0, %v5383
    %v5385 = vmul.f32 %v5382, %v5384
    %v5386 = vadd.f32 %v5382, %v5385
    %vm5387 = vweird.f32 %v5366
    %vm5388 = vweird.f32 %v5382
    %vm5389 = vmor %vm5387, %vm5388
    %v5390 = vsel %vm5389, %v5382, %v5386
    %v5391 = vand.u32 2147483647, %v5366
    %vm5392 = vcmp.eq.f32.partialorder %v5391, 8.507059e+37
    %v5393 = vand.u32 %v5366, 2147483648
    %v5394 = vor.u32 1.1754944e-38, %v5393
    %v5395 = vsel %vm5392, %v5394, %v5390
    %v5396 = vmul.f32 1.0, %v5395
    %v5397 = vadd.f32 %v4607, %v5276
    %v5398 = vadd.f32 %v4608, %v5302
    %v5399 = vxor.u32 %v5397, 2147483648
    %v5400 = vxor.u32 %v5398, 2147483648
    %v5401 = vmul.f32 %v5399, 1.442695
    %v5402 = vpow.pop %v5401
    %v5403 = vmul.f32 %v5400, 1.442695
    %v5404 = vpow.pop %v5403
    %v5405 = vadd.f32 %v5402, 1.0
    %v5406 = vadd.f32 %v5404, 1.0
    %v5407 = vrcp.pop %v5405
    %v5408 = vmul.f32 %v5405, %v5407
    %v5409 = vsub.f32 1.0, %v5408
    %v5410 = vmul.f32 %v5407, %v5409
    %v5411 = vadd.f32 %v5407, %v5410
    %vm5412 = vweird.f32 %v5405
    %vm5413 = vweird.f32 %v5407
    %vm5414 = vmor %vm5412, %vm5413
    %v5415 = vsel %vm5414, %v5407, %v5411
    %v5416 = vand.u32 2147483647, %v5405
    %vm5417 = vcmp.eq.f32.partialorder %v5416, 8.507059e+37
    %v5418 = vand.u32 %v5405, 2147483648
    %v5419 = vor.u32 1.1754944e-38, %v5418
    %v5420 = vsel %vm5417, %v5419, %v5415
    %v5421 = vmul.f32 1.0, %v5420
    %v5422 = vrcp.pop %v5406
    %v5423 = vmul.f32 %v5406, %v5422
    %v5424 = vsub.f32 1.0, %v5423
    %v5425 = vmul.f32 %v5422, %v5424
    %v5426 = vadd.f32 %v5422, %v5425
    %vm5427 = vweird.f32 %v5406
    %vm5428 = vweird.f32 %v5422
    %vm5429 = vmor %vm5427, %vm5428
    %v5430 = vsel %vm5429, %v5422, %v5426
    %v5431 = vand.u32 2147483647, %v5406
    %vm5432 = vcmp.eq.f32.partialorder %v5431, 8.507059e+37
    %v5433 = vand.u32 %v5406, 2147483648
    %v5434 = vor.u32 1.1754944e-38, %v5433
    %v5435 = vsel %vm5432, %v5434, %v5430
    %v5436 = vmul.f32 1.0, %v5435
    %v5437 = vmul.f32 %v5381, %v5328
    %v5438 = vmul.f32 %v5396, %v5354
    %v5439 = vadd.f32 %v4609, %v5437
    %v5440 = vadd.f32 %v4610, %v5438
    %v5441 = vtanh.pop %v5439
    %v5442 = vtanh.pop %v5440
    %v5443 = vsub.f32 1.0, %v5421
    %v5444 = vsub.f32 1.0, %v5436
    %v5445 = vmul.f32 %v5443, %v5441
    %v5446 = vmul.f32 %v5444, %v5442
    %v5447 = vmul.f32 %v5421, 0.0
    %v5448 = vmul.f32 %v5436, 0.0
    %v5449 = vadd.f32 %v5445, %v5447
    %v5450 = vadd.f32 %v5446, %v5448
    %v5451 = vld [vmem:[#allocation2 + $0x30] sm:$0xff]
    %v5452 = vld [vmem:[#allocation2 + $0x38] sm:$0xff]
    %v5453 = vld [vmem:[#allocation2 + $0x40] sm:$0xff]
    %v5454 = vld [vmem:[#allocation2 + $0x48] sm:$0xff]
    %v5455 = vld [vmem:[#allocation2 + $0x50] sm:$0xff]
    %v5456 = vld [vmem:[#allocation2 + $0x58] sm:$0xff]
    %v5457 = vpack.c.bf16 %v5449, %v5449
    %v5458 = vpack.c.bf16 %v5450, %v5450
    %5459 = vmatpush.bf16.msra.mxu0 %v5051
    %5460 = vmatpush.bf16.msra.mxu0 %v5045
    %5461 = vmatpush.bf16.msra.mxu0 %v5039
    %5462 = vmatpush.bf16.msra.mxu0 %v5033
    %5463 = vmatpush.bf16.msra.mxu0 %v5027
    %5464 = vmatpush.bf16.msra.mxu0 %v5021
    %5465 = vmatpush.bf16.msra.mxu0 %v5015
    %5466 = vmatpush.bf16.msra.mxu0 %v5009
    %5467 = vmatmul.bf16.gmra.mxu0 %v5457
    %v5468 = vpop.f32.mrf.mxu0
    %v5469 = vadd.f32 %v4709, %v5468
    %v5470 = vpop.f32.mrf.mxu0
    %5471 = vdwg.mxu0
    %5472 = vmatpush.bf16.msra.mxu0 %v5099
    %5473 = vmatpush.bf16.msra.mxu0 %v5093
    %5474 = vmatpush.bf16.msra.mxu0 %v5087
    %5475 = vmatpush.bf16.msra.mxu0 %v5081
    %5476 = vmatpush.bf16.msra.mxu0 %v5075
    %5477 = vmatpush.bf16.msra.mxu0 %v5069
    %5478 = vmatpush.bf16.msra.mxu0 %v5063
    %5479 = vmatpush.bf16.msra.mxu0 %v5057
    %5480 = vmatmul.bf16.gmra.mxu0 %v5458
    %v5481 = vpop.f32.mrf.mxu0
    %v5482 = vadd.f32 %v5469, %v5481
    %v5483 = vpop.f32.mrf.mxu0
    %5484 = vdwg.mxu0
    %5485 = vmatpush.bf16.msra.mxu0 %v5052
    %5486 = vmatpush.bf16.msra.mxu0 %v5046
    %5487 = vmatpush.bf16.msra.mxu0 %v5040
    %5488 = vmatpush.bf16.msra.mxu0 %v5034
    %5489 = vmatpush.bf16.msra.mxu0 %v5028
    %5490 = vmatpush.bf16.msra.mxu0 %v5022
    %5491 = vmatpush.bf16.msra.mxu0 %v5016
    %5492 = vmatpush.bf16.msra.mxu0 %v5010
    %5493 = vmatmul.bf16.gmra.mxu0 %v5457
    %v5494 = vpop.f32.mrf.mxu0
    %v5495 = vadd.f32 %v4710, %v5494
    %v5496 = vpop.f32.mrf.mxu0
    %5497 = vdwg.mxu0
    %5498 = vmatpush.bf16.msra.mxu0 %v5100
    %5499 = vmatpush.bf16.msra.mxu0 %v5094
    %5500 = vmatpush.bf16.msra.mxu0 %v5088
    %5501 = vmatpush.bf16.msra.mxu0 %v5082
    %5502 = vmatpush.bf16.msra.mxu0 %v5076
    %5503 = vmatpush.bf16.msra.mxu0 %v5070
    %5504 = vmatpush.bf16.msra.mxu0 %v5064
    %5505 = vmatpush.bf16.msra.mxu0 %v5058
    %5506 = vmatmul.bf16.gmra.mxu0 %v5458
    %v5507 = vpop.f32.mrf.mxu0
    %v5508 = vadd.f32 %v5495, %v5507
    %v5509 = vpop.f32.mrf.mxu0
    %5510 = vdwg.mxu0
    %5511 = vmatpush.bf16.msra.mxu0 %v5053
    %5512 = vmatpush.bf16.msra.mxu0 %v5047
    %5513 = vmatpush.bf16.msra.mxu0 %v5041
    %5514 = vmatpush.bf16.msra.mxu0 %v5035
    %5515 = vmatpush.bf16.msra.mxu0 %v5029
    %5516 = vmatpush.bf16.msra.mxu0 %v5023
    %5517 = vmatpush.bf16.msra.mxu0 %v5017
    %5518 = vmatpush.bf16.msra.mxu0 %v5011
    %5519 = vmatmul.bf16.gmra.mxu0 %v5457
    %v5520 = vpop.f32.mrf.mxu0
    %v5521 = vadd.f32 %v4711, %v5520
    %v5522 = vpop.f32.mrf.mxu0
    %5523 = vdwg.mxu0
    %5524 = vmatpush.bf16.msra.mxu0 %v5101
    %5525 = vmatpush.bf16.msra.mxu0 %v5095
    %5526 = vmatpush.bf16.msra.mxu0 %v5089
    %5527 = vmatpush.bf16.msra.mxu0 %v5083
    %5528 = vmatpush.bf16.msra.mxu0 %v5077
    %5529 = vmatpush.bf16.msra.mxu0 %v5071
    %5530 = vmatpush.bf16.msra.mxu0 %v5065
    %5531 = vmatpush.bf16.msra.mxu0 %v5059
    %5532 = vmatmul.bf16.gmra.mxu0 %v5458
    %v5533 = vpop.f32.mrf.mxu0
    %v5534 = vadd.f32 %v5521, %v5533
    %v5535 = vpop.f32.mrf.mxu0
    %5536 = vdwg.mxu0
    %5537 = vmatpush.bf16.msra.mxu0 %v5054
    %5538 = vmatpush.bf16.msra.mxu0 %v5048
    %5539 = vmatpush.bf16.msra.mxu0 %v5042
    %5540 = vmatpush.bf16.msra.mxu0 %v5036
    %5541 = vmatpush.bf16.msra.mxu0 %v5030
    %5542 = vmatpush.bf16.msra.mxu0 %v5024
    %5543 = vmatpush.bf16.msra.mxu0 %v5018
    %5544 = vmatpush.bf16.msra.mxu0 %v5012
    %5545 = vmatmul.bf16.gmra.mxu0 %v5457
    %v5546 = vpop.f32.mrf.mxu0
    %v5547 = vadd.f32 %v4712, %v5546
    %v5548 = vpop.f32.mrf.mxu0
    %5549 = vdwg.mxu0
    %5550 = vmatpush.bf16.msra.mxu0 %v5102
    %5551 = vmatpush.bf16.msra.mxu0 %v5096
    %5552 = vmatpush.bf16.msra.mxu0 %v5090
    %5553 = vmatpush.bf16.msra.mxu0 %v5084
    %5554 = vmatpush.bf16.msra.mxu0 %v5078
    %5555 = vmatpush.bf16.msra.mxu0 %v5072
    %5556 = vmatpush.bf16.msra.mxu0 %v5066
    %5557 = vmatpush.bf16.msra.mxu0 %v5060
    %5558 = vmatmul.bf16.gmra.mxu0 %v5458
    %v5559 = vpop.f32.mrf.mxu0
    %v5560 = vadd.f32 %v5547, %v5559
    %v5561 = vpop.f32.mrf.mxu0
    %5562 = vdwg.mxu0
    %5563 = vmatpush.bf16.msra.mxu0 %v5055
    %5564 = vmatpush.bf16.msra.mxu0 %v5049
    %5565 = vmatpush.bf16.msra.mxu0 %v5043
    %5566 = vmatpush.bf16.msra.mxu0 %v5037
    %5567 = vmatpush.bf16.msra.mxu0 %v5031
    %5568 = vmatpush.bf16.msra.mxu0 %v5025
    %5569 = vmatpush.bf16.msra.mxu0 %v5019
    %5570 = vmatpush.bf16.msra.mxu0 %v5013
    %5571 = vmatmul.bf16.gmra.mxu0 %v5457
    %v5572 = vpop.f32.mrf.mxu0
    %v5573 = vadd.f32 %v4713, %v5572
    %v5574 = vpop.f32.mrf.mxu0
    %5575 = vdwg.mxu0
    %5576 = vmatpush.bf16.msra.mxu0 %v5103
    %5577 = vmatpush.bf16.msra.mxu0 %v5097
    %5578 = vmatpush.bf16.msra.mxu0 %v5091
    %5579 = vmatpush.bf16.msra.mxu0 %v5085
    %5580 = vmatpush.bf16.msra.mxu0 %v5079
    %5581 = vmatpush.bf16.msra.mxu0 %v5073
    %5582 = vmatpush.bf16.msra.mxu0 %v5067
    %5583 = vmatpush.bf16.msra.mxu0 %v5061
    %5584 = vmatmul.bf16.gmra.mxu0 %v5458
    %v5585 = vpop.f32.mrf.mxu0
    %v5586 = vadd.f32 %v5573, %v5585
    %v5587 = vpop.f32.mrf.mxu0
    %5588 = vdwg.mxu0
    %5589 = vmatpush.bf16.msra.mxu0 %v5056
    %5590 = vmatpush.bf16.msra.mxu0 %v5050
    %5591 = vmatpush.bf16.msra.mxu0 %v5044
    %5592 = vmatpush.bf16.msra.mxu0 %v5038
    %5593 = vmatpush.bf16.msra.mxu0 %v5032
    %5594 = vmatpush.bf16.msra.mxu0 %v5026
    %5595 = vmatpush.bf16.msra.mxu0 %v5020
    %5596 = vmatpush.bf16.msra.mxu0 %v5014
    %5597 = vmatmul.bf16.gmra.mxu0 %v5457
    %v5598 = vpop.f32.mrf.mxu0
    %v5599 = vadd.f32 %v4714, %v5598
    %v5600 = vpop.f32.mrf.mxu0
    %5601 = vdwg.mxu0
    %5602 = vmatpush.bf16.msra.mxu0 %v5104
    %5603 = vmatpush.bf16.msra.mxu0 %v5098
    %5604 = vmatpush.bf16.msra.mxu0 %v5092
    %5605 = vmatpush.bf16.msra.mxu0 %v5086
    %5606 = vmatpush.bf16.msra.mxu0 %v5080
    %5607 = vmatpush.bf16.msra.mxu0 %v5074
    %5608 = vmatpush.bf16.msra.mxu0 %v5068
    %5609 = vmatpush.bf16.msra.mxu0 %v5062
    %5610 = vmatmul.bf16.gmra.mxu0 %v5458
    %v5611 = vpop.f32.mrf.mxu0
    %v5612 = vadd.f32 %v5599, %v5611
    %v5613 = vpop.f32.mrf.mxu0
    %5614 = vdwg.mxu0
    %v5615 = vadd.f32 %v5451, %v5482
    %v5616 = vadd.f32 %v5452, %v5508
    %v5617 = vxor.u32 %v5615, 2147483648
    %v5618 = vxor.u32 %v5616, 2147483648
    %v5619 = vmul.f32 %v5617, 1.442695
    %v5620 = vpow.pop %v5619
    %v5621 = vmul.f32 %v5618, 1.442695
    %v5622 = vpow.pop %v5621
    %v5623 = vadd.f32 %v5620, 1.0
    %v5624 = vadd.f32 %v5622, 1.0
    %v5625 = vrcp.pop %v5623
    %v5626 = vmul.f32 %v5623, %v5625
    %v5627 = vsub.f32 1.0, %v5626
    %v5628 = vmul.f32 %v5625, %v5627
    %v5629 = vadd.f32 %v5625, %v5628
    %vm5630 = vweird.f32 %v5623
    %vm5631 = vweird.f32 %v5625
    %vm5632 = vmor %vm5630, %vm5631
    %v5633 = vsel %vm5632, %v5625, %v5629
    %v5634 = vand.u32 2147483647, %v5623
    %vm5635 = vcmp.eq.f32.partialorder %v5634, 8.507059e+37
    %v5636 = vand.u32 %v5623, 2147483648
    %v5637 = vor.u32 1.1754944e-38, %v5636
    %v5638 = vsel %vm5635, %v5637, %v5633
    %v5639 = vmul.f32 1.0, %v5638
    %v5640 = vrcp.pop %v5624
    %v5641 = vmul.f32 %v5624, %v5640
    %v5642 = vsub.f32 1.0, %v5641
    %v5643 = vmul.f32 %v5640, %v5642
    %v5644 = vadd.f32 %v5640, %v5643
    %vm5645 = vweird.f32 %v5624
    %vm5646 = vweird.f32 %v5640
    %vm5647 = vmor %vm5645, %vm5646
    %v5648 = vsel %vm5647, %v5640, %v5644
    %v5649 = vand.u32 2147483647, %v5624
    %vm5650 = vcmp.eq.f32.partialorder %v5649, 8.507059e+37
    %v5651 = vand.u32 %v5624, 2147483648
    %v5652 = vor.u32 1.1754944e-38, %v5651
    %v5653 = vsel %vm5650, %v5652, %v5648
    %v5654 = vmul.f32 1.0, %v5653
    %v5655 = vadd.f32 %v5453, %v5534
    %v5656 = vadd.f32 %v5454, %v5560
    %v5657 = vxor.u32 %v5655, 2147483648
    %v5658 = vxor.u32 %v5656, 2147483648
    %v5659 = vmul.f32 %v5657, 1.442695
    %v5660 = vpow.pop %v5659
    %v5661 = vmul.f32 %v5658, 1.442695
    %v5662 = vpow.pop %v5661
    %v5663 = vadd.f32 %v5660, 1.0
    %v5664 = vadd.f32 %v5662, 1.0
    %v5665 = vrcp.pop %v5663
    %v5666 = vmul.f32 %v5663, %v5665
    %v5667 = vsub.f32 1.0, %v5666
    %v5668 = vmul.f32 %v5665, %v5667
    %v5669 = vadd.f32 %v5665, %v5668
    %vm5670 = vweird.f32 %v5663
    %vm5671 = vweird.f32 %v5665
    %vm5672 = vmor %vm5670, %vm5671
    %v5673 = vsel %vm5672, %v5665, %v5669
    %v5674 = vand.u32 2147483647, %v5663
    %vm5675 = vcmp.eq.f32.partialorder %v5674, 8.507059e+37
    %v5676 = vand.u32 %v5663, 2147483648
    %v5677 = vor.u32 1.1754944e-38, %v5676
    %v5678 = vsel %vm5675, %v5677, %v5673
    %v5679 = vmul.f32 1.0, %v5678
    %v5680 = vrcp.pop %v5664
    %v5681 = vmul.f32 %v5664, %v5680
    %v5682 = vsub.f32 1.0, %v5681
    %v5683 = vmul.f32 %v5680, %v5682
    %v5684 = vadd.f32 %v5680, %v5683
    %vm5685 = vweird.f32 %v5664
    %vm5686 = vweird.f32 %v5680
    %vm5687 = vmor %vm5685, %vm5686
    %v5688 = vsel %vm5687, %v5680, %v5684
    %v5689 = vand.u32 2147483647, %v5664
    %vm5690 = vcmp.eq.f32.partialorder %v5689, 8.507059e+37
    %v5691 = vand.u32 %v5664, 2147483648
    %v5692 = vor.u32 1.1754944e-38, %v5691
    %v5693 = vsel %vm5690, %v5692, %v5688
    %v5694 = vmul.f32 1.0, %v5693
    %v5695 = vmul.f32 %v5639, %v5586
    %v5696 = vmul.f32 %v5654, %v5612
    %v5697 = vadd.f32 %v5455, %v5695
    %v5698 = vadd.f32 %v5456, %v5696
    %v5699 = vtanh.pop %v5697
    %v5700 = vtanh.pop %v5698
    %v5701 = vsub.f32 1.0, %v5679
    %v5702 = vsub.f32 1.0, %v5694
    %v5703 = vmul.f32 %v5701, %v5699
    %v5704 = vmul.f32 %v5702, %v5700
    %v5705 = vmul.f32 %v5679, %v5449
    %v5706 = vmul.f32 %v5694, %v5450
    %v5707 = vadd.f32 %v5703, %v5705
    %v5708 = vadd.f32 %v5704, %v5706
    %v5709 = vld [vmem:[#allocation2 + $0x60] sm:$0xff]
    %v5710 = vld [vmem:[#allocation2 + $0x68] sm:$0xff]
    %v5711 = vld [vmem:[#allocation2 + $0x70] sm:$0xff]
    %v5712 = vld [vmem:[#allocation2 + $0x78] sm:$0xff]
    %v5713 = vld [vmem:[#allocation2 + $0x80] sm:$0xff]
    %v5714 = vld [vmem:[#allocation2 + $0x88] sm:$0xff]
    %v5715 = vpack.c.bf16 %v5707, %v5707
    %v5716 = vpack.c.bf16 %v5708, %v5708
    %5717 = vmatpush.bf16.msra.mxu0 %v5051
    %5718 = vmatpush.bf16.msra.mxu0 %v5045
    %5719 = vmatpush.bf16.msra.mxu0 %v5039
    %5720 = vmatpush.bf16.msra.mxu0 %v5033
    %5721 = vmatpush.bf16.msra.mxu0 %v5027
    %5722 = vmatpush.bf16.msra.mxu0 %v5021
    %5723 = vmatpush.bf16.msra.mxu0 %v5015
    %5724 = vmatpush.bf16.msra.mxu0 %v5009
    %5725 = vmatmul.bf16.gmra.mxu0 %v5715
    %v5726 = vpop.f32.mrf.mxu0
    %v5727 = vadd.f32 %v4709, %v5726
    %v5728 = vpop.f32.mrf.mxu0
    %5729 = vdwg.mxu0
    %5730 = vmatpush.bf16.msra.mxu0 %v5099
    %5731 = vmatpush.bf16.msra.mxu0 %v5093
    %5732 = vmatpush.bf16.msra.mxu0 %v5087
    %5733 = vmatpush.bf16.msra.mxu0 %v5081
    %5734 = vmatpush.bf16.msra.mxu0 %v5075
    %5735 = vmatpush.bf16.msra.mxu0 %v5069
    %5736 = vmatpush.bf16.msra.mxu0 %v5063
    %5737 = vmatpush.bf16.msra.mxu0 %v5057
    %5738 = vmatmul.bf16.gmra.mxu0 %v5716
    %v5739 = vpop.f32.mrf.mxu0
    %v5740 = vadd.f32 %v5727, %v5739
    %v5741 = vpop.f32.mrf.mxu0
    %5742 = vdwg.mxu0
    %5743 = vmatpush.bf16.msra.mxu0 %v5052
    %5744 = vmatpush.bf16.msra.mxu0 %v5046
    %5745 = vmatpush.bf16.msra.mxu0 %v5040
    %5746 = vmatpush.bf16.msra.mxu0 %v5034
    %5747 = vmatpush.bf16.msra.mxu0 %v5028
    %5748 = vmatpush.bf16.msra.mxu0 %v5022
    %5749 = vmatpush.bf16.msra.mxu0 %v5016
    %5750 = vmatpush.bf16.msra.mxu0 %v5010
    %5751 = vmatmul.bf16.gmra.mxu0 %v5715
    %v5752 = vpop.f32.mrf.mxu0
    %v5753 = vadd.f32 %v4710, %v5752
    %v5754 = vpop.f32.mrf.mxu0
    %5755 = vdwg.mxu0
    %5756 = vmatpush.bf16.msra.mxu0 %v5100
    %5757 = vmatpush.bf16.msra.mxu0 %v5094
    %5758 = vmatpush.bf16.msra.mxu0 %v5088
    %5759 = vmatpush.bf16.msra.mxu0 %v5082
    %5760 = vmatpush.bf16.msra.mxu0 %v5076
    %5761 = vmatpush.bf16.msra.mxu0 %v5070
    %5762 = vmatpush.bf16.msra.mxu0 %v5064
    %5763 = vmatpush.bf16.msra.mxu0 %v5058
    %5764 = vmatmul.bf16.gmra.mxu0 %v5716
    %v5765 = vpop.f32.mrf.mxu0
    %v5766 = vadd.f32 %v5753, %v5765
    %v5767 = vpop.f32.mrf.mxu0
    %5768 = vdwg.mxu0
    %5769 = vmatpush.bf16.msra.mxu0 %v5053
    %5770 = vmatpush.bf16.msra.mxu0 %v5047
    %5771 = vmatpush.bf16.msra.mxu0 %v5041
    %5772 = vmatpush.bf16.msra.mxu0 %v5035
    %5773 = vmatpush.bf16.msra.mxu0 %v5029
    %5774 = vmatpush.bf16.msra.mxu0 %v5023
    %5775 = vmatpush.bf16.msra.mxu0 %v5017
    %5776 = vmatpush.bf16.msra.mxu0 %v5011
    %5777 = vmatmul.bf16.gmra.mxu0 %v5715
    %v5778 = vpop.f32.mrf.mxu0
    %v5779 = vadd.f32 %v4711, %v5778
    %v5780 = vpop.f32.mrf.mxu0
    %5781 = vdwg.mxu0
    %5782 = vmatpush.bf16.msra.mxu0 %v5101
    %5783 = vmatpush.bf16.msra.mxu0 %v5095
    %5784 = vmatpush.bf16.msra.mxu0 %v5089
    %5785 = vmatpush.bf16.msra.mxu0 %v5083
    %5786 = vmatpush.bf16.msra.mxu0 %v5077
    %5787 = vmatpush.bf16.msra.mxu0 %v5071
    %5788 = vmatpush.bf16.msra.mxu0 %v5065
    %5789 = vmatpush.bf16.msra.mxu0 %v5059
    %5790 = vmatmul.bf16.gmra.mxu0 %v5716
    %v5791 = vpop.f32.mrf.mxu0
    %v5792 = vadd.f32 %v5779, %v5791
    %v5793 = vpop.f32.mrf.mxu0
    %5794 = vdwg.mxu0
    %5795 = vmatpush.bf16.msra.mxu0 %v5054
    %5796 = vmatpush.bf16.msra.mxu0 %v5048
    %5797 = vmatpush.bf16.msra.mxu0 %v5042
    %5798 = vmatpush.bf16.msra.mxu0 %v5036
    %5799 = vmatpush.bf16.msra.mxu0 %v5030
    %5800 = vmatpush.bf16.msra.mxu0 %v5024
    %5801 = vmatpush.bf16.msra.mxu0 %v5018
    %5802 = vmatpush.bf16.msra.mxu0 %v5012
    %5803 = vmatmul.bf16.gmra.mxu0 %v5715
    %v5804 = vpop.f32.mrf.mxu0
    %v5805 = vadd.f32 %v4712, %v5804
    %v5806 = vpop.f32.mrf.mxu0
    %5807 = vdwg.mxu0
    %5808 = vmatpush.bf16.msra.mxu0 %v5102
    %5809 = vmatpush.bf16.msra.mxu0 %v5096
    %5810 = vmatpush.bf16.msra.mxu0 %v5090
    %5811 = vmatpush.bf16.msra.mxu0 %v5084
    %5812 = vmatpush.bf16.msra.mxu0 %v5078
    %5813 = vmatpush.bf16.msra.mxu0 %v5072
    %5814 = vmatpush.bf16.msra.mxu0 %v5066
    %5815 = vmatpush.bf16.msra.mxu0 %v5060
    %5816 = vmatmul.bf16.gmra.mxu0 %v5716
    %v5817 = vpop.f32.mrf.mxu0
    %v5818 = vadd.f32 %v5805, %v5817
    %v5819 = vpop.f32.mrf.mxu0
    %5820 = vdwg.mxu0
    %5821 = vmatpush.bf16.msra.mxu0 %v5055
    %5822 = vmatpush.bf16.msra.mxu0 %v5049
    %5823 = vmatpush.bf16.msra.mxu0 %v5043
    %5824 = vmatpush.bf16.msra.mxu0 %v5037
    %5825 = vmatpush.bf16.msra.mxu0 %v5031
    %5826 = vmatpush.bf16.msra.mxu0 %v5025
    %5827 = vmatpush.bf16.msra.mxu0 %v5019
    %5828 = vmatpush.bf16.msra.mxu0 %v5013
    %5829 = vmatmul.bf16.gmra.mxu0 %v5715
    %v5830 = vpop.f32.mrf.mxu0
    %v5831 = vadd.f32 %v4713, %v5830
    %v5832 = vpop.f32.mrf.mxu0
    %5833 = vdwg.mxu0
    %5834 = vmatpush.bf16.msra.mxu0 %v5103
    %5835 = vmatpush.bf16.msra.mxu0 %v5097
    %5836 = vmatpush.bf16.msra.mxu0 %v5091
    %5837 = vmatpush.bf16.msra.mxu0 %v5085
    %5838 = vmatpush.bf16.msra.mxu0 %v5079
    %5839 = vmatpush.bf16.msra.mxu0 %v5073
    %5840 = vmatpush.bf16.msra.mxu0 %v5067
    %5841 = vmatpush.bf16.msra.mxu0 %v5061
    %5842 = vmatmul.bf16.gmra.mxu0 %v5716
    %v5843 = vpop.f32.mrf.mxu0
    %v5844 = vadd.f32 %v5831, %v5843
    %v5845 = vpop.f32.mrf.mxu0
    %5846 = vdwg.mxu0
    %5847 = vmatpush.bf16.msra.mxu0 %v5056
    %5848 = vmatpush.bf16.msra.mxu0 %v5050
    %5849 = vmatpush.bf16.msra.mxu0 %v5044
    %5850 = vmatpush.bf16.msra.mxu0 %v5038
    %5851 = vmatpush.bf16.msra.mxu0 %v5032
    %5852 = vmatpush.bf16.msra.mxu0 %v5026
    %5853 = vmatpush.bf16.msra.mxu0 %v5020
    %5854 = vmatpush.bf16.msra.mxu0 %v5014
    %5855 = vmatmul.bf16.gmra.mxu0 %v5715
    %v5856 = vpop.f32.mrf.mxu0
    %v5857 = vadd.f32 %v4714, %v5856
    %v5858 = vpop.f32.mrf.mxu0
    %5859 = vdwg.mxu0
    %5860 = vmatpush.bf16.msra.mxu0 %v5104
    %5861 = vmatpush.bf16.msra.mxu0 %v5098
    %5862 = vmatpush.bf16.msra.mxu0 %v5092
    %5863 = vmatpush.bf16.msra.mxu0 %v5086
    %5864 = vmatpush.bf16.msra.mxu0 %v5080
    %5865 = vmatpush.bf16.msra.mxu0 %v5074
    %5866 = vmatpush.bf16.msra.mxu0 %v5068
    %5867 = vmatpush.bf16.msra.mxu0 %v5062
    %5868 = vmatmul.bf16.gmra.mxu0 %v5716
    %v5869 = vpop.f32.mrf.mxu0
    %v5870 = vadd.f32 %v5857, %v5869
    %v5871 = vpop.f32.mrf.mxu0
    %5872 = vdwg.mxu0
    %v5873 = vadd.f32 %v5709, %v5740
    %v5874 = vadd.f32 %v5710, %v5766
    %v5875 = vxor.u32 %v5873, 2147483648
    %v5876 = vxor.u32 %v5874, 2147483648
    %v5877 = vmul.f32 %v5875, 1.442695
    %v5878 = vpow.pop %v5877
    %v5879 = vmul.f32 %v5876, 1.442695
    %v5880 = vpow.pop %v5879
    %v5881 = vadd.f32 %v5878, 1.0
    %v5882 = vadd.f32 %v5880, 1.0
    %v5883 = vrcp.pop %v5881
    %v5884 = vmul.f32 %v5881, %v5883
    %v5885 = vsub.f32 1.0, %v5884
    %v5886 = vmul.f32 %v5883, %v5885
    %v5887 = vadd.f32 %v5883, %v5886
    %vm5888 = vweird.f32 %v5881
    %vm5889 = vweird.f32 %v5883
    %vm5890 = vmor %vm5888, %vm5889
    %v5891 = vsel %vm5890, %v5883, %v5887
    %v5892 = vand.u32 2147483647, %v5881
    %vm5893 = vcmp.eq.f32.partialorder %v5892, 8.507059e+37
    %v5894 = vand.u32 %v5881, 2147483648
    %v5895 = vor.u32 1.1754944e-38, %v5894
    %v5896 = vsel %vm5893, %v5895, %v5891
    %v5897 = vmul.f32 1.0, %v5896
    %v5898 = vrcp.pop %v5882
    %v5899 = vmul.f32 %v5882, %v5898
    %v5900 = vsub.f32 1.0, %v5899
    %v5901 = vmul.f32 %v5898, %v5900
    %v5902 = vadd.f32 %v5898, %v5901
    %vm5903 = vweird.f32 %v5882
    %vm5904 = vweird.f32 %v5898
    %vm5905 = vmor %vm5903, %vm5904
    %v5906 = vsel %vm5905, %v5898, %v5902
    %v5907 = vand.u32 2147483647, %v5882
    %vm5908 = vcmp.eq.f32.partialorder %v5907, 8.507059e+37
    %v5909 = vand.u32 %v5882, 2147483648
    %v5910 = vor.u32 1.1754944e-38, %v5909
    %v5911 = vsel %vm5908, %v5910, %v5906
    %v5912 = vmul.f32 1.0, %v5911
    %v5913 = vadd.f32 %v5711, %v5792
    %v5914 = vadd.f32 %v5712, %v5818
    %v5915 = vxor.u32 %v5913, 2147483648
    %v5916 = vxor.u32 %v5914, 2147483648
    %v5917 = vmul.f32 %v5915, 1.442695
    %v5918 = vpow.pop %v5917
    %v5919 = vmul.f32 %v5916, 1.442695
    %v5920 = vpow.pop %v5919
    %v5921 = vadd.f32 %v5918, 1.0
    %v5922 = vadd.f32 %v5920, 1.0
    %v5923 = vrcp.pop %v5921
    %v5924 = vmul.f32 %v5921, %v5923
    %v5925 = vsub.f32 1.0, %v5924
    %v5926 = vmul.f32 %v5923, %v5925
    %v5927 = vadd.f32 %v5923, %v5926
    %vm5928 = vweird.f32 %v5921
    %vm5929 = vweird.f32 %v5923
    %vm5930 = vmor %vm5928, %vm5929
    %v5931 = vsel %vm5930, %v5923, %v5927
    %v5932 = vand.u32 2147483647, %v5921
    %vm5933 = vcmp.eq.f32.partialorder %v5932, 8.507059e+37
    %v5934 = vand.u32 %v5921, 2147483648
    %v5935 = vor.u32 1.1754944e-38, %v5934
    %v5936 = vsel %vm5933, %v5935, %v5931
    %v5937 = vmul.f32 1.0, %v5936
    %v5938 = vrcp.pop %v5922
    %v5939 = vmul.f32 %v5922, %v5938
    %v5940 = vsub.f32 1.0, %v5939
    %v5941 = vmul.f32 %v5938, %v5940
    %v5942 = vadd.f32 %v5938, %v5941
    %vm5943 = vweird.f32 %v5922
    %vm5944 = vweird.f32 %v5938
    %vm5945 = vmor %vm5943, %vm5944
    %v5946 = vsel %vm5945, %v5938, %v5942
    %v5947 = vand.u32 2147483647, %v5922
    %vm5948 = vcmp.eq.f32.partialorder %v5947, 8.507059e+37
    %v5949 = vand.u32 %v5922, 2147483648
    %v5950 = vor.u32 1.1754944e-38, %v5949
    %v5951 = vsel %vm5948, %v5950, %v5946
    %v5952 = vmul.f32 1.0, %v5951
    %v5953 = vmul.f32 %v5897, %v5844
    %v5954 = vmul.f32 %v5912, %v5870
    %v5955 = vadd.f32 %v5713, %v5953
    %v5956 = vadd.f32 %v5714, %v5954
    %v5957 = vtanh.pop %v5955
    %v5958 = vtanh.pop %v5956
    %v5959 = vsub.f32 1.0, %v5937
    %v5960 = vsub.f32 1.0, %v5952
    %v5961 = vmul.f32 %v5959, %v5957
    %v5962 = vmul.f32 %v5960, %v5958
    %v5963 = vmul.f32 %v5937, %v5707
    %v5964 = vmul.f32 %v5952, %v5708
    %v5965 = vadd.f32 %v5961, %v5963
    %v5966 = vadd.f32 %v5962, %v5964
    %v5967 = vld [vmem:[#allocation2 + $0x90] sm:$0xff]
    %v5968 = vld [vmem:[#allocation2 + $0x98] sm:$0xff]
    %v5969 = vld [vmem:[#allocation2 + $0xa0] sm:$0xff]
    %v5970 = vld [vmem:[#allocation2 + $0xa8] sm:$0xff]
    %v5971 = vld [vmem:[#allocation2 + $0xb0] sm:$0xff]
    %v5972 = vld [vmem:[#allocation2 + $0xb8] sm:$0xff]
    %v5973 = vpack.c.bf16 %v5965, %v5965
    %v5974 = vpack.c.bf16 %v5966, %v5966
    %5975 = vmatpush.bf16.msra.mxu0 %v5051
    %5976 = vmatpush.bf16.msra.mxu0 %v5045
    %5977 = vmatpush.bf16.msra.mxu0 %v5039
    %5978 = vmatpush.bf16.msra.mxu0 %v5033
    %5979 = vmatpush.bf16.msra.mxu0 %v5027
    %5980 = vmatpush.bf16.msra.mxu0 %v5021
    %5981 = vmatpush.bf16.msra.mxu0 %v5015
    %5982 = vmatpush.bf16.msra.mxu0 %v5009
    %5983 = vmatmul.bf16.gmra.mxu0 %v5973
    %v5984 = vpop.f32.mrf.mxu0
    %v5985 = vadd.f32 %v4709, %v5984
    %v5986 = vpop.f32.mrf.mxu0
    %5987 = vdwg.mxu0
    %5988 = vmatpush.bf16.msra.mxu0 %v5099
    %5989 = vmatpush.bf16.msra.mxu0 %v5093
    %5990 = vmatpush.bf16.msra.mxu0 %v5087
    %5991 = vmatpush.bf16.msra.mxu0 %v5081
    %5992 = vmatpush.bf16.msra.mxu0 %v5075
    %5993 = vmatpush.bf16.msra.mxu0 %v5069
    %5994 = vmatpush.bf16.msra.mxu0 %v5063
    %5995 = vmatpush.bf16.msra.mxu0 %v5057
    %5996 = vmatmul.bf16.gmra.mxu0 %v5974
    %v5997 = vpop.f32.mrf.mxu0
    %v5998 = vadd.f32 %v5985, %v5997
    %v5999 = vpop.f32.mrf.mxu0
    %6000 = vdwg.mxu0
    %6001 = vmatpush.bf16.msra.mxu0 %v5052
    %6002 = vmatpush.bf16.msra.mxu0 %v5046
    %6003 = vmatpush.bf16.msra.mxu0 %v5040
    %6004 = vmatpush.bf16.msra.mxu0 %v5034
    %6005 = vmatpush.bf16.msra.mxu0 %v5028
    %6006 = vmatpush.bf16.msra.mxu0 %v5022
    %6007 = vmatpush.bf16.msra.mxu0 %v5016
    %6008 = vmatpush.bf16.msra.mxu0 %v5010
    %6009 = vmatmul.bf16.gmra.mxu0 %v5973
    %v6010 = vpop.f32.mrf.mxu0
    %v6011 = vadd.f32 %v4710, %v6010
    %v6012 = vpop.f32.mrf.mxu0
    %6013 = vdwg.mxu0
    %6014 = vmatpush.bf16.msra.mxu0 %v5100
    %6015 = vmatpush.bf16.msra.mxu0 %v5094
    %6016 = vmatpush.bf16.msra.mxu0 %v5088
    %6017 = vmatpush.bf16.msra.mxu0 %v5082
    %6018 = vmatpush.bf16.msra.mxu0 %v5076
    %6019 = vmatpush.bf16.msra.mxu0 %v5070
    %6020 = vmatpush.bf16.msra.mxu0 %v5064
    %6021 = vmatpush.bf16.msra.mxu0 %v5058
    %6022 = vmatmul.bf16.gmra.mxu0 %v5974
    %v6023 = vpop.f32.mrf.mxu0
    %v6024 = vadd.f32 %v6011, %v6023
    %v6025 = vpop.f32.mrf.mxu0
    %6026 = vdwg.mxu0
    %6027 = vmatpush.bf16.msra.mxu0 %v5053
    %6028 = vmatpush.bf16.msra.mxu0 %v5047
    %6029 = vmatpush.bf16.msra.mxu0 %v5041
    %6030 = vmatpush.bf16.msra.mxu0 %v5035
    %6031 = vmatpush.bf16.msra.mxu0 %v5029
    %6032 = vmatpush.bf16.msra.mxu0 %v5023
    %6033 = vmatpush.bf16.msra.mxu0 %v5017
    %6034 = vmatpush.bf16.msra.mxu0 %v5011
    %6035 = vmatmul.bf16.gmra.mxu0 %v5973
    %v6036 = vpop.f32.mrf.mxu0
    %v6037 = vadd.f32 %v4711, %v6036
    %v6038 = vpop.f32.mrf.mxu0
    %6039 = vdwg.mxu0
    %6040 = vmatpush.bf16.msra.mxu0 %v5101
    %6041 = vmatpush.bf16.msra.mxu0 %v5095
    %6042 = vmatpush.bf16.msra.mxu0 %v5089
    %6043 = vmatpush.bf16.msra.mxu0 %v5083
    %6044 = vmatpush.bf16.msra.mxu0 %v5077
    %6045 = vmatpush.bf16.msra.mxu0 %v5071
    %6046 = vmatpush.bf16.msra.mxu0 %v5065
    %6047 = vmatpush.bf16.msra.mxu0 %v5059
    %6048 = vmatmul.bf16.gmra.mxu0 %v5974
    %v6049 = vpop.f32.mrf.mxu0
    %v6050 = vadd.f32 %v6037, %v6049
    %v6051 = vpop.f32.mrf.mxu0
    %6052 = vdwg.mxu0
    %6053 = vmatpush.bf16.msra.mxu0 %v5054
    %6054 = vmatpush.bf16.msra.mxu0 %v5048
    %6055 = vmatpush.bf16.msra.mxu0 %v5042
    %6056 = vmatpush.bf16.msra.mxu0 %v5036
    %6057 = vmatpush.bf16.msra.mxu0 %v5030
    %6058 = vmatpush.bf16.msra.mxu0 %v5024
    %6059 = vmatpush.bf16.msra.mxu0 %v5018
    %6060 = vmatpush.bf16.msra.mxu0 %v5012
    %6061 = vmatmul.bf16.gmra.mxu0 %v5973
    %v6062 = vpop.f32.mrf.mxu0
    %v6063 = vadd.f32 %v4712, %v6062
    %v6064 = vpop.f32.mrf.mxu0
    %6065 = vdwg.mxu0
    %6066 = vmatpush.bf16.msra.mxu0 %v5102
    %6067 = vmatpush.bf16.msra.mxu0 %v5096
    %6068 = vmatpush.bf16.msra.mxu0 %v5090
    %6069 = vmatpush.bf16.msra.mxu0 %v5084
    %6070 = vmatpush.bf16.msra.mxu0 %v5078
    %6071 = vmatpush.bf16.msra.mxu0 %v5072
    %6072 = vmatpush.bf16.msra.mxu0 %v5066
    %6073 = vmatpush.bf16.msra.mxu0 %v5060
    %6074 = vmatmul.bf16.gmra.mxu0 %v5974
    %v6075 = vpop.f32.mrf.mxu0
    %v6076 = vadd.f32 %v6063, %v6075
    %v6077 = vpop.f32.mrf.mxu0
    %6078 = vdwg.mxu0
    %6079 = vmatpush.bf16.msra.mxu0 %v5055
    %6080 = vmatpush.bf16.msra.mxu0 %v5049
    %6081 = vmatpush.bf16.msra.mxu0 %v5043
    %6082 = vmatpush.bf16.msra.mxu0 %v5037
    %6083 = vmatpush.bf16.msra.mxu0 %v5031
    %6084 = vmatpush.bf16.msra.mxu0 %v5025
    %6085 = vmatpush.bf16.msra.mxu0 %v5019
    %6086 = vmatpush.bf16.msra.mxu0 %v5013
    %6087 = vmatmul.bf16.gmra.mxu0 %v5973
    %v6088 = vpop.f32.mrf.mxu0
    %v6089 = vadd.f32 %v4713, %v6088
    %v6090 = vpop.f32.mrf.mxu0
    %6091 = vdwg.mxu0
    %6092 = vmatpush.bf16.msra.mxu0 %v5103
    %6093 = vmatpush.bf16.msra.mxu0 %v5097
    %6094 = vmatpush.bf16.msra.mxu0 %v5091
    %6095 = vmatpush.bf16.msra.mxu0 %v5085
    %6096 = vmatpush.bf16.msra.mxu0 %v5079
    %6097 = vmatpush.bf16.msra.mxu0 %v5073
    %6098 = vmatpush.bf16.msra.mxu0 %v5067
    %6099 = vmatpush.bf16.msra.mxu0 %v5061
    %6100 = vmatmul.bf16.gmra.mxu0 %v5974
    %v6101 = vpop.f32.mrf.mxu0
    %v6102 = vadd.f32 %v6089, %v6101
    %v6103 = vpop.f32.mrf.mxu0
    %6104 = vdwg.mxu0
    %6105 = vmatpush.bf16.msra.mxu0 %v5056
    %6106 = vmatpush.bf16.msra.mxu0 %v5050
    %6107 = vmatpush.bf16.msra.mxu0 %v5044
    %6108 = vmatpush.bf16.msra.mxu0 %v5038
    %6109 = vmatpush.bf16.msra.mxu0 %v5032
    %6110 = vmatpush.bf16.msra.mxu0 %v5026
    %6111 = vmatpush.bf16.msra.mxu0 %v5020
    %6112 = vmatpush.bf16.msra.mxu0 %v5014
    %6113 = vmatmul.bf16.gmra.mxu0 %v5973
    %v6114 = vpop.f32.mrf.mxu0
    %v6115 = vadd.f32 %v4714, %v6114
    %v6116 = vpop.f32.mrf.mxu0
    %6117 = vdwg.mxu0
    %6118 = vmatpush.bf16.msra.mxu0 %v5104
    %6119 = vmatpush.bf16.msra.mxu0 %v5098
    %6120 = vmatpush.bf16.msra.mxu0 %v5092
    %6121 = vmatpush.bf16.msra.mxu0 %v5086
    %6122 = vmatpush.bf16.msra.mxu0 %v5080
    %6123 = vmatpush.bf16.msra.mxu0 %v5074
    %6124 = vmatpush.bf16.msra.mxu0 %v5068
    %6125 = vmatpush.bf16.msra.mxu0 %v5062
    %6126 = vmatmul.bf16.gmra.mxu0 %v5974
    %v6127 = vpop.f32.mrf.mxu0
    %v6128 = vadd.f32 %v6115, %v6127
    %v6129 = vpop.f32.mrf.mxu0
    %6130 = vdwg.mxu0
    %v6131 = vadd.f32 %v5967, %v5998
    %v6132 = vadd.f32 %v5968, %v6024
    %v6133 = vxor.u32 %v6131, 2147483648
    %v6134 = vxor.u32 %v6132, 2147483648
    %v6135 = vmul.f32 %v6133, 1.442695
    %v6136 = vpow.pop %v6135
    %v6137 = vmul.f32 %v6134, 1.442695
    %v6138 = vpow.pop %v6137
    %v6139 = vadd.f32 %v6136, 1.0
    %v6140 = vadd.f32 %v6138, 1.0
    %v6141 = vrcp.pop %v6139
    %v6142 = vmul.f32 %v6139, %v6141
    %v6143 = vsub.f32 1.0, %v6142
    %v6144 = vmul.f32 %v6141, %v6143
    %v6145 = vadd.f32 %v6141, %v6144
    %vm6146 = vweird.f32 %v6139
    %vm6147 = vweird.f32 %v6141
    %vm6148 = vmor %vm6146, %vm6147
    %v6149 = vsel %vm6148, %v6141, %v6145
    %v6150 = vand.u32 2147483647, %v6139
    %vm6151 = vcmp.eq.f32.partialorder %v6150, 8.507059e+37
    %v6152 = vand.u32 %v6139, 2147483648
    %v6153 = vor.u32 1.1754944e-38, %v6152
    %v6154 = vsel %vm6151, %v6153, %v6149
    %v6155 = vmul.f32 1.0, %v6154
    %v6156 = vrcp.pop %v6140
    %v6157 = vmul.f32 %v6140, %v6156
    %v6158 = vsub.f32 1.0, %v6157
    %v6159 = vmul.f32 %v6156, %v6158
    %v6160 = vadd.f32 %v6156, %v6159
    %vm6161 = vweird.f32 %v6140
    %vm6162 = vweird.f32 %v6156
    %vm6163 = vmor %vm6161, %vm6162
    %v6164 = vsel %vm6163, %v6156, %v6160
    %v6165 = vand.u32 2147483647, %v6140
    %vm6166 = vcmp.eq.f32.partialorder %v6165, 8.507059e+37
    %v6167 = vand.u32 %v6140, 2147483648
    %v6168 = vor.u32 1.1754944e-38, %v6167
    %v6169 = vsel %vm6166, %v6168, %v6164
    %v6170 = vmul.f32 1.0, %v6169
    %v6171 = vadd.f32 %v5969, %v6050
    %v6172 = vadd.f32 %v5970, %v6076
    %v6173 = vxor.u32 %v6171, 2147483648
    %v6174 = vxor.u32 %v6172, 2147483648
    %v6175 = vmul.f32 %v6173, 1.442695
    %v6176 = vpow.pop %v6175
    %v6177 = vmul.f32 %v6174, 1.442695
    %v6178 = vpow.pop %v6177
    %v6179 = vadd.f32 %v6176, 1.0
    %v6180 = vadd.f32 %v6178, 1.0
    %v6181 = vrcp.pop %v6179
    %v6182 = vmul.f32 %v6179, %v6181
    %v6183 = vsub.f32 1.0, %v6182
    %v6184 = vmul.f32 %v6181, %v6183
    %v6185 = vadd.f32 %v6181, %v6184
    %vm6186 = vweird.f32 %v6179
    %vm6187 = vweird.f32 %v6181
    %vm6188 = vmor %vm6186, %vm6187
    %v6189 = vsel %vm6188, %v6181, %v6185
    %v6190 = vand.u32 2147483647, %v6179
    %vm6191 = vcmp.eq.f32.partialorder %v6190, 8.507059e+37
    %v6192 = vand.u32 %v6179, 2147483648
    %v6193 = vor.u32 1.1754944e-38, %v6192
    %v6194 = vsel %vm6191, %v6193, %v6189
    %v6195 = vmul.f32 1.0, %v6194
    %v6196 = vrcp.pop %v6180
    %v6197 = vmul.f32 %v6180, %v6196
    %v6198 = vsub.f32 1.0, %v6197
    %v6199 = vmul.f32 %v6196, %v6198
    %v6200 = vadd.f32 %v6196, %v6199
    %vm6201 = vweird.f32 %v6180
    %vm6202 = vweird.f32 %v6196
    %vm6203 = vmor %vm6201, %vm6202
    %v6204 = vsel %vm6203, %v6196, %v6200
    %v6205 = vand.u32 2147483647, %v6180
    %vm6206 = vcmp.eq.f32.partialorder %v6205, 8.507059e+37
    %v6207 = vand.u32 %v6180, 2147483648
    %v6208 = vor.u32 1.1754944e-38, %v6207
    %v6209 = vsel %vm6206, %v6208, %v6204
    %v6210 = vmul.f32 1.0, %v6209
    %v6211 = vmul.f32 %v6155, %v6102
    %v6212 = vmul.f32 %v6170, %v6128
    %v6213 = vadd.f32 %v5971, %v6211
    %v6214 = vadd.f32 %v5972, %v6212
    %v6215 = vtanh.pop %v6213
    %v6216 = vtanh.pop %v6214
    %v6217 = vsub.f32 1.0, %v6195
    %v6218 = vsub.f32 1.0, %v6210
    %v6219 = vmul.f32 %v6217, %v6215
    %v6220 = vmul.f32 %v6218, %v6216
    %v6221 = vmul.f32 %v6195, %v5965
    %v6222 = vmul.f32 %v6210, %v5966
    %v6223 = vadd.f32 %v6219, %v6221
    %v6224 = vadd.f32 %v6220, %v6222
    %v6225 = vld [vmem:[#allocation2 + $0xc0] sm:$0xff]
    %v6226 = vld [vmem:[#allocation2 + $0xc8] sm:$0xff]
    %v6227 = vld [vmem:[#allocation2 + $0xd0] sm:$0xff]
    %v6228 = vld [vmem:[#allocation2 + $0xd8] sm:$0xff]
    %v6229 = vld [vmem:[#allocation2 + $0xe0] sm:$0xff]
    %v6230 = vld [vmem:[#allocation2 + $0xe8] sm:$0xff]
    %v6231 = vpack.c.bf16 %v6223, %v6223
    %v6232 = vpack.c.bf16 %v6224, %v6224
    %6233 = vmatpush.bf16.msra.mxu0 %v5051
    %6234 = vmatpush.bf16.msra.mxu0 %v5045
    %6235 = vmatpush.bf16.msra.mxu0 %v5039
    %6236 = vmatpush.bf16.msra.mxu0 %v5033
    %6237 = vmatpush.bf16.msra.mxu0 %v5027
    %6238 = vmatpush.bf16.msra.mxu0 %v5021
    %6239 = vmatpush.bf16.msra.mxu0 %v5015
    %6240 = vmatpush.bf16.msra.mxu0 %v5009
    %6241 = vmatmul.bf16.gmra.mxu0 %v6231
    %v6242 = vpop.f32.mrf.mxu0
    %v6243 = vadd.f32 %v4709, %v6242
    %v6244 = vpop.f32.mrf.mxu0
    %6245 = vdwg.mxu0
    %6246 = vmatpush.bf16.msra.mxu0 %v5099
    %6247 = vmatpush.bf16.msra.mxu0 %v5093
    %6248 = vmatpush.bf16.msra.mxu0 %v5087
    %6249 = vmatpush.bf16.msra.mxu0 %v5081
    %6250 = vmatpush.bf16.msra.mxu0 %v5075
    %6251 = vmatpush.bf16.msra.mxu0 %v5069
    %6252 = vmatpush.bf16.msra.mxu0 %v5063
    %6253 = vmatpush.bf16.msra.mxu0 %v5057
    %6254 = vmatmul.bf16.gmra.mxu0 %v6232
    %v6255 = vpop.f32.mrf.mxu0
    %v6256 = vadd.f32 %v6243, %v6255
    %v6257 = vpop.f32.mrf.mxu0
    %6258 = vdwg.mxu0
    %6259 = vmatpush.bf16.msra.mxu0 %v5052
    %6260 = vmatpush.bf16.msra.mxu0 %v5046
    %6261 = vmatpush.bf16.msra.mxu0 %v5040
    %6262 = vmatpush.bf16.msra.mxu0 %v5034
    %6263 = vmatpush.bf16.msra.mxu0 %v5028
    %6264 = vmatpush.bf16.msra.mxu0 %v5022
    %6265 = vmatpush.bf16.msra.mxu0 %v5016
    %6266 = vmatpush.bf16.msra.mxu0 %v5010
    %6267 = vmatmul.bf16.gmra.mxu0 %v6231
    %v6268 = vpop.f32.mrf.mxu0
    %v6269 = vadd.f32 %v4710, %v6268
    %v6270 = vpop.f32.mrf.mxu0
    %6271 = vdwg.mxu0
    %6272 = vmatpush.bf16.msra.mxu0 %v5100
    %6273 = vmatpush.bf16.msra.mxu0 %v5094
    %6274 = vmatpush.bf16.msra.mxu0 %v5088
    %6275 = vmatpush.bf16.msra.mxu0 %v5082
    %6276 = vmatpush.bf16.msra.mxu0 %v5076
    %6277 = vmatpush.bf16.msra.mxu0 %v5070
    %6278 = vmatpush.bf16.msra.mxu0 %v5064
    %6279 = vmatpush.bf16.msra.mxu0 %v5058
    %6280 = vmatmul.bf16.gmra.mxu0 %v6232
    %v6281 = vpop.f32.mrf.mxu0
    %v6282 = vadd.f32 %v6269, %v6281
    %v6283 = vpop.f32.mrf.mxu0
    %6284 = vdwg.mxu0
    %6285 = vmatpush.bf16.msra.mxu0 %v5053
    %6286 = vmatpush.bf16.msra.mxu0 %v5047
    %6287 = vmatpush.bf16.msra.mxu0 %v5041
    %6288 = vmatpush.bf16.msra.mxu0 %v5035
    %6289 = vmatpush.bf16.msra.mxu0 %v5029
    %6290 = vmatpush.bf16.msra.mxu0 %v5023
    %6291 = vmatpush.bf16.msra.mxu0 %v5017
    %6292 = vmatpush.bf16.msra.mxu0 %v5011
    %6293 = vmatmul.bf16.gmra.mxu0 %v6231
    %v6294 = vpop.f32.mrf.mxu0
    %v6295 = vadd.f32 %v4711, %v6294
    %v6296 = vpop.f32.mrf.mxu0
    %6297 = vdwg.mxu0
    %6298 = vmatpush.bf16.msra.mxu0 %v5101
    %6299 = vmatpush.bf16.msra.mxu0 %v5095
    %6300 = vmatpush.bf16.msra.mxu0 %v5089
    %6301 = vmatpush.bf16.msra.mxu0 %v5083
    %6302 = vmatpush.bf16.msra.mxu0 %v5077
    %6303 = vmatpush.bf16.msra.mxu0 %v5071
    %6304 = vmatpush.bf16.msra.mxu0 %v5065
    %6305 = vmatpush.bf16.msra.mxu0 %v5059
    %6306 = vmatmul.bf16.gmra.mxu0 %v6232
    %v6307 = vpop.f32.mrf.mxu0
    %v6308 = vadd.f32 %v6295, %v6307
    %v6309 = vpop.f32.mrf.mxu0
    %6310 = vdwg.mxu0
    %6311 = vmatpush.bf16.msra.mxu0 %v5054
    %6312 = vmatpush.bf16.msra.mxu0 %v5048
    %6313 = vmatpush.bf16.msra.mxu0 %v5042
    %6314 = vmatpush.bf16.msra.mxu0 %v5036
    %6315 = vmatpush.bf16.msra.mxu0 %v5030
    %6316 = vmatpush.bf16.msra.mxu0 %v5024
    %6317 = vmatpush.bf16.msra.mxu0 %v5018
    %6318 = vmatpush.bf16.msra.mxu0 %v5012
    %6319 = vmatmul.bf16.gmra.mxu0 %v6231
    %v6320 = vpop.f32.mrf.mxu0
    %v6321 = vadd.f32 %v4712, %v6320
    %v6322 = vpop.f32.mrf.mxu0
    %6323 = vdwg.mxu0
    %6324 = vmatpush.bf16.msra.mxu0 %v5102
    %6325 = vmatpush.bf16.msra.mxu0 %v5096
    %6326 = vmatpush.bf16.msra.mxu0 %v5090
    %6327 = vmatpush.bf16.msra.mxu0 %v5084
    %6328 = vmatpush.bf16.msra.mxu0 %v5078
    %6329 = vmatpush.bf16.msra.mxu0 %v5072
    %6330 = vmatpush.bf16.msra.mxu0 %v5066
    %6331 = vmatpush.bf16.msra.mxu0 %v5060
    %6332 = vmatmul.bf16.gmra.mxu0 %v6232
    %v6333 = vpop.f32.mrf.mxu0
    %v6334 = vadd.f32 %v6321, %v6333
    %v6335 = vpop.f32.mrf.mxu0
    %6336 = vdwg.mxu0
    %6337 = vmatpush.bf16.msra.mxu0 %v5055
    %6338 = vmatpush.bf16.msra.mxu0 %v5049
    %6339 = vmatpush.bf16.msra.mxu0 %v5043
    %6340 = vmatpush.bf16.msra.mxu0 %v5037
    %6341 = vmatpush.bf16.msra.mxu0 %v5031
    %6342 = vmatpush.bf16.msra.mxu0 %v5025
    %6343 = vmatpush.bf16.msra.mxu0 %v5019
    %6344 = vmatpush.bf16.msra.mxu0 %v5013
    %6345 = vmatmul.bf16.gmra.mxu0 %v6231
    %v6346 = vpop.f32.mrf.mxu0
    %v6347 = vadd.f32 %v4713, %v6346
    %v6348 = vpop.f32.mrf.mxu0
    %6349 = vdwg.mxu0
    %6350 = vmatpush.bf16.msra.mxu0 %v5103
    %6351 = vmatpush.bf16.msra.mxu0 %v5097
    %6352 = vmatpush.bf16.msra.mxu0 %v5091
    %6353 = vmatpush.bf16.msra.mxu0 %v5085
    %6354 = vmatpush.bf16.msra.mxu0 %v5079
    %6355 = vmatpush.bf16.msra.mxu0 %v5073
    %6356 = vmatpush.bf16.msra.mxu0 %v5067
    %6357 = vmatpush.bf16.msra.mxu0 %v5061
    %6358 = vmatmul.bf16.gmra.mxu0 %v6232
    %v6359 = vpop.f32.mrf.mxu0
    %v6360 = vadd.f32 %v6347, %v6359
    %v6361 = vpop.f32.mrf.mxu0
    %6362 = vdwg.mxu0
    %6363 = vmatpush.bf16.msra.mxu0 %v5056
    %6364 = vmatpush.bf16.msra.mxu0 %v5050
    %6365 = vmatpush.bf16.msra.mxu0 %v5044
    %6366 = vmatpush.bf16.msra.mxu0 %v5038
    %6367 = vmatpush.bf16.msra.mxu0 %v5032
    %6368 = vmatpush.bf16.msra.mxu0 %v5026
    %6369 = vmatpush.bf16.msra.mxu0 %v5020
    %6370 = vmatpush.bf16.msra.mxu0 %v5014
    %6371 = vmatmul.bf16.gmra.mxu0 %v6231
    %v6372 = vpop.f32.mrf.mxu0
    %v6373 = vadd.f32 %v4714, %v6372
    %v6374 = vpop.f32.mrf.mxu0
    %6375 = vdwg.mxu0
    %6376 = vmatpush.bf16.msra.mxu0 %v5104
    %6377 = vmatpush.bf16.msra.mxu0 %v5098
    %6378 = vmatpush.bf16.msra.mxu0 %v5092
    %6379 = vmatpush.bf16.msra.mxu0 %v5086
    %6380 = vmatpush.bf16.msra.mxu0 %v5080
    %6381 = vmatpush.bf16.msra.mxu0 %v5074
    %6382 = vmatpush.bf16.msra.mxu0 %v5068
    %6383 = vmatpush.bf16.msra.mxu0 %v5062
    %6384 = vmatmul.bf16.gmra.mxu0 %v6232
    %v6385 = vpop.f32.mrf.mxu0
    %v6386 = vadd.f32 %v6373, %v6385
    %v6387 = vpop.f32.mrf.mxu0
    %6388 = vdwg.mxu0
    %v6389 = vadd.f32 %v6225, %v6256
    %v6390 = vadd.f32 %v6226, %v6282
    %v6391 = vxor.u32 %v6389, 2147483648
    %v6392 = vxor.u32 %v6390, 2147483648
    %v6393 = vmul.f32 %v6391, 1.442695
    %v6394 = vpow.pop %v6393
    %v6395 = vmul.f32 %v6392, 1.442695
    %v6396 = vpow.pop %v6395
    %v6397 = vadd.f32 %v6394, 1.0
    %v6398 = vadd.f32 %v6396, 1.0
    %v6399 = vrcp.pop %v6397
    %v6400 = vmul.f32 %v6397, %v6399
    %v6401 = vsub.f32 1.0, %v6400
    %v6402 = vmul.f32 %v6399, %v6401
    %v6403 = vadd.f32 %v6399, %v6402
    %vm6404 = vweird.f32 %v6397
    %vm6405 = vweird.f32 %v6399
    %vm6406 = vmor %vm6404, %vm6405
    %v6407 = vsel %vm6406, %v6399, %v6403
    %v6408 = vand.u32 2147483647, %v6397
    %vm6409 = vcmp.eq.f32.partialorder %v6408, 8.507059e+37
    %v6410 = vand.u32 %v6397, 2147483648
    %v6411 = vor.u32 1.1754944e-38, %v6410
    %v6412 = vsel %vm6409, %v6411, %v6407
    %v6413 = vmul.f32 1.0, %v6412
    %v6414 = vrcp.pop %v6398
    %v6415 = vmul.f32 %v6398, %v6414
    %v6416 = vsub.f32 1.0, %v6415
    %v6417 = vmul.f32 %v6414, %v6416
    %v6418 = vadd.f32 %v6414, %v6417
    %vm6419 = vweird.f32 %v6398
    %vm6420 = vweird.f32 %v6414
    %vm6421 = vmor %vm6419, %vm6420
    %v6422 = vsel %vm6421, %v6414, %v6418
    %v6423 = vand.u32 2147483647, %v6398
    %vm6424 = vcmp.eq.f32.partialorder %v6423, 8.507059e+37
    %v6425 = vand.u32 %v6398, 2147483648
    %v6426 = vor.u32 1.1754944e-38, %v6425
    %v6427 = vsel %vm6424, %v6426, %v6422
    %v6428 = vmul.f32 1.0, %v6427
    %v6429 = vadd.f32 %v6227, %v6308
    %v6430 = vadd.f32 %v6228, %v6334
    %v6431 = vxor.u32 %v6429, 2147483648
    %v6432 = vxor.u32 %v6430, 2147483648
    %v6433 = vmul.f32 %v6431, 1.442695
    %v6434 = vpow.pop %v6433
    %v6435 = vmul.f32 %v6432, 1.442695
    %v6436 = vpow.pop %v6435
    %v6437 = vadd.f32 %v6434, 1.0
    %v6438 = vadd.f32 %v6436, 1.0
    %v6439 = vrcp.pop %v6437
    %v6440 = vmul.f32 %v6437, %v6439
    %v6441 = vsub.f32 1.0, %v6440
    %v6442 = vmul.f32 %v6439, %v6441
    %v6443 = vadd.f32 %v6439, %v6442
    %vm6444 = vweird.f32 %v6437
    %vm6445 = vweird.f32 %v6439
    %vm6446 = vmor %vm6444, %vm6445
    %v6447 = vsel %vm6446, %v6439, %v6443
    %v6448 = vand.u32 2147483647, %v6437
    %vm6449 = vcmp.eq.f32.partialorder %v6448, 8.507059e+37
    %v6450 = vand.u32 %v6437, 2147483648
    %v6451 = vor.u32 1.1754944e-38, %v6450
    %v6452 = vsel %vm6449, %v6451, %v6447
    %v6453 = vmul.f32 1.0, %v6452
    %v6454 = vrcp.pop %v6438
    %v6455 = vmul.f32 %v6438, %v6454
    %v6456 = vsub.f32 1.0, %v6455
    %v6457 = vmul.f32 %v6454, %v6456
    %v6458 = vadd.f32 %v6454, %v6457
    %vm6459 = vweird.f32 %v6438
    %vm6460 = vweird.f32 %v6454
    %vm6461 = vmor %vm6459, %vm6460
    %v6462 = vsel %vm6461, %v6454, %v6458
    %v6463 = vand.u32 2147483647, %v6438
    %vm6464 = vcmp.eq.f32.partialorder %v6463, 8.507059e+37
    %v6465 = vand.u32 %v6438, 2147483648
    %v6466 = vor.u32 1.1754944e-38, %v6465
    %v6467 = vsel %vm6464, %v6466, %v6462
    %v6468 = vmul.f32 1.0, %v6467
    %v6469 = vmul.f32 %v6413, %v6360
    %v6470 = vmul.f32 %v6428, %v6386
    %v6471 = vadd.f32 %v6229, %v6469
    %v6472 = vadd.f32 %v6230, %v6470
    %v6473 = vtanh.pop %v6471
    %v6474 = vtanh.pop %v6472
    %v6475 = vsub.f32 1.0, %v6453
    %v6476 = vsub.f32 1.0, %v6468
    %v6477 = vmul.f32 %v6475, %v6473
    %v6478 = vmul.f32 %v6476, %v6474
    %v6479 = vmul.f32 %v6453, %v6223
    %v6480 = vmul.f32 %v6468, %v6224
    %v6481 = vadd.f32 %v6477, %v6479
    %v6482 = vadd.f32 %v6478, %v6480
    %v6483 = vld [vmem:[#allocation2 + $0xf0] sm:$0xff]
    %v6484 = vld [vmem:[#allocation2 + $0xf8] sm:$0xff]
    %v6485 = vld [vmem:[#allocation2 + $0x100] sm:$0xff]
    %v6486 = vld [vmem:[#allocation2 + $0x108] sm:$0xff]
    %v6487 = vld [vmem:[#allocation2 + $0x110] sm:$0xff]
    %v6488 = vld [vmem:[#allocation2 + $0x118] sm:$0xff]
    %v6489 = vpack.c.bf16 %v6481, %v6481
    %v6490 = vpack.c.bf16 %v6482, %v6482
    %6491 = vmatpush.bf16.msra.mxu0 %v5051
    %6492 = vmatpush.bf16.msra.mxu0 %v5045
    %6493 = vmatpush.bf16.msra.mxu0 %v5039
    %6494 = vmatpush.bf16.msra.mxu0 %v5033
    %6495 = vmatpush.bf16.msra.mxu0 %v5027
    %6496 = vmatpush.bf16.msra.mxu0 %v5021
    %6497 = vmatpush.bf16.msra.mxu0 %v5015
    %6498 = vmatpush.bf16.msra.mxu0 %v5009
    %6499 = vmatmul.bf16.gmra.mxu0 %v6489
    %v6500 = vpop.f32.mrf.mxu0
    %v6501 = vadd.f32 %v4709, %v6500
    %v6502 = vpop.f32.mrf.mxu0
    %6503 = vdwg.mxu0
    %6504 = vmatpush.bf16.msra.mxu0 %v5099
    %6505 = vmatpush.bf16.msra.mxu0 %v5093
    %6506 = vmatpush.bf16.msra.mxu0 %v5087
    %6507 = vmatpush.bf16.msra.mxu0 %v5081
    %6508 = vmatpush.bf16.msra.mxu0 %v5075
    %6509 = vmatpush.bf16.msra.mxu0 %v5069
    %6510 = vmatpush.bf16.msra.mxu0 %v5063
    %6511 = vmatpush.bf16.msra.mxu0 %v5057
    %6512 = vmatmul.bf16.gmra.mxu0 %v6490
    %v6513 = vpop.f32.mrf.mxu0
    %v6514 = vadd.f32 %v6501, %v6513
    %v6515 = vpop.f32.mrf.mxu0
    %6516 = vdwg.mxu0
    %6517 = vmatpush.bf16.msra.mxu0 %v5052
    %6518 = vmatpush.bf16.msra.mxu0 %v5046
    %6519 = vmatpush.bf16.msra.mxu0 %v5040
    %6520 = vmatpush.bf16.msra.mxu0 %v5034
    %6521 = vmatpush.bf16.msra.mxu0 %v5028
    %6522 = vmatpush.bf16.msra.mxu0 %v5022
    %6523 = vmatpush.bf16.msra.mxu0 %v5016
    %6524 = vmatpush.bf16.msra.mxu0 %v5010
    %6525 = vmatmul.bf16.gmra.mxu0 %v6489
    %v6526 = vpop.f32.mrf.mxu0
    %v6527 = vadd.f32 %v4710, %v6526
    %v6528 = vpop.f32.mrf.mxu0
    %6529 = vdwg.mxu0
    %6530 = vmatpush.bf16.msra.mxu0 %v5100
    %6531 = vmatpush.bf16.msra.mxu0 %v5094
    %6532 = vmatpush.bf16.msra.mxu0 %v5088
    %6533 = vmatpush.bf16.msra.mxu0 %v5082
    %6534 = vmatpush.bf16.msra.mxu0 %v5076
    %6535 = vmatpush.bf16.msra.mxu0 %v5070
    %6536 = vmatpush.bf16.msra.mxu0 %v5064
    %6537 = vmatpush.bf16.msra.mxu0 %v5058
    %6538 = vmatmul.bf16.gmra.mxu0 %v6490
    %v6539 = vpop.f32.mrf.mxu0
    %v6540 = vadd.f32 %v6527, %v6539
    %v6541 = vpop.f32.mrf.mxu0
    %6542 = vdwg.mxu0
    %6543 = vmatpush.bf16.msra.mxu0 %v5053
    %6544 = vmatpush.bf16.msra.mxu0 %v5047
    %6545 = vmatpush.bf16.msra.mxu0 %v5041
    %6546 = vmatpush.bf16.msra.mxu0 %v5035
    %6547 = vmatpush.bf16.msra.mxu0 %v5029
    %6548 = vmatpush.bf16.msra.mxu0 %v5023
    %6549 = vmatpush.bf16.msra.mxu0 %v5017
    %6550 = vmatpush.bf16.msra.mxu0 %v5011
    %6551 = vmatmul.bf16.gmra.mxu0 %v6489
    %v6552 = vpop.f32.mrf.mxu0
    %v6553 = vadd.f32 %v4711, %v6552
    %v6554 = vpop.f32.mrf.mxu0
    %6555 = vdwg.mxu0
    %6556 = vmatpush.bf16.msra.mxu0 %v5101
    %6557 = vmatpush.bf16.msra.mxu0 %v5095
    %6558 = vmatpush.bf16.msra.mxu0 %v5089
    %6559 = vmatpush.bf16.msra.mxu0 %v5083
    %6560 = vmatpush.bf16.msra.mxu0 %v5077
    %6561 = vmatpush.bf16.msra.mxu0 %v5071
    %6562 = vmatpush.bf16.msra.mxu0 %v5065
    %6563 = vmatpush.bf16.msra.mxu0 %v5059
    %6564 = vmatmul.bf16.gmra.mxu0 %v6490
    %v6565 = vpop.f32.mrf.mxu0
    %v6566 = vadd.f32 %v6553, %v6565
    %v6567 = vpop.f32.mrf.mxu0
    %6568 = vdwg.mxu0
    %6569 = vmatpush.bf16.msra.mxu0 %v5054
    %6570 = vmatpush.bf16.msra.mxu0 %v5048
    %6571 = vmatpush.bf16.msra.mxu0 %v5042
    %6572 = vmatpush.bf16.msra.mxu0 %v5036
    %6573 = vmatpush.bf16.msra.mxu0 %v5030
    %6574 = vmatpush.bf16.msra.mxu0 %v5024
    %6575 = vmatpush.bf16.msra.mxu0 %v5018
    %6576 = vmatpush.bf16.msra.mxu0 %v5012
    %6577 = vmatmul.bf16.gmra.mxu0 %v6489
    %v6578 = vpop.f32.mrf.mxu0
    %v6579 = vadd.f32 %v4712, %v6578
    %v6580 = vpop.f32.mrf.mxu0
    %6581 = vdwg.mxu0
    %6582 = vmatpush.bf16.msra.mxu0 %v5102
    %6583 = vmatpush.bf16.msra.mxu0 %v5096
    %6584 = vmatpush.bf16.msra.mxu0 %v5090
    %6585 = vmatpush.bf16.msra.mxu0 %v5084
    %6586 = vmatpush.bf16.msra.mxu0 %v5078
    %6587 = vmatpush.bf16.msra.mxu0 %v5072
    %6588 = vmatpush.bf16.msra.mxu0 %v5066
    %6589 = vmatpush.bf16.msra.mxu0 %v5060
    %6590 = vmatmul.bf16.gmra.mxu0 %v6490
    %v6591 = vpop.f32.mrf.mxu0
    %v6592 = vadd.f32 %v6579, %v6591
    %v6593 = vpop.f32.mrf.mxu0
    %6594 = vdwg.mxu0
    %6595 = vmatpush.bf16.msra.mxu0 %v5055
    %6596 = vmatpush.bf16.msra.mxu0 %v5049
    %6597 = vmatpush.bf16.msra.mxu0 %v5043
    %6598 = vmatpush.bf16.msra.mxu0 %v5037
    %6599 = vmatpush.bf16.msra.mxu0 %v5031
    %6600 = vmatpush.bf16.msra.mxu0 %v5025
    %6601 = vmatpush.bf16.msra.mxu0 %v5019
    %6602 = vmatpush.bf16.msra.mxu0 %v5013
    %6603 = vmatmul.bf16.gmra.mxu0 %v6489
    %v6604 = vpop.f32.mrf.mxu0
    %v6605 = vadd.f32 %v4713, %v6604
    %v6606 = vpop.f32.mrf.mxu0
    %6607 = vdwg.mxu0
    %6608 = vmatpush.bf16.msra.mxu0 %v5103
    %6609 = vmatpush.bf16.msra.mxu0 %v5097
    %6610 = vmatpush.bf16.msra.mxu0 %v5091
    %6611 = vmatpush.bf16.msra.mxu0 %v5085
    %6612 = vmatpush.bf16.msra.mxu0 %v5079
    %6613 = vmatpush.bf16.msra.mxu0 %v5073
    %6614 = vmatpush.bf16.msra.mxu0 %v5067
    %6615 = vmatpush.bf16.msra.mxu0 %v5061
    %6616 = vmatmul.bf16.gmra.mxu0 %v6490
    %v6617 = vpop.f32.mrf.mxu0
    %v6618 = vadd.f32 %v6605, %v6617
    %v6619 = vpop.f32.mrf.mxu0
    %6620 = vdwg.mxu0
    %6621 = vmatpush.bf16.msra.mxu0 %v5056
    %6622 = vmatpush.bf16.msra.mxu0 %v5050
    %6623 = vmatpush.bf16.msra.mxu0 %v5044
    %6624 = vmatpush.bf16.msra.mxu0 %v5038
    %6625 = vmatpush.bf16.msra.mxu0 %v5032
    %6626 = vmatpush.bf16.msra.mxu0 %v5026
    %6627 = vmatpush.bf16.msra.mxu0 %v5020
    %6628 = vmatpush.bf16.msra.mxu0 %v5014
    %6629 = vmatmul.bf16.gmra.mxu0 %v6489
    %v6630 = vpop.f32.mrf.mxu0
    %v6631 = vadd.f32 %v4714, %v6630
    %v6632 = vpop.f32.mrf.mxu0
    %6633 = vdwg.mxu0
    %6634 = vmatpush.bf16.msra.mxu0 %v5104
    %6635 = vmatpush.bf16.msra.mxu0 %v5098
    %6636 = vmatpush.bf16.msra.mxu0 %v5092
    %6637 = vmatpush.bf16.msra.mxu0 %v5086
    %6638 = vmatpush.bf16.msra.mxu0 %v5080
    %6639 = vmatpush.bf16.msra.mxu0 %v5074
    %6640 = vmatpush.bf16.msra.mxu0 %v5068
    %6641 = vmatpush.bf16.msra.mxu0 %v5062
    %6642 = vmatmul.bf16.gmra.mxu0 %v6490
    %v6643 = vpop.f32.mrf.mxu0
    %v6644 = vadd.f32 %v6631, %v6643
    %v6645 = vpop.f32.mrf.mxu0
    %6646 = vdwg.mxu0
    %v6647 = vadd.f32 %v6483, %v6514
    %v6648 = vadd.f32 %v6484, %v6540
    %v6649 = vxor.u32 %v6647, 2147483648
    %v6650 = vxor.u32 %v6648, 2147483648
    %v6651 = vmul.f32 %v6649, 1.442695
    %v6652 = vpow.pop %v6651
    %v6653 = vmul.f32 %v6650, 1.442695
    %v6654 = vpow.pop %v6653
    %v6655 = vadd.f32 %v6652, 1.0
    %v6656 = vadd.f32 %v6654, 1.0
    %v6657 = vrcp.pop %v6655
    %v6658 = vmul.f32 %v6655, %v6657
    %v6659 = vsub.f32 1.0, %v6658
    %v6660 = vmul.f32 %v6657, %v6659
    %v6661 = vadd.f32 %v6657, %v6660
    %vm6662 = vweird.f32 %v6655
    %vm6663 = vweird.f32 %v6657
    %vm6664 = vmor %vm6662, %vm6663
    %v6665 = vsel %vm6664, %v6657, %v6661
    %v6666 = vand.u32 2147483647, %v6655
    %vm6667 = vcmp.eq.f32.partialorder %v6666, 8.507059e+37
    %v6668 = vand.u32 %v6655, 2147483648
    %v6669 = vor.u32 1.1754944e-38, %v6668
    %v6670 = vsel %vm6667, %v6669, %v6665
    %v6671 = vmul.f32 1.0, %v6670
    %v6672 = vrcp.pop %v6656
    %v6673 = vmul.f32 %v6656, %v6672
    %v6674 = vsub.f32 1.0, %v6673
    %v6675 = vmul.f32 %v6672, %v6674
    %v6676 = vadd.f32 %v6672, %v6675
    %vm6677 = vweird.f32 %v6656
    %vm6678 = vweird.f32 %v6672
    %vm6679 = vmor %vm6677, %vm6678
    %v6680 = vsel %vm6679, %v6672, %v6676
    %v6681 = vand.u32 2147483647, %v6656
    %vm6682 = vcmp.eq.f32.partialorder %v6681, 8.507059e+37
    %v6683 = vand.u32 %v6656, 2147483648
    %v6684 = vor.u32 1.1754944e-38, %v6683
    %v6685 = vsel %vm6682, %v6684, %v6680
    %v6686 = vmul.f32 1.0, %v6685
    %v6687 = vadd.f32 %v6485, %v6566
    %v6688 = vadd.f32 %v6486, %v6592
    %v6689 = vxor.u32 %v6687, 2147483648
    %v6690 = vxor.u32 %v6688, 2147483648
    %v6691 = vmul.f32 %v6689, 1.442695
    %v6692 = vpow.pop %v6691
    %v6693 = vmul.f32 %v6690, 1.442695
    %v6694 = vpow.pop %v6693
    %v6695 = vadd.f32 %v6692, 1.0
    %v6696 = vadd.f32 %v6694, 1.0
    %v6697 = vrcp.pop %v6695
    %v6698 = vmul.f32 %v6695, %v6697
    %v6699 = vsub.f32 1.0, %v6698
    %v6700 = vmul.f32 %v6697, %v6699
    %v6701 = vadd.f32 %v6697, %v6700
    %vm6702 = vweird.f32 %v6695
    %vm6703 = vweird.f32 %v6697
    %vm6704 = vmor %vm6702, %vm6703
    %v6705 = vsel %vm6704, %v6697, %v6701
    %v6706 = vand.u32 2147483647, %v6695
    %vm6707 = vcmp.eq.f32.partialorder %v6706, 8.507059e+37
    %v6708 = vand.u32 %v6695, 2147483648
    %v6709 = vor.u32 1.1754944e-38, %v6708
    %v6710 = vsel %vm6707, %v6709, %v6705
    %v6711 = vmul.f32 1.0, %v6710
    %v6712 = vrcp.pop %v6696
    %v6713 = vmul.f32 %v6696, %v6712
    %v6714 = vsub.f32 1.0, %v6713
    %v6715 = vmul.f32 %v6712, %v6714
    %v6716 = vadd.f32 %v6712, %v6715
    %vm6717 = vweird.f32 %v6696
    %vm6718 = vweird.f32 %v6712
    %vm6719 = vmor %vm6717, %vm6718
    %v6720 = vsel %vm6719, %v6712, %v6716
    %v6721 = vand.u32 2147483647, %v6696
    %vm6722 = vcmp.eq.f32.partialorder %v6721, 8.507059e+37
    %v6723 = vand.u32 %v6696, 2147483648
    %v6724 = vor.u32 1.1754944e-38, %v6723
    %v6725 = vsel %vm6722, %v6724, %v6720
    %v6726 = vmul.f32 1.0, %v6725
    %v6727 = vmul.f32 %v6671, %v6618
    %v6728 = vmul.f32 %v6686, %v6644
    %v6729 = vadd.f32 %v6487, %v6727
    %v6730 = vadd.f32 %v6488, %v6728
    %v6731 = vtanh.pop %v6729
    %v6732 = vtanh.pop %v6730
    %v6733 = vsub.f32 1.0, %v6711
    %v6734 = vsub.f32 1.0, %v6726
    %v6735 = vmul.f32 %v6733, %v6731
    %v6736 = vmul.f32 %v6734, %v6732
    %v6737 = vmul.f32 %v6711, %v6481
    %v6738 = vmul.f32 %v6726, %v6482
    %v6739 = vadd.f32 %v6735, %v6737
    %v6740 = vadd.f32 %v6736, %v6738
    %v6741 = vld [vmem:[#allocation2 + $0x120] sm:$0xff]
    %v6742 = vld [vmem:[#allocation2 + $0x128] sm:$0xff]
    %v6743 = vld [vmem:[#allocation2 + $0x130] sm:$0xff]
    %v6744 = vld [vmem:[#allocation2 + $0x138] sm:$0xff]
    %v6745 = vld [vmem:[#allocation2 + $0x140] sm:$0xff]
    %v6746 = vld [vmem:[#allocation2 + $0x148] sm:$0xff]
    %v6747 = vpack.c.bf16 %v6739, %v6739
    %v6748 = vpack.c.bf16 %v6740, %v6740
    %6749 = vmatpush.bf16.msra.mxu0 %v5051
    %6750 = vmatpush.bf16.msra.mxu0 %v5045
    %6751 = vmatpush.bf16.msra.mxu0 %v5039
    %6752 = vmatpush.bf16.msra.mxu0 %v5033
    %6753 = vmatpush.bf16.msra.mxu0 %v5027
    %6754 = vmatpush.bf16.msra.mxu0 %v5021
    %6755 = vmatpush.bf16.msra.mxu0 %v5015
    %6756 = vmatpush.bf16.msra.mxu0 %v5009
    %6757 = vmatmul.bf16.gmra.mxu0 %v6747
    %v6758 = vpop.f32.mrf.mxu0
    %v6759 = vadd.f32 %v4709, %v6758
    %v6760 = vpop.f32.mrf.mxu0
    %6761 = vdwg.mxu0
    %6762 = vmatpush.bf16.msra.mxu0 %v5099
    %6763 = vmatpush.bf16.msra.mxu0 %v5093
    %6764 = vmatpush.bf16.msra.mxu0 %v5087
    %6765 = vmatpush.bf16.msra.mxu0 %v5081
    %6766 = vmatpush.bf16.msra.mxu0 %v5075
    %6767 = vmatpush.bf16.msra.mxu0 %v5069
    %6768 = vmatpush.bf16.msra.mxu0 %v5063
    %6769 = vmatpush.bf16.msra.mxu0 %v5057
    %6770 = vmatmul.bf16.gmra.mxu0 %v6748
    %v6771 = vpop.f32.mrf.mxu0
    %v6772 = vadd.f32 %v6759, %v6771
    %v6773 = vpop.f32.mrf.mxu0
    %6774 = vdwg.mxu0
    %6775 = vmatpush.bf16.msra.mxu0 %v5052
    %6776 = vmatpush.bf16.msra.mxu0 %v5046
    %6777 = vmatpush.bf16.msra.mxu0 %v5040
    %6778 = vmatpush.bf16.msra.mxu0 %v5034
    %6779 = vmatpush.bf16.msra.mxu0 %v5028
    %6780 = vmatpush.bf16.msra.mxu0 %v5022
    %6781 = vmatpush.bf16.msra.mxu0 %v5016
    %6782 = vmatpush.bf16.msra.mxu0 %v5010
    %6783 = vmatmul.bf16.gmra.mxu0 %v6747
    %v6784 = vpop.f32.mrf.mxu0
    %v6785 = vadd.f32 %v4710, %v6784
    %v6786 = vpop.f32.mrf.mxu0
    %6787 = vdwg.mxu0
    %6788 = vmatpush.bf16.msra.mxu0 %v5100
    %6789 = vmatpush.bf16.msra.mxu0 %v5094
    %6790 = vmatpush.bf16.msra.mxu0 %v5088
    %6791 = vmatpush.bf16.msra.mxu0 %v5082
    %6792 = vmatpush.bf16.msra.mxu0 %v5076
    %6793 = vmatpush.bf16.msra.mxu0 %v5070
    %6794 = vmatpush.bf16.msra.mxu0 %v5064
    %6795 = vmatpush.bf16.msra.mxu0 %v5058
    %6796 = vmatmul.bf16.gmra.mxu0 %v6748
    %v6797 = vpop.f32.mrf.mxu0
    %v6798 = vadd.f32 %v6785, %v6797
    %v6799 = vpop.f32.mrf.mxu0
    %6800 = vdwg.mxu0
    %6801 = vmatpush.bf16.msra.mxu0 %v5053
    %6802 = vmatpush.bf16.msra.mxu0 %v5047
    %6803 = vmatpush.bf16.msra.mxu0 %v5041
    %6804 = vmatpush.bf16.msra.mxu0 %v5035
    %6805 = vmatpush.bf16.msra.mxu0 %v5029
    %6806 = vmatpush.bf16.msra.mxu0 %v5023
    %6807 = vmatpush.bf16.msra.mxu0 %v5017
    %6808 = vmatpush.bf16.msra.mxu0 %v5011
    %6809 = vmatmul.bf16.gmra.mxu0 %v6747
    %v6810 = vpop.f32.mrf.mxu0
    %v6811 = vadd.f32 %v4711, %v6810
    %v6812 = vpop.f32.mrf.mxu0
    %6813 = vdwg.mxu0
    %6814 = vmatpush.bf16.msra.mxu0 %v5101
    %6815 = vmatpush.bf16.msra.mxu0 %v5095
    %6816 = vmatpush.bf16.msra.mxu0 %v5089
    %6817 = vmatpush.bf16.msra.mxu0 %v5083
    %6818 = vmatpush.bf16.msra.mxu0 %v5077
    %6819 = vmatpush.bf16.msra.mxu0 %v5071
    %6820 = vmatpush.bf16.msra.mxu0 %v5065
    %6821 = vmatpush.bf16.msra.mxu0 %v5059
    %6822 = vmatmul.bf16.gmra.mxu0 %v6748
    %v6823 = vpop.f32.mrf.mxu0
    %v6824 = vadd.f32 %v6811, %v6823
    %v6825 = vpop.f32.mrf.mxu0
    %6826 = vdwg.mxu0
    %6827 = vmatpush.bf16.msra.mxu0 %v5054
    %6828 = vmatpush.bf16.msra.mxu0 %v5048
    %6829 = vmatpush.bf16.msra.mxu0 %v5042
    %6830 = vmatpush.bf16.msra.mxu0 %v5036
    %6831 = vmatpush.bf16.msra.mxu0 %v5030
    %6832 = vmatpush.bf16.msra.mxu0 %v5024
    %6833 = vmatpush.bf16.msra.mxu0 %v5018
    %6834 = vmatpush.bf16.msra.mxu0 %v5012
    %6835 = vmatmul.bf16.gmra.mxu0 %v6747
    %v6836 = vpop.f32.mrf.mxu0
    %v6837 = vadd.f32 %v4712, %v6836
    %v6838 = vpop.f32.mrf.mxu0
    %6839 = vdwg.mxu0
    %6840 = vmatpush.bf16.msra.mxu0 %v5102
    %6841 = vmatpush.bf16.msra.mxu0 %v5096
    %6842 = vmatpush.bf16.msra.mxu0 %v5090
    %6843 = vmatpush.bf16.msra.mxu0 %v5084
    %6844 = vmatpush.bf16.msra.mxu0 %v5078
    %6845 = vmatpush.bf16.msra.mxu0 %v5072
    %6846 = vmatpush.bf16.msra.mxu0 %v5066
    %6847 = vmatpush.bf16.msra.mxu0 %v5060
    %6848 = vmatmul.bf16.gmra.mxu0 %v6748
    %v6849 = vpop.f32.mrf.mxu0
    %v6850 = vadd.f32 %v6837, %v6849
    %v6851 = vpop.f32.mrf.mxu0
    %6852 = vdwg.mxu0
    %6853 = vmatpush.bf16.msra.mxu0 %v5055
    %6854 = vmatpush.bf16.msra.mxu0 %v5049
    %6855 = vmatpush.bf16.msra.mxu0 %v5043
    %6856 = vmatpush.bf16.msra.mxu0 %v5037
    %6857 = vmatpush.bf16.msra.mxu0 %v5031
    %6858 = vmatpush.bf16.msra.mxu0 %v5025
    %6859 = vmatpush.bf16.msra.mxu0 %v5019
    %6860 = vmatpush.bf16.msra.mxu0 %v5013
    %6861 = vmatmul.bf16.gmra.mxu0 %v6747
    %v6862 = vpop.f32.mrf.mxu0
    %v6863 = vadd.f32 %v4713, %v6862
    %v6864 = vpop.f32.mrf.mxu0
    %6865 = vdwg.mxu0
    %6866 = vmatpush.bf16.msra.mxu0 %v5103
    %6867 = vmatpush.bf16.msra.mxu0 %v5097
    %6868 = vmatpush.bf16.msra.mxu0 %v5091
    %6869 = vmatpush.bf16.msra.mxu0 %v5085
    %6870 = vmatpush.bf16.msra.mxu0 %v5079
    %6871 = vmatpush.bf16.msra.mxu0 %v5073
    %6872 = vmatpush.bf16.msra.mxu0 %v5067
    %6873 = vmatpush.bf16.msra.mxu0 %v5061
    %6874 = vmatmul.bf16.gmra.mxu0 %v6748
    %v6875 = vpop.f32.mrf.mxu0
    %v6876 = vadd.f32 %v6863, %v6875
    %v6877 = vpop.f32.mrf.mxu0
    %6878 = vdwg.mxu0
    %6879 = vmatpush.bf16.msra.mxu0 %v5056
    %6880 = vmatpush.bf16.msra.mxu0 %v5050
    %6881 = vmatpush.bf16.msra.mxu0 %v5044
    %6882 = vmatpush.bf16.msra.mxu0 %v5038
    %6883 = vmatpush.bf16.msra.mxu0 %v5032
    %6884 = vmatpush.bf16.msra.mxu0 %v5026
    %6885 = vmatpush.bf16.msra.mxu0 %v5020
    %6886 = vmatpush.bf16.msra.mxu0 %v5014
    %6887 = vmatmul.bf16.gmra.mxu0 %v6747
    %v6888 = vpop.f32.mrf.mxu0
    %v6889 = vadd.f32 %v4714, %v6888
    %v6890 = vpop.f32.mrf.mxu0
    %6891 = vdwg.mxu0
    %6892 = vmatpush.bf16.msra.mxu0 %v5104
    %6893 = vmatpush.bf16.msra.mxu0 %v5098
    %6894 = vmatpush.bf16.msra.mxu0 %v5092
    %6895 = vmatpush.bf16.msra.mxu0 %v5086
    %6896 = vmatpush.bf16.msra.mxu0 %v5080
    %6897 = vmatpush.bf16.msra.mxu0 %v5074
    %6898 = vmatpush.bf16.msra.mxu0 %v5068
    %6899 = vmatpush.bf16.msra.mxu0 %v5062
    %6900 = vmatmul.bf16.gmra.mxu0 %v6748
    %v6901 = vpop.f32.mrf.mxu0
    %v6902 = vadd.f32 %v6889, %v6901
    %v6903 = vpop.f32.mrf.mxu0
    %6904 = vdwg.mxu0
    %v6905 = vadd.f32 %v6741, %v6772
    %v6906 = vadd.f32 %v6742, %v6798
    %v6907 = vxor.u32 %v6905, 2147483648
    %v6908 = vxor.u32 %v6906, 2147483648
    %v6909 = vmul.f32 %v6907, 1.442695
    %v6910 = vpow.pop %v6909
    %v6911 = vmul.f32 %v6908, 1.442695
    %v6912 = vpow.pop %v6911
    %v6913 = vadd.f32 %v6910, 1.0
    %v6914 = vadd.f32 %v6912, 1.0
    %v6915 = vrcp.pop %v6913
    %v6916 = vmul.f32 %v6913, %v6915
    %v6917 = vsub.f32 1.0, %v6916
    %v6918 = vmul.f32 %v6915, %v6917
    %v6919 = vadd.f32 %v6915, %v6918
    %vm6920 = vweird.f32 %v6913
    %vm6921 = vweird.f32 %v6915
    %vm6922 = vmor %vm6920, %vm6921
    %v6923 = vsel %vm6922, %v6915, %v6919
    %v6924 = vand.u32 2147483647, %v6913
    %vm6925 = vcmp.eq.f32.partialorder %v6924, 8.507059e+37
    %v6926 = vand.u32 %v6913, 2147483648
    %v6927 = vor.u32 1.1754944e-38, %v6926
    %v6928 = vsel %vm6925, %v6927, %v6923
    %v6929 = vmul.f32 1.0, %v6928
    %v6930 = vrcp.pop %v6914
    %v6931 = vmul.f32 %v6914, %v6930
    %v6932 = vsub.f32 1.0, %v6931
    %v6933 = vmul.f32 %v6930, %v6932
    %v6934 = vadd.f32 %v6930, %v6933
    %vm6935 = vweird.f32 %v6914
    %vm6936 = vweird.f32 %v6930
    %vm6937 = vmor %vm6935, %vm6936
    %v6938 = vsel %vm6937, %v6930, %v6934
    %v6939 = vand.u32 2147483647, %v6914
    %vm6940 = vcmp.eq.f32.partialorder %v6939, 8.507059e+37
    %v6941 = vand.u32 %v6914, 2147483648
    %v6942 = vor.u32 1.1754944e-38, %v6941
    %v6943 = vsel %vm6940, %v6942, %v6938
    %v6944 = vmul.f32 1.0, %v6943
    %v6945 = vadd.f32 %v6743, %v6824
    %v6946 = vadd.f32 %v6744, %v6850
    %v6947 = vxor.u32 %v6945, 2147483648
    %v6948 = vxor.u32 %v6946, 2147483648
    %v6949 = vmul.f32 %v6947, 1.442695
    %v6950 = vpow.pop %v6949
    %v6951 = vmul.f32 %v6948, 1.442695
    %v6952 = vpow.pop %v6951
    %v6953 = vadd.f32 %v6950, 1.0
    %v6954 = vadd.f32 %v6952, 1.0
    %v6955 = vrcp.pop %v6953
    %v6956 = vmul.f32 %v6953, %v6955
    %v6957 = vsub.f32 1.0, %v6956
    %v6958 = vmul.f32 %v6955, %v6957
    %v6959 = vadd.f32 %v6955, %v6958
    %vm6960 = vweird.f32 %v6953
    %vm6961 = vweird.f32 %v6955
    %vm6962 = vmor %vm6960, %vm6961
    %v6963 = vsel %vm6962, %v6955, %v6959
    %v6964 = vand.u32 2147483647, %v6953
    %vm6965 = vcmp.eq.f32.partialorder %v6964, 8.507059e+37
    %v6966 = vand.u32 %v6953, 2147483648
    %v6967 = vor.u32 1.1754944e-38, %v6966
    %v6968 = vsel %vm6965, %v6967, %v6963
    %v6969 = vmul.f32 1.0, %v6968
    %v6970 = vrcp.pop %v6954
    %v6971 = vmul.f32 %v6954, %v6970
    %v6972 = vsub.f32 1.0, %v6971
    %v6973 = vmul.f32 %v6970, %v6972
    %v6974 = vadd.f32 %v6970, %v6973
    %vm6975 = vweird.f32 %v6954
    %vm6976 = vweird.f32 %v6970
    %vm6977 = vmor %vm6975, %vm6976
    %v6978 = vsel %vm6977, %v6970, %v6974
    %v6979 = vand.u32 2147483647, %v6954
    %vm6980 = vcmp.eq.f32.partialorder %v6979, 8.507059e+37
    %v6981 = vand.u32 %v6954, 2147483648
    %v6982 = vor.u32 1.1754944e-38, %v6981
    %v6983 = vsel %vm6980, %v6982, %v6978
    %v6984 = vmul.f32 1.0, %v6983
    %v6985 = vmul.f32 %v6929, %v6876
    %v6986 = vmul.f32 %v6944, %v6902
    %v6987 = vadd.f32 %v6745, %v6985
    %v6988 = vadd.f32 %v6746, %v6986
    %v6989 = vtanh.pop %v6987
    %v6990 = vtanh.pop %v6988
    %v6991 = vsub.f32 1.0, %v6969
    %v6992 = vsub.f32 1.0, %v6984
    %v6993 = vmul.f32 %v6991, %v6989
    %v6994 = vmul.f32 %v6992, %v6990
    %v6995 = vmul.f32 %v6969, %v6739
    %v6996 = vmul.f32 %v6984, %v6740
    %v6997 = vadd.f32 %v6993, %v6995
    %v6998 = vadd.f32 %v6994, %v6996
    %v6999 = vld [vmem:[#allocation2 + $0x150] sm:$0xff]
    %v7000 = vld [vmem:[#allocation2 + $0x158] sm:$0xff]
    %v7001 = vld [vmem:[#allocation2 + $0x160] sm:$0xff]
    %v7002 = vld [vmem:[#allocation2 + $0x168] sm:$0xff]
    %v7003 = vld [vmem:[#allocation2 + $0x170] sm:$0xff]
    %v7004 = vld [vmem:[#allocation2 + $0x178] sm:$0xff]
    %v7005 = vpack.c.bf16 %v6997, %v6997
    %v7006 = vpack.c.bf16 %v6998, %v6998
    %7007 = vmatpush.bf16.msra.mxu0 %v5051
    %7008 = vmatpush.bf16.msra.mxu0 %v5045
    %7009 = vmatpush.bf16.msra.mxu0 %v5039
    %7010 = vmatpush.bf16.msra.mxu0 %v5033
    %7011 = vmatpush.bf16.msra.mxu0 %v5027
    %7012 = vmatpush.bf16.msra.mxu0 %v5021
    %7013 = vmatpush.bf16.msra.mxu0 %v5015
    %7014 = vmatpush.bf16.msra.mxu0 %v5009
    %7015 = vmatmul.bf16.gmra.mxu0 %v7005
    %v7016 = vpop.f32.mrf.mxu0
    %v7017 = vadd.f32 %v4709, %v7016
    %v7018 = vpop.f32.mrf.mxu0
    %7019 = vdwg.mxu0
    %7020 = vmatpush.bf16.msra.mxu0 %v5099
    %7021 = vmatpush.bf16.msra.mxu0 %v5093
    %7022 = vmatpush.bf16.msra.mxu0 %v5087
    %7023 = vmatpush.bf16.msra.mxu0 %v5081
    %7024 = vmatpush.bf16.msra.mxu0 %v5075
    %7025 = vmatpush.bf16.msra.mxu0 %v5069
    %7026 = vmatpush.bf16.msra.mxu0 %v5063
    %7027 = vmatpush.bf16.msra.mxu0 %v5057
    %7028 = vmatmul.bf16.gmra.mxu0 %v7006
    %v7029 = vpop.f32.mrf.mxu0
    %v7030 = vadd.f32 %v7017, %v7029
    %v7031 = vpop.f32.mrf.mxu0
    %7032 = vdwg.mxu0
    %7033 = vmatpush.bf16.msra.mxu0 %v5052
    %7034 = vmatpush.bf16.msra.mxu0 %v5046
    %7035 = vmatpush.bf16.msra.mxu0 %v5040
    %7036 = vmatpush.bf16.msra.mxu0 %v5034
    %7037 = vmatpush.bf16.msra.mxu0 %v5028
    %7038 = vmatpush.bf16.msra.mxu0 %v5022
    %7039 = vmatpush.bf16.msra.mxu0 %v5016
    %7040 = vmatpush.bf16.msra.mxu0 %v5010
    %7041 = vmatmul.bf16.gmra.mxu0 %v7005
    %v7042 = vpop.f32.mrf.mxu0
    %v7043 = vadd.f32 %v4710, %v7042
    %v7044 = vpop.f32.mrf.mxu0
    %7045 = vdwg.mxu0
    %7046 = vmatpush.bf16.msra.mxu0 %v5100
    %7047 = vmatpush.bf16.msra.mxu0 %v5094
    %7048 = vmatpush.bf16.msra.mxu0 %v5088
    %7049 = vmatpush.bf16.msra.mxu0 %v5082
    %7050 = vmatpush.bf16.msra.mxu0 %v5076
    %7051 = vmatpush.bf16.msra.mxu0 %v5070
    %7052 = vmatpush.bf16.msra.mxu0 %v5064
    %7053 = vmatpush.bf16.msra.mxu0 %v5058
    %7054 = vmatmul.bf16.gmra.mxu0 %v7006
    %v7055 = vpop.f32.mrf.mxu0
    %v7056 = vadd.f32 %v7043, %v7055
    %v7057 = vpop.f32.mrf.mxu0
    %7058 = vdwg.mxu0
    %7059 = vmatpush.bf16.msra.mxu0 %v5053
    %7060 = vmatpush.bf16.msra.mxu0 %v5047
    %7061 = vmatpush.bf16.msra.mxu0 %v5041
    %7062 = vmatpush.bf16.msra.mxu0 %v5035
    %7063 = vmatpush.bf16.msra.mxu0 %v5029
    %7064 = vmatpush.bf16.msra.mxu0 %v5023
    %7065 = vmatpush.bf16.msra.mxu0 %v5017
    %7066 = vmatpush.bf16.msra.mxu0 %v5011
    %7067 = vmatmul.bf16.gmra.mxu0 %v7005
    %v7068 = vpop.f32.mrf.mxu0
    %v7069 = vadd.f32 %v4711, %v7068
    %v7070 = vpop.f32.mrf.mxu0
    %7071 = vdwg.mxu0
    %7072 = vmatpush.bf16.msra.mxu0 %v5101
    %7073 = vmatpush.bf16.msra.mxu0 %v5095
    %7074 = vmatpush.bf16.msra.mxu0 %v5089
    %7075 = vmatpush.bf16.msra.mxu0 %v5083
    %7076 = vmatpush.bf16.msra.mxu0 %v5077
    %7077 = vmatpush.bf16.msra.mxu0 %v5071
    %7078 = vmatpush.bf16.msra.mxu0 %v5065
    %7079 = vmatpush.bf16.msra.mxu0 %v5059
    %7080 = vmatmul.bf16.gmra.mxu0 %v7006
    %v7081 = vpop.f32.mrf.mxu0
    %v7082 = vadd.f32 %v7069, %v7081
    %v7083 = vpop.f32.mrf.mxu0
    %7084 = vdwg.mxu0
    %7085 = vmatpush.bf16.msra.mxu0 %v5054
    %7086 = vmatpush.bf16.msra.mxu0 %v5048
    %7087 = vmatpush.bf16.msra.mxu0 %v5042
    %7088 = vmatpush.bf16.msra.mxu0 %v5036
    %7089 = vmatpush.bf16.msra.mxu0 %v5030
    %7090 = vmatpush.bf16.msra.mxu0 %v5024
    %7091 = vmatpush.bf16.msra.mxu0 %v5018
    %7092 = vmatpush.bf16.msra.mxu0 %v5012
    %7093 = vmatmul.bf16.gmra.mxu0 %v7005
    %v7094 = vpop.f32.mrf.mxu0
    %v7095 = vadd.f32 %v4712, %v7094
    %v7096 = vpop.f32.mrf.mxu0
    %7097 = vdwg.mxu0
    %7098 = vmatpush.bf16.msra.mxu0 %v5102
    %7099 = vmatpush.bf16.msra.mxu0 %v5096
    %7100 = vmatpush.bf16.msra.mxu0 %v5090
    %7101 = vmatpush.bf16.msra.mxu0 %v5084
    %7102 = vmatpush.bf16.msra.mxu0 %v5078
    %7103 = vmatpush.bf16.msra.mxu0 %v5072
    %7104 = vmatpush.bf16.msra.mxu0 %v5066
    %7105 = vmatpush.bf16.msra.mxu0 %v5060
    %7106 = vmatmul.bf16.gmra.mxu0 %v7006
    %v7107 = vpop.f32.mrf.mxu0
    %v7108 = vadd.f32 %v7095, %v7107
    %v7109 = vpop.f32.mrf.mxu0
    %7110 = vdwg.mxu0
    %7111 = vmatpush.bf16.msra.mxu0 %v5055
    %7112 = vmatpush.bf16.msra.mxu0 %v5049
    %7113 = vmatpush.bf16.msra.mxu0 %v5043
    %7114 = vmatpush.bf16.msra.mxu0 %v5037
    %7115 = vmatpush.bf16.msra.mxu0 %v5031
    %7116 = vmatpush.bf16.msra.mxu0 %v5025
    %7117 = vmatpush.bf16.msra.mxu0 %v5019
    %7118 = vmatpush.bf16.msra.mxu0 %v5013
    %7119 = vmatmul.bf16.gmra.mxu0 %v7005
    %v7120 = vpop.f32.mrf.mxu0
    %v7121 = vadd.f32 %v4713, %v7120
    %v7122 = vpop.f32.mrf.mxu0
    %7123 = vdwg.mxu0
    %7124 = vmatpush.bf16.msra.mxu0 %v5103
    %7125 = vmatpush.bf16.msra.mxu0 %v5097
    %7126 = vmatpush.bf16.msra.mxu0 %v5091
    %7127 = vmatpush.bf16.msra.mxu0 %v5085
    %7128 = vmatpush.bf16.msra.mxu0 %v5079
    %7129 = vmatpush.bf16.msra.mxu0 %v5073
    %7130 = vmatpush.bf16.msra.mxu0 %v5067
    %7131 = vmatpush.bf16.msra.mxu0 %v5061
    %7132 = vmatmul.bf16.gmra.mxu0 %v7006
    %v7133 = vpop.f32.mrf.mxu0
    %v7134 = vadd.f32 %v7121, %v7133
    %v7135 = vpop.f32.mrf.mxu0
    %7136 = vdwg.mxu0
    %7137 = vmatpush.bf16.msra.mxu0 %v5056
    %7138 = vmatpush.bf16.msra.mxu0 %v5050
    %7139 = vmatpush.bf16.msra.mxu0 %v5044
    %7140 = vmatpush.bf16.msra.mxu0 %v5038
    %7141 = vmatpush.bf16.msra.mxu0 %v5032
    %7142 = vmatpush.bf16.msra.mxu0 %v5026
    %7143 = vmatpush.bf16.msra.mxu0 %v5020
    %7144 = vmatpush.bf16.msra.mxu0 %v5014
    %7145 = vmatmul.bf16.gmra.mxu0 %v7005
    %v7146 = vpop.f32.mrf.mxu0
    %v7147 = vadd.f32 %v4714, %v7146
    %v7148 = vpop.f32.mrf.mxu0
    %7149 = vdwg.mxu0
    %7150 = vmatpush.bf16.msra.mxu0 %v5104
    %7151 = vmatpush.bf16.msra.mxu0 %v5098
    %7152 = vmatpush.bf16.msra.mxu0 %v5092
    %7153 = vmatpush.bf16.msra.mxu0 %v5086
    %7154 = vmatpush.bf16.msra.mxu0 %v5080
    %7155 = vmatpush.bf16.msra.mxu0 %v5074
    %7156 = vmatpush.bf16.msra.mxu0 %v5068
    %7157 = vmatpush.bf16.msra.mxu0 %v5062
    %7158 = vmatmul.bf16.gmra.mxu0 %v7006
    %v7159 = vpop.f32.mrf.mxu0
    %v7160 = vadd.f32 %v7147, %v7159
    %v7161 = vpop.f32.mrf.mxu0
    %7162 = vdwg.mxu0
    %v7163 = vadd.f32 %v6999, %v7030
    %v7164 = vadd.f32 %v7000, %v7056
    %v7165 = vxor.u32 %v7163, 2147483648
    %v7166 = vxor.u32 %v7164, 2147483648
    %v7167 = vmul.f32 %v7165, 1.442695
    %v7168 = vpow.pop %v7167
    %v7169 = vmul.f32 %v7166, 1.442695
    %v7170 = vpow.pop %v7169
    %v7171 = vadd.f32 %v7168, 1.0
    %v7172 = vadd.f32 %v7170, 1.0
    %v7173 = vrcp.pop %v7171
    %v7174 = vmul.f32 %v7171, %v7173
    %v7175 = vsub.f32 1.0, %v7174
    %v7176 = vmul.f32 %v7173, %v7175
    %v7177 = vadd.f32 %v7173, %v7176
    %vm7178 = vweird.f32 %v7171
    %vm7179 = vweird.f32 %v7173
    %vm7180 = vmor %vm7178, %vm7179
    %v7181 = vsel %vm7180, %v7173, %v7177
    %v7182 = vand.u32 2147483647, %v7171
    %vm7183 = vcmp.eq.f32.partialorder %v7182, 8.507059e+37
    %v7184 = vand.u32 %v7171, 2147483648
    %v7185 = vor.u32 1.1754944e-38, %v7184
    %v7186 = vsel %vm7183, %v7185, %v7181
    %v7187 = vmul.f32 1.0, %v7186
    %v7188 = vrcp.pop %v7172
    %v7189 = vmul.f32 %v7172, %v7188
    %v7190 = vsub.f32 1.0, %v7189
    %v7191 = vmul.f32 %v7188, %v7190
    %v7192 = vadd.f32 %v7188, %v7191
    %vm7193 = vweird.f32 %v7172
    %vm7194 = vweird.f32 %v7188
    %vm7195 = vmor %vm7193, %vm7194
    %v7196 = vsel %vm7195, %v7188, %v7192
    %v7197 = vand.u32 2147483647, %v7172
    %vm7198 = vcmp.eq.f32.partialorder %v7197, 8.507059e+37
    %v7199 = vand.u32 %v7172, 2147483648
    %v7200 = vor.u32 1.1754944e-38, %v7199
    %v7201 = vsel %vm7198, %v7200, %v7196
    %v7202 = vmul.f32 1.0, %v7201
    %v7203 = vadd.f32 %v7001, %v7082
    %v7204 = vadd.f32 %v7002, %v7108
    %v7205 = vxor.u32 %v7203, 2147483648
    %v7206 = vxor.u32 %v7204, 2147483648
    %v7207 = vmul.f32 %v7205, 1.442695
    %v7208 = vpow.pop %v7207
    %v7209 = vmul.f32 %v7206, 1.442695
    %v7210 = vpow.pop %v7209
    %v7211 = vadd.f32 %v7208, 1.0
    %v7212 = vadd.f32 %v7210, 1.0
    %v7213 = vrcp.pop %v7211
    %v7214 = vmul.f32 %v7211, %v7213
    %v7215 = vsub.f32 1.0, %v7214
    %v7216 = vmul.f32 %v7213, %v7215
    %v7217 = vadd.f32 %v7213, %v7216
    %vm7218 = vweird.f32 %v7211
    %vm7219 = vweird.f32 %v7213
    %vm7220 = vmor %vm7218, %vm7219
    %v7221 = vsel %vm7220, %v7213, %v7217
    %v7222 = vand.u32 2147483647, %v7211
    %vm7223 = vcmp.eq.f32.partialorder %v7222, 8.507059e+37
    %v7224 = vand.u32 %v7211, 2147483648
    %v7225 = vor.u32 1.1754944e-38, %v7224
    %v7226 = vsel %vm7223, %v7225, %v7221
    %v7227 = vmul.f32 1.0, %v7226
    %v7228 = vrcp.pop %v7212
    %v7229 = vmul.f32 %v7212, %v7228
    %v7230 = vsub.f32 1.0, %v7229
    %v7231 = vmul.f32 %v7228, %v7230
    %v7232 = vadd.f32 %v7228, %v7231
    %vm7233 = vweird.f32 %v7212
    %vm7234 = vweird.f32 %v7228
    %vm7235 = vmor %vm7233, %vm7234
    %v7236 = vsel %vm7235, %v7228, %v7232
    %v7237 = vand.u32 2147483647, %v7212
    %vm7238 = vcmp.eq.f32.partialorder %v7237, 8.507059e+37
    %v7239 = vand.u32 %v7212, 2147483648
    %v7240 = vor.u32 1.1754944e-38, %v7239
    %v7241 = vsel %vm7238, %v7240, %v7236
    %v7242 = vmul.f32 1.0, %v7241
    %v7243 = vmul.f32 %v7187, %v7134
    %v7244 = vmul.f32 %v7202, %v7160
    %v7245 = vadd.f32 %v7003, %v7243
    %v7246 = vadd.f32 %v7004, %v7244
    %v7247 = vtanh.pop %v7245
    %v7248 = vtanh.pop %v7246
    %v7249 = vsub.f32 1.0, %v7227
    %v7250 = vsub.f32 1.0, %v7242
    %v7251 = vmul.f32 %v7249, %v7247
    %v7252 = vmul.f32 %v7250, %v7248
    %v7253 = vmul.f32 %v7227, %v6997
    %v7254 = vmul.f32 %v7242, %v6998
    %v7255 = vadd.f32 %v7251, %v7253
    %v7256 = vadd.f32 %v7252, %v7254
    %v7257 = vld [vmem:[#allocation2 + $0x180] sm:$0xff]
    %v7258 = vld [vmem:[#allocation2 + $0x188] sm:$0xff]
    %v7259 = vld [vmem:[#allocation2 + $0x190] sm:$0xff]
    %v7260 = vld [vmem:[#allocation2 + $0x198] sm:$0xff]
    %v7261 = vld [vmem:[#allocation2 + $0x1a0] sm:$0xff]
    %v7262 = vld [vmem:[#allocation2 + $0x1a8] sm:$0xff]
    %v7263 = vpack.c.bf16 %v7255, %v7255
    %v7264 = vpack.c.bf16 %v7256, %v7256
    %7265 = vmatpush.bf16.msra.mxu0 %v5051
    %7266 = vmatpush.bf16.msra.mxu0 %v5045
    %7267 = vmatpush.bf16.msra.mxu0 %v5039
    %7268 = vmatpush.bf16.msra.mxu0 %v5033
    %7269 = vmatpush.bf16.msra.mxu0 %v5027
    %7270 = vmatpush.bf16.msra.mxu0 %v5021
    %7271 = vmatpush.bf16.msra.mxu0 %v5015
    %7272 = vmatpush.bf16.msra.mxu0 %v5009
    %7273 = vmatmul.bf16.gmra.mxu0 %v7263
    %v7274 = vpop.f32.mrf.mxu0
    %v7275 = vadd.f32 %v4709, %v7274
    %v7276 = vpop.f32.mrf.mxu0
    %7277 = vdwg.mxu0
    %7278 = vmatpush.bf16.msra.mxu0 %v5099
    %7279 = vmatpush.bf16.msra.mxu0 %v5093
    %7280 = vmatpush.bf16.msra.mxu0 %v5087
    %7281 = vmatpush.bf16.msra.mxu0 %v5081
    %7282 = vmatpush.bf16.msra.mxu0 %v5075
    %7283 = vmatpush.bf16.msra.mxu0 %v5069
    %7284 = vmatpush.bf16.msra.mxu0 %v5063
    %7285 = vmatpush.bf16.msra.mxu0 %v5057
    %7286 = vmatmul.bf16.gmra.mxu0 %v7264
    %v7287 = vpop.f32.mrf.mxu0
    %v7288 = vadd.f32 %v7275, %v7287
    %v7289 = vpop.f32.mrf.mxu0
    %7290 = vdwg.mxu0
    %7291 = vmatpush.bf16.msra.mxu0 %v5052
    %7292 = vmatpush.bf16.msra.mxu0 %v5046
    %7293 = vmatpush.bf16.msra.mxu0 %v5040
    %7294 = vmatpush.bf16.msra.mxu0 %v5034
    %7295 = vmatpush.bf16.msra.mxu0 %v5028
    %7296 = vmatpush.bf16.msra.mxu0 %v5022
    %7297 = vmatpush.bf16.msra.mxu0 %v5016
    %7298 = vmatpush.bf16.msra.mxu0 %v5010
    %7299 = vmatmul.bf16.gmra.mxu0 %v7263
    %v7300 = vpop.f32.mrf.mxu0
    %v7301 = vadd.f32 %v4710, %v7300
    %v7302 = vpop.f32.mrf.mxu0
    %7303 = vdwg.mxu0
    %7304 = vmatpush.bf16.msra.mxu0 %v5100
    %7305 = vmatpush.bf16.msra.mxu0 %v5094
    %7306 = vmatpush.bf16.msra.mxu0 %v5088
    %7307 = vmatpush.bf16.msra.mxu0 %v5082
    %7308 = vmatpush.bf16.msra.mxu0 %v5076
    %7309 = vmatpush.bf16.msra.mxu0 %v5070
    %7310 = vmatpush.bf16.msra.mxu0 %v5064
    %7311 = vmatpush.bf16.msra.mxu0 %v5058
    %7312 = vmatmul.bf16.gmra.mxu0 %v7264
    %v7313 = vpop.f32.mrf.mxu0
    %v7314 = vadd.f32 %v7301, %v7313
    %v7315 = vpop.f32.mrf.mxu0
    %7316 = vdwg.mxu0
    %7317 = vmatpush.bf16.msra.mxu0 %v5053
    %7318 = vmatpush.bf16.msra.mxu0 %v5047
    %7319 = vmatpush.bf16.msra.mxu0 %v5041
    %7320 = vmatpush.bf16.msra.mxu0 %v5035
    %7321 = vmatpush.bf16.msra.mxu0 %v5029
    %7322 = vmatpush.bf16.msra.mxu0 %v5023
    %7323 = vmatpush.bf16.msra.mxu0 %v5017
    %7324 = vmatpush.bf16.msra.mxu0 %v5011
    %7325 = vmatmul.bf16.gmra.mxu0 %v7263
    %v7326 = vpop.f32.mrf.mxu0
    %v7327 = vadd.f32 %v4711, %v7326
    %v7328 = vpop.f32.mrf.mxu0
    %7329 = vdwg.mxu0
    %7330 = vmatpush.bf16.msra.mxu0 %v5101
    %7331 = vmatpush.bf16.msra.mxu0 %v5095
    %7332 = vmatpush.bf16.msra.mxu0 %v5089
    %7333 = vmatpush.bf16.msra.mxu0 %v5083
    %7334 = vmatpush.bf16.msra.mxu0 %v5077
    %7335 = vmatpush.bf16.msra.mxu0 %v5071
    %7336 = vmatpush.bf16.msra.mxu0 %v5065
    %7337 = vmatpush.bf16.msra.mxu0 %v5059
    %7338 = vmatmul.bf16.gmra.mxu0 %v7264
    %v7339 = vpop.f32.mrf.mxu0
    %v7340 = vadd.f32 %v7327, %v7339
    %v7341 = vpop.f32.mrf.mxu0
    %7342 = vdwg.mxu0
    %7343 = vmatpush.bf16.msra.mxu0 %v5054
    %7344 = vmatpush.bf16.msra.mxu0 %v5048
    %7345 = vmatpush.bf16.msra.mxu0 %v5042
    %7346 = vmatpush.bf16.msra.mxu0 %v5036
    %7347 = vmatpush.bf16.msra.mxu0 %v5030
    %7348 = vmatpush.bf16.msra.mxu0 %v5024
    %7349 = vmatpush.bf16.msra.mxu0 %v5018
    %7350 = vmatpush.bf16.msra.mxu0 %v5012
    %7351 = vmatmul.bf16.gmra.mxu0 %v7263
    %v7352 = vpop.f32.mrf.mxu0
    %v7353 = vadd.f32 %v4712, %v7352
    %v7354 = vpop.f32.mrf.mxu0
    %7355 = vdwg.mxu0
    %7356 = vmatpush.bf16.msra.mxu0 %v5102
    %7357 = vmatpush.bf16.msra.mxu0 %v5096
    %7358 = vmatpush.bf16.msra.mxu0 %v5090
    %7359 = vmatpush.bf16.msra.mxu0 %v5084
    %7360 = vmatpush.bf16.msra.mxu0 %v5078
    %7361 = vmatpush.bf16.msra.mxu0 %v5072
    %7362 = vmatpush.bf16.msra.mxu0 %v5066
    %7363 = vmatpush.bf16.msra.mxu0 %v5060
    %7364 = vmatmul.bf16.gmra.mxu0 %v7264
    %v7365 = vpop.f32.mrf.mxu0
    %v7366 = vadd.f32 %v7353, %v7365
    %v7367 = vpop.f32.mrf.mxu0
    %7368 = vdwg.mxu0
    %7369 = vmatpush.bf16.msra.mxu0 %v5055
    %7370 = vmatpush.bf16.msra.mxu0 %v5049
    %7371 = vmatpush.bf16.msra.mxu0 %v5043
    %7372 = vmatpush.bf16.msra.mxu0 %v5037
    %7373 = vmatpush.bf16.msra.mxu0 %v5031
    %7374 = vmatpush.bf16.msra.mxu0 %v5025
    %7375 = vmatpush.bf16.msra.mxu0 %v5019
    %7376 = vmatpush.bf16.msra.mxu0 %v5013
    %7377 = vmatmul.bf16.gmra.mxu0 %v7263
    %v7378 = vpop.f32.mrf.mxu0
    %v7379 = vadd.f32 %v4713, %v7378
    %v7380 = vpop.f32.mrf.mxu0
    %7381 = vdwg.mxu0
    %7382 = vmatpush.bf16.msra.mxu0 %v5103
    %7383 = vmatpush.bf16.msra.mxu0 %v5097
    %7384 = vmatpush.bf16.msra.mxu0 %v5091
    %7385 = vmatpush.bf16.msra.mxu0 %v5085
    %7386 = vmatpush.bf16.msra.mxu0 %v5079
    %7387 = vmatpush.bf16.msra.mxu0 %v5073
    %7388 = vmatpush.bf16.msra.mxu0 %v5067
    %7389 = vmatpush.bf16.msra.mxu0 %v5061
    %7390 = vmatmul.bf16.gmra.mxu0 %v7264
    %v7391 = vpop.f32.mrf.mxu0
    %v7392 = vadd.f32 %v7379, %v7391
    %v7393 = vpop.f32.mrf.mxu0
    %7394 = vdwg.mxu0
    %7395 = vmatpush.bf16.msra.mxu0 %v5056
    %7396 = vmatpush.bf16.msra.mxu0 %v5050
    %7397 = vmatpush.bf16.msra.mxu0 %v5044
    %7398 = vmatpush.bf16.msra.mxu0 %v5038
    %7399 = vmatpush.bf16.msra.mxu0 %v5032
    %7400 = vmatpush.bf16.msra.mxu0 %v5026
    %7401 = vmatpush.bf16.msra.mxu0 %v5020
    %7402 = vmatpush.bf16.msra.mxu0 %v5014
    %7403 = vmatmul.bf16.gmra.mxu0 %v7263
    %v7404 = vpop.f32.mrf.mxu0
    %v7405 = vadd.f32 %v4714, %v7404
    %v7406 = vpop.f32.mrf.mxu0
    %7407 = vdwg.mxu0
    %7408 = vmatpush.bf16.msra.mxu0 %v5104
    %7409 = vmatpush.bf16.msra.mxu0 %v5098
    %7410 = vmatpush.bf16.msra.mxu0 %v5092
    %7411 = vmatpush.bf16.msra.mxu0 %v5086
    %7412 = vmatpush.bf16.msra.mxu0 %v5080
    %7413 = vmatpush.bf16.msra.mxu0 %v5074
    %7414 = vmatpush.bf16.msra.mxu0 %v5068
    %7415 = vmatpush.bf16.msra.mxu0 %v5062
    %7416 = vmatmul.bf16.gmra.mxu0 %v7264
    %v7417 = vpop.f32.mrf.mxu0
    %v7418 = vadd.f32 %v7405, %v7417
    %v7419 = vpop.f32.mrf.mxu0
    %7420 = vdwg.mxu0
    %v7421 = vadd.f32 %v7257, %v7288
    %v7422 = vadd.f32 %v7258, %v7314
    %v7423 = vxor.u32 %v7421, 2147483648
    %v7424 = vxor.u32 %v7422, 2147483648
    %v7425 = vmul.f32 %v7423, 1.442695
    %v7426 = vpow.pop %v7425
    %v7427 = vmul.f32 %v7424, 1.442695
    %v7428 = vpow.pop %v7427
    %v7429 = vadd.f32 %v7426, 1.0
    %v7430 = vadd.f32 %v7428, 1.0
    %v7431 = vrcp.pop %v7429
    %v7432 = vmul.f32 %v7429, %v7431
    %v7433 = vsub.f32 1.0, %v7432
    %v7434 = vmul.f32 %v7431, %v7433
    %v7435 = vadd.f32 %v7431, %v7434
    %vm7436 = vweird.f32 %v7429
    %vm7437 = vweird.f32 %v7431
    %vm7438 = vmor %vm7436, %vm7437
    %v7439 = vsel %vm7438, %v7431, %v7435
    %v7440 = vand.u32 2147483647, %v7429
    %vm7441 = vcmp.eq.f32.partialorder %v7440, 8.507059e+37
    %v7442 = vand.u32 %v7429, 2147483648
    %v7443 = vor.u32 1.1754944e-38, %v7442
    %v7444 = vsel %vm7441, %v7443, %v7439
    %v7445 = vmul.f32 1.0, %v7444
    %v7446 = vrcp.pop %v7430
    %v7447 = vmul.f32 %v7430, %v7446
    %v7448 = vsub.f32 1.0, %v7447
    %v7449 = vmul.f32 %v7446, %v7448
    %v7450 = vadd.f32 %v7446, %v7449
    %vm7451 = vweird.f32 %v7430
    %vm7452 = vweird.f32 %v7446
    %vm7453 = vmor %vm7451, %vm7452
    %v7454 = vsel %vm7453, %v7446, %v7450
    %v7455 = vand.u32 2147483647, %v7430
    %vm7456 = vcmp.eq.f32.partialorder %v7455, 8.507059e+37
    %v7457 = vand.u32 %v7430, 2147483648
    %v7458 = vor.u32 1.1754944e-38, %v7457
    %v7459 = vsel %vm7456, %v7458, %v7454
    %v7460 = vmul.f32 1.0, %v7459
    %v7461 = vadd.f32 %v7259, %v7340
    %v7462 = vadd.f32 %v7260, %v7366
    %v7463 = vxor.u32 %v7461, 2147483648
    %v7464 = vxor.u32 %v7462, 2147483648
    %v7465 = vmul.f32 %v7463, 1.442695
    %v7466 = vpow.pop %v7465
    %v7467 = vmul.f32 %v7464, 1.442695
    %v7468 = vpow.pop %v7467
    %v7469 = vadd.f32 %v7466, 1.0
    %v7470 = vadd.f32 %v7468, 1.0
    %v7471 = vrcp.pop %v7469
    %v7472 = vmul.f32 %v7469, %v7471
    %v7473 = vsub.f32 1.0, %v7472
    %v7474 = vmul.f32 %v7471, %v7473
    %v7475 = vadd.f32 %v7471, %v7474
    %vm7476 = vweird.f32 %v7469
    %vm7477 = vweird.f32 %v7471
    %vm7478 = vmor %vm7476, %vm7477
    %v7479 = vsel %vm7478, %v7471, %v7475
    %v7480 = vand.u32 2147483647, %v7469
    %vm7481 = vcmp.eq.f32.partialorder %v7480, 8.507059e+37
    %v7482 = vand.u32 %v7469, 2147483648
    %v7483 = vor.u32 1.1754944e-38, %v7482
    %v7484 = vsel %vm7481, %v7483, %v7479
    %v7485 = vmul.f32 1.0, %v7484
    %v7486 = vrcp.pop %v7470
    %v7487 = vmul.f32 %v7470, %v7486
    %v7488 = vsub.f32 1.0, %v7487
    %v7489 = vmul.f32 %v7486, %v7488
    %v7490 = vadd.f32 %v7486, %v7489
    %vm7491 = vweird.f32 %v7470
    %vm7492 = vweird.f32 %v7486
    %vm7493 = vmor %vm7491, %vm7492
    %v7494 = vsel %vm7493, %v7486, %v7490
    %v7495 = vand.u32 2147483647, %v7470
    %vm7496 = vcmp.eq.f32.partialorder %v7495, 8.507059e+37
    %v7497 = vand.u32 %v7470, 2147483648
    %v7498 = vor.u32 1.1754944e-38, %v7497
    %v7499 = vsel %vm7496, %v7498, %v7494
    %v7500 = vmul.f32 1.0, %v7499
    %v7501 = vmul.f32 %v7445, %v7392
    %v7502 = vmul.f32 %v7460, %v7418
    %v7503 = vadd.f32 %v7261, %v7501
    %v7504 = vadd.f32 %v7262, %v7502
    %v7505 = vtanh.pop %v7503
    %v7506 = vtanh.pop %v7504
    %v7507 = vsub.f32 1.0, %v7485
    %v7508 = vsub.f32 1.0, %v7500
    %v7509 = vmul.f32 %v7507, %v7505
    %v7510 = vmul.f32 %v7508, %v7506
    %v7511 = vmul.f32 %v7485, %v7255
    %v7512 = vmul.f32 %v7500, %v7256
    %v7513 = vadd.f32 %v7509, %v7511
    %v7514 = vadd.f32 %v7510, %v7512
    %v7515 = vadd.f32 %v7513, %v2122
    %v7516 = vadd.f32 %v7514, %v2123
    %v7517 = vpack.c.bf16 %v7515, %v7515
    %v7518 = vpack.c.bf16 %v7516, %v7516
    %v7519 = vld [vmem:[#allocation12] sm:$0xf]
    %v7520 = vld [vmem:[#allocation12 + $0x4] sm:$0xf]
    %v7521 = vld [vmem:[#allocation12 + $0x8] sm:$0xf]
    %v7522 = vld [vmem:[#allocation12 + $0xc] sm:$0xf]
    %v7523 = vld [vmem:[#allocation12 + $0x10] sm:$0xf]
    %v7524 = vld [vmem:[#allocation12 + $0x14] sm:$0xf]
    %v7525 = vld [vmem:[#allocation12 + $0x18] sm:$0xf]
    %v7526 = vld [vmem:[#allocation12 + $0x1c] sm:$0xf]
    %v7527 = vld [vmem:[#allocation12 + $0x20] sm:$0xf]
    %v7528 = vld [vmem:[#allocation12 + $0x24] sm:$0xf]
    %v7529 = vld [vmem:[#allocation12 + $0x28] sm:$0xf]
    %v7530 = vld [vmem:[#allocation12 + $0x2c] sm:$0xf]
    %v7531 = vld [vmem:[#allocation12 + $0x30] sm:$0xf]
    %v7532 = vld [vmem:[#allocation12 + $0x34] sm:$0xf]
    %v7533 = vld [vmem:[#allocation12 + $0x38] sm:$0xf]
    %v7534 = vld [vmem:[#allocation12 + $0x3c] sm:$0xf]
    %v7535 = vld [vmem:[#allocation12 + $0x40] sm:$0xf]
    %v7536 = vld [vmem:[#allocation12 + $0x44] sm:$0xf]
    %v7537 = vld [vmem:[#allocation12 + $0x48] sm:$0xf]
    %v7538 = vld [vmem:[#allocation12 + $0x4c] sm:$0xf]
    %v7539 = vld [vmem:[#allocation12 + $0x50] sm:$0xf]
    %v7540 = vld [vmem:[#allocation12 + $0x54] sm:$0xf]
    %v7541 = vld [vmem:[#allocation12 + $0x58] sm:$0xf]
    %v7542 = vld [vmem:[#allocation12 + $0x5c] sm:$0xf]
    %v7543 = vld [vmem:[#allocation12 + $0x60] sm:$0xf]
    %v7544 = vld [vmem:[#allocation12 + $0x64] sm:$0xf]
    %v7545 = vld [vmem:[#allocation12 + $0x68] sm:$0xf]
    %v7546 = vld [vmem:[#allocation12 + $0x6c] sm:$0xf]
    %v7547 = vld [vmem:[#allocation12 + $0x70] sm:$0xf]
    %v7548 = vld [vmem:[#allocation12 + $0x74] sm:$0xf]
    %v7549 = vld [vmem:[#allocation12 + $0x78] sm:$0xf]
    %v7550 = vld [vmem:[#allocation12 + $0x7c] sm:$0xf]
    %v7551 = vld [vmem:[%s10] sm:$0x1]
    %v7553 = vperm.slane %v7551, 0
    %v7587 = vunpack.c.l.b16 %v7519
    %v7588 = vunpack.c.l.b16 %v7520
    %v7589 = vunpack.c.l.b16 %v7521
    %v7590 = vunpack.c.l.b16 %v7522
    %v7591 = vunpack.c.l.b16 %v7523
    %v7592 = vunpack.c.l.b16 %v7524
    %v7593 = vunpack.c.l.b16 %v7525
    %v7594 = vunpack.c.l.b16 %v7526
    %v7595 = vunpack.c.l.b16 %v7527
    %v7596 = vunpack.c.l.b16 %v7528
    %v7597 = vunpack.c.l.b16 %v7529
    %v7598 = vunpack.c.l.b16 %v7530
    %v7599 = vunpack.c.l.b16 %v7531
    %v7600 = vunpack.c.l.b16 %v7532
    %v7601 = vunpack.c.l.b16 %v7533
    %v7602 = vunpack.c.l.b16 %v7534
    %v7603 = vunpack.c.l.b16 %v7535
    %v7604 = vunpack.c.l.b16 %v7536
    %v7605 = vunpack.c.l.b16 %v7537
    %v7606 = vunpack.c.l.b16 %v7538
    %v7607 = vunpack.c.l.b16 %v7539
    %v7608 = vunpack.c.l.b16 %v7540
    %v7609 = vunpack.c.l.b16 %v7541
    %v7610 = vunpack.c.l.b16 %v7542
    %v7611 = vunpack.c.l.b16 %v7543
    %v7612 = vunpack.c.l.b16 %v7544
    %v7613 = vunpack.c.l.b16 %v7545
    %v7614 = vunpack.c.l.b16 %v7546
    %v7615 = vunpack.c.l.b16 %v7547
    %v7616 = vunpack.c.l.b16 %v7548
    %v7617 = vunpack.c.l.b16 %v7549
    %v7618 = vunpack.c.l.b16 %v7550
    %v7619 = vpack.c.b16 %v7588, %v7587
    %v7620 = vpack.c.b16 %v7590, %v7589
    %v7621 = vpack.c.b16 %v7592, %v7591
    %v7622 = vpack.c.b16 %v7594, %v7593
    %v7623 = vpack.c.b16 %v7596, %v7595
    %v7624 = vpack.c.b16 %v7598, %v7597
    %v7625 = vpack.c.b16 %v7600, %v7599
    %v7626 = vpack.c.b16 %v7602, %v7601
    %v7627 = vpack.c.b16 %v7604, %v7603
    %v7628 = vpack.c.b16 %v7606, %v7605
    %v7629 = vpack.c.b16 %v7608, %v7607
    %v7630 = vpack.c.b16 %v7610, %v7609
    %v7631 = vpack.c.b16 %v7612, %v7611
    %v7632 = vpack.c.b16 %v7614, %v7613
    %v7633 = vpack.c.b16 %v7616, %v7615
    %v7634 = vpack.c.b16 %v7618, %v7617
    %7651 = vmatpush.bf16.msra.mxu0 %v7626
    %7652 = vmatpush.bf16.msra.mxu0 %v7625
    %7653 = vmatpush.bf16.msra.mxu0 %v7624
    %7654 = vmatpush.bf16.msra.mxu0 %v7623
    %7655 = vmatpush.bf16.msra.mxu0 %v7622
    %7656 = vmatpush.bf16.msra.mxu0 %v7621
    %7657 = vmatpush.bf16.msra.mxu0 %v7620
    %7658 = vmatpush.bf16.msra.mxu0 %v7619
    %7659 = vmatmul.bf16.gmra.mxu0 %v7517
    %v7660 = vpop.f32.mrf.mxu0
    %v7661 = vadd.f32 %v7553, %v7660
    %v7662 = vpop.f32.mrf.mxu0
    %7663 = vdwg.mxu0
    %7664 = vmatpush.bf16.msra.mxu0 %v7634
    %7665 = vmatpush.bf16.msra.mxu0 %v7633
    %7666 = vmatpush.bf16.msra.mxu0 %v7632
    %7667 = vmatpush.bf16.msra.mxu0 %v7631
    %7668 = vmatpush.bf16.msra.mxu0 %v7630
    %7669 = vmatpush.bf16.msra.mxu0 %v7629
    %7670 = vmatpush.bf16.msra.mxu0 %v7628
    %7671 = vmatpush.bf16.msra.mxu0 %v7627
    %7672 = vmatmul.bf16.gmra.mxu0 %v7518
    %v7673 = vpop.f32.mrf.mxu0
    %v7674 = vadd.f32 %v7661, %v7673
    %v7675 = vpop.f32.mrf.mxu0
    %7676 = vdwg.mxu0
    %v7677 = vmax.f32 %v7674, 0.0
    %v7678 = vpack.c.bf16 %v7677, %v7677
    %7679 = vst [vmem:[#allocation14] sm:$0xf] %v7678
    // Predicated region
    $region70: #{tpu_custom_call.1} parent=1 // pred_check
      _
    $region71: #{tpu_custom_call.1} parent=1 // pred_check_branch
      %7681 = sbr.rel (0) target = $region73
    $region72: #{tpu_custom_call.1} parent=1 // pred_region
      %7683 = vsyncadd [#allocation5], 0
      %s7685 = sshll.u32 [#allocation14], 4
      %s7686 = int_to_ptr.vmem [resolvable:$true] %s7685
      %s7687 = sshll.u32 %s11, 4
      %s7688 = int_to_ptr.hbm [resolvable:$true] %s7687
      %7690 = dma.vmem_to_hbm [thread:$0]  %s7686, 64, %s7688, [#allocation5]
    $region73: #{tpu_custom_call.1} parent=1 // pred_fallthru
      _
    // Predicated region
    $region74: #{tpu_custom_call.1} parent=1 // pred_check
      _
    $region75: #{tpu_custom_call.1} parent=1 // pred_check_branch
      %7692 = sbr.rel (0) target = $region77
    $region76: #{tpu_custom_call.1} parent=1 // pred_region
      %7694 = dma.done [#allocation5], 64
    $region77: #{tpu_custom_call.1} parent=1 // pred_fallthru
      _
    %7695 = vsyncpa [#allocation4], 1
    %7696 = vsyncpa [#allocation7], 1
    %7697 = vsyncpa [#allocation10], 1
    %7698 = vsyncpa [#allocation13], 1
    %7699 = vsyncpa [#allocation5], 1

</llo_original>
